<compile_context>
chip_gen: v7x
topology: tpu7x:2x2x1
jax: 0.10.0
libtpu: 0.0.40
codegen_flags: <defaults>
</compile_context>

<pallas_src>
import functools

import jax
import jax.numpy as jnp
from jax.experimental import pallas as pl
from jax.experimental.pallas import tpu as pltpu

ENC_HIDDEN = 1500  # hard-coded in the torch module
ENC_PAD = 1536     # padded to a multiple of 128 lanes (zero-padded weights)


# ----------------------------------------------------------------------------
# Pallas kernel: encoder MLP -> fused latent heads -> reparameterization ->
# decoder MLP -> (pre-scaled) group-sparse linear -> per-position log_softmax
# over the alphabet axis.  Weights arrive in bf16; all accumulation is f32.
# ----------------------------------------------------------------------------
def _vae_kernel(A, L, latent,
                x_ref, we1_ref, be1_ref, we2_ref, be2_ref,
                wlat_ref, blat_ref, eps_ref,
                wd1_ref, bd1_ref, wd2_ref, bd2_ref,
                wsc_ref, bsp_ref,
                xhat_ref, mu_ref, logvar_ref):
    f32 = jnp.float32
    bf16 = jnp.bfloat16

    x = x_ref[...].astype(bf16)                                      # (B, A*L)

    # ---- encoder: Linear+ReLU, Linear+ReLU (K padded to 1536) ----
    h = jnp.dot(x, we1_ref[...], preferred_element_type=f32) + be1_ref[...]
    h = jnp.maximum(h, 0.0)
    h = jnp.dot(h.astype(bf16), we2_ref[...],
                preferred_element_type=f32) + be2_ref[...]
    h = jnp.maximum(h, 0.0)

    # ---- fused latent heads: [fc21 | fc22] in a single matmul ----
    lat = jnp.dot(h.astype(bf16), wlat_ref[...],
                  preferred_element_type=f32) + blat_ref[...]        # (B, 2*latent)
    mu = lat[:, :latent]
    logvar = lat[:, latent:2 * latent]
    mu_ref[...] = mu
    logvar_ref[...] = logvar

    # ---- reparameterization:  z = mu + eps * exp(0.5 * logvar) ----
    z = mu + eps_ref[...] * jnp.exp(0.5 * logvar)

    # ---- decoder: Linear+ReLU, Linear+Sigmoid (dropout = identity) ----
    d = jnp.dot(z.astype(bf16), wd1_ref[...],
                preferred_element_type=f32) + bd1_ref[...]
    d = jnp.maximum(d, 0.0)
    d = jnp.dot(d.astype(bf16), wd2_ref[...],
                preferred_element_type=f32) + bd2_ref[...]
    d = jax.nn.sigmoid(d)

    # ---- sparse decode: softplus(lambda) already folded into wsc / bsp ----
    logits = jnp.dot(d.astype(bf16), wsc_ref[...],
                     preferred_element_type=f32) + bsp_ref[...]      # (B, A*L)

    # ---- log_softmax over the alphabet axis ----
    # column index = a*L + l  ->  reduce over a for each position l.
    m = logits[:, 0:L]
    for a in range(1, A):
        m = jnp.maximum(m, logits[:, a * L:(a + 1) * L])
    s = jnp.zeros_like(m)
    for a in range(A):
        s = s + jnp.exp(logits[:, a * L:(a + 1) * L] - m)
    lse = m + jnp.log(s)                                             # (B, L)
    # single lane-dense full-width store (no masked partial stores)
    xhat_ref[...] = logits - jnp.tile(lse, (1, A))


# ----------------------------------------------------------------------------
# Parameter construction (deterministic, mirrors the torch __init__).
# ----------------------------------------------------------------------------
def make_params(key, cfg):
    A, L = cfg['alphabet_size'], cfg['seq_len']
    input_size = A * L
    latent = cfg['latent_size']
    H4 = cfg['hidden_size'] // 4
    shared = cfg['shared_size']
    repeat = cfg['repeat']
    ks = list(jax.random.split(key, 10))

    def xavier(k, out_f, in_f):
        std = (2.0 / (in_f + out_f)) ** 0.5
        return (std * jax.random.normal(k, (out_f, in_f))).astype(jnp.float32)

    def bayes_linear(k, out_f, in_f, bias=True):
        std = (2.0 / (in_f + out_f)) ** 0.5
        d = {'w_mean': (std * jax.random.normal(k, (out_f, in_f))).astype(jnp.float32),
             'w_logvar': jnp.full((out_f, in_f), -5.0, jnp.float32)}
        if bias:
            d['b_mean'] = jnp.full((out_f,), 0.1, jnp.float32)
            d['b_logvar'] = jnp.full((out_f,), -10.0, jnp.float32)
        return d

    p = {}
    # encoder (non-Bayesian): xavier weights, bias 0.1
    p['enc1_w'] = xavier(ks[0], ENC_HIDDEN, input_size)
    p['enc1_b'] = jnp.full((ENC_HIDDEN,), 0.1, jnp.float32)
    p['enc2_w'] = xavier(ks[1], ENC_HIDDEN, ENC_HIDDEN)
    p['enc2_b'] = jnp.full((ENC_HIDDEN,), 0.1, jnp.float32)
    p['fc21_w'] = xavier(ks[2], latent, ENC_HIDDEN)
    p['fc21_b'] = jnp.full((latent,), 0.1, jnp.float32)
    p['fc22_w'] = xavier(ks[3], latent, ENC_HIDDEN)
    p['fc22_b'] = jnp.full((latent,), -5.0, jnp.float32)
    # Bayesian decoder linears + group-sparsity factors
    p['dec1'] = bayes_linear(ks[4], 100, latent)           # Linear(latent, 100)
    p['dec2'] = bayes_linear(ks[5], H4, 100)               # Linear(100, hidden//4)
    p['W'] = bayes_linear(ks[6], H4 * L, shared, bias=False)
    p['D'] = bayes_linear(ks[7], shared, A, bias=False)
    p['S'] = bayes_linear(ks[8], H4 // repeat, L, bias=False)
    p['lambda_mean'] = jnp.array([1.0], jnp.float32)
    p['lambda_logvar'] = jnp.array([-5.0], jnp.float32)
    p['b_mean'] = jnp.full((input_size,), 0.1, jnp.float32)
    p['b_logvar'] = jnp.full((input_size,), -5.0, jnp.float32)
    return p


def _sample(mean, logvar, key):
    # Normal(mean, exp(0.5*logvar)).rsample()
    return mean + jax.random.normal(key, mean.shape, mean.dtype) * jnp.exp(0.5 * logvar)


def _build_w_scale(Ww, Dw, Sw, H4, A, L, repeat):
    # Parameter-only construction (no batch dimension) -> kept as JAX glue.
    WD = jnp.dot(Ww, Dw)                         # (H4*L, A)
    WD = WD.reshape(H4, A, L)                    # torch .view (row-major reinterpret)
    S = jax.nn.sigmoid(jnp.tile(Sw, (repeat, 1)))[:, None, :]   # (H4, 1, L)
    return (WD * S).reshape(H4, A * L)           # (H4, input_size)


def build_kernel_args(x, params, key, cfg):
    A, L = cfg['alphabet_size'], cfg['seq_len']
    latent = cfg['latent_size']
    H4 = cfg['hidden_size'] // 4
    input_size = A * L
    B = x.shape[0]
    keys = jax.random.split(key, 10)

    # forward-pre-hook sampling of Bayesian weights / biases (wrapper-side)
    wd1 = _sample(params['dec1']['w_mean'], params['dec1']['w_logvar'], keys[0])
    bd1 = _sample(params['dec1']['b_mean'], params['dec1']['b_logvar'], keys[1])
    wd2 = _sample(params['dec2']['w_mean'], params['dec2']['w_logvar'], keys[2])
    bd2 = _sample(params['dec2']['b_mean'], params['dec2']['b_logvar'], keys[3])
    Ww = _sample(params['W']['w_mean'], params['W']['w_logvar'], keys[4])
    Dw = _sample(params['D']['w_mean'], params['D']['w_logvar'], keys[5])
    Sw = _sample(params['S']['w_mean'], params['S']['w_logvar'], keys[6])
    lam = _sample(params['lambda_mean'], params['lambda_logvar'], keys[7])
    b_sp = _sample(params['b_mean'], params['b_logvar'], keys[8])
    eps_z = jax.random.normal(keys[9], (B, latent), jnp.float32)

    # (1 + exp(lam)).log() is parameter-only -> fold (stable softplus) into the
    # sparse-decode weight and bias so the kernel never sees the scalar.
    scale = jax.nn.softplus(lam)[0]
    w_scale = _build_w_scale(Ww, Dw, Sw, H4, A, L, cfg['repeat']) * scale
    b_sp = b_sp * scale

    x2 = x.reshape(B, input_size)                # == torch x.view(-1, input_size)

    # Pad the 1500-wide encoder hidden dim to 1536 with zeros (math unchanged:
    # padded activations are relu(0)=0 and meet zero weight rows downstream).
    pad = ENC_PAD - ENC_HIDDEN
    bf = lambda a: a.astype(jnp.bfloat16)

    we1 = jnp.pad(params['enc1_w'].T, ((0, 0), (0, pad)))             # (in, 1536)
    be1 = jnp.pad(params['enc1_b'], (0, pad))[None, :]                # (1, 1536)
    we2 = jnp.pad(params['enc2_w'].T, ((0, pad), (0, pad)))           # (1536, 1536)
    be2 = jnp.pad(params['enc2_b'], (0, pad))[None, :]                # (1, 1536)
    # fused latent heads: [fc21 | fc22]
    wlat = jnp.pad(jnp.concatenate([params['fc21_w'].T, params['fc22_w'].T], axis=1),
                   ((0, pad), (0, 0)))                                # (1536, 2*latent)
    blat = jnp.concatenate([params['fc21_b'], params['fc22_b']])[None, :]

    args = (
        x2,
        bf(we1), be1,
        bf(we2), be2,
        bf(wlat), blat,
        eps_z,
        bf(wd1.T), bd1[None, :],
        bf(wd2.T), bd2[None, :],
        bf(w_scale), b_sp[None, :],
    )
    return args


def vae_bayesian_forward(x, params, key, cfg):
    A, L = cfg['alphabet_size'], cfg['seq_len']
    latent = cfg['latent_size']
    input_size = A * L
    B = x.shape[0]
    args = build_kernel_args(x, params, key, cfg)

    kernel = functools.partial(_vae_kernel, A, L, latent)
    vmem_spec = pl.BlockSpec(memory_space=pltpu.MemorySpace.VMEM)
    xhat_flat, mu, logvar = pl.pallas_call(
        kernel,
        out_shape=(
            jax.ShapeDtypeStruct((B, input_size), jnp.float32),
            jax.ShapeDtypeStruct((B, latent), jnp.float32),
            jax.ShapeDtypeStruct((B, latent), jnp.float32),
        ),
        in_specs=[vmem_spec] * len(args),
        out_specs=(vmem_spec, vmem_spec, vmem_spec),
        # real footprint is ~6 MiB (bf16 enc2 ~4.6 MiB); 24 MiB leaves compiler
        # headroom and stays well inside v7x's 64 MiB physical VMEM.
        compiler_params=pltpu.CompilerParams(vmem_limit_bytes=24 * 1024 * 1024),
    )(*args)

    xhat = xhat_flat.reshape(B, A, L)            # == torch x.view(-1, alphabet, seq_len)
    return xhat, mu, logvar


# Pure-JAX reference on the exact same (sampled, bf16-quantized) kernel args.
def _ref_forward(args, A, L, latent):
    (x, we1, be1, we2, be2, wlat, blat, eps,
     wd1, bd1, wd2, bd2, wsc, bsp) = args
    f = lambda a: a.astype(jnp.float32)
    hp = jax.lax.Precision.HIGHEST
    h = jax.nn.relu(jnp.dot(x, f(we1), precision=hp) + be1)
    h = jax.nn.relu(jnp.dot(h, f(we2), precision=hp) + be2)
    lat = jnp.dot(h, f(wlat), precision=hp) + blat
    mu, logvar = lat[:, :latent], lat[:, latent:2 * latent]
    z = mu + eps * jnp.exp(0.5 * logvar)
    d = jax.nn.relu(jnp.dot(z, f(wd1), precision=hp) + bd1)
    d = jax.nn.sigmoid(jnp.dot(d, f(wd2), precision=hp) + bd2)
    logits = jnp.dot(d, f(wsc), precision=hp) + bsp
    B = x.shape[0]
    xhat = jax.nn.log_softmax(logits.reshape(B, A, L), axis=1)
    return xhat, mu, logvar


if __name__ == "__main__":
    cfg = dict(neff=100.0, hidden_size=32, latent_size=8, alphabet_size=4,
               seq_len=8, device=None, bayesian=True, beta=1.0,
               shared_size=16, repeat=2, group_sparsity=True, dropout=0.0)

    key = jax.random.PRNGKey(0)
    kp, kx, ks = jax.random.split(key, 3)
    params = make_params(kp, cfg)

    B = 2
    x = jax.random.uniform(kx, (B, cfg['alphabet_size'], cfg['seq_len']),
                           dtype=jnp.float32)

    xhat, mu, logvar = vae_bayesian_forward(x, params, ks, cfg)
    jax.block_until_ready((xhat, mu, logvar))

    # sanity checks
    assert xhat.shape == (B, cfg['alphabet_size'], cfg['seq_len'])
    assert mu.shape == (B, cfg['latent_size']) and logvar.shape == (B, cfg['latent_size'])
    assert bool(jnp.all(jnp.isfinite(xhat)))
    # log_softmax over alphabet must normalize
    probs_sum = jnp.exp(xhat).sum(axis=1)
    assert bool(jnp.allclose(probs_sum, 1.0, atol=1e-4))

    # compare against a plain-JAX reference using the identical sampled args
    ref_args = build_kernel_args(x, params, ks, cfg)
    xhat_r, mu_r, logvar_r = _ref_forward(
        ref_args, cfg['alphabet_size'], cfg['seq_len'], cfg['latent_size'])
    assert bool(jnp.allclose(xhat, xhat_r, atol=2e-2, rtol=2e-2))
    assert bool(jnp.allclose(mu, mu_r, atol=2e-2, rtol=2e-2))
    assert bool(jnp.allclose(logvar, logvar_r, atol=2e-2, rtol=2e-2))

    print("KERNEL_OK")
</pallas_src>

<mosaic_0001>
module attributes {stable_mosaic.version = 11 : i64} {
  func.func @_vae_kernel(%arg0: memref<2x32xf32, #tpu.memory_space<vmem>>, %arg1: memref<32x1536xbf16, #tpu.memory_space<vmem>>, %arg2: memref<1x1536xf32, #tpu.memory_space<vmem>>, %arg3: memref<1536x1536xbf16, #tpu.memory_space<vmem>>, %arg4: memref<1x1536xf32, #tpu.memory_space<vmem>>, %arg5: memref<1536x16xbf16, #tpu.memory_space<vmem>>, %arg6: memref<1x16xf32, #tpu.memory_space<vmem>>, %arg7: memref<2x8xf32, #tpu.memory_space<vmem>>, %arg8: memref<8x100xbf16, #tpu.memory_space<vmem>>, %arg9: memref<1x100xf32, #tpu.memory_space<vmem>>, %arg10: memref<100x8xbf16, #tpu.memory_space<vmem>>, %arg11: memref<1x8xf32, #tpu.memory_space<vmem>>, %arg12: memref<8x32xbf16, #tpu.memory_space<vmem>>, %arg13: memref<1x32xf32, #tpu.memory_space<vmem>>, %arg14: memref<2x32xf32, #tpu.memory_space<vmem>>, %arg15: memref<2x8xf32, #tpu.memory_space<vmem>>, %arg16: memref<2x8xf32, #tpu.memory_space<vmem>>) attributes {dimension_semantics = [], scalar_prefetch = 0 : i64, scratch_operands = 0 : i64, tpu.core_type = #tpu.core_type<tc>} {
    %c0 = arith.constant 0 : index
    %c0_0 = arith.constant 0 : index
    %0 = vector.load %arg0[%c0, %c0_0] : memref<2x32xf32, #tpu.memory_space<vmem>>, vector<2x32xf32>
    %1 = arith.truncf %0 : vector<2x32xf32> to vector<2x32xbf16>
    %c0_1 = arith.constant 0 : index
    %c0_2 = arith.constant 0 : index
    %2 = vector.load %arg1[%c0_1, %c0_2] : memref<32x1536xbf16, #tpu.memory_space<vmem>>, vector<32x1536xbf16>
    %cst = arith.constant dense<0.000000e+00> : vector<2x1536xf32>
    %3 = tpu.matmul %1, %2, %cst {dimension_numbers = #tpu.dot_dimension_numbers<[1], [0], [0], [1], [0, 0, 1, 1], [], []>} : vector<2x32xbf16>, vector<32x1536xbf16>, vector<2x1536xf32> -> vector<2x1536xf32>
    %c0_3 = arith.constant 0 : index
    %c0_4 = arith.constant 0 : index
    %4 = vector.load %arg2[%c0_3, %c0_4] : memref<1x1536xf32, #tpu.memory_space<vmem>>, vector<1x1536xf32>
    %5 = vector.broadcast %4 : vector<1x1536xf32> to vector<2x1536xf32>
    %6 = arith.addf %3, %5 : vector<2x1536xf32>
    %cst_5 = arith.constant 0.000000e+00 : f32
    %7 = vector.broadcast %cst_5 : f32 to vector<2x1536xf32>
    %8 = arith.maximumf %6, %7 : vector<2x1536xf32>
    %9 = arith.truncf %8 : vector<2x1536xf32> to vector<2x1536xbf16>
    %c0_6 = arith.constant 0 : index
    %c0_7 = arith.constant 0 : index
    %10 = vector.load %arg3[%c0_6, %c0_7] : memref<1536x1536xbf16, #tpu.memory_space<vmem>>, vector<1536x1536xbf16>
    %cst_8 = arith.constant dense<0.000000e+00> : vector<2x1536xf32>
    %11 = tpu.matmul %9, %10, %cst_8 {dimension_numbers = #tpu.dot_dimension_numbers<[1], [0], [0], [1], [0, 0, 1, 1], [], []>} : vector<2x1536xbf16>, vector<1536x1536xbf16>, vector<2x1536xf32> -> vector<2x1536xf32>
    %c0_9 = arith.constant 0 : index
    %c0_10 = arith.constant 0 : index
    %12 = vector.load %arg4[%c0_9, %c0_10] : memref<1x1536xf32, #tpu.memory_space<vmem>>, vector<1x1536xf32>
    %13 = vector.broadcast %12 : vector<1x1536xf32> to vector<2x1536xf32>
    %14 = arith.addf %11, %13 : vector<2x1536xf32>
    %cst_11 = arith.constant 0.000000e+00 : f32
    %15 = vector.broadcast %cst_11 : f32 to vector<2x1536xf32>
    %16 = arith.maximumf %14, %15 : vector<2x1536xf32>
    %17 = arith.truncf %16 : vector<2x1536xf32> to vector<2x1536xbf16>
    %c0_12 = arith.constant 0 : index
    %c0_13 = arith.constant 0 : index
    %18 = vector.load %arg5[%c0_12, %c0_13] : memref<1536x16xbf16, #tpu.memory_space<vmem>>, vector<1536x16xbf16>
    %cst_14 = arith.constant dense<0.000000e+00> : vector<2x16xf32>
    %19 = tpu.matmul %17, %18, %cst_14 {dimension_numbers = #tpu.dot_dimension_numbers<[1], [0], [0], [1], [0, 0, 1, 1], [], []>} : vector<2x1536xbf16>, vector<1536x16xbf16>, vector<2x16xf32> -> vector<2x16xf32>
    %c0_15 = arith.constant 0 : index
    %c0_16 = arith.constant 0 : index
    %20 = vector.load %arg6[%c0_15, %c0_16] : memref<1x16xf32, #tpu.memory_space<vmem>>, vector<1x16xf32>
    %21 = vector.broadcast %20 : vector<1x16xf32> to vector<2x16xf32>
    %22 = arith.addf %19, %21 : vector<2x16xf32>
    %23 = vector.extract_strided_slice %22 {offsets = [0, 0], sizes = [2, 8], strides = [1, 1]} : vector<2x16xf32> to vector<2x8xf32>
    %24 = vector.extract_strided_slice %22 {offsets = [0, 8], sizes = [2, 8], strides = [1, 1]} : vector<2x16xf32> to vector<2x8xf32>
    %c0_17 = arith.constant 0 : index
    %c0_18 = arith.constant 0 : index
    %25 = vector.load %arg15[%c0_17, %c0_18] : memref<2x8xf32, #tpu.memory_space<vmem>>, vector<2x8xf32>
    tpu.vector_store %arg15[%c0_17, %c0_18], %23 {strides = array<i32>} : memref<2x8xf32, #tpu.memory_space<vmem>>, vector<2x8xf32>,
    %c0_19 = arith.constant 0 : index
    %c0_20 = arith.constant 0 : index
    %26 = vector.load %arg16[%c0_19, %c0_20] : memref<2x8xf32, #tpu.memory_space<vmem>>, vector<2x8xf32>
    tpu.vector_store %arg16[%c0_19, %c0_20], %24 {strides = array<i32>} : memref<2x8xf32, #tpu.memory_space<vmem>>, vector<2x8xf32>,
    %c0_21 = arith.constant 0 : index
    %c0_22 = arith.constant 0 : index
    %27 = vector.load %arg7[%c0_21, %c0_22] : memref<2x8xf32, #tpu.memory_space<vmem>>, vector<2x8xf32>
    %cst_23 = arith.constant 5.000000e-01 : f32
    %28 = vector.broadcast %cst_23 : f32 to vector<2x8xf32>
    %29 = arith.mulf %28, %24 : vector<2x8xf32>
    %30 = math.exp %29 : vector<2x8xf32>
    %31 = arith.mulf %27, %30 : vector<2x8xf32>
    %32 = arith.addf %23, %31 : vector<2x8xf32>
    %33 = arith.truncf %32 : vector<2x8xf32> to vector<2x8xbf16>
    %c0_24 = arith.constant 0 : index
    %c0_25 = arith.constant 0 : index
    %34 = vector.load %arg8[%c0_24, %c0_25] : memref<8x100xbf16, #tpu.memory_space<vmem>>, vector<8x100xbf16>
    %cst_26 = arith.constant dense<0.000000e+00> : vector<2x100xf32>
    %35 = tpu.matmul %33, %34, %cst_26 {dimension_numbers = #tpu.dot_dimension_numbers<[1], [0], [0], [1], [0, 0, 1, 1], [], []>} : vector<2x8xbf16>, vector<8x100xbf16>, vector<2x100xf32> -> vector<2x100xf32>
    %c0_27 = arith.constant 0 : index
    %c0_28 = arith.constant 0 : index
    %36 = vector.load %arg9[%c0_27, %c0_28] : memref<1x100xf32, #tpu.memory_space<vmem>>, vector<1x100xf32>
    %37 = vector.broadcast %36 : vector<1x100xf32> to vector<2x100xf32>
    %38 = arith.addf %35, %37 : vector<2x100xf32>
    %cst_29 = arith.constant 0.000000e+00 : f32
    %39 = vector.broadcast %cst_29 : f32 to vector<2x100xf32>
    %40 = arith.maximumf %38, %39 : vector<2x100xf32>
    %41 = arith.truncf %40 : vector<2x100xf32> to vector<2x100xbf16>
    %c0_30 = arith.constant 0 : index
    %c0_31 = arith.constant 0 : index
    %42 = vector.load %arg10[%c0_30, %c0_31] : memref<100x8xbf16, #tpu.memory_space<vmem>>, vector<100x8xbf16>
    %cst_32 = arith.constant dense<0.000000e+00> : vector<2x8xf32>
    %43 = tpu.matmul %41, %42, %cst_32 {dimension_numbers = #tpu.dot_dimension_numbers<[1], [0], [0], [1], [0, 0, 1, 1], [], []>} : vector<2x100xbf16>, vector<100x8xbf16>, vector<2x8xf32> -> vector<2x8xf32>
    %c0_33 = arith.constant 0 : index
    %c0_34 = arith.constant 0 : index
    %44 = vector.load %arg11[%c0_33, %c0_34] : memref<1x8xf32, #tpu.memory_space<vmem>>, vector<1x8xf32>
    %45 = vector.broadcast %44 : vector<1x8xf32> to vector<2x8xf32>
    %46 = arith.addf %43, %45 : vector<2x8xf32>
    %47 = arith.negf %46 : vector<2x8xf32>
    %48 = math.exp %47 : vector<2x8xf32>
    %cst_35 = arith.constant 1.000000e+00 : f32
    %49 = vector.broadcast %cst_35 : f32 to vector<2x8xf32>
    %50 = arith.addf %49, %48 : vector<2x8xf32>
    %51 = arith.divf %49, %50 : vector<2x8xf32>
    %52 = arith.truncf %51 : vector<2x8xf32> to vector<2x8xbf16>
    %c0_36 = arith.constant 0 : index
    %c0_37 = arith.constant 0 : index
    %53 = vector.load %arg12[%c0_36, %c0_37] : memref<8x32xbf16, #tpu.memory_space<vmem>>, vector<8x32xbf16>
    %cst_38 = arith.constant dense<0.000000e+00> : vector<2x32xf32>
    %54 = tpu.matmul %52, %53, %cst_38 {dimension_numbers = #tpu.dot_dimension_numbers<[1], [0], [0], [1], [0, 0, 1, 1], [], []>} : vector<2x8xbf16>, vector<8x32xbf16>, vector<2x32xf32> -> vector<2x32xf32>
    %c0_39 = arith.constant 0 : index
    %c0_40 = arith.constant 0 : index
    %55 = vector.load %arg13[%c0_39, %c0_40] : memref<1x32xf32, #tpu.memory_space<vmem>>, vector<1x32xf32>
    %56 = vector.broadcast %55 : vector<1x32xf32> to vector<2x32xf32>
    %57 = arith.addf %54, %56 : vector<2x32xf32>
    %58 = vector.extract_strided_slice %57 {offsets = [0, 0], sizes = [2, 8], strides = [1, 1]} : vector<2x32xf32> to vector<2x8xf32>
    %59 = vector.extract_strided_slice %57 {offsets = [0, 8], sizes = [2, 8], strides = [1, 1]} : vector<2x32xf32> to vector<2x8xf32>
    %60 = arith.maximumf %58, %59 : vector<2x8xf32>
    %61 = vector.extract_strided_slice %57 {offsets = [0, 16], sizes = [2, 8], strides = [1, 1]} : vector<2x32xf32> to vector<2x8xf32>
    %62 = arith.maximumf %60, %61 : vector<2x8xf32>
    %63 = vector.extract_strided_slice %57 {offsets = [0, 24], sizes = [2, 8], strides = [1, 1]} : vector<2x32xf32> to vector<2x8xf32>
    %64 = arith.maximumf %62, %63 : vector<2x8xf32>
    %cst_41 = arith.constant 0.000000e+00 : f32
    %65 = vector.broadcast %cst_41 : f32 to vector<2x8xf32>
    %66 = vector.extract_strided_slice %57 {offsets = [0, 0], sizes = [2, 8], strides = [1, 1]} : vector<2x32xf32> to vector<2x8xf32>
    %67 = arith.subf %66, %64 : vector<2x8xf32>
    %68 = math.exp %67 : vector<2x8xf32>
    %69 = arith.addf %65, %68 : vector<2x8xf32>
    %70 = vector.extract_strided_slice %57 {offsets = [0, 8], sizes = [2, 8], strides = [1, 1]} : vector<2x32xf32> to vector<2x8xf32>
    %71 = arith.subf %70, %64 : vector<2x8xf32>
    %72 = math.exp %71 : vector<2x8xf32>
    %73 = arith.addf %69, %72 : vector<2x8xf32>
    %74 = vector.extract_strided_slice %57 {offsets = [0, 16], sizes = [2, 8], strides = [1, 1]} : vector<2x32xf32> to vector<2x8xf32>
    %75 = arith.subf %74, %64 : vector<2x8xf32>
    %76 = math.exp %75 : vector<2x8xf32>
    %77 = arith.addf %73, %76 : vector<2x8xf32>
    %78 = vector.extract_strided_slice %57 {offsets = [0, 24], sizes = [2, 8], strides = [1, 1]} : vector<2x32xf32> to vector<2x8xf32>
    %79 = arith.subf %78, %64 : vector<2x8xf32>
    %80 = math.exp %79 : vector<2x8xf32>
    %81 = arith.addf %77, %80 : vector<2x8xf32>
    %82 = math.log %81 : vector<2x8xf32>
    %83 = arith.addf %64, %82 : vector<2x8xf32>
    %84 = tpu.concatenate %83, %83, %83, %83 in 1 : vector<2x8xf32>, vector<2x8xf32>, vector<2x8xf32>, vector<2x8xf32> -> vector<2x32xf32>
    %85 = arith.subf %57, %84 : vector<2x32xf32>
    %c0_42 = arith.constant 0 : index
    %c0_43 = arith.constant 0 : index
    %86 = vector.load %arg14[%c0_42, %c0_43] : memref<2x32xf32, #tpu.memory_space<vmem>>, vector<2x32xf32>
    tpu.vector_store %arg14[%c0_42, %c0_43], %85 {strides = array<i32>} : memref<2x32xf32, #tpu.memory_space<vmem>>, vector<2x32xf32>,
    return
  }
}

</mosaic_0001>

<llo_original>
// kernel: tpu_custom_call.1
$region0: #{tpu_custom_call.1}
  #allocation0 [shape = 'u32[]', space=smem, size = 0x4, offset = 0x4, fixed_abs, tag = 'smem constant byte address 0x4 - core index']
  #allocation1 [shape = 'u32[144,128]{1,0:T(1,128)}', space=vmem, size = 0x12000, scoped, tag = 'internal scratch']
  %s0 = inlined_call_operand.hbm [shape: f32[2,32], index: 0, kind: input, shape index: {}]
  %s1 = inlined_call_operand.hbm [shape: bf16[32,1536], index: 1, kind: input, shape index: {}]
  %s2 = inlined_call_operand.hbm [shape: f32[1,1536], index: 2, kind: input, shape index: {}]
  %s3 = inlined_call_operand.hbm [shape: bf16[1536,1536], index: 3, kind: input, shape index: {}]
  %s4 = inlined_call_operand.hbm [shape: f32[1,1536], index: 4, kind: input, shape index: {}]
  %s5 = inlined_call_operand.vmem [shape: bf16[1536,16], index: 5, kind: input, shape index: {}]
  %s6 = inlined_call_operand.hbm [shape: f32[1,16], index: 6, kind: input, shape index: {}]
  %s7 = inlined_call_operand.hbm [shape: f32[2,8], index: 7, kind: input, shape index: {}]
  %s8 = inlined_call_operand.hbm [shape: bf16[8,100], index: 8, kind: input, shape index: {}]
  %s9 = inlined_call_operand.hbm [shape: f32[1,100], index: 9, kind: input, shape index: {}]
  %s10 = inlined_call_operand.vmem [shape: bf16[100,8], index: 10, kind: input, shape index: {}]
  %s11 = inlined_call_operand.hbm [shape: f32[1,8], index: 11, kind: input, shape index: {}]
  %s12 = inlined_call_operand.hbm [shape: bf16[8,32], index: 12, kind: input, shape index: {}]
  %s13 = inlined_call_operand.hbm [shape: f32[1,32], index: 13, kind: input, shape index: {}]
  %s14 = inlined_call_operand.hbm [shape: f32[2,32], index: 14, kind: output, shape index: {0}]
  %s15 = inlined_call_operand.hbm [shape: f32[2,8], index: 15, kind: output, shape index: {1}]
  %s16 = inlined_call_operand.hbm [shape: f32[2,8], index: 16, kind: output, shape index: {2}]
  %17 = xla_tuple %s14, %s15, %s16
  %s18 = sld [smem:[#allocation0]]
  $region130: #{tpu_custom_call.1} parent=0
    _
  %s20 = ssub.s32 1, %s18
  %s21 = scalar_select 0, %s20, %s18
  $region1: #{tpu_custom_call.1} parent=0
    #allocation2 [shape = 'u8[1024]{0}', space=vmem, size = 0x400, scoped, tag = 'input window, operand 0, single buffered']
    #allocation3 [shape = 's32[1]{0}', space=sflag, size = 0x4, scoped, tag = 'scoped memory for tpu_custom_call.1']
    #allocation4 [shape = 's32[1]{0}', space=sflag, size = 0x4, scoped, tag = 'scoped memory for tpu_custom_call.1']
    #allocation5 [shape = 'u8[98304]{0}', space=vmem, size = 0x18000, scoped, tag = 'input window, operand 1, single buffered']
    #allocation6 [shape = 's32[1]{0}', space=sflag, size = 0x4, scoped, tag = 'scoped memory for tpu_custom_call.1']
    #allocation7 [shape = 'u8[6144]{0}', space=vmem, size = 0x1800, scoped, tag = 'input window, operand 2, single buffered']
    #allocation8 [shape = 'u8[4718592]{0}', space=vmem, size = 0x480000, scoped, tag = 'input window, operand 3, single buffered']
    #allocation9 [shape = 's32[1]{0}', space=sflag, size = 0x4, scoped, tag = 'scoped memory for tpu_custom_call.1']
    #allocation10 [shape = 'u8[6144]{0}', space=vmem, size = 0x1800, scoped, tag = 'input window, operand 4, single buffered']
    #allocation11 [shape = 'u8[512]{0}', space=vmem, size = 0x400, scoped, tag = 'input window, operand 6, single buffered']
    #allocation12 [shape = 's32[1]{0}', space=sflag, size = 0x4, scoped, tag = 'scoped memory for tpu_custom_call.1']
    #allocation13 [shape = 'u8[1024]{0}', space=vmem, size = 0x400, scoped, tag = 'input window, operand 7, single buffered']
    #allocation14 [shape = 'u8[2048]{0}', space=vmem, size = 0x800, scoped, tag = 'input window, operand 8, single buffered']
    #allocation15 [shape = 's32[1]{0}', space=sflag, size = 0x4, scoped, tag = 'scoped memory for tpu_custom_call.1']
    #allocation16 [shape = 'u8[512]{0}', space=vmem, size = 0x400, scoped, tag = 'input window, operand 9, single buffered']
    #allocation17 [shape = 'u8[512]{0}', space=vmem, size = 0x400, scoped, tag = 'input window, operand 11, single buffered']
    #allocation18 [shape = 's32[1]{0}', space=sflag, size = 0x4, scoped, tag = 'scoped memory for tpu_custom_call.1']
    #allocation19 [shape = 'u8[2048]{0}', space=vmem, size = 0x800, scoped, tag = 'input window, operand 12, single buffered']
    #allocation20 [shape = 'u8[512]{0}', space=vmem, size = 0x400, scoped, tag = 'input window, operand 13, single buffered']
    #allocation21 [shape = 's32[1]{0}', space=sflag, size = 0x4, scoped, tag = 'scoped memory for tpu_custom_call.1']
    #allocation22 [shape = 'u8[1024]{0}', space=vmem, size = 0x400, scoped, tag = 'output window, operand 0, single buffered']
    #allocation23 [shape = 'u8[1024]{0}', space=vmem, size = 0x400, scoped, tag = 'output window, operand 1, single buffered']
    #allocation24 [shape = 's32[1]{0}', space=sflag, size = 0x4, scoped, tag = 'scoped memory for tpu_custom_call.1']
    #allocation25 [shape = 'u8[1024]{0}', space=vmem, size = 0x400, scoped, tag = 'output window, operand 2, single buffered']
    %22 = vsyncpa [#allocation3], 0
    %23 = vsyncpa [#allocation6], 0
    %24 = vsyncpa [#allocation9], 0
    %25 = vsyncpa [#allocation12], 0
    %26 = vsyncpa [#allocation15], 0
    %27 = vsyncpa [#allocation18], 0
    %28 = vsyncpa [#allocation21], 0
    %29 = vsyncpa [#allocation4], 0
    %30 = vsyncpa [#allocation24], 0
    // Predicated region
    $region2: #{tpu_custom_call.1} parent=1 // pred_check
      _
    $region3: #{tpu_custom_call.1} parent=1 // pred_check_branch
      %32 = sbr.rel (0) target = $region5
    $region4: #{tpu_custom_call.1} parent=1 // pred_region
      %s34 = ssub.s32 32, 32
      %35 = vsyncadd [#allocation3], %s34
      %s37 = sshll.u32 [#allocation2], 4
      %s38 = int_to_ptr.vmem [resolvable:$true] %s37
      %40 = dma.hbm_to_vmem [thread:$0]  %s0, 32, %s38, [#allocation3]
    $region5: #{tpu_custom_call.1} parent=1 // pred_fallthru
      _
    // Predicated region
    $region6: #{tpu_custom_call.1} parent=1 // pred_check
      _
    $region7: #{tpu_custom_call.1} parent=1 // pred_check_branch
      %42 = sbr.rel (0) target = $region9
    $region8: #{tpu_custom_call.1} parent=1 // pred_region
      %s44 = ssub.s32 3072, 3072
      %45 = vsyncadd [#allocation6], %s44
      %s46 = sshll.u32 [#allocation5], 4
      %s47 = int_to_ptr.vmem [resolvable:$true] %s46
      %52 = dma.hbm_to_vmem [thread:$0]  %s1, 3072, %s47, [#allocation6], 768, 768, 48
    $region9: #{tpu_custom_call.1} parent=1 // pred_fallthru
      _
    // Predicated region
    $region10: #{tpu_custom_call.1} parent=1 // pred_check
      _
    $region11: #{tpu_custom_call.1} parent=1 // pred_check_branch
      %54 = sbr.rel (0) target = $region13
    $region12: #{tpu_custom_call.1} parent=1 // pred_region
      %s56 = ssub.s32 192, 192
      %57 = vsyncadd [#allocation6], %s56
      %s59 = sshll.u32 [#allocation7], 4
      %s60 = int_to_ptr.vmem [resolvable:$true] %s59
      %62 = dma.hbm_to_vmem [thread:$0]  %s2, 192, %s60, [#allocation6]
    $region13: #{tpu_custom_call.1} parent=1 // pred_fallthru
      _
    // Predicated region
    $region14: #{tpu_custom_call.1} parent=1 // pred_check
      _
    $region15: #{tpu_custom_call.1} parent=1 // pred_check_branch
      %64 = sbr.rel (0) target = $region17
    $region16: #{tpu_custom_call.1} parent=1 // pred_region
      %s66 = ssub.s32 147456, 147456
      %67 = vsyncadd [#allocation9], %s66
      %s68 = sshll.u32 [#allocation8], 4
      %s69 = int_to_ptr.vmem [resolvable:$true] %s68
      %74 = dma.hbm_to_vmem [thread:$0]  %s3, 147456, %s69, [#allocation9], 768, 768, 48
    $region17: #{tpu_custom_call.1} parent=1 // pred_fallthru
      _
    // Predicated region
    $region18: #{tpu_custom_call.1} parent=1 // pred_check
      _
    $region19: #{tpu_custom_call.1} parent=1 // pred_check_branch
      %76 = sbr.rel (0) target = $region21
    $region20: #{tpu_custom_call.1} parent=1 // pred_region
      %s78 = ssub.s32 192, 192
      %79 = vsyncadd [#allocation9], %s78
      %s81 = sshll.u32 [#allocation10], 4
      %s82 = int_to_ptr.vmem [resolvable:$true] %s81
      %84 = dma.hbm_to_vmem [thread:$0]  %s4, 192, %s82, [#allocation9]
    $region21: #{tpu_custom_call.1} parent=1 // pred_fallthru
      _
    // Predicated region
    $region22: #{tpu_custom_call.1} parent=1 // pred_check
      _
    $region23: #{tpu_custom_call.1} parent=1 // pred_check_branch
      %86 = sbr.rel (0) target = $region25
    $region24: #{tpu_custom_call.1} parent=1 // pred_region
      _
    $region25: #{tpu_custom_call.1} parent=1 // pred_fallthru
      _
    // Predicated region
    $region26: #{tpu_custom_call.1} parent=1 // pred_check
      _
    $region27: #{tpu_custom_call.1} parent=1 // pred_check_branch
      %88 = sbr.rel (0) target = $region29
    $region28: #{tpu_custom_call.1} parent=1 // pred_region
      %s90 = ssub.s32 16, 16
      %91 = vsyncadd [#allocation12], %s90
      %s93 = sshll.u32 [#allocation11], 4
      %s94 = int_to_ptr.vmem [resolvable:$true] %s93
      %96 = dma.hbm_to_vmem [thread:$0]  %s6, 16, %s94, [#allocation12]
    $region29: #{tpu_custom_call.1} parent=1 // pred_fallthru
      _
    // Predicated region
    $region30: #{tpu_custom_call.1} parent=1 // pred_check
      _
    $region31: #{tpu_custom_call.1} parent=1 // pred_check_branch
      %98 = sbr.rel (0) target = $region33
    $region32: #{tpu_custom_call.1} parent=1 // pred_region
      %s100 = ssub.s32 32, 32
      %101 = vsyncadd [#allocation12], %s100
      %s103 = sshll.u32 [#allocation13], 4
      %s104 = int_to_ptr.vmem [resolvable:$true] %s103
      %106 = dma.hbm_to_vmem [thread:$0]  %s7, 32, %s104, [#allocation12]
    $region33: #{tpu_custom_call.1} parent=1 // pred_fallthru
      _
    // Predicated region
    $region34: #{tpu_custom_call.1} parent=1 // pred_check
      _
    $region35: #{tpu_custom_call.1} parent=1 // pred_check_branch
      %108 = sbr.rel (0) target = $region37
    $region36: #{tpu_custom_call.1} parent=1 // pred_region
      %s110 = ssub.s32 64, 64
      %111 = vsyncadd [#allocation15], %s110
      %s113 = sshll.u32 [#allocation14], 4
      %s114 = int_to_ptr.vmem [resolvable:$true] %s113
      %116 = dma.hbm_to_vmem [thread:$0]  %s8, 64, %s114, [#allocation15]
    $region37: #{tpu_custom_call.1} parent=1 // pred_fallthru
      _
    // Predicated region
    $region38: #{tpu_custom_call.1} parent=1 // pred_check
      _
    $region39: #{tpu_custom_call.1} parent=1 // pred_check_branch
      %118 = sbr.rel (0) target = $region41
    $region40: #{tpu_custom_call.1} parent=1 // pred_region
      %s120 = ssub.s32 16, 16
      %121 = vsyncadd [#allocation15], %s120
      %s123 = sshll.u32 [#allocation16], 4
      %s124 = int_to_ptr.vmem [resolvable:$true] %s123
      %126 = dma.hbm_to_vmem [thread:$0]  %s9, 16, %s124, [#allocation15]
    $region41: #{tpu_custom_call.1} parent=1 // pred_fallthru
      _
    // Predicated region
    $region42: #{tpu_custom_call.1} parent=1 // pred_check
      _
    $region43: #{tpu_custom_call.1} parent=1 // pred_check_branch
      %128 = sbr.rel (0) target = $region45
    $region44: #{tpu_custom_call.1} parent=1 // pred_region
      _
    $region45: #{tpu_custom_call.1} parent=1 // pred_fallthru
      _
    // Predicated region
    $region46: #{tpu_custom_call.1} parent=1 // pred_check
      _
    $region47: #{tpu_custom_call.1} parent=1 // pred_check_branch
      %130 = sbr.rel (0) target = $region49
    $region48: #{tpu_custom_call.1} parent=1 // pred_region
      %s132 = ssub.s32 16, 16
      %133 = vsyncadd [#allocation18], %s132
      %s135 = sshll.u32 [#allocation17], 4
      %s136 = int_to_ptr.vmem [resolvable:$true] %s135
      %138 = dma.hbm_to_vmem [thread:$0]  %s11, 16, %s136, [#allocation18]
    $region49: #{tpu_custom_call.1} parent=1 // pred_fallthru
      _
    // Predicated region
    $region50: #{tpu_custom_call.1} parent=1 // pred_check
      _
    $region51: #{tpu_custom_call.1} parent=1 // pred_check_branch
      %140 = sbr.rel (0) target = $region53
    $region52: #{tpu_custom_call.1} parent=1 // pred_region
      %s142 = ssub.s32 64, 64
      %143 = vsyncadd [#allocation18], %s142
      %s145 = sshll.u32 [#allocation19], 4
      %s146 = int_to_ptr.vmem [resolvable:$true] %s145
      %148 = dma.hbm_to_vmem [thread:$0]  %s12, 64, %s146, [#allocation18]
    $region53: #{tpu_custom_call.1} parent=1 // pred_fallthru
      _
    // Predicated region
    $region54: #{tpu_custom_call.1} parent=1 // pred_check
      _
    $region55: #{tpu_custom_call.1} parent=1 // pred_check_branch
      %150 = sbr.rel (0) target = $region57
    $region56: #{tpu_custom_call.1} parent=1 // pred_region
      %s152 = ssub.s32 16, 16
      %153 = vsyncadd [#allocation21], %s152
      %s155 = sshll.u32 [#allocation20], 4
      %s156 = int_to_ptr.vmem [resolvable:$true] %s155
      %158 = dma.hbm_to_vmem [thread:$0]  %s13, 16, %s156, [#allocation21]
    $region57: #{tpu_custom_call.1} parent=1 // pred_fallthru
      _
    // Predicated region
    $region58: #{tpu_custom_call.1} parent=1 // pred_check
      _
    $region59: #{tpu_custom_call.1} parent=1 // pred_check_branch
      %160 = sbr.rel (0) target = $region61
    $region60: #{tpu_custom_call.1} parent=1 // pred_region
      %161 = dma.done [#allocation3], 32
    $region61: #{tpu_custom_call.1} parent=1 // pred_fallthru
      _
    // Predicated region
    $region62: #{tpu_custom_call.1} parent=1 // pred_check
      _
    $region63: #{tpu_custom_call.1} parent=1 // pred_check_branch
      %163 = sbr.rel (0) target = $region65
    $region64: #{tpu_custom_call.1} parent=1 // pred_region
      %164 = dma.done [#allocation6], 3072
    $region65: #{tpu_custom_call.1} parent=1 // pred_fallthru
      _
    // Predicated region
    $region66: #{tpu_custom_call.1} parent=1 // pred_check
      _
    $region67: #{tpu_custom_call.1} parent=1 // pred_check_branch
      %166 = sbr.rel (0) target = $region69
    $region68: #{tpu_custom_call.1} parent=1 // pred_region
      %167 = dma.done [#allocation6], 192
    $region69: #{tpu_custom_call.1} parent=1 // pred_fallthru
      _
    // Predicated region
    $region70: #{tpu_custom_call.1} parent=1 // pred_check
      _
    $region71: #{tpu_custom_call.1} parent=1 // pred_check_branch
      %169 = sbr.rel (0) target = $region73
    $region72: #{tpu_custom_call.1} parent=1 // pred_region
      %170 = dma.done [#allocation9], 147456
    $region73: #{tpu_custom_call.1} parent=1 // pred_fallthru
      _
    // Predicated region
    $region74: #{tpu_custom_call.1} parent=1 // pred_check
      _
    $region75: #{tpu_custom_call.1} parent=1 // pred_check_branch
      %172 = sbr.rel (0) target = $region77
    $region76: #{tpu_custom_call.1} parent=1 // pred_region
      %173 = dma.done [#allocation9], 192
    $region77: #{tpu_custom_call.1} parent=1 // pred_fallthru
      _
    // Predicated region
    $region78: #{tpu_custom_call.1} parent=1 // pred_check
      _
    $region79: #{tpu_custom_call.1} parent=1 // pred_check_branch
      %175 = sbr.rel (0) target = $region81
    $region80: #{tpu_custom_call.1} parent=1 // pred_region
      %176 = dma.done [#allocation12], 16
    $region81: #{tpu_custom_call.1} parent=1 // pred_fallthru
      _
    // Predicated region
    $region82: #{tpu_custom_call.1} parent=1 // pred_check
      _
    $region83: #{tpu_custom_call.1} parent=1 // pred_check_branch
      %178 = sbr.rel (0) target = $region85
    $region84: #{tpu_custom_call.1} parent=1 // pred_region
      %179 = dma.done [#allocation12], 32
    $region85: #{tpu_custom_call.1} parent=1 // pred_fallthru
      _
    // Predicated region
    $region86: #{tpu_custom_call.1} parent=1 // pred_check
      _
    $region87: #{tpu_custom_call.1} parent=1 // pred_check_branch
      %181 = sbr.rel (0) target = $region89
    $region88: #{tpu_custom_call.1} parent=1 // pred_region
      %182 = dma.done [#allocation15], 64
    $region89: #{tpu_custom_call.1} parent=1 // pred_fallthru
      _
    // Predicated region
    $region90: #{tpu_custom_call.1} parent=1 // pred_check
      _
    $region91: #{tpu_custom_call.1} parent=1 // pred_check_branch
      %184 = sbr.rel (0) target = $region93
    $region92: #{tpu_custom_call.1} parent=1 // pred_region
      %185 = dma.done [#allocation15], 16
    $region93: #{tpu_custom_call.1} parent=1 // pred_fallthru
      _
    // Predicated region
    $region94: #{tpu_custom_call.1} parent=1 // pred_check
      _
    $region95: #{tpu_custom_call.1} parent=1 // pred_check_branch
      %187 = sbr.rel (0) target = $region97
    $region96: #{tpu_custom_call.1} parent=1 // pred_region
      %188 = dma.done [#allocation18], 16
    $region97: #{tpu_custom_call.1} parent=1 // pred_fallthru
      _
    // Predicated region
    $region98: #{tpu_custom_call.1} parent=1 // pred_check
      _
    $region99: #{tpu_custom_call.1} parent=1 // pred_check_branch
      %190 = sbr.rel (0) target = $region101
    $region100: #{tpu_custom_call.1} parent=1 // pred_region
      %191 = dma.done [#allocation18], 64
    $region101: #{tpu_custom_call.1} parent=1 // pred_fallthru
      _
    // Predicated region
    $region102: #{tpu_custom_call.1} parent=1 // pred_check
      _
    $region103: #{tpu_custom_call.1} parent=1 // pred_check_branch
      %193 = sbr.rel (0) target = $region105
    $region104: #{tpu_custom_call.1} parent=1 // pred_region
      %194 = dma.done [#allocation21], 16
    $region105: #{tpu_custom_call.1} parent=1 // pred_fallthru
      _
    %v196 = vld [vmem:[#allocation2] sm:$0x3]
    %v197 = vpack.c.bf16 %v196, %v196
    %v198 = vld [vmem:[#allocation5] sm:$0xff]
    %v199 = vld [vmem:[#allocation5 + $0x8] sm:$0xff]
    %v200 = vld [vmem:[#allocation5 + $0x10] sm:$0xff]
    %v201 = vld [vmem:[#allocation5 + $0x18] sm:$0xff]
    %v202 = vld [vmem:[#allocation5 + $0x20] sm:$0xff]
    %v203 = vld [vmem:[#allocation5 + $0x28] sm:$0xff]
    %v204 = vld [vmem:[#allocation5 + $0x30] sm:$0xff]
    %v205 = vld [vmem:[#allocation5 + $0x38] sm:$0xff]
    %v206 = vld [vmem:[#allocation5 + $0x40] sm:$0xff]
    %v207 = vld [vmem:[#allocation5 + $0x48] sm:$0xff]
    %v208 = vld [vmem:[#allocation5 + $0x50] sm:$0xff]
    %v209 = vld [vmem:[#allocation5 + $0x58] sm:$0xff]
    %v210 = vld [vmem:[#allocation5 + $0x60] sm:$0xff]
    %v211 = vld [vmem:[#allocation5 + $0x68] sm:$0xff]
    %v212 = vld [vmem:[#allocation5 + $0x70] sm:$0xff]
    %v213 = vld [vmem:[#allocation5 + $0x78] sm:$0xff]
    %v214 = vld [vmem:[#allocation5 + $0x80] sm:$0xff]
    %v215 = vld [vmem:[#allocation5 + $0x88] sm:$0xff]
    %v216 = vld [vmem:[#allocation5 + $0x90] sm:$0xff]
    %v217 = vld [vmem:[#allocation5 + $0x98] sm:$0xff]
    %v218 = vld [vmem:[#allocation5 + $0xa0] sm:$0xff]
    %v219 = vld [vmem:[#allocation5 + $0xa8] sm:$0xff]
    %v220 = vld [vmem:[#allocation5 + $0xb0] sm:$0xff]
    %v221 = vld [vmem:[#allocation5 + $0xb8] sm:$0xff]
    %v222 = vld [vmem:[#allocation7] sm:$0xff]
    %v223 = vld [vmem:[#allocation7 + $0x8] sm:$0xf]
    %v226 = vlaneseq
    %v227 = vshrl.u32 %v226, 7
    %v228 = vsub.s32 0, %v227
    %v229 = vrot.slane %v222, %v228
    %v230 = vlaneseq
    %v231 = vshrl.u32 %v230, 7
    %v232 = vsub.s32 1, %v231
    %v233 = vrot.slane %v222, %v232
    %v234 = vlaneseq
    %v235 = vshrl.u32 %v234, 7
    %v236 = vsub.s32 2, %v235
    %v237 = vrot.slane %v222, %v236
    %v238 = vlaneseq
    %v239 = vshrl.u32 %v238, 7
    %v240 = vsub.s32 3, %v239
    %v241 = vrot.slane %v222, %v240
    %v242 = vlaneseq
    %v243 = vshrl.u32 %v242, 7
    %v244 = vsub.s32 4, %v243
    %v245 = vrot.slane %v222, %v244
    %v246 = vlaneseq
    %v247 = vshrl.u32 %v246, 7
    %v248 = vsub.s32 5, %v247
    %v249 = vrot.slane %v222, %v248
    %v250 = vlaneseq
    %v251 = vshrl.u32 %v250, 7
    %v252 = vsub.s32 6, %v251
    %v253 = vrot.slane %v222, %v252
    %v254 = vlaneseq
    %v255 = vshrl.u32 %v254, 7
    %v256 = vsub.s32 7, %v255
    %v257 = vrot.slane %v222, %v256
    %v258 = vlaneseq
    %v259 = vshrl.u32 %v258, 7
    %v260 = vsub.s32 0, %v259
    %v261 = vrot.slane %v223, %v260
    %v262 = vlaneseq
    %v263 = vshrl.u32 %v262, 7
    %v264 = vsub.s32 1, %v263
    %v265 = vrot.slane %v223, %v264
    %v266 = vlaneseq
    %v267 = vshrl.u32 %v266, 7
    %v268 = vsub.s32 2, %v267
    %v269 = vrot.slane %v223, %v268
    %v270 = vlaneseq
    %v271 = vshrl.u32 %v270, 7
    %v272 = vsub.s32 3, %v271
    %v273 = vrot.slane %v223, %v272
    %v310 = vunpack.c.l.b16 %v198
    %v311 = vunpack.c.h.b16 %v198
    %v312 = vunpack.c.l.b16 %v199
    %v313 = vunpack.c.h.b16 %v199
    %v314 = vunpack.c.l.b16 %v200
    %v315 = vunpack.c.h.b16 %v200
    %v316 = vunpack.c.l.b16 %v201
    %v317 = vunpack.c.h.b16 %v201
    %v318 = vunpack.c.l.b16 %v202
    %v319 = vunpack.c.h.b16 %v202
    %v320 = vunpack.c.l.b16 %v203
    %v321 = vunpack.c.h.b16 %v203
    %v322 = vunpack.c.l.b16 %v204
    %v323 = vunpack.c.h.b16 %v204
    %v324 = vunpack.c.l.b16 %v205
    %v325 = vunpack.c.h.b16 %v205
    %v326 = vunpack.c.l.b16 %v206
    %v327 = vunpack.c.h.b16 %v206
    %v328 = vunpack.c.l.b16 %v207
    %v329 = vunpack.c.h.b16 %v207
    %v330 = vunpack.c.l.b16 %v208
    %v331 = vunpack.c.h.b16 %v208
    %v332 = vunpack.c.l.b16 %v209
    %v333 = vunpack.c.h.b16 %v209
    %v334 = vunpack.c.l.b16 %v210
    %v335 = vunpack.c.h.b16 %v210
    %v336 = vunpack.c.l.b16 %v211
    %v337 = vunpack.c.h.b16 %v211
    %v338 = vunpack.c.l.b16 %v212
    %v339 = vunpack.c.h.b16 %v212
    %v340 = vunpack.c.l.b16 %v213
    %v341 = vunpack.c.h.b16 %v213
    %v342 = vunpack.c.l.b16 %v214
    %v343 = vunpack.c.h.b16 %v214
    %v344 = vunpack.c.l.b16 %v215
    %v345 = vunpack.c.h.b16 %v215
    %v346 = vunpack.c.l.b16 %v216
    %v347 = vunpack.c.h.b16 %v216
    %v348 = vunpack.c.l.b16 %v217
    %v349 = vunpack.c.h.b16 %v217
    %v350 = vunpack.c.l.b16 %v218
    %v351 = vunpack.c.h.b16 %v218
    %v352 = vunpack.c.l.b16 %v219
    %v353 = vunpack.c.h.b16 %v219
    %v354 = vunpack.c.l.b16 %v220
    %v355 = vunpack.c.h.b16 %v220
    %v356 = vunpack.c.l.b16 %v221
    %v357 = vunpack.c.h.b16 %v221
    %v358 = vpack.c.b16 %v322, %v310
    %v359 = vpack.c.b16 %v323, %v311
    %v360 = vpack.c.b16 %v324, %v312
    %v361 = vpack.c.b16 %v325, %v313
    %v362 = vpack.c.b16 %v326, %v314
    %v363 = vpack.c.b16 %v327, %v315
    %v364 = vpack.c.b16 %v328, %v316
    %v365 = vpack.c.b16 %v329, %v317
    %v366 = vpack.c.b16 %v330, %v318
    %v367 = vpack.c.b16 %v331, %v319
    %v368 = vpack.c.b16 %v332, %v320
    %v369 = vpack.c.b16 %v333, %v321
    %v370 = vpack.c.b16 %v346, %v334
    %v371 = vpack.c.b16 %v347, %v335
    %v372 = vpack.c.b16 %v348, %v336
    %v373 = vpack.c.b16 %v349, %v337
    %v374 = vpack.c.b16 %v350, %v338
    %v375 = vpack.c.b16 %v351, %v339
    %v376 = vpack.c.b16 %v352, %v340
    %v377 = vpack.c.b16 %v353, %v341
    %v378 = vpack.c.b16 %v354, %v342
    %v379 = vpack.c.b16 %v355, %v343
    %v380 = vpack.c.b16 %v356, %v344
    %v381 = vpack.c.b16 %v357, %v345
    %vm406 = vcmask 261120
    %v408 = vsel %vm406, %v197, 0
    %410 = vmatprep.subr.bf16.mxu0 %v359
    %411 = vmatpush1.bf16.msra.mxu0 %v358
    %412 = vmatprep.subr.bf16.mxu0 %v371
    %413 = vmatpush1.bf16.msra.mxu0 %v370
    %414 = vmatprep.subr.bf16.mxu0 0
    %415 = vmatpush1.bf16.msra.mxu0 0
    %416 = vmatprep.subr.bf16.mxu0 0
    %417 = vmatpush1.bf16.msra.mxu0 0
    %418 = vmatprep.subr.bf16.mxu0 0
    %419 = vmatpush1.bf16.msra.mxu0 0
    %420 = vmatprep.subr.bf16.mxu0 0
    %421 = vmatpush1.bf16.msra.mxu0 0
    %422 = vmatprep.subr.bf16.mxu0 0
    %423 = vmatpush1.bf16.msra.mxu0 0
    %424 = vmatprep.subr.bf16.mxu0 0
    %425 = vmatpush1.bf16.msra.mxu0 0
    %426 = vmatprep.subr.bf16.mxu0 0
    %427 = vmatpush1.bf16.msra.mxu0 0
    %428 = vmatprep.subr.bf16.mxu0 0
    %429 = vmatpush1.bf16.msra.mxu0 0
    %430 = vmatprep.subr.bf16.mxu0 0
    %431 = vmatpush1.bf16.msra.mxu0 0
    %432 = vmatprep.subr.bf16.mxu0 0
    %433 = vmatpush1.bf16.msra.mxu0 0
    %434 = vmatprep.subr.bf16.mxu0 0
    %435 = vmatpush1.bf16.msra.mxu0 0
    %436 = vmatprep.subr.bf16.mxu0 0
    %437 = vmatpush1.bf16.msra.mxu0 0
    %438 = vmatprep.subr.bf16.mxu0 0
    %439 = vmatpush1.bf16.msra.mxu0 0
    %440 = vmatprep.subr.bf16.mxu0 0
    %441 = vmatpush1.bf16.msra.mxu0 0
    %442 = vmatprep.mubr.bf16.mxu0 0
    %443 = vmatmul.mubr.bf16.gmra.mrb[0].mxu0 %v408
    %v444 = vpop.f32.mrb[0].mxu0
    %v445 = vadd.f32 %v229, %v444
    %v446 = vpop.f32.mrb[0].mxu0
    %v447 = vadd.f32 %v233, %v446
    %v448 = vpop.f32.mrb[0].mxu0
    %v449 = vpop.f32.mrb[0].mxu0
    %450 = vdwg.mxu0
    %451 = vmatprep.subr.bf16.mxu0 %v361
    %452 = vmatpush1.bf16.msra.mxu0 %v360
    %453 = vmatprep.subr.bf16.mxu0 %v373
    %454 = vmatpush1.bf16.msra.mxu0 %v372
    %455 = vmatprep.subr.bf16.mxu0 0
    %456 = vmatpush1.bf16.msra.mxu0 0
    %457 = vmatprep.subr.bf16.mxu0 0
    %458 = vmatpush1.bf16.msra.mxu0 0
    %459 = vmatprep.subr.bf16.mxu0 0
    %460 = vmatpush1.bf16.msra.mxu0 0
    %461 = vmatprep.subr.bf16.mxu0 0
    %462 = vmatpush1.bf16.msra.mxu0 0
    %463 = vmatprep.subr.bf16.mxu0 0
    %464 = vmatpush1.bf16.msra.mxu0 0
    %465 = vmatprep.subr.bf16.mxu0 0
    %466 = vmatpush1.bf16.msra.mxu0 0
    %467 = vmatprep.subr.bf16.mxu0 0
    %468 = vmatpush1.bf16.msra.mxu0 0
    %469 = vmatprep.subr.bf16.mxu0 0
    %470 = vmatpush1.bf16.msra.mxu0 0
    %471 = vmatprep.subr.bf16.mxu0 0
    %472 = vmatpush1.bf16.msra.mxu0 0
    %473 = vmatprep.subr.bf16.mxu0 0
    %474 = vmatpush1.bf16.msra.mxu0 0
    %475 = vmatprep.subr.bf16.mxu0 0
    %476 = vmatpush1.bf16.msra.mxu0 0
    %477 = vmatprep.subr.bf16.mxu0 0
    %478 = vmatpush1.bf16.msra.mxu0 0
    %479 = vmatprep.subr.bf16.mxu0 0
    %480 = vmatpush1.bf16.msra.mxu0 0
    %481 = vmatprep.subr.bf16.mxu0 0
    %482 = vmatpush1.bf16.msra.mxu0 0
    %483 = vmatprep.mubr.bf16.mxu0 0
    %484 = vmatmul.mubr.bf16.gmra.mrb[0].mxu0 %v408
    %v485 = vpop.f32.mrb[0].mxu0
    %v486 = vadd.f32 %v237, %v485
    %v487 = vpop.f32.mrb[0].mxu0
    %v488 = vadd.f32 %v241, %v487
    %v489 = vpop.f32.mrb[0].mxu0
    %v490 = vpop.f32.mrb[0].mxu0
    %491 = vdwg.mxu0
    %492 = vmatprep.subr.bf16.mxu0 %v363
    %493 = vmatpush1.bf16.msra.mxu0 %v362
    %494 = vmatprep.subr.bf16.mxu0 %v375
    %495 = vmatpush1.bf16.msra.mxu0 %v374
    %496 = vmatprep.subr.bf16.mxu0 0
    %497 = vmatpush1.bf16.msra.mxu0 0
    %498 = vmatprep.subr.bf16.mxu0 0
    %499 = vmatpush1.bf16.msra.mxu0 0
    %500 = vmatprep.subr.bf16.mxu0 0
    %501 = vmatpush1.bf16.msra.mxu0 0
    %502 = vmatprep.subr.bf16.mxu0 0
    %503 = vmatpush1.bf16.msra.mxu0 0
    %504 = vmatprep.subr.bf16.mxu0 0
    %505 = vmatpush1.bf16.msra.mxu0 0
    %506 = vmatprep.subr.bf16.mxu0 0
    %507 = vmatpush1.bf16.msra.mxu0 0
    %508 = vmatprep.subr.bf16.mxu0 0
    %509 = vmatpush1.bf16.msra.mxu0 0
    %510 = vmatprep.subr.bf16.mxu0 0
    %511 = vmatpush1.bf16.msra.mxu0 0
    %512 = vmatprep.subr.bf16.mxu0 0
    %513 = vmatpush1.bf16.msra.mxu0 0
    %514 = vmatprep.subr.bf16.mxu0 0
    %515 = vmatpush1.bf16.msra.mxu0 0
    %516 = vmatprep.subr.bf16.mxu0 0
    %517 = vmatpush1.bf16.msra.mxu0 0
    %518 = vmatprep.subr.bf16.mxu0 0
    %519 = vmatpush1.bf16.msra.mxu0 0
    %520 = vmatprep.subr.bf16.mxu0 0
    %521 = vmatpush1.bf16.msra.mxu0 0
    %522 = vmatprep.subr.bf16.mxu0 0
    %523 = vmatpush1.bf16.msra.mxu0 0
    %524 = vmatprep.mubr.bf16.mxu0 0
    %525 = vmatmul.mubr.bf16.gmra.mrb[0].mxu0 %v408
    %v526 = vpop.f32.mrb[0].mxu0
    %v527 = vadd.f32 %v245, %v526
    %v528 = vpop.f32.mrb[0].mxu0
    %v529 = vadd.f32 %v249, %v528
    %v530 = vpop.f32.mrb[0].mxu0
    %v531 = vpop.f32.mrb[0].mxu0
    %532 = vdwg.mxu0
    %533 = vmatprep.subr.bf16.mxu0 %v365
    %534 = vmatpush1.bf16.msra.mxu0 %v364
    %535 = vmatprep.subr.bf16.mxu0 %v377
    %536 = vmatpush1.bf16.msra.mxu0 %v376
    %537 = vmatprep.subr.bf16.mxu0 0
    %538 = vmatpush1.bf16.msra.mxu0 0
    %539 = vmatprep.subr.bf16.mxu0 0
    %540 = vmatpush1.bf16.msra.mxu0 0
    %541 = vmatprep.subr.bf16.mxu0 0
    %542 = vmatpush1.bf16.msra.mxu0 0
    %543 = vmatprep.subr.bf16.mxu0 0
    %544 = vmatpush1.bf16.msra.mxu0 0
    %545 = vmatprep.subr.bf16.mxu0 0
    %546 = vmatpush1.bf16.msra.mxu0 0
    %547 = vmatprep.subr.bf16.mxu0 0
    %548 = vmatpush1.bf16.msra.mxu0 0
    %549 = vmatprep.subr.bf16.mxu0 0
    %550 = vmatpush1.bf16.msra.mxu0 0
    %551 = vmatprep.subr.bf16.mxu0 0
    %552 = vmatpush1.bf16.msra.mxu0 0
    %553 = vmatprep.subr.bf16.mxu0 0
    %554 = vmatpush1.bf16.msra.mxu0 0
    %555 = vmatprep.subr.bf16.mxu0 0
    %556 = vmatpush1.bf16.msra.mxu0 0
    %557 = vmatprep.subr.bf16.mxu0 0
    %558 = vmatpush1.bf16.msra.mxu0 0
    %559 = vmatprep.subr.bf16.mxu0 0
    %560 = vmatpush1.bf16.msra.mxu0 0
    %561 = vmatprep.subr.bf16.mxu0 0
    %562 = vmatpush1.bf16.msra.mxu0 0
    %563 = vmatprep.subr.bf16.mxu0 0
    %564 = vmatpush1.bf16.msra.mxu0 0
    %565 = vmatprep.mubr.bf16.mxu0 0
    %566 = vmatmul.mubr.bf16.gmra.mrb[0].mxu0 %v408
    %v567 = vpop.f32.mrb[0].mxu0
    %v568 = vadd.f32 %v253, %v567
    %v569 = vpop.f32.mrb[0].mxu0
    %v570 = vadd.f32 %v257, %v569
    %v571 = vpop.f32.mrb[0].mxu0
    %v572 = vpop.f32.mrb[0].mxu0
    %573 = vdwg.mxu0
    %574 = vmatprep.subr.bf16.mxu0 %v367
    %575 = vmatpush1.bf16.msra.mxu0 %v366
    %576 = vmatprep.subr.bf16.mxu0 %v379
    %577 = vmatpush1.bf16.msra.mxu0 %v378
    %578 = vmatprep.subr.bf16.mxu0 0
    %579 = vmatpush1.bf16.msra.mxu0 0
    %580 = vmatprep.subr.bf16.mxu0 0
    %581 = vmatpush1.bf16.msra.mxu0 0
    %582 = vmatprep.subr.bf16.mxu0 0
    %583 = vmatpush1.bf16.msra.mxu0 0
    %584 = vmatprep.subr.bf16.mxu0 0
    %585 = vmatpush1.bf16.msra.mxu0 0
    %586 = vmatprep.subr.bf16.mxu0 0
    %587 = vmatpush1.bf16.msra.mxu0 0
    %588 = vmatprep.subr.bf16.mxu0 0
    %589 = vmatpush1.bf16.msra.mxu0 0
    %590 = vmatprep.subr.bf16.mxu0 0
    %591 = vmatpush1.bf16.msra.mxu0 0
    %592 = vmatprep.subr.bf16.mxu0 0
    %593 = vmatpush1.bf16.msra.mxu0 0
    %594 = vmatprep.subr.bf16.mxu0 0
    %595 = vmatpush1.bf16.msra.mxu0 0
    %596 = vmatprep.subr.bf16.mxu0 0
    %597 = vmatpush1.bf16.msra.mxu0 0
    %598 = vmatprep.subr.bf16.mxu0 0
    %599 = vmatpush1.bf16.msra.mxu0 0
    %600 = vmatprep.subr.bf16.mxu0 0
    %601 = vmatpush1.bf16.msra.mxu0 0
    %602 = vmatprep.subr.bf16.mxu0 0
    %603 = vmatpush1.bf16.msra.mxu0 0
    %604 = vmatprep.subr.bf16.mxu0 0
    %605 = vmatpush1.bf16.msra.mxu0 0
    %606 = vmatprep.mubr.bf16.mxu0 0
    %607 = vmatmul.mubr.bf16.gmra.mrb[0].mxu0 %v408
    %v608 = vpop.f32.mrb[0].mxu0
    %v609 = vadd.f32 %v261, %v608
    %v610 = vpop.f32.mrb[0].mxu0
    %v611 = vadd.f32 %v265, %v610
    %v612 = vpop.f32.mrb[0].mxu0
    %v613 = vpop.f32.mrb[0].mxu0
    %614 = vdwg.mxu0
    %615 = vmatprep.subr.bf16.mxu0 %v369
    %616 = vmatpush1.bf16.msra.mxu0 %v368
    %617 = vmatprep.subr.bf16.mxu0 %v381
    %618 = vmatpush1.bf16.msra.mxu0 %v380
    %619 = vmatprep.subr.bf16.mxu0 0
    %620 = vmatpush1.bf16.msra.mxu0 0
    %621 = vmatprep.subr.bf16.mxu0 0
    %622 = vmatpush1.bf16.msra.mxu0 0
    %623 = vmatprep.subr.bf16.mxu0 0
    %624 = vmatpush1.bf16.msra.mxu0 0
    %625 = vmatprep.subr.bf16.mxu0 0
    %626 = vmatpush1.bf16.msra.mxu0 0
    %627 = vmatprep.subr.bf16.mxu0 0
    %628 = vmatpush1.bf16.msra.mxu0 0
    %629 = vmatprep.subr.bf16.mxu0 0
    %630 = vmatpush1.bf16.msra.mxu0 0
    %631 = vmatprep.subr.bf16.mxu0 0
    %632 = vmatpush1.bf16.msra.mxu0 0
    %633 = vmatprep.subr.bf16.mxu0 0
    %634 = vmatpush1.bf16.msra.mxu0 0
    %635 = vmatprep.subr.bf16.mxu0 0
    %636 = vmatpush1.bf16.msra.mxu0 0
    %637 = vmatprep.subr.bf16.mxu0 0
    %638 = vmatpush1.bf16.msra.mxu0 0
    %639 = vmatprep.subr.bf16.mxu0 0
    %640 = vmatpush1.bf16.msra.mxu0 0
    %641 = vmatprep.subr.bf16.mxu0 0
    %642 = vmatpush1.bf16.msra.mxu0 0
    %643 = vmatprep.subr.bf16.mxu0 0
    %644 = vmatpush1.bf16.msra.mxu0 0
    %645 = vmatprep.subr.bf16.mxu0 0
    %646 = vmatpush1.bf16.msra.mxu0 0
    %647 = vmatprep.mubr.bf16.mxu0 0
    %648 = vmatmul.mubr.bf16.gmra.mrb[0].mxu0 %v408
    %v649 = vpop.f32.mrb[0].mxu0
    %v650 = vadd.f32 %v269, %v649
    %v651 = vpop.f32.mrb[0].mxu0
    %v652 = vadd.f32 %v273, %v651
    %v653 = vpop.f32.mrb[0].mxu0
    %v654 = vpop.f32.mrb[0].mxu0
    %655 = vdwg.mxu0
    %v656 = vmax.f32 %v445, 0.0
    %v657 = vmax.f32 %v447, 0.0
    %v658 = vmax.f32 %v486, 0.0
    %v659 = vmax.f32 %v488, 0.0
    %v660 = vmax.f32 %v527, 0.0
    %v661 = vmax.f32 %v529, 0.0
    %v662 = vmax.f32 %v568, 0.0
    %v663 = vmax.f32 %v570, 0.0
    %v664 = vmax.f32 %v609, 0.0
    %v665 = vmax.f32 %v611, 0.0
    %v666 = vmax.f32 %v650, 0.0
    %v667 = vmax.f32 %v652, 0.0
    %v668 = vpack.c.bf16 %v656, %v656
    %v669 = vpack.c.bf16 %v657, %v657
    %v670 = vpack.c.bf16 %v658, %v658
    %v671 = vpack.c.bf16 %v659, %v659
    %v672 = vpack.c.bf16 %v660, %v660
    %v673 = vpack.c.bf16 %v661, %v661
    %v674 = vpack.c.bf16 %v662, %v662
    %v675 = vpack.c.bf16 %v663, %v663
    %v676 = vpack.c.bf16 %v664, %v664
    %v677 = vpack.c.bf16 %v665, %v665
    %v678 = vpack.c.bf16 %v666, %v666
    %v679 = vpack.c.bf16 %v667, %v667
    %v680 = vld [vmem:[#allocation8] sm:$0xff]
    %v681 = vld [vmem:[#allocation8 + $0x8] sm:$0xff]
    %v682 = vld [vmem:[#allocation8 + $0x10] sm:$0xff]
    %v683 = vld [vmem:[#allocation8 + $0x18] sm:$0xff]
    %v684 = vld [vmem:[#allocation8 + $0x20] sm:$0xff]
    %v685 = vld [vmem:[#allocation8 + $0x28] sm:$0xff]
    %v686 = vld [vmem:[#allocation8 + $0x30] sm:$0xff]
    %v687 = vld [vmem:[#allocation8 + $0x38] sm:$0xff]
    %v688 = vld [vmem:[#allocation8 + $0x40] sm:$0xff]
    %v689 = vld [vmem:[#allocation8 + $0x48] sm:$0xff]
    %v690 = vld [vmem:[#allocation8 + $0x50] sm:$0xff]
    %v691 = vld [vmem:[#allocation8 + $0x58] sm:$0xff]
    %v692 = vld [vmem:[#allocation8 + $0x60] sm:$0xff]
    %v693 = vld [vmem:[#allocation8 + $0x68] sm:$0xff]
    %v694 = vld [vmem:[#allocation8 + $0x70] sm:$0xff]
    %v695 = vld [vmem:[#allocation8 + $0x78] sm:$0xff]
    %v696 = vld [vmem:[#allocation8 + $0x80] sm:$0xff]
    %v697 = vld [vmem:[#allocation8 + $0x88] sm:$0xff]
    %v698 = vld [vmem:[#allocation8 + $0x90] sm:$0xff]
    %v699 = vld [vmem:[#allocation8 + $0x98] sm:$0xff]
    %v700 = vld [vmem:[#allocation8 + $0xa0] sm:$0xff]
    %v701 = vld [vmem:[#allocation8 + $0xa8] sm:$0xff]
    %v702 = vld [vmem:[#allocation8 + $0xb0] sm:$0xff]
    %v703 = vld [vmem:[#allocation8 + $0xb8] sm:$0xff]
    %v704 = vld [vmem:[#allocation8 + $0xc0] sm:$0xff]
    %v705 = vld [vmem:[#allocation8 + $0xc8] sm:$0xff]
    %v706 = vld [vmem:[#allocation8 + $0xd0] sm:$0xff]
    %v707 = vld [vmem:[#allocation8 + $0xd8] sm:$0xff]
    %v708 = vld [vmem:[#allocation8 + $0xe0] sm:$0xff]
    %v709 = vld [vmem:[#allocation8 + $0xe8] sm:$0xff]
    %v710 = vld [vmem:[#allocation8 + $0xf0] sm:$0xff]
    %v711 = vld [vmem:[#allocation8 + $0xf8] sm:$0xff]
    %v712 = vld [vmem:[#allocation8 + $0x100] sm:$0xff]
    %v713 = vld [vmem:[#allocation8 + $0x108] sm:$0xff]
    %v714 = vld [vmem:[#allocation8 + $0x110] sm:$0xff]
    %v715 = vld [vmem:[#allocation8 + $0x118] sm:$0xff]
    %v716 = vld [vmem:[#allocation8 + $0x120] sm:$0xff]
    %v717 = vld [vmem:[#allocation8 + $0x128] sm:$0xff]
    %v718 = vld [vmem:[#allocation8 + $0x130] sm:$0xff]
    %v719 = vld [vmem:[#allocation8 + $0x138] sm:$0xff]
    %v720 = vld [vmem:[#allocation8 + $0x140] sm:$0xff]
    %v721 = vld [vmem:[#allocation8 + $0x148] sm:$0xff]
    %v722 = vld [vmem:[#allocation8 + $0x150] sm:$0xff]
    %v723 = vld [vmem:[#allocation8 + $0x158] sm:$0xff]
    %v724 = vld [vmem:[#allocation8 + $0x160] sm:$0xff]
    %v725 = vld [vmem:[#allocation8 + $0x168] sm:$0xff]
    %v726 = vld [vmem:[#allocation8 + $0x170] sm:$0xff]
    %v727 = vld [vmem:[#allocation8 + $0x178] sm:$0xff]
    %v728 = vld [vmem:[#allocation8 + $0x180] sm:$0xff]
    %v729 = vld [vmem:[#allocation8 + $0x188] sm:$0xff]
    %v730 = vld [vmem:[#allocation8 + $0x190] sm:$0xff]
    %v731 = vld [vmem:[#allocation8 + $0x198] sm:$0xff]
    %v732 = vld [vmem:[#allocation8 + $0x1a0] sm:$0xff]
    %v733 = vld [vmem:[#allocation8 + $0x1a8] sm:$0xff]
    %v734 = vld [vmem:[#allocation8 + $0x1b0] sm:$0xff]
    %v735 = vld [vmem:[#allocation8 + $0x1b8] sm:$0xff]
    %v736 = vld [vmem:[#allocation8 + $0x1c0] sm:$0xff]
    %v737 = vld [vmem:[#allocation8 + $0x1c8] sm:$0xff]
    %v738 = vld [vmem:[#allocation8 + $0x1d0] sm:$0xff]
    %v739 = vld [vmem:[#allocation8 + $0x1d8] sm:$0xff]
    %v740 = vld [vmem:[#allocation8 + $0x1e0] sm:$0xff]
    %v741 = vld [vmem:[#allocation8 + $0x1e8] sm:$0xff]
    %v742 = vld [vmem:[#allocation8 + $0x1f0] sm:$0xff]
    %v743 = vld [vmem:[#allocation8 + $0x1f8] sm:$0xff]
    %v744 = vld [vmem:[#allocation8 + $0x200] sm:$0xff]
    %v745 = vld [vmem:[#allocation8 + $0x208] sm:$0xff]
    %v746 = vld [vmem:[#allocation8 + $0x210] sm:$0xff]
    %v747 = vld [vmem:[#allocation8 + $0x218] sm:$0xff]
    %v748 = vld [vmem:[#allocation8 + $0x220] sm:$0xff]
    %v749 = vld [vmem:[#allocation8 + $0x228] sm:$0xff]
    %v750 = vld [vmem:[#allocation8 + $0x230] sm:$0xff]
    %v751 = vld [vmem:[#allocation8 + $0x238] sm:$0xff]
    %v752 = vld [vmem:[#allocation8 + $0x240] sm:$0xff]
    %v753 = vld [vmem:[#allocation8 + $0x248] sm:$0xff]
    %v754 = vld [vmem:[#allocation8 + $0x250] sm:$0xff]
    %v755 = vld [vmem:[#allocation8 + $0x258] sm:$0xff]
    %v756 = vld [vmem:[#allocation8 + $0x260] sm:$0xff]
    %v757 = vld [vmem:[#allocation8 + $0x268] sm:$0xff]
    %v758 = vld [vmem:[#allocation8 + $0x270] sm:$0xff]
    %v759 = vld [vmem:[#allocation8 + $0x278] sm:$0xff]
    %v760 = vld [vmem:[#allocation8 + $0x280] sm:$0xff]
    %v761 = vld [vmem:[#allocation8 + $0x288] sm:$0xff]
    %v762 = vld [vmem:[#allocation8 + $0x290] sm:$0xff]
    %v763 = vld [vmem:[#allocation8 + $0x298] sm:$0xff]
    %v764 = vld [vmem:[#allocation8 + $0x2a0] sm:$0xff]
    %v765 = vld [vmem:[#allocation8 + $0x2a8] sm:$0xff]
    %v766 = vld [vmem:[#allocation8 + $0x2b0] sm:$0xff]
    %v767 = vld [vmem:[#allocation8 + $0x2b8] sm:$0xff]
    %v768 = vld [vmem:[#allocation8 + $0x2c0] sm:$0xff]
    %v769 = vld [vmem:[#allocation8 + $0x2c8] sm:$0xff]
    %v770 = vld [vmem:[#allocation8 + $0x2d0] sm:$0xff]
    %v771 = vld [vmem:[#allocation8 + $0x2d8] sm:$0xff]
    %v772 = vld [vmem:[#allocation8 + $0x2e0] sm:$0xff]
    %v773 = vld [vmem:[#allocation8 + $0x2e8] sm:$0xff]
    %v774 = vld [vmem:[#allocation8 + $0x2f0] sm:$0xff]
    %v775 = vld [vmem:[#allocation8 + $0x2f8] sm:$0xff]
    %v776 = vld [vmem:[#allocation8 + $0x300] sm:$0xff]
    %v777 = vld [vmem:[#allocation8 + $0x308] sm:$0xff]
    %v778 = vld [vmem:[#allocation8 + $0x310] sm:$0xff]
    %v779 = vld [vmem:[#allocation8 + $0x318] sm:$0xff]
    %v780 = vld [vmem:[#allocation8 + $0x320] sm:$0xff]
    %v781 = vld [vmem:[#allocation8 + $0x328] sm:$0xff]
    %v782 = vld [vmem:[#allocation8 + $0x330] sm:$0xff]
    %v783 = vld [vmem:[#allocation8 + $0x338] sm:$0xff]
    %v784 = vld [vmem:[#allocation8 + $0x340] sm:$0xff]
    %v785 = vld [vmem:[#allocation8 + $0x348] sm:$0xff]
    %v786 = vld [vmem:[#allocation8 + $0x350] sm:$0xff]
    %v787 = vld [vmem:[#allocation8 + $0x358] sm:$0xff]
    %v788 = vld [vmem:[#allocation8 + $0x360] sm:$0xff]
    %v789 = vld [vmem:[#allocation8 + $0x368] sm:$0xff]
    %v790 = vld [vmem:[#allocation8 + $0x370] sm:$0xff]
    %v791 = vld [vmem:[#allocation8 + $0x378] sm:$0xff]
    %v792 = vld [vmem:[#allocation8 + $0x380] sm:$0xff]
    %v793 = vld [vmem:[#allocation8 + $0x388] sm:$0xff]
    %v794 = vld [vmem:[#allocation8 + $0x390] sm:$0xff]
    %v795 = vld [vmem:[#allocation8 + $0x398] sm:$0xff]
    %v796 = vld [vmem:[#allocation8 + $0x3a0] sm:$0xff]
    %v797 = vld [vmem:[#allocation8 + $0x3a8] sm:$0xff]
    %v798 = vld [vmem:[#allocation8 + $0x3b0] sm:$0xff]
    %v799 = vld [vmem:[#allocation8 + $0x3b8] sm:$0xff]
    %v800 = vld [vmem:[#allocation8 + $0x3c0] sm:$0xff]
    %v801 = vld [vmem:[#allocation8 + $0x3c8] sm:$0xff]
    %v802 = vld [vmem:[#allocation8 + $0x3d0] sm:$0xff]
    %v803 = vld [vmem:[#allocation8 + $0x3d8] sm:$0xff]
    %v804 = vld [vmem:[#allocation8 + $0x3e0] sm:$0xff]
    %v805 = vld [vmem:[#allocation8 + $0x3e8] sm:$0xff]
    %v806 = vld [vmem:[#allocation8 + $0x3f0] sm:$0xff]
    %v807 = vld [vmem:[#allocation8 + $0x3f8] sm:$0xff]
    %v808 = vld [vmem:[#allocation8 + $0x400] sm:$0xff]
    %v809 = vld [vmem:[#allocation8 + $0x408] sm:$0xff]
    %v810 = vld [vmem:[#allocation8 + $0x410] sm:$0xff]
    %v811 = vld [vmem:[#allocation8 + $0x418] sm:$0xff]
    %v812 = vld [vmem:[#allocation8 + $0x420] sm:$0xff]
    %v813 = vld [vmem:[#allocation8 + $0x428] sm:$0xff]
    %v814 = vld [vmem:[#allocation8 + $0x430] sm:$0xff]
    %v815 = vld [vmem:[#allocation8 + $0x438] sm:$0xff]
    %v816 = vld [vmem:[#allocation8 + $0x440] sm:$0xff]
    %v817 = vld [vmem:[#allocation8 + $0x448] sm:$0xff]
    %v818 = vld [vmem:[#allocation8 + $0x450] sm:$0xff]
    %v819 = vld [vmem:[#allocation8 + $0x458] sm:$0xff]
    %v820 = vld [vmem:[#allocation8 + $0x460] sm:$0xff]
    %v821 = vld [vmem:[#allocation8 + $0x468] sm:$0xff]
    %v822 = vld [vmem:[#allocation8 + $0x470] sm:$0xff]
    %v823 = vld [vmem:[#allocation8 + $0x478] sm:$0xff]
    %v824 = vld [vmem:[#allocation8 + $0x480] sm:$0xff]
    %v825 = vld [vmem:[#allocation8 + $0x488] sm:$0xff]
    %v826 = vld [vmem:[#allocation8 + $0x490] sm:$0xff]
    %v827 = vld [vmem:[#allocation8 + $0x498] sm:$0xff]
    %v828 = vld [vmem:[#allocation8 + $0x4a0] sm:$0xff]
    %v829 = vld [vmem:[#allocation8 + $0x4a8] sm:$0xff]
    %v830 = vld [vmem:[#allocation8 + $0x4b0] sm:$0xff]
    %v831 = vld [vmem:[#allocation8 + $0x4b8] sm:$0xff]
    %v832 = vld [vmem:[#allocation8 + $0x4c0] sm:$0xff]
    %v833 = vld [vmem:[#allocation8 + $0x4c8] sm:$0xff]
    %v834 = vld [vmem:[#allocation8 + $0x4d0] sm:$0xff]
    %v835 = vld [vmem:[#allocation8 + $0x4d8] sm:$0xff]
    %v836 = vld [vmem:[#allocation8 + $0x4e0] sm:$0xff]
    %v837 = vld [vmem:[#allocation8 + $0x4e8] sm:$0xff]
    %v838 = vld [vmem:[#allocation8 + $0x4f0] sm:$0xff]
    %v839 = vld [vmem:[#allocation8 + $0x4f8] sm:$0xff]
    %v840 = vld [vmem:[#allocation8 + $0x500] sm:$0xff]
    %v841 = vld [vmem:[#allocation8 + $0x508] sm:$0xff]
    %v842 = vld [vmem:[#allocation8 + $0x510] sm:$0xff]
    %v843 = vld [vmem:[#allocation8 + $0x518] sm:$0xff]
    %v844 = vld [vmem:[#allocation8 + $0x520] sm:$0xff]
    %v845 = vld [vmem:[#allocation8 + $0x528] sm:$0xff]
    %v846 = vld [vmem:[#allocation8 + $0x530] sm:$0xff]
    %v847 = vld [vmem:[#allocation8 + $0x538] sm:$0xff]
    %v848 = vld [vmem:[#allocation8 + $0x540] sm:$0xff]
    %v849 = vld [vmem:[#allocation8 + $0x548] sm:$0xff]
    %v850 = vld [vmem:[#allocation8 + $0x550] sm:$0xff]
    %v851 = vld [vmem:[#allocation8 + $0x558] sm:$0xff]
    %v852 = vld [vmem:[#allocation8 + $0x560] sm:$0xff]
    %v853 = vld [vmem:[#allocation8 + $0x568] sm:$0xff]
    %v854 = vld [vmem:[#allocation8 + $0x570] sm:$0xff]
    %v855 = vld [vmem:[#allocation8 + $0x578] sm:$0xff]
    %v856 = vld [vmem:[#allocation8 + $0x580] sm:$0xff]
    %v857 = vld [vmem:[#allocation8 + $0x588] sm:$0xff]
    %v858 = vld [vmem:[#allocation8 + $0x590] sm:$0xff]
    %v859 = vld [vmem:[#allocation8 + $0x598] sm:$0xff]
    %v860 = vld [vmem:[#allocation8 + $0x5a0] sm:$0xff]
    %v861 = vld [vmem:[#allocation8 + $0x5a8] sm:$0xff]
    %v862 = vld [vmem:[#allocation8 + $0x5b0] sm:$0xff]
    %v863 = vld [vmem:[#allocation8 + $0x5b8] sm:$0xff]
    %v864 = vld [vmem:[#allocation8 + $0x5c0] sm:$0xff]
    %v865 = vld [vmem:[#allocation8 + $0x5c8] sm:$0xff]
    %v866 = vld [vmem:[#allocation8 + $0x5d0] sm:$0xff]
    %v867 = vld [vmem:[#allocation8 + $0x5d8] sm:$0xff]
    %v868 = vld [vmem:[#allocation8 + $0x5e0] sm:$0xff]
    %v869 = vld [vmem:[#allocation8 + $0x5e8] sm:$0xff]
    %v870 = vld [vmem:[#allocation8 + $0x5f0] sm:$0xff]
    %v871 = vld [vmem:[#allocation8 + $0x5f8] sm:$0xff]
    %v872 = vld [vmem:[#allocation8 + $0x600] sm:$0xff]
    %v873 = vld [vmem:[#allocation8 + $0x608] sm:$0xff]
    %v874 = vld [vmem:[#allocation8 + $0x610] sm:$0xff]
    %v875 = vld [vmem:[#allocation8 + $0x618] sm:$0xff]
    %v876 = vld [vmem:[#allocation8 + $0x620] sm:$0xff]
    %v877 = vld [vmem:[#allocation8 + $0x628] sm:$0xff]
    %v878 = vld [vmem:[#allocation8 + $0x630] sm:$0xff]
    %v879 = vld [vmem:[#allocation8 + $0x638] sm:$0xff]
    %v880 = vld [vmem:[#allocation8 + $0x640] sm:$0xff]
    %v881 = vld [vmem:[#allocation8 + $0x648] sm:$0xff]
    %v882 = vld [vmem:[#allocation8 + $0x650] sm:$0xff]
    %v883 = vld [vmem:[#allocation8 + $0x658] sm:$0xff]
    %v884 = vld [vmem:[#allocation8 + $0x660] sm:$0xff]
    %v885 = vld [vmem:[#allocation8 + $0x668] sm:$0xff]
    %v886 = vld [vmem:[#allocation8 + $0x670] sm:$0xff]
    %v887 = vld [vmem:[#allocation8 + $0x678] sm:$0xff]
    %v888 = vld [vmem:[#allocation8 + $0x680] sm:$0xff]
    %v889 = vld [vmem:[#allocation8 + $0x688] sm:$0xff]
    %v890 = vld [vmem:[#allocation8 + $0x690] sm:$0xff]
    %v891 = vld [vmem:[#allocation8 + $0x698] sm:$0xff]
    %v892 = vld [vmem:[#allocation8 + $0x6a0] sm:$0xff]
    %v893 = vld [vmem:[#allocation8 + $0x6a8] sm:$0xff]
    %v894 = vld [vmem:[#allocation8 + $0x6b0] sm:$0xff]
    %v895 = vld [vmem:[#allocation8 + $0x6b8] sm:$0xff]
    %v896 = vld [vmem:[#allocation8 + $0x6c0] sm:$0xff]
    %v897 = vld [vmem:[#allocation8 + $0x6c8] sm:$0xff]
    %v898 = vld [vmem:[#allocation8 + $0x6d0] sm:$0xff]
    %v899 = vld [vmem:[#allocation8 + $0x6d8] sm:$0xff]
    %v900 = vld [vmem:[#allocation8 + $0x6e0] sm:$0xff]
    %v901 = vld [vmem:[#allocation8 + $0x6e8] sm:$0xff]
    %v902 = vld [vmem:[#allocation8 + $0x6f0] sm:$0xff]
    %v903 = vld [vmem:[#allocation8 + $0x6f8] sm:$0xff]
    %v904 = vld [vmem:[#allocation8 + $0x700] sm:$0xff]
    %v905 = vld [vmem:[#allocation8 + $0x708] sm:$0xff]
    %v906 = vld [vmem:[#allocation8 + $0x710] sm:$0xff]
    %v907 = vld [vmem:[#allocation8 + $0x718] sm:$0xff]
    %v908 = vld [vmem:[#allocation8 + $0x720] sm:$0xff]
    %v909 = vld [vmem:[#allocation8 + $0x728] sm:$0xff]
    %v910 = vld [vmem:[#allocation8 + $0x730] sm:$0xff]
    %v911 = vld [vmem:[#allocation8 + $0x738] sm:$0xff]
    %v912 = vld [vmem:[#allocation8 + $0x740] sm:$0xff]
    %v913 = vld [vmem:[#allocation8 + $0x748] sm:$0xff]
    %v914 = vld [vmem:[#allocation8 + $0x750] sm:$0xff]
    %v915 = vld [vmem:[#allocation8 + $0x758] sm:$0xff]
    %v916 = vld [vmem:[#allocation8 + $0x760] sm:$0xff]
    %v917 = vld [vmem:[#allocation8 + $0x768] sm:$0xff]
    %v918 = vld [vmem:[#allocation8 + $0x770] sm:$0xff]
    %v919 = vld [vmem:[#allocation8 + $0x778] sm:$0xff]
    %v920 = vld [vmem:[#allocation8 + $0x780] sm:$0xff]
    %v921 = vld [vmem:[#allocation8 + $0x788] sm:$0xff]
    %v922 = vld [vmem:[#allocation8 + $0x790] sm:$0xff]
    %v923 = vld [vmem:[#allocation8 + $0x798] sm:$0xff]
    %v924 = vld [vmem:[#allocation8 + $0x7a0] sm:$0xff]
    %v925 = vld [vmem:[#allocation8 + $0x7a8] sm:$0xff]
    %v926 = vld [vmem:[#allocation8 + $0x7b0] sm:$0xff]
    %v927 = vld [vmem:[#allocation8 + $0x7b8] sm:$0xff]
    %v928 = vld [vmem:[#allocation8 + $0x7c0] sm:$0xff]
    %v929 = vld [vmem:[#allocation8 + $0x7c8] sm:$0xff]
    %v930 = vld [vmem:[#allocation8 + $0x7d0] sm:$0xff]
    %v931 = vld [vmem:[#allocation8 + $0x7d8] sm:$0xff]
    %v932 = vld [vmem:[#allocation8 + $0x7e0] sm:$0xff]
    %v933 = vld [vmem:[#allocation8 + $0x7e8] sm:$0xff]
    %v934 = vld [vmem:[#allocation8 + $0x7f0] sm:$0xff]
    %v935 = vld [vmem:[#allocation8 + $0x7f8] sm:$0xff]
    %v936 = vld [vmem:[#allocation8 + $0x800] sm:$0xff]
    %v937 = vld [vmem:[#allocation8 + $0x808] sm:$0xff]
    %v938 = vld [vmem:[#allocation8 + $0x810] sm:$0xff]
    %v939 = vld [vmem:[#allocation8 + $0x818] sm:$0xff]
    %v940 = vld [vmem:[#allocation8 + $0x820] sm:$0xff]
    %v941 = vld [vmem:[#allocation8 + $0x828] sm:$0xff]
    %v942 = vld [vmem:[#allocation8 + $0x830] sm:$0xff]
    %v943 = vld [vmem:[#allocation8 + $0x838] sm:$0xff]
    %v944 = vld [vmem:[#allocation8 + $0x840] sm:$0xff]
    %v945 = vld [vmem:[#allocation8 + $0x848] sm:$0xff]
    %v946 = vld [vmem:[#allocation8 + $0x850] sm:$0xff]
    %v947 = vld [vmem:[#allocation8 + $0x858] sm:$0xff]
    %v948 = vld [vmem:[#allocation8 + $0x860] sm:$0xff]
    %v949 = vld [vmem:[#allocation8 + $0x868] sm:$0xff]
    %v950 = vld [vmem:[#allocation8 + $0x870] sm:$0xff]
    %v951 = vld [vmem:[#allocation8 + $0x878] sm:$0xff]
    %v952 = vld [vmem:[#allocation8 + $0x880] sm:$0xff]
    %v953 = vld [vmem:[#allocation8 + $0x888] sm:$0xff]
    %v954 = vld [vmem:[#allocation8 + $0x890] sm:$0xff]
    %v955 = vld [vmem:[#allocation8 + $0x898] sm:$0xff]
    %v956 = vld [vmem:[#allocation8 + $0x8a0] sm:$0xff]
    %v957 = vld [vmem:[#allocation8 + $0x8a8] sm:$0xff]
    %v958 = vld [vmem:[#allocation8 + $0x8b0] sm:$0xff]
    %v959 = vld [vmem:[#allocation8 + $0x8b8] sm:$0xff]
    %v960 = vld [vmem:[#allocation8 + $0x8c0] sm:$0xff]
    %v961 = vld [vmem:[#allocation8 + $0x8c8] sm:$0xff]
    %v962 = vld [vmem:[#allocation8 + $0x8d0] sm:$0xff]
    %v963 = vld [vmem:[#allocation8 + $0x8d8] sm:$0xff]
    %v964 = vld [vmem:[#allocation8 + $0x8e0] sm:$0xff]
    %v965 = vld [vmem:[#allocation8 + $0x8e8] sm:$0xff]
    %v966 = vld [vmem:[#allocation8 + $0x8f0] sm:$0xff]
    %v967 = vld [vmem:[#allocation8 + $0x8f8] sm:$0xff]
    %v968 = vld [vmem:[#allocation8 + $0x900] sm:$0xff]
    %v969 = vld [vmem:[#allocation8 + $0x908] sm:$0xff]
    %v970 = vld [vmem:[#allocation8 + $0x910] sm:$0xff]
    %v971 = vld [vmem:[#allocation8 + $0x918] sm:$0xff]
    %v972 = vld [vmem:[#allocation8 + $0x920] sm:$0xff]
    %v973 = vld [vmem:[#allocation8 + $0x928] sm:$0xff]
    %v974 = vld [vmem:[#allocation8 + $0x930] sm:$0xff]
    %v975 = vld [vmem:[#allocation8 + $0x938] sm:$0xff]
    %v976 = vld [vmem:[#allocation8 + $0x940] sm:$0xff]
    %v977 = vld [vmem:[#allocation8 + $0x948] sm:$0xff]
    %v978 = vld [vmem:[#allocation8 + $0x950] sm:$0xff]
    %v979 = vld [vmem:[#allocation8 + $0x958] sm:$0xff]
    %v980 = vld [vmem:[#allocation8 + $0x960] sm:$0xff]
    %v981 = vld [vmem:[#allocation8 + $0x968] sm:$0xff]
    %v982 = vld [vmem:[#allocation8 + $0x970] sm:$0xff]
    %v983 = vld [vmem:[#allocation8 + $0x978] sm:$0xff]
    %v984 = vld [vmem:[#allocation8 + $0x980] sm:$0xff]
    %v985 = vld [vmem:[#allocation8 + $0x988] sm:$0xff]
    %v986 = vld [vmem:[#allocation8 + $0x990] sm:$0xff]
    %v987 = vld [vmem:[#allocation8 + $0x998] sm:$0xff]
    %v988 = vld [vmem:[#allocation8 + $0x9a0] sm:$0xff]
    %v989 = vld [vmem:[#allocation8 + $0x9a8] sm:$0xff]
    %v990 = vld [vmem:[#allocation8 + $0x9b0] sm:$0xff]
    %v991 = vld [vmem:[#allocation8 + $0x9b8] sm:$0xff]
    %v992 = vld [vmem:[#allocation8 + $0x9c0] sm:$0xff]
    %v993 = vld [vmem:[#allocation8 + $0x9c8] sm:$0xff]
    %v994 = vld [vmem:[#allocation8 + $0x9d0] sm:$0xff]
    %v995 = vld [vmem:[#allocation8 + $0x9d8] sm:$0xff]
    %v996 = vld [vmem:[#allocation8 + $0x9e0] sm:$0xff]
    %v997 = vld [vmem:[#allocation8 + $0x9e8] sm:$0xff]
    %v998 = vld [vmem:[#allocation8 + $0x9f0] sm:$0xff]
    %v999 = vld [vmem:[#allocation8 + $0x9f8] sm:$0xff]
    %v1000 = vld [vmem:[#allocation8 + $0xa00] sm:$0xff]
    %v1001 = vld [vmem:[#allocation8 + $0xa08] sm:$0xff]
    %v1002 = vld [vmem:[#allocation8 + $0xa10] sm:$0xff]
    %v1003 = vld [vmem:[#allocation8 + $0xa18] sm:$0xff]
    %v1004 = vld [vmem:[#allocation8 + $0xa20] sm:$0xff]
    %v1005 = vld [vmem:[#allocation8 + $0xa28] sm:$0xff]
    %v1006 = vld [vmem:[#allocation8 + $0xa30] sm:$0xff]
    %v1007 = vld [vmem:[#allocation8 + $0xa38] sm:$0xff]
    %v1008 = vld [vmem:[#allocation8 + $0xa40] sm:$0xff]
    %v1009 = vld [vmem:[#allocation8 + $0xa48] sm:$0xff]
    %v1010 = vld [vmem:[#allocation8 + $0xa50] sm:$0xff]
    %v1011 = vld [vmem:[#allocation8 + $0xa58] sm:$0xff]
    %v1012 = vld [vmem:[#allocation8 + $0xa60] sm:$0xff]
    %v1013 = vld [vmem:[#allocation8 + $0xa68] sm:$0xff]
    %v1014 = vld [vmem:[#allocation8 + $0xa70] sm:$0xff]
    %v1015 = vld [vmem:[#allocation8 + $0xa78] sm:$0xff]
    %v1016 = vld [vmem:[#allocation8 + $0xa80] sm:$0xff]
    %v1017 = vld [vmem:[#allocation8 + $0xa88] sm:$0xff]
    %v1018 = vld [vmem:[#allocation8 + $0xa90] sm:$0xff]
    %v1019 = vld [vmem:[#allocation8 + $0xa98] sm:$0xff]
    %v1020 = vld [vmem:[#allocation8 + $0xaa0] sm:$0xff]
    %v1021 = vld [vmem:[#allocation8 + $0xaa8] sm:$0xff]
    %v1022 = vld [vmem:[#allocation8 + $0xab0] sm:$0xff]
    %v1023 = vld [vmem:[#allocation8 + $0xab8] sm:$0xff]
    %v1024 = vld [vmem:[#allocation8 + $0xac0] sm:$0xff]
    %v1025 = vld [vmem:[#allocation8 + $0xac8] sm:$0xff]
    %v1026 = vld [vmem:[#allocation8 + $0xad0] sm:$0xff]
    %v1027 = vld [vmem:[#allocation8 + $0xad8] sm:$0xff]
    %v1028 = vld [vmem:[#allocation8 + $0xae0] sm:$0xff]
    %v1029 = vld [vmem:[#allocation8 + $0xae8] sm:$0xff]
    %v1030 = vld [vmem:[#allocation8 + $0xaf0] sm:$0xff]
    %v1031 = vld [vmem:[#allocation8 + $0xaf8] sm:$0xff]
    %v1032 = vld [vmem:[#allocation8 + $0xb00] sm:$0xff]
    %v1033 = vld [vmem:[#allocation8 + $0xb08] sm:$0xff]
    %v1034 = vld [vmem:[#allocation8 + $0xb10] sm:$0xff]
    %v1035 = vld [vmem:[#allocation8 + $0xb18] sm:$0xff]
    %v1036 = vld [vmem:[#allocation8 + $0xb20] sm:$0xff]
    %v1037 = vld [vmem:[#allocation8 + $0xb28] sm:$0xff]
    %v1038 = vld [vmem:[#allocation8 + $0xb30] sm:$0xff]
    %v1039 = vld [vmem:[#allocation8 + $0xb38] sm:$0xff]
    %v1040 = vld [vmem:[#allocation8 + $0xb40] sm:$0xff]
    %v1041 = vld [vmem:[#allocation8 + $0xb48] sm:$0xff]
    %v1042 = vld [vmem:[#allocation8 + $0xb50] sm:$0xff]
    %v1043 = vld [vmem:[#allocation8 + $0xb58] sm:$0xff]
    %v1044 = vld [vmem:[#allocation8 + $0xb60] sm:$0xff]
    %v1045 = vld [vmem:[#allocation8 + $0xb68] sm:$0xff]
    %v1046 = vld [vmem:[#allocation8 + $0xb70] sm:$0xff]
    %v1047 = vld [vmem:[#allocation8 + $0xb78] sm:$0xff]
    %v1048 = vld [vmem:[#allocation8 + $0xb80] sm:$0xff]
    %v1049 = vld [vmem:[#allocation8 + $0xb88] sm:$0xff]
    %v1050 = vld [vmem:[#allocation8 + $0xb90] sm:$0xff]
    %v1051 = vld [vmem:[#allocation8 + $0xb98] sm:$0xff]
    %v1052 = vld [vmem:[#allocation8 + $0xba0] sm:$0xff]
    %v1053 = vld [vmem:[#allocation8 + $0xba8] sm:$0xff]
    %v1054 = vld [vmem:[#allocation8 + $0xbb0] sm:$0xff]
    %v1055 = vld [vmem:[#allocation8 + $0xbb8] sm:$0xff]
    %v1056 = vld [vmem:[#allocation8 + $0xbc0] sm:$0xff]
    %v1057 = vld [vmem:[#allocation8 + $0xbc8] sm:$0xff]
    %v1058 = vld [vmem:[#allocation8 + $0xbd0] sm:$0xff]
    %v1059 = vld [vmem:[#allocation8 + $0xbd8] sm:$0xff]
    %v1060 = vld [vmem:[#allocation8 + $0xbe0] sm:$0xff]
    %v1061 = vld [vmem:[#allocation8 + $0xbe8] sm:$0xff]
    %v1062 = vld [vmem:[#allocation8 + $0xbf0] sm:$0xff]
    %v1063 = vld [vmem:[#allocation8 + $0xbf8] sm:$0xff]
    %v1064 = vld [vmem:[#allocation8 + $0xc00] sm:$0xff]
    %v1065 = vld [vmem:[#allocation8 + $0xc08] sm:$0xff]
    %v1066 = vld [vmem:[#allocation8 + $0xc10] sm:$0xff]
    %v1067 = vld [vmem:[#allocation8 + $0xc18] sm:$0xff]
    %v1068 = vld [vmem:[#allocation8 + $0xc20] sm:$0xff]
    %v1069 = vld [vmem:[#allocation8 + $0xc28] sm:$0xff]
    %v1070 = vld [vmem:[#allocation8 + $0xc30] sm:$0xff]
    %v1071 = vld [vmem:[#allocation8 + $0xc38] sm:$0xff]
    %v1072 = vld [vmem:[#allocation8 + $0xc40] sm:$0xff]
    %v1073 = vld [vmem:[#allocation8 + $0xc48] sm:$0xff]
    %v1074 = vld [vmem:[#allocation8 + $0xc50] sm:$0xff]
    %v1075 = vld [vmem:[#allocation8 + $0xc58] sm:$0xff]
    %v1076 = vld [vmem:[#allocation8 + $0xc60] sm:$0xff]
    %v1077 = vld [vmem:[#allocation8 + $0xc68] sm:$0xff]
    %v1078 = vld [vmem:[#allocation8 + $0xc70] sm:$0xff]
    %v1079 = vld [vmem:[#allocation8 + $0xc78] sm:$0xff]
    %v1080 = vld [vmem:[#allocation8 + $0xc80] sm:$0xff]
    %v1081 = vld [vmem:[#allocation8 + $0xc88] sm:$0xff]
    %v1082 = vld [vmem:[#allocation8 + $0xc90] sm:$0xff]
    %v1083 = vld [vmem:[#allocation8 + $0xc98] sm:$0xff]
    %v1084 = vld [vmem:[#allocation8 + $0xca0] sm:$0xff]
    %v1085 = vld [vmem:[#allocation8 + $0xca8] sm:$0xff]
    %v1086 = vld [vmem:[#allocation8 + $0xcb0] sm:$0xff]
    %v1087 = vld [vmem:[#allocation8 + $0xcb8] sm:$0xff]
    %v1088 = vld [vmem:[#allocation8 + $0xcc0] sm:$0xff]
    %v1089 = vld [vmem:[#allocation8 + $0xcc8] sm:$0xff]
    %v1090 = vld [vmem:[#allocation8 + $0xcd0] sm:$0xff]
    %v1091 = vld [vmem:[#allocation8 + $0xcd8] sm:$0xff]
    %v1092 = vld [vmem:[#allocation8 + $0xce0] sm:$0xff]
    %v1093 = vld [vmem:[#allocation8 + $0xce8] sm:$0xff]
    %v1094 = vld [vmem:[#allocation8 + $0xcf0] sm:$0xff]
    %v1095 = vld [vmem:[#allocation8 + $0xcf8] sm:$0xff]
    %v1096 = vld [vmem:[#allocation8 + $0xd00] sm:$0xff]
    %v1097 = vld [vmem:[#allocation8 + $0xd08] sm:$0xff]
    %v1098 = vld [vmem:[#allocation8 + $0xd10] sm:$0xff]
    %v1099 = vld [vmem:[#allocation8 + $0xd18] sm:$0xff]
    %v1100 = vld [vmem:[#allocation8 + $0xd20] sm:$0xff]
    %v1101 = vld [vmem:[#allocation8 + $0xd28] sm:$0xff]
    %v1102 = vld [vmem:[#allocation8 + $0xd30] sm:$0xff]
    %v1103 = vld [vmem:[#allocation8 + $0xd38] sm:$0xff]
    %v1104 = vld [vmem:[#allocation8 + $0xd40] sm:$0xff]
    %v1105 = vld [vmem:[#allocation8 + $0xd48] sm:$0xff]
    %v1106 = vld [vmem:[#allocation8 + $0xd50] sm:$0xff]
    %v1107 = vld [vmem:[#allocation8 + $0xd58] sm:$0xff]
    %v1108 = vld [vmem:[#allocation8 + $0xd60] sm:$0xff]
    %v1109 = vld [vmem:[#allocation8 + $0xd68] sm:$0xff]
    %v1110 = vld [vmem:[#allocation8 + $0xd70] sm:$0xff]
    %v1111 = vld [vmem:[#allocation8 + $0xd78] sm:$0xff]
    %v1112 = vld [vmem:[#allocation8 + $0xd80] sm:$0xff]
    %v1113 = vld [vmem:[#allocation8 + $0xd88] sm:$0xff]
    %v1114 = vld [vmem:[#allocation8 + $0xd90] sm:$0xff]
    %v1115 = vld [vmem:[#allocation8 + $0xd98] sm:$0xff]
    %v1116 = vld [vmem:[#allocation8 + $0xda0] sm:$0xff]
    %v1117 = vld [vmem:[#allocation8 + $0xda8] sm:$0xff]
    %v1118 = vld [vmem:[#allocation8 + $0xdb0] sm:$0xff]
    %v1119 = vld [vmem:[#allocation8 + $0xdb8] sm:$0xff]
    %v1120 = vld [vmem:[#allocation8 + $0xdc0] sm:$0xff]
    %v1121 = vld [vmem:[#allocation8 + $0xdc8] sm:$0xff]
    %v1122 = vld [vmem:[#allocation8 + $0xdd0] sm:$0xff]
    %v1123 = vld [vmem:[#allocation8 + $0xdd8] sm:$0xff]
    %v1124 = vld [vmem:[#allocation8 + $0xde0] sm:$0xff]
    %v1125 = vld [vmem:[#allocation8 + $0xde8] sm:$0xff]
    %v1126 = vld [vmem:[#allocation8 + $0xdf0] sm:$0xff]
    %v1127 = vld [vmem:[#allocation8 + $0xdf8] sm:$0xff]
    %v1128 = vld [vmem:[#allocation8 + $0xe00] sm:$0xff]
    %v1129 = vld [vmem:[#allocation8 + $0xe08] sm:$0xff]
    %v1130 = vld [vmem:[#allocation8 + $0xe10] sm:$0xff]
    %v1131 = vld [vmem:[#allocation8 + $0xe18] sm:$0xff]
    %v1132 = vld [vmem:[#allocation8 + $0xe20] sm:$0xff]
    %v1133 = vld [vmem:[#allocation8 + $0xe28] sm:$0xff]
    %v1134 = vld [vmem:[#allocation8 + $0xe30] sm:$0xff]
    %v1135 = vld [vmem:[#allocation8 + $0xe38] sm:$0xff]
    %v1136 = vld [vmem:[#allocation8 + $0xe40] sm:$0xff]
    %v1137 = vld [vmem:[#allocation8 + $0xe48] sm:$0xff]
    %v1138 = vld [vmem:[#allocation8 + $0xe50] sm:$0xff]
    %v1139 = vld [vmem:[#allocation8 + $0xe58] sm:$0xff]
    %v1140 = vld [vmem:[#allocation8 + $0xe60] sm:$0xff]
    %v1141 = vld [vmem:[#allocation8 + $0xe68] sm:$0xff]
    %v1142 = vld [vmem:[#allocation8 + $0xe70] sm:$0xff]
    %v1143 = vld [vmem:[#allocation8 + $0xe78] sm:$0xff]
    %v1144 = vld [vmem:[#allocation8 + $0xe80] sm:$0xff]
    %v1145 = vld [vmem:[#allocation8 + $0xe88] sm:$0xff]
    %v1146 = vld [vmem:[#allocation8 + $0xe90] sm:$0xff]
    %v1147 = vld [vmem:[#allocation8 + $0xe98] sm:$0xff]
    %v1148 = vld [vmem:[#allocation8 + $0xea0] sm:$0xff]
    %v1149 = vld [vmem:[#allocation8 + $0xea8] sm:$0xff]
    %v1150 = vld [vmem:[#allocation8 + $0xeb0] sm:$0xff]
    %v1151 = vld [vmem:[#allocation8 + $0xeb8] sm:$0xff]
    %v1152 = vld [vmem:[#allocation8 + $0xec0] sm:$0xff]
    %v1153 = vld [vmem:[#allocation8 + $0xec8] sm:$0xff]
    %v1154 = vld [vmem:[#allocation8 + $0xed0] sm:$0xff]
    %v1155 = vld [vmem:[#allocation8 + $0xed8] sm:$0xff]
    %v1156 = vld [vmem:[#allocation8 + $0xee0] sm:$0xff]
    %v1157 = vld [vmem:[#allocation8 + $0xee8] sm:$0xff]
    %v1158 = vld [vmem:[#allocation8 + $0xef0] sm:$0xff]
    %v1159 = vld [vmem:[#allocation8 + $0xef8] sm:$0xff]
    %v1160 = vld [vmem:[#allocation8 + $0xf00] sm:$0xff]
    %v1161 = vld [vmem:[#allocation8 + $0xf08] sm:$0xff]
    %v1162 = vld [vmem:[#allocation8 + $0xf10] sm:$0xff]
    %v1163 = vld [vmem:[#allocation8 + $0xf18] sm:$0xff]
    %v1164 = vld [vmem:[#allocation8 + $0xf20] sm:$0xff]
    %v1165 = vld [vmem:[#allocation8 + $0xf28] sm:$0xff]
    %v1166 = vld [vmem:[#allocation8 + $0xf30] sm:$0xff]
    %v1167 = vld [vmem:[#allocation8 + $0xf38] sm:$0xff]
    %v1168 = vld [vmem:[#allocation8 + $0xf40] sm:$0xff]
    %v1169 = vld [vmem:[#allocation8 + $0xf48] sm:$0xff]
    %v1170 = vld [vmem:[#allocation8 + $0xf50] sm:$0xff]
    %v1171 = vld [vmem:[#allocation8 + $0xf58] sm:$0xff]
    %v1172 = vld [vmem:[#allocation8 + $0xf60] sm:$0xff]
    %v1173 = vld [vmem:[#allocation8 + $0xf68] sm:$0xff]
    %v1174 = vld [vmem:[#allocation8 + $0xf70] sm:$0xff]
    %v1175 = vld [vmem:[#allocation8 + $0xf78] sm:$0xff]
    %v1176 = vld [vmem:[#allocation8 + $0xf80] sm:$0xff]
    %v1177 = vld [vmem:[#allocation8 + $0xf88] sm:$0xff]
    %v1178 = vld [vmem:[#allocation8 + $0xf90] sm:$0xff]
    %v1179 = vld [vmem:[#allocation8 + $0xf98] sm:$0xff]
    %v1180 = vld [vmem:[#allocation8 + $0xfa0] sm:$0xff]
    %v1181 = vld [vmem:[#allocation8 + $0xfa8] sm:$0xff]
    %v1182 = vld [vmem:[#allocation8 + $0xfb0] sm:$0xff]
    %v1183 = vld [vmem:[#allocation8 + $0xfb8] sm:$0xff]
    %v1184 = vld [vmem:[#allocation8 + $0xfc0] sm:$0xff]
    %v1185 = vld [vmem:[#allocation8 + $0xfc8] sm:$0xff]
    %v1186 = vld [vmem:[#allocation8 + $0xfd0] sm:$0xff]
    %v1187 = vld [vmem:[#allocation8 + $0xfd8] sm:$0xff]
    %v1188 = vld [vmem:[#allocation8 + $0xfe0] sm:$0xff]
    %v1189 = vld [vmem:[#allocation8 + $0xfe8] sm:$0xff]
    %v1190 = vld [vmem:[#allocation8 + $0xff0] sm:$0xff]
    %v1191 = vld [vmem:[#allocation8 + $0xff8] sm:$0xff]
    %v1192 = vld [vmem:[#allocation8 + $0x1000] sm:$0xff]
    %v1193 = vld [vmem:[#allocation8 + $0x1008] sm:$0xff]
    %v1194 = vld [vmem:[#allocation8 + $0x1010] sm:$0xff]
    %v1195 = vld [vmem:[#allocation8 + $0x1018] sm:$0xff]
    %v1196 = vld [vmem:[#allocation8 + $0x1020] sm:$0xff]
    %v1197 = vld [vmem:[#allocation8 + $0x1028] sm:$0xff]
    %v1198 = vld [vmem:[#allocation8 + $0x1030] sm:$0xff]
    %v1199 = vld [vmem:[#allocation8 + $0x1038] sm:$0xff]
    %v1200 = vld [vmem:[#allocation8 + $0x1040] sm:$0xff]
    %v1201 = vld [vmem:[#allocation8 + $0x1048] sm:$0xff]
    %v1202 = vld [vmem:[#allocation8 + $0x1050] sm:$0xff]
    %v1203 = vld [vmem:[#allocation8 + $0x1058] sm:$0xff]
    %v1204 = vld [vmem:[#allocation8 + $0x1060] sm:$0xff]
    %v1205 = vld [vmem:[#allocation8 + $0x1068] sm:$0xff]
    %v1206 = vld [vmem:[#allocation8 + $0x1070] sm:$0xff]
    %v1207 = vld [vmem:[#allocation8 + $0x1078] sm:$0xff]
    %v1208 = vld [vmem:[#allocation8 + $0x1080] sm:$0xff]
    %v1209 = vld [vmem:[#allocation8 + $0x1088] sm:$0xff]
    %v1210 = vld [vmem:[#allocation8 + $0x1090] sm:$0xff]
    %v1211 = vld [vmem:[#allocation8 + $0x1098] sm:$0xff]
    %v1212 = vld [vmem:[#allocation8 + $0x10a0] sm:$0xff]
    %v1213 = vld [vmem:[#allocation8 + $0x10a8] sm:$0xff]
    %v1214 = vld [vmem:[#allocation8 + $0x10b0] sm:$0xff]
    %v1215 = vld [vmem:[#allocation8 + $0x10b8] sm:$0xff]
    %v1216 = vld [vmem:[#allocation8 + $0x10c0] sm:$0xff]
    %v1217 = vld [vmem:[#allocation8 + $0x10c8] sm:$0xff]
    %v1218 = vld [vmem:[#allocation8 + $0x10d0] sm:$0xff]
    %v1219 = vld [vmem:[#allocation8 + $0x10d8] sm:$0xff]
    %v1220 = vld [vmem:[#allocation8 + $0x10e0] sm:$0xff]
    %v1221 = vld [vmem:[#allocation8 + $0x10e8] sm:$0xff]
    %v1222 = vld [vmem:[#allocation8 + $0x10f0] sm:$0xff]
    %v1223 = vld [vmem:[#allocation8 + $0x10f8] sm:$0xff]
    %v1224 = vld [vmem:[#allocation8 + $0x1100] sm:$0xff]
    %v1225 = vld [vmem:[#allocation8 + $0x1108] sm:$0xff]
    %v1226 = vld [vmem:[#allocation8 + $0x1110] sm:$0xff]
    %v1227 = vld [vmem:[#allocation8 + $0x1118] sm:$0xff]
    %v1228 = vld [vmem:[#allocation8 + $0x1120] sm:$0xff]
    %v1229 = vld [vmem:[#allocation8 + $0x1128] sm:$0xff]
    %v1230 = vld [vmem:[#allocation8 + $0x1130] sm:$0xff]
    %v1231 = vld [vmem:[#allocation8 + $0x1138] sm:$0xff]
    %v1232 = vld [vmem:[#allocation8 + $0x1140] sm:$0xff]
    %v1233 = vld [vmem:[#allocation8 + $0x1148] sm:$0xff]
    %v1234 = vld [vmem:[#allocation8 + $0x1150] sm:$0xff]
    %v1235 = vld [vmem:[#allocation8 + $0x1158] sm:$0xff]
    %v1236 = vld [vmem:[#allocation8 + $0x1160] sm:$0xff]
    %v1237 = vld [vmem:[#allocation8 + $0x1168] sm:$0xff]
    %v1238 = vld [vmem:[#allocation8 + $0x1170] sm:$0xff]
    %v1239 = vld [vmem:[#allocation8 + $0x1178] sm:$0xff]
    %v1240 = vld [vmem:[#allocation8 + $0x1180] sm:$0xff]
    %v1241 = vld [vmem:[#allocation8 + $0x1188] sm:$0xff]
    %v1242 = vld [vmem:[#allocation8 + $0x1190] sm:$0xff]
    %v1243 = vld [vmem:[#allocation8 + $0x1198] sm:$0xff]
    %v1244 = vld [vmem:[#allocation8 + $0x11a0] sm:$0xff]
    %v1245 = vld [vmem:[#allocation8 + $0x11a8] sm:$0xff]
    %v1246 = vld [vmem:[#allocation8 + $0x11b0] sm:$0xff]
    %v1247 = vld [vmem:[#allocation8 + $0x11b8] sm:$0xff]
    %v1248 = vld [vmem:[#allocation8 + $0x11c0] sm:$0xff]
    %v1249 = vld [vmem:[#allocation8 + $0x11c8] sm:$0xff]
    %v1250 = vld [vmem:[#allocation8 + $0x11d0] sm:$0xff]
    %v1251 = vld [vmem:[#allocation8 + $0x11d8] sm:$0xff]
    %v1252 = vld [vmem:[#allocation8 + $0x11e0] sm:$0xff]
    %v1253 = vld [vmem:[#allocation8 + $0x11e8] sm:$0xff]
    %v1254 = vld [vmem:[#allocation8 + $0x11f0] sm:$0xff]
    %v1255 = vld [vmem:[#allocation8 + $0x11f8] sm:$0xff]
    %v1256 = vld [vmem:[#allocation8 + $0x1200] sm:$0xff]
    %v1257 = vld [vmem:[#allocation8 + $0x1208] sm:$0xff]
    %v1258 = vld [vmem:[#allocation8 + $0x1210] sm:$0xff]
    %v1259 = vld [vmem:[#allocation8 + $0x1218] sm:$0xff]
    %v1260 = vld [vmem:[#allocation8 + $0x1220] sm:$0xff]
    %v1261 = vld [vmem:[#allocation8 + $0x1228] sm:$0xff]
    %v1262 = vld [vmem:[#allocation8 + $0x1230] sm:$0xff]
    %v1263 = vld [vmem:[#allocation8 + $0x1238] sm:$0xff]
    %v1264 = vld [vmem:[#allocation8 + $0x1240] sm:$0xff]
    %v1265 = vld [vmem:[#allocation8 + $0x1248] sm:$0xff]
    %v1266 = vld [vmem:[#allocation8 + $0x1250] sm:$0xff]
    %v1267 = vld [vmem:[#allocation8 + $0x1258] sm:$0xff]
    %v1268 = vld [vmem:[#allocation8 + $0x1260] sm:$0xff]
    %v1269 = vld [vmem:[#allocation8 + $0x1268] sm:$0xff]
    %v1270 = vld [vmem:[#allocation8 + $0x1270] sm:$0xff]
    %v1271 = vld [vmem:[#allocation8 + $0x1278] sm:$0xff]
    %v1272 = vld [vmem:[#allocation8 + $0x1280] sm:$0xff]
    %v1273 = vld [vmem:[#allocation8 + $0x1288] sm:$0xff]
    %v1274 = vld [vmem:[#allocation8 + $0x1290] sm:$0xff]
    %v1275 = vld [vmem:[#allocation8 + $0x1298] sm:$0xff]
    %v1276 = vld [vmem:[#allocation8 + $0x12a0] sm:$0xff]
    %v1277 = vld [vmem:[#allocation8 + $0x12a8] sm:$0xff]
    %v1278 = vld [vmem:[#allocation8 + $0x12b0] sm:$0xff]
    %v1279 = vld [vmem:[#allocation8 + $0x12b8] sm:$0xff]
    %v1280 = vld [vmem:[#allocation8 + $0x12c0] sm:$0xff]
    %v1281 = vld [vmem:[#allocation8 + $0x12c8] sm:$0xff]
    %v1282 = vld [vmem:[#allocation8 + $0x12d0] sm:$0xff]
    %v1283 = vld [vmem:[#allocation8 + $0x12d8] sm:$0xff]
    %v1284 = vld [vmem:[#allocation8 + $0x12e0] sm:$0xff]
    %v1285 = vld [vmem:[#allocation8 + $0x12e8] sm:$0xff]
    %v1286 = vld [vmem:[#allocation8 + $0x12f0] sm:$0xff]
    %v1287 = vld [vmem:[#allocation8 + $0x12f8] sm:$0xff]
    %v1288 = vld [vmem:[#allocation8 + $0x1300] sm:$0xff]
    %v1289 = vld [vmem:[#allocation8 + $0x1308] sm:$0xff]
    %v1290 = vld [vmem:[#allocation8 + $0x1310] sm:$0xff]
    %v1291 = vld [vmem:[#allocation8 + $0x1318] sm:$0xff]
    %v1292 = vld [vmem:[#allocation8 + $0x1320] sm:$0xff]
    %v1293 = vld [vmem:[#allocation8 + $0x1328] sm:$0xff]
    %v1294 = vld [vmem:[#allocation8 + $0x1330] sm:$0xff]
    %v1295 = vld [vmem:[#allocation8 + $0x1338] sm:$0xff]
    %v1296 = vld [vmem:[#allocation8 + $0x1340] sm:$0xff]
    %v1297 = vld [vmem:[#allocation8 + $0x1348] sm:$0xff]
    %v1298 = vld [vmem:[#allocation8 + $0x1350] sm:$0xff]
    %v1299 = vld [vmem:[#allocation8 + $0x1358] sm:$0xff]
    %v1300 = vld [vmem:[#allocation8 + $0x1360] sm:$0xff]
    %v1301 = vld [vmem:[#allocation8 + $0x1368] sm:$0xff]
    %v1302 = vld [vmem:[#allocation8 + $0x1370] sm:$0xff]
    %v1303 = vld [vmem:[#allocation8 + $0x1378] sm:$0xff]
    %v1304 = vld [vmem:[#allocation8 + $0x1380] sm:$0xff]
    %v1305 = vld [vmem:[#allocation8 + $0x1388] sm:$0xff]
    %v1306 = vld [vmem:[#allocation8 + $0x1390] sm:$0xff]
    %v1307 = vld [vmem:[#allocation8 + $0x1398] sm:$0xff]
    %v1308 = vld [vmem:[#allocation8 + $0x13a0] sm:$0xff]
    %v1309 = vld [vmem:[#allocation8 + $0x13a8] sm:$0xff]
    %v1310 = vld [vmem:[#allocation8 + $0x13b0] sm:$0xff]
    %v1311 = vld [vmem:[#allocation8 + $0x13b8] sm:$0xff]
    %v1312 = vld [vmem:[#allocation8 + $0x13c0] sm:$0xff]
    %v1313 = vld [vmem:[#allocation8 + $0x13c8] sm:$0xff]
    %v1314 = vld [vmem:[#allocation8 + $0x13d0] sm:$0xff]
    %v1315 = vld [vmem:[#allocation8 + $0x13d8] sm:$0xff]
    %v1316 = vld [vmem:[#allocation8 + $0x13e0] sm:$0xff]
    %v1317 = vld [vmem:[#allocation8 + $0x13e8] sm:$0xff]
    %v1318 = vld [vmem:[#allocation8 + $0x13f0] sm:$0xff]
    %v1319 = vld [vmem:[#allocation8 + $0x13f8] sm:$0xff]
    %v1320 = vld [vmem:[#allocation8 + $0x1400] sm:$0xff]
    %v1321 = vld [vmem:[#allocation8 + $0x1408] sm:$0xff]
    %v1322 = vld [vmem:[#allocation8 + $0x1410] sm:$0xff]
    %v1323 = vld [vmem:[#allocation8 + $0x1418] sm:$0xff]
    %v1324 = vld [vmem:[#allocation8 + $0x1420] sm:$0xff]
    %v1325 = vld [vmem:[#allocation8 + $0x1428] sm:$0xff]
    %v1326 = vld [vmem:[#allocation8 + $0x1430] sm:$0xff]
    %v1327 = vld [vmem:[#allocation8 + $0x1438] sm:$0xff]
    %v1328 = vld [vmem:[#allocation8 + $0x1440] sm:$0xff]
    %v1329 = vld [vmem:[#allocation8 + $0x1448] sm:$0xff]
    %v1330 = vld [vmem:[#allocation8 + $0x1450] sm:$0xff]
    %v1331 = vld [vmem:[#allocation8 + $0x1458] sm:$0xff]
    %v1332 = vld [vmem:[#allocation8 + $0x1460] sm:$0xff]
    %v1333 = vld [vmem:[#allocation8 + $0x1468] sm:$0xff]
    %v1334 = vld [vmem:[#allocation8 + $0x1470] sm:$0xff]
    %v1335 = vld [vmem:[#allocation8 + $0x1478] sm:$0xff]
    %v1336 = vld [vmem:[#allocation8 + $0x1480] sm:$0xff]
    %v1337 = vld [vmem:[#allocation8 + $0x1488] sm:$0xff]
    %v1338 = vld [vmem:[#allocation8 + $0x1490] sm:$0xff]
    %v1339 = vld [vmem:[#allocation8 + $0x1498] sm:$0xff]
    %v1340 = vld [vmem:[#allocation8 + $0x14a0] sm:$0xff]
    %v1341 = vld [vmem:[#allocation8 + $0x14a8] sm:$0xff]
    %v1342 = vld [vmem:[#allocation8 + $0x14b0] sm:$0xff]
    %v1343 = vld [vmem:[#allocation8 + $0x14b8] sm:$0xff]
    %v1344 = vld [vmem:[#allocation8 + $0x14c0] sm:$0xff]
    %v1345 = vld [vmem:[#allocation8 + $0x14c8] sm:$0xff]
    %v1346 = vld [vmem:[#allocation8 + $0x14d0] sm:$0xff]
    %v1347 = vld [vmem:[#allocation8 + $0x14d8] sm:$0xff]
    %v1348 = vld [vmem:[#allocation8 + $0x14e0] sm:$0xff]
    %v1349 = vld [vmem:[#allocation8 + $0x14e8] sm:$0xff]
    %v1350 = vld [vmem:[#allocation8 + $0x14f0] sm:$0xff]
    %v1351 = vld [vmem:[#allocation8 + $0x14f8] sm:$0xff]
    %v1352 = vld [vmem:[#allocation8 + $0x1500] sm:$0xff]
    %v1353 = vld [vmem:[#allocation8 + $0x1508] sm:$0xff]
    %v1354 = vld [vmem:[#allocation8 + $0x1510] sm:$0xff]
    %v1355 = vld [vmem:[#allocation8 + $0x1518] sm:$0xff]
    %v1356 = vld [vmem:[#allocation8 + $0x1520] sm:$0xff]
    %v1357 = vld [vmem:[#allocation8 + $0x1528] sm:$0xff]
    %v1358 = vld [vmem:[#allocation8 + $0x1530] sm:$0xff]
    %v1359 = vld [vmem:[#allocation8 + $0x1538] sm:$0xff]
    %v1360 = vld [vmem:[#allocation8 + $0x1540] sm:$0xff]
    %v1361 = vld [vmem:[#allocation8 + $0x1548] sm:$0xff]
    %v1362 = vld [vmem:[#allocation8 + $0x1550] sm:$0xff]
    %v1363 = vld [vmem:[#allocation8 + $0x1558] sm:$0xff]
    %v1364 = vld [vmem:[#allocation8 + $0x1560] sm:$0xff]
    %v1365 = vld [vmem:[#allocation8 + $0x1568] sm:$0xff]
    %v1366 = vld [vmem:[#allocation8 + $0x1570] sm:$0xff]
    %v1367 = vld [vmem:[#allocation8 + $0x1578] sm:$0xff]
    %v1368 = vld [vmem:[#allocation8 + $0x1580] sm:$0xff]
    %v1369 = vld [vmem:[#allocation8 + $0x1588] sm:$0xff]
    %v1370 = vld [vmem:[#allocation8 + $0x1590] sm:$0xff]
    %v1371 = vld [vmem:[#allocation8 + $0x1598] sm:$0xff]
    %v1372 = vld [vmem:[#allocation8 + $0x15a0] sm:$0xff]
    %v1373 = vld [vmem:[#allocation8 + $0x15a8] sm:$0xff]
    %v1374 = vld [vmem:[#allocation8 + $0x15b0] sm:$0xff]
    %v1375 = vld [vmem:[#allocation8 + $0x15b8] sm:$0xff]
    %v1376 = vld [vmem:[#allocation8 + $0x15c0] sm:$0xff]
    %v1377 = vld [vmem:[#allocation8 + $0x15c8] sm:$0xff]
    %v1378 = vld [vmem:[#allocation8 + $0x15d0] sm:$0xff]
    %v1379 = vld [vmem:[#allocation8 + $0x15d8] sm:$0xff]
    %v1380 = vld [vmem:[#allocation8 + $0x15e0] sm:$0xff]
    %v1381 = vld [vmem:[#allocation8 + $0x15e8] sm:$0xff]
    %v1382 = vld [vmem:[#allocation8 + $0x15f0] sm:$0xff]
    %v1383 = vld [vmem:[#allocation8 + $0x15f8] sm:$0xff]
    %v1384 = vld [vmem:[#allocation8 + $0x1600] sm:$0xff]
    %v1385 = vld [vmem:[#allocation8 + $0x1608] sm:$0xff]
    %v1386 = vld [vmem:[#allocation8 + $0x1610] sm:$0xff]
    %v1387 = vld [vmem:[#allocation8 + $0x1618] sm:$0xff]
    %v1388 = vld [vmem:[#allocation8 + $0x1620] sm:$0xff]
    %v1389 = vld [vmem:[#allocation8 + $0x1628] sm:$0xff]
    %v1390 = vld [vmem:[#allocation8 + $0x1630] sm:$0xff]
    %v1391 = vld [vmem:[#allocation8 + $0x1638] sm:$0xff]
    %v1392 = vld [vmem:[#allocation8 + $0x1640] sm:$0xff]
    %v1393 = vld [vmem:[#allocation8 + $0x1648] sm:$0xff]
    %v1394 = vld [vmem:[#allocation8 + $0x1650] sm:$0xff]
    %v1395 = vld [vmem:[#allocation8 + $0x1658] sm:$0xff]
    %v1396 = vld [vmem:[#allocation8 + $0x1660] sm:$0xff]
    %v1397 = vld [vmem:[#allocation8 + $0x1668] sm:$0xff]
    %v1398 = vld [vmem:[#allocation8 + $0x1670] sm:$0xff]
    %v1399 = vld [vmem:[#allocation8 + $0x1678] sm:$0xff]
    %v1400 = vld [vmem:[#allocation8 + $0x1680] sm:$0xff]
    %v1401 = vld [vmem:[#allocation8 + $0x1688] sm:$0xff]
    %v1402 = vld [vmem:[#allocation8 + $0x1690] sm:$0xff]
    %v1403 = vld [vmem:[#allocation8 + $0x1698] sm:$0xff]
    %v1404 = vld [vmem:[#allocation8 + $0x16a0] sm:$0xff]
    %v1405 = vld [vmem:[#allocation8 + $0x16a8] sm:$0xff]
    %v1406 = vld [vmem:[#allocation8 + $0x16b0] sm:$0xff]
    %v1407 = vld [vmem:[#allocation8 + $0x16b8] sm:$0xff]
    %v1408 = vld [vmem:[#allocation8 + $0x16c0] sm:$0xff]
    %v1409 = vld [vmem:[#allocation8 + $0x16c8] sm:$0xff]
    %v1410 = vld [vmem:[#allocation8 + $0x16d0] sm:$0xff]
    %v1411 = vld [vmem:[#allocation8 + $0x16d8] sm:$0xff]
    %v1412 = vld [vmem:[#allocation8 + $0x16e0] sm:$0xff]
    %v1413 = vld [vmem:[#allocation8 + $0x16e8] sm:$0xff]
    %v1414 = vld [vmem:[#allocation8 + $0x16f0] sm:$0xff]
    %v1415 = vld [vmem:[#allocation8 + $0x16f8] sm:$0xff]
    %v1416 = vld [vmem:[#allocation8 + $0x1700] sm:$0xff]
    %v1417 = vld [vmem:[#allocation8 + $0x1708] sm:$0xff]
    %v1418 = vld [vmem:[#allocation8 + $0x1710] sm:$0xff]
    %v1419 = vld [vmem:[#allocation8 + $0x1718] sm:$0xff]
    %v1420 = vld [vmem:[#allocation8 + $0x1720] sm:$0xff]
    %v1421 = vld [vmem:[#allocation8 + $0x1728] sm:$0xff]
    %v1422 = vld [vmem:[#allocation8 + $0x1730] sm:$0xff]
    %v1423 = vld [vmem:[#allocation8 + $0x1738] sm:$0xff]
    %v1424 = vld [vmem:[#allocation8 + $0x1740] sm:$0xff]
    %v1425 = vld [vmem:[#allocation8 + $0x1748] sm:$0xff]
    %v1426 = vld [vmem:[#allocation8 + $0x1750] sm:$0xff]
    %v1427 = vld [vmem:[#allocation8 + $0x1758] sm:$0xff]
    %v1428 = vld [vmem:[#allocation8 + $0x1760] sm:$0xff]
    %v1429 = vld [vmem:[#allocation8 + $0x1768] sm:$0xff]
    %v1430 = vld [vmem:[#allocation8 + $0x1770] sm:$0xff]
    %v1431 = vld [vmem:[#allocation8 + $0x1778] sm:$0xff]
    %v1432 = vld [vmem:[#allocation8 + $0x1780] sm:$0xff]
    %v1433 = vld [vmem:[#allocation8 + $0x1788] sm:$0xff]
    %v1434 = vld [vmem:[#allocation8 + $0x1790] sm:$0xff]
    %v1435 = vld [vmem:[#allocation8 + $0x1798] sm:$0xff]
    %v1436 = vld [vmem:[#allocation8 + $0x17a0] sm:$0xff]
    %v1437 = vld [vmem:[#allocation8 + $0x17a8] sm:$0xff]
    %v1438 = vld [vmem:[#allocation8 + $0x17b0] sm:$0xff]
    %v1439 = vld [vmem:[#allocation8 + $0x17b8] sm:$0xff]
    %v1440 = vld [vmem:[#allocation8 + $0x17c0] sm:$0xff]
    %v1441 = vld [vmem:[#allocation8 + $0x17c8] sm:$0xff]
    %v1442 = vld [vmem:[#allocation8 + $0x17d0] sm:$0xff]
    %v1443 = vld [vmem:[#allocation8 + $0x17d8] sm:$0xff]
    %v1444 = vld [vmem:[#allocation8 + $0x17e0] sm:$0xff]
    %v1445 = vld [vmem:[#allocation8 + $0x17e8] sm:$0xff]
    %v1446 = vld [vmem:[#allocation8 + $0x17f0] sm:$0xff]
    %v1447 = vld [vmem:[#allocation8 + $0x17f8] sm:$0xff]
    %v1448 = vld [vmem:[#allocation8 + $0x1800] sm:$0xff]
    %v1449 = vld [vmem:[#allocation8 + $0x1808] sm:$0xff]
    %v1450 = vld [vmem:[#allocation8 + $0x1810] sm:$0xff]
    %v1451 = vld [vmem:[#allocation8 + $0x1818] sm:$0xff]
    %v1452 = vld [vmem:[#allocation8 + $0x1820] sm:$0xff]
    %v1453 = vld [vmem:[#allocation8 + $0x1828] sm:$0xff]
    %v1454 = vld [vmem:[#allocation8 + $0x1830] sm:$0xff]
    %v1455 = vld [vmem:[#allocation8 + $0x1838] sm:$0xff]
    %v1456 = vld [vmem:[#allocation8 + $0x1840] sm:$0xff]
    %v1457 = vld [vmem:[#allocation8 + $0x1848] sm:$0xff]
    %v1458 = vld [vmem:[#allocation8 + $0x1850] sm:$0xff]
    %v1459 = vld [vmem:[#allocation8 + $0x1858] sm:$0xff]
    %v1460 = vld [vmem:[#allocation8 + $0x1860] sm:$0xff]
    %v1461 = vld [vmem:[#allocation8 + $0x1868] sm:$0xff]
    %v1462 = vld [vmem:[#allocation8 + $0x1870] sm:$0xff]
    %v1463 = vld [vmem:[#allocation8 + $0x1878] sm:$0xff]
    %v1464 = vld [vmem:[#allocation8 + $0x1880] sm:$0xff]
    %v1465 = vld [vmem:[#allocation8 + $0x1888] sm:$0xff]
    %v1466 = vld [vmem:[#allocation8 + $0x1890] sm:$0xff]
    %v1467 = vld [vmem:[#allocation8 + $0x1898] sm:$0xff]
    %v1468 = vld [vmem:[#allocation8 + $0x18a0] sm:$0xff]
    %v1469 = vld [vmem:[#allocation8 + $0x18a8] sm:$0xff]
    %v1470 = vld [vmem:[#allocation8 + $0x18b0] sm:$0xff]
    %v1471 = vld [vmem:[#allocation8 + $0x18b8] sm:$0xff]
    %v1472 = vld [vmem:[#allocation8 + $0x18c0] sm:$0xff]
    %v1473 = vld [vmem:[#allocation8 + $0x18c8] sm:$0xff]
    %v1474 = vld [vmem:[#allocation8 + $0x18d0] sm:$0xff]
    %v1475 = vld [vmem:[#allocation8 + $0x18d8] sm:$0xff]
    %v1476 = vld [vmem:[#allocation8 + $0x18e0] sm:$0xff]
    %v1477 = vld [vmem:[#allocation8 + $0x18e8] sm:$0xff]
    %v1478 = vld [vmem:[#allocation8 + $0x18f0] sm:$0xff]
    %v1479 = vld [vmem:[#allocation8 + $0x18f8] sm:$0xff]
    %v1480 = vld [vmem:[#allocation8 + $0x1900] sm:$0xff]
    %v1481 = vld [vmem:[#allocation8 + $0x1908] sm:$0xff]
    %v1482 = vld [vmem:[#allocation8 + $0x1910] sm:$0xff]
    %v1483 = vld [vmem:[#allocation8 + $0x1918] sm:$0xff]
    %v1484 = vld [vmem:[#allocation8 + $0x1920] sm:$0xff]
    %v1485 = vld [vmem:[#allocation8 + $0x1928] sm:$0xff]
    %v1486 = vld [vmem:[#allocation8 + $0x1930] sm:$0xff]
    %v1487 = vld [vmem:[#allocation8 + $0x1938] sm:$0xff]
    %v1488 = vld [vmem:[#allocation8 + $0x1940] sm:$0xff]
    %v1489 = vld [vmem:[#allocation8 + $0x1948] sm:$0xff]
    %v1490 = vld [vmem:[#allocation8 + $0x1950] sm:$0xff]
    %v1491 = vld [vmem:[#allocation8 + $0x1958] sm:$0xff]
    %v1492 = vld [vmem:[#allocation8 + $0x1960] sm:$0xff]
    %v1493 = vld [vmem:[#allocation8 + $0x1968] sm:$0xff]
    %v1494 = vld [vmem:[#allocation8 + $0x1970] sm:$0xff]
    %v1495 = vld [vmem:[#allocation8 + $0x1978] sm:$0xff]
    %v1496 = vld [vmem:[#allocation8 + $0x1980] sm:$0xff]
    %v1497 = vld [vmem:[#allocation8 + $0x1988] sm:$0xff]
    %v1498 = vld [vmem:[#allocation8 + $0x1990] sm:$0xff]
    %v1499 = vld [vmem:[#allocation8 + $0x1998] sm:$0xff]
    %v1500 = vld [vmem:[#allocation8 + $0x19a0] sm:$0xff]
    %v1501 = vld [vmem:[#allocation8 + $0x19a8] sm:$0xff]
    %v1502 = vld [vmem:[#allocation8 + $0x19b0] sm:$0xff]
    %v1503 = vld [vmem:[#allocation8 + $0x19b8] sm:$0xff]
    %v1504 = vld [vmem:[#allocation8 + $0x19c0] sm:$0xff]
    %v1505 = vld [vmem:[#allocation8 + $0x19c8] sm:$0xff]
    %v1506 = vld [vmem:[#allocation8 + $0x19d0] sm:$0xff]
    %v1507 = vld [vmem:[#allocation8 + $0x19d8] sm:$0xff]
    %v1508 = vld [vmem:[#allocation8 + $0x19e0] sm:$0xff]
    %v1509 = vld [vmem:[#allocation8 + $0x19e8] sm:$0xff]
    %v1510 = vld [vmem:[#allocation8 + $0x19f0] sm:$0xff]
    %v1511 = vld [vmem:[#allocation8 + $0x19f8] sm:$0xff]
    %v1512 = vld [vmem:[#allocation8 + $0x1a00] sm:$0xff]
    %v1513 = vld [vmem:[#allocation8 + $0x1a08] sm:$0xff]
    %v1514 = vld [vmem:[#allocation8 + $0x1a10] sm:$0xff]
    %v1515 = vld [vmem:[#allocation8 + $0x1a18] sm:$0xff]
    %v1516 = vld [vmem:[#allocation8 + $0x1a20] sm:$0xff]
    %v1517 = vld [vmem:[#allocation8 + $0x1a28] sm:$0xff]
    %v1518 = vld [vmem:[#allocation8 + $0x1a30] sm:$0xff]
    %v1519 = vld [vmem:[#allocation8 + $0x1a38] sm:$0xff]
    %v1520 = vld [vmem:[#allocation8 + $0x1a40] sm:$0xff]
    %v1521 = vld [vmem:[#allocation8 + $0x1a48] sm:$0xff]
    %v1522 = vld [vmem:[#allocation8 + $0x1a50] sm:$0xff]
    %v1523 = vld [vmem:[#allocation8 + $0x1a58] sm:$0xff]
    %v1524 = vld [vmem:[#allocation8 + $0x1a60] sm:$0xff]
    %v1525 = vld [vmem:[#allocation8 + $0x1a68] sm:$0xff]
    %v1526 = vld [vmem:[#allocation8 + $0x1a70] sm:$0xff]
    %v1527 = vld [vmem:[#allocation8 + $0x1a78] sm:$0xff]
    %v1528 = vld [vmem:[#allocation8 + $0x1a80] sm:$0xff]
    %v1529 = vld [vmem:[#allocation8 + $0x1a88] sm:$0xff]
    %v1530 = vld [vmem:[#allocation8 + $0x1a90] sm:$0xff]
    %v1531 = vld [vmem:[#allocation8 + $0x1a98] sm:$0xff]
    %v1532 = vld [vmem:[#allocation8 + $0x1aa0] sm:$0xff]
    %v1533 = vld [vmem:[#allocation8 + $0x1aa8] sm:$0xff]
    %v1534 = vld [vmem:[#allocation8 + $0x1ab0] sm:$0xff]
    %v1535 = vld [vmem:[#allocation8 + $0x1ab8] sm:$0xff]
    %v1536 = vld [vmem:[#allocation8 + $0x1ac0] sm:$0xff]
    %v1537 = vld [vmem:[#allocation8 + $0x1ac8] sm:$0xff]
    %v1538 = vld [vmem:[#allocation8 + $0x1ad0] sm:$0xff]
    %v1539 = vld [vmem:[#allocation8 + $0x1ad8] sm:$0xff]
    %v1540 = vld [vmem:[#allocation8 + $0x1ae0] sm:$0xff]
    %v1541 = vld [vmem:[#allocation8 + $0x1ae8] sm:$0xff]
    %v1542 = vld [vmem:[#allocation8 + $0x1af0] sm:$0xff]
    %v1543 = vld [vmem:[#allocation8 + $0x1af8] sm:$0xff]
    %v1544 = vld [vmem:[#allocation8 + $0x1b00] sm:$0xff]
    %v1545 = vld [vmem:[#allocation8 + $0x1b08] sm:$0xff]
    %v1546 = vld [vmem:[#allocation8 + $0x1b10] sm:$0xff]
    %v1547 = vld [vmem:[#allocation8 + $0x1b18] sm:$0xff]
    %v1548 = vld [vmem:[#allocation8 + $0x1b20] sm:$0xff]
    %v1549 = vld [vmem:[#allocation8 + $0x1b28] sm:$0xff]
    %v1550 = vld [vmem:[#allocation8 + $0x1b30] sm:$0xff]
    %v1551 = vld [vmem:[#allocation8 + $0x1b38] sm:$0xff]
    %v1552 = vld [vmem:[#allocation8 + $0x1b40] sm:$0xff]
    %v1553 = vld [vmem:[#allocation8 + $0x1b48] sm:$0xff]
    %v1554 = vld [vmem:[#allocation8 + $0x1b50] sm:$0xff]
    %v1555 = vld [vmem:[#allocation8 + $0x1b58] sm:$0xff]
    %v1556 = vld [vmem:[#allocation8 + $0x1b60] sm:$0xff]
    %v1557 = vld [vmem:[#allocation8 + $0x1b68] sm:$0xff]
    %v1558 = vld [vmem:[#allocation8 + $0x1b70] sm:$0xff]
    %v1559 = vld [vmem:[#allocation8 + $0x1b78] sm:$0xff]
    %v1560 = vld [vmem:[#allocation8 + $0x1b80] sm:$0xff]
    %v1561 = vld [vmem:[#allocation8 + $0x1b88] sm:$0xff]
    %v1562 = vld [vmem:[#allocation8 + $0x1b90] sm:$0xff]
    %v1563 = vld [vmem:[#allocation8 + $0x1b98] sm:$0xff]
    %v1564 = vld [vmem:[#allocation8 + $0x1ba0] sm:$0xff]
    %v1565 = vld [vmem:[#allocation8 + $0x1ba8] sm:$0xff]
    %v1566 = vld [vmem:[#allocation8 + $0x1bb0] sm:$0xff]
    %v1567 = vld [vmem:[#allocation8 + $0x1bb8] sm:$0xff]
    %v1568 = vld [vmem:[#allocation8 + $0x1bc0] sm:$0xff]
    %v1569 = vld [vmem:[#allocation8 + $0x1bc8] sm:$0xff]
    %v1570 = vld [vmem:[#allocation8 + $0x1bd0] sm:$0xff]
    %v1571 = vld [vmem:[#allocation8 + $0x1bd8] sm:$0xff]
    %v1572 = vld [vmem:[#allocation8 + $0x1be0] sm:$0xff]
    %v1573 = vld [vmem:[#allocation8 + $0x1be8] sm:$0xff]
    %v1574 = vld [vmem:[#allocation8 + $0x1bf0] sm:$0xff]
    %v1575 = vld [vmem:[#allocation8 + $0x1bf8] sm:$0xff]
    %v1576 = vld [vmem:[#allocation8 + $0x1c00] sm:$0xff]
    %v1577 = vld [vmem:[#allocation8 + $0x1c08] sm:$0xff]
    %v1578 = vld [vmem:[#allocation8 + $0x1c10] sm:$0xff]
    %v1579 = vld [vmem:[#allocation8 + $0x1c18] sm:$0xff]
    %v1580 = vld [vmem:[#allocation8 + $0x1c20] sm:$0xff]
    %v1581 = vld [vmem:[#allocation8 + $0x1c28] sm:$0xff]
    %v1582 = vld [vmem:[#allocation8 + $0x1c30] sm:$0xff]
    %v1583 = vld [vmem:[#allocation8 + $0x1c38] sm:$0xff]
    %v1584 = vld [vmem:[#allocation8 + $0x1c40] sm:$0xff]
    %v1585 = vld [vmem:[#allocation8 + $0x1c48] sm:$0xff]
    %v1586 = vld [vmem:[#allocation8 + $0x1c50] sm:$0xff]
    %v1587 = vld [vmem:[#allocation8 + $0x1c58] sm:$0xff]
    %v1588 = vld [vmem:[#allocation8 + $0x1c60] sm:$0xff]
    %v1589 = vld [vmem:[#allocation8 + $0x1c68] sm:$0xff]
    %v1590 = vld [vmem:[#allocation8 + $0x1c70] sm:$0xff]
    %v1591 = vld [vmem:[#allocation8 + $0x1c78] sm:$0xff]
    %v1592 = vld [vmem:[#allocation8 + $0x1c80] sm:$0xff]
    %v1593 = vld [vmem:[#allocation8 + $0x1c88] sm:$0xff]
    %v1594 = vld [vmem:[#allocation8 + $0x1c90] sm:$0xff]
    %v1595 = vld [vmem:[#allocation8 + $0x1c98] sm:$0xff]
    %v1596 = vld [vmem:[#allocation8 + $0x1ca0] sm:$0xff]
    %v1597 = vld [vmem:[#allocation8 + $0x1ca8] sm:$0xff]
    %v1598 = vld [vmem:[#allocation8 + $0x1cb0] sm:$0xff]
    %v1599 = vld [vmem:[#allocation8 + $0x1cb8] sm:$0xff]
    %v1600 = vld [vmem:[#allocation8 + $0x1cc0] sm:$0xff]
    %v1601 = vld [vmem:[#allocation8 + $0x1cc8] sm:$0xff]
    %v1602 = vld [vmem:[#allocation8 + $0x1cd0] sm:$0xff]
    %v1603 = vld [vmem:[#allocation8 + $0x1cd8] sm:$0xff]
    %v1604 = vld [vmem:[#allocation8 + $0x1ce0] sm:$0xff]
    %v1605 = vld [vmem:[#allocation8 + $0x1ce8] sm:$0xff]
    %v1606 = vld [vmem:[#allocation8 + $0x1cf0] sm:$0xff]
    %v1607 = vld [vmem:[#allocation8 + $0x1cf8] sm:$0xff]
    %v1608 = vld [vmem:[#allocation8 + $0x1d00] sm:$0xff]
    %v1609 = vld [vmem:[#allocation8 + $0x1d08] sm:$0xff]
    %v1610 = vld [vmem:[#allocation8 + $0x1d10] sm:$0xff]
    %v1611 = vld [vmem:[#allocation8 + $0x1d18] sm:$0xff]
    %v1612 = vld [vmem:[#allocation8 + $0x1d20] sm:$0xff]
    %v1613 = vld [vmem:[#allocation8 + $0x1d28] sm:$0xff]
    %v1614 = vld [vmem:[#allocation8 + $0x1d30] sm:$0xff]
    %v1615 = vld [vmem:[#allocation8 + $0x1d38] sm:$0xff]
    %v1616 = vld [vmem:[#allocation8 + $0x1d40] sm:$0xff]
    %v1617 = vld [vmem:[#allocation8 + $0x1d48] sm:$0xff]
    %v1618 = vld [vmem:[#allocation8 + $0x1d50] sm:$0xff]
    %v1619 = vld [vmem:[#allocation8 + $0x1d58] sm:$0xff]
    %v1620 = vld [vmem:[#allocation8 + $0x1d60] sm:$0xff]
    %v1621 = vld [vmem:[#allocation8 + $0x1d68] sm:$0xff]
    %v1622 = vld [vmem:[#allocation8 + $0x1d70] sm:$0xff]
    %v1623 = vld [vmem:[#allocation8 + $0x1d78] sm:$0xff]
    %v1624 = vld [vmem:[#allocation8 + $0x1d80] sm:$0xff]
    %v1625 = vld [vmem:[#allocation8 + $0x1d88] sm:$0xff]
    %v1626 = vld [vmem:[#allocation8 + $0x1d90] sm:$0xff]
    %v1627 = vld [vmem:[#allocation8 + $0x1d98] sm:$0xff]
    %v1628 = vld [vmem:[#allocation8 + $0x1da0] sm:$0xff]
    %v1629 = vld [vmem:[#allocation8 + $0x1da8] sm:$0xff]
    %v1630 = vld [vmem:[#allocation8 + $0x1db0] sm:$0xff]
    %v1631 = vld [vmem:[#allocation8 + $0x1db8] sm:$0xff]
    %v1632 = vld [vmem:[#allocation8 + $0x1dc0] sm:$0xff]
    %v1633 = vld [vmem:[#allocation8 + $0x1dc8] sm:$0xff]
    %v1634 = vld [vmem:[#allocation8 + $0x1dd0] sm:$0xff]
    %v1635 = vld [vmem:[#allocation8 + $0x1dd8] sm:$0xff]
    %v1636 = vld [vmem:[#allocation8 + $0x1de0] sm:$0xff]
    %v1637 = vld [vmem:[#allocation8 + $0x1de8] sm:$0xff]
    %v1638 = vld [vmem:[#allocation8 + $0x1df0] sm:$0xff]
    %v1639 = vld [vmem:[#allocation8 + $0x1df8] sm:$0xff]
    %v1640 = vld [vmem:[#allocation8 + $0x1e00] sm:$0xff]
    %v1641 = vld [vmem:[#allocation8 + $0x1e08] sm:$0xff]
    %v1642 = vld [vmem:[#allocation8 + $0x1e10] sm:$0xff]
    %v1643 = vld [vmem:[#allocation8 + $0x1e18] sm:$0xff]
    %v1644 = vld [vmem:[#allocation8 + $0x1e20] sm:$0xff]
    %v1645 = vld [vmem:[#allocation8 + $0x1e28] sm:$0xff]
    %v1646 = vld [vmem:[#allocation8 + $0x1e30] sm:$0xff]
    %v1647 = vld [vmem:[#allocation8 + $0x1e38] sm:$0xff]
    %v1648 = vld [vmem:[#allocation8 + $0x1e40] sm:$0xff]
    %v1649 = vld [vmem:[#allocation8 + $0x1e48] sm:$0xff]
    %v1650 = vld [vmem:[#allocation8 + $0x1e50] sm:$0xff]
    %v1651 = vld [vmem:[#allocation8 + $0x1e58] sm:$0xff]
    %v1652 = vld [vmem:[#allocation8 + $0x1e60] sm:$0xff]
    %v1653 = vld [vmem:[#allocation8 + $0x1e68] sm:$0xff]
    %v1654 = vld [vmem:[#allocation8 + $0x1e70] sm:$0xff]
    %v1655 = vld [vmem:[#allocation8 + $0x1e78] sm:$0xff]
    %v1656 = vld [vmem:[#allocation8 + $0x1e80] sm:$0xff]
    %v1657 = vld [vmem:[#allocation8 + $0x1e88] sm:$0xff]
    %v1658 = vld [vmem:[#allocation8 + $0x1e90] sm:$0xff]
    %v1659 = vld [vmem:[#allocation8 + $0x1e98] sm:$0xff]
    %v1660 = vld [vmem:[#allocation8 + $0x1ea0] sm:$0xff]
    %v1661 = vld [vmem:[#allocation8 + $0x1ea8] sm:$0xff]
    %v1662 = vld [vmem:[#allocation8 + $0x1eb0] sm:$0xff]
    %v1663 = vld [vmem:[#allocation8 + $0x1eb8] sm:$0xff]
    %v1664 = vld [vmem:[#allocation8 + $0x1ec0] sm:$0xff]
    %v1665 = vld [vmem:[#allocation8 + $0x1ec8] sm:$0xff]
    %v1666 = vld [vmem:[#allocation8 + $0x1ed0] sm:$0xff]
    %v1667 = vld [vmem:[#allocation8 + $0x1ed8] sm:$0xff]
    %v1668 = vld [vmem:[#allocation8 + $0x1ee0] sm:$0xff]
    %v1669 = vld [vmem:[#allocation8 + $0x1ee8] sm:$0xff]
    %v1670 = vld [vmem:[#allocation8 + $0x1ef0] sm:$0xff]
    %v1671 = vld [vmem:[#allocation8 + $0x1ef8] sm:$0xff]
    %v1672 = vld [vmem:[#allocation8 + $0x1f00] sm:$0xff]
    %v1673 = vld [vmem:[#allocation8 + $0x1f08] sm:$0xff]
    %v1674 = vld [vmem:[#allocation8 + $0x1f10] sm:$0xff]
    %v1675 = vld [vmem:[#allocation8 + $0x1f18] sm:$0xff]
    %v1676 = vld [vmem:[#allocation8 + $0x1f20] sm:$0xff]
    %v1677 = vld [vmem:[#allocation8 + $0x1f28] sm:$0xff]
    %v1678 = vld [vmem:[#allocation8 + $0x1f30] sm:$0xff]
    %v1679 = vld [vmem:[#allocation8 + $0x1f38] sm:$0xff]
    %v1680 = vld [vmem:[#allocation8 + $0x1f40] sm:$0xff]
    %v1681 = vld [vmem:[#allocation8 + $0x1f48] sm:$0xff]
    %v1682 = vld [vmem:[#allocation8 + $0x1f50] sm:$0xff]
    %v1683 = vld [vmem:[#allocation8 + $0x1f58] sm:$0xff]
    %v1684 = vld [vmem:[#allocation8 + $0x1f60] sm:$0xff]
    %v1685 = vld [vmem:[#allocation8 + $0x1f68] sm:$0xff]
    %v1686 = vld [vmem:[#allocation8 + $0x1f70] sm:$0xff]
    %v1687 = vld [vmem:[#allocation8 + $0x1f78] sm:$0xff]
    %v1688 = vld [vmem:[#allocation8 + $0x1f80] sm:$0xff]
    %v1689 = vld [vmem:[#allocation8 + $0x1f88] sm:$0xff]
    %v1690 = vld [vmem:[#allocation8 + $0x1f90] sm:$0xff]
    %v1691 = vld [vmem:[#allocation8 + $0x1f98] sm:$0xff]
    %v1692 = vld [vmem:[#allocation8 + $0x1fa0] sm:$0xff]
    %v1693 = vld [vmem:[#allocation8 + $0x1fa8] sm:$0xff]
    %v1694 = vld [vmem:[#allocation8 + $0x1fb0] sm:$0xff]
    %v1695 = vld [vmem:[#allocation8 + $0x1fb8] sm:$0xff]
    %v1696 = vld [vmem:[#allocation8 + $0x1fc0] sm:$0xff]
    %v1697 = vld [vmem:[#allocation8 + $0x1fc8] sm:$0xff]
    %v1698 = vld [vmem:[#allocation8 + $0x1fd0] sm:$0xff]
    %v1699 = vld [vmem:[#allocation8 + $0x1fd8] sm:$0xff]
    %v1700 = vld [vmem:[#allocation8 + $0x1fe0] sm:$0xff]
    %v1701 = vld [vmem:[#allocation8 + $0x1fe8] sm:$0xff]
    %v1702 = vld [vmem:[#allocation8 + $0x1ff0] sm:$0xff]
    %v1703 = vld [vmem:[#allocation8 + $0x1ff8] sm:$0xff]
    %v1704 = vld [vmem:[#allocation8 + $0x2000] sm:$0xff]
    %v1705 = vld [vmem:[#allocation8 + $0x2008] sm:$0xff]
    %v1706 = vld [vmem:[#allocation8 + $0x2010] sm:$0xff]
    %v1707 = vld [vmem:[#allocation8 + $0x2018] sm:$0xff]
    %v1708 = vld [vmem:[#allocation8 + $0x2020] sm:$0xff]
    %v1709 = vld [vmem:[#allocation8 + $0x2028] sm:$0xff]
    %v1710 = vld [vmem:[#allocation8 + $0x2030] sm:$0xff]
    %v1711 = vld [vmem:[#allocation8 + $0x2038] sm:$0xff]
    %v1712 = vld [vmem:[#allocation8 + $0x2040] sm:$0xff]
    %v1713 = vld [vmem:[#allocation8 + $0x2048] sm:$0xff]
    %v1714 = vld [vmem:[#allocation8 + $0x2050] sm:$0xff]
    %v1715 = vld [vmem:[#allocation8 + $0x2058] sm:$0xff]
    %v1716 = vld [vmem:[#allocation8 + $0x2060] sm:$0xff]
    %v1717 = vld [vmem:[#allocation8 + $0x2068] sm:$0xff]
    %v1718 = vld [vmem:[#allocation8 + $0x2070] sm:$0xff]
    %v1719 = vld [vmem:[#allocation8 + $0x2078] sm:$0xff]
    %v1720 = vld [vmem:[#allocation8 + $0x2080] sm:$0xff]
    %v1721 = vld [vmem:[#allocation8 + $0x2088] sm:$0xff]
    %v1722 = vld [vmem:[#allocation8 + $0x2090] sm:$0xff]
    %v1723 = vld [vmem:[#allocation8 + $0x2098] sm:$0xff]
    %v1724 = vld [vmem:[#allocation8 + $0x20a0] sm:$0xff]
    %v1725 = vld [vmem:[#allocation8 + $0x20a8] sm:$0xff]
    %v1726 = vld [vmem:[#allocation8 + $0x20b0] sm:$0xff]
    %v1727 = vld [vmem:[#allocation8 + $0x20b8] sm:$0xff]
    %v1728 = vld [vmem:[#allocation8 + $0x20c0] sm:$0xff]
    %v1729 = vld [vmem:[#allocation8 + $0x20c8] sm:$0xff]
    %v1730 = vld [vmem:[#allocation8 + $0x20d0] sm:$0xff]
    %v1731 = vld [vmem:[#allocation8 + $0x20d8] sm:$0xff]
    %v1732 = vld [vmem:[#allocation8 + $0x20e0] sm:$0xff]
    %v1733 = vld [vmem:[#allocation8 + $0x20e8] sm:$0xff]
    %v1734 = vld [vmem:[#allocation8 + $0x20f0] sm:$0xff]
    %v1735 = vld [vmem:[#allocation8 + $0x20f8] sm:$0xff]
    %v1736 = vld [vmem:[#allocation8 + $0x2100] sm:$0xff]
    %v1737 = vld [vmem:[#allocation8 + $0x2108] sm:$0xff]
    %v1738 = vld [vmem:[#allocation8 + $0x2110] sm:$0xff]
    %v1739 = vld [vmem:[#allocation8 + $0x2118] sm:$0xff]
    %v1740 = vld [vmem:[#allocation8 + $0x2120] sm:$0xff]
    %v1741 = vld [vmem:[#allocation8 + $0x2128] sm:$0xff]
    %v1742 = vld [vmem:[#allocation8 + $0x2130] sm:$0xff]
    %v1743 = vld [vmem:[#allocation8 + $0x2138] sm:$0xff]
    %v1744 = vld [vmem:[#allocation8 + $0x2140] sm:$0xff]
    %v1745 = vld [vmem:[#allocation8 + $0x2148] sm:$0xff]
    %v1746 = vld [vmem:[#allocation8 + $0x2150] sm:$0xff]
    %v1747 = vld [vmem:[#allocation8 + $0x2158] sm:$0xff]
    %v1748 = vld [vmem:[#allocation8 + $0x2160] sm:$0xff]
    %v1749 = vld [vmem:[#allocation8 + $0x2168] sm:$0xff]
    %v1750 = vld [vmem:[#allocation8 + $0x2170] sm:$0xff]
    %v1751 = vld [vmem:[#allocation8 + $0x2178] sm:$0xff]
    %v1752 = vld [vmem:[#allocation8 + $0x2180] sm:$0xff]
    %v1753 = vld [vmem:[#allocation8 + $0x2188] sm:$0xff]
    %v1754 = vld [vmem:[#allocation8 + $0x2190] sm:$0xff]
    %v1755 = vld [vmem:[#allocation8 + $0x2198] sm:$0xff]
    %v1756 = vld [vmem:[#allocation8 + $0x21a0] sm:$0xff]
    %v1757 = vld [vmem:[#allocation8 + $0x21a8] sm:$0xff]
    %v1758 = vld [vmem:[#allocation8 + $0x21b0] sm:$0xff]
    %v1759 = vld [vmem:[#allocation8 + $0x21b8] sm:$0xff]
    %v1760 = vld [vmem:[#allocation8 + $0x21c0] sm:$0xff]
    %v1761 = vld [vmem:[#allocation8 + $0x21c8] sm:$0xff]
    %v1762 = vld [vmem:[#allocation8 + $0x21d0] sm:$0xff]
    %v1763 = vld [vmem:[#allocation8 + $0x21d8] sm:$0xff]
    %v1764 = vld [vmem:[#allocation8 + $0x21e0] sm:$0xff]
    %v1765 = vld [vmem:[#allocation8 + $0x21e8] sm:$0xff]
    %v1766 = vld [vmem:[#allocation8 + $0x21f0] sm:$0xff]
    %v1767 = vld [vmem:[#allocation8 + $0x21f8] sm:$0xff]
    %v1768 = vld [vmem:[#allocation8 + $0x2200] sm:$0xff]
    %v1769 = vld [vmem:[#allocation8 + $0x2208] sm:$0xff]
    %v1770 = vld [vmem:[#allocation8 + $0x2210] sm:$0xff]
    %v1771 = vld [vmem:[#allocation8 + $0x2218] sm:$0xff]
    %v1772 = vld [vmem:[#allocation8 + $0x2220] sm:$0xff]
    %v1773 = vld [vmem:[#allocation8 + $0x2228] sm:$0xff]
    %v1774 = vld [vmem:[#allocation8 + $0x2230] sm:$0xff]
    %v1775 = vld [vmem:[#allocation8 + $0x2238] sm:$0xff]
    %v1776 = vld [vmem:[#allocation8 + $0x2240] sm:$0xff]
    %v1777 = vld [vmem:[#allocation8 + $0x2248] sm:$0xff]
    %v1778 = vld [vmem:[#allocation8 + $0x2250] sm:$0xff]
    %v1779 = vld [vmem:[#allocation8 + $0x2258] sm:$0xff]
    %v1780 = vld [vmem:[#allocation8 + $0x2260] sm:$0xff]
    %v1781 = vld [vmem:[#allocation8 + $0x2268] sm:$0xff]
    %v1782 = vld [vmem:[#allocation8 + $0x2270] sm:$0xff]
    %v1783 = vld [vmem:[#allocation8 + $0x2278] sm:$0xff]
    %v1784 = vld [vmem:[#allocation8 + $0x2280] sm:$0xff]
    %v1785 = vld [vmem:[#allocation8 + $0x2288] sm:$0xff]
    %v1786 = vld [vmem:[#allocation8 + $0x2290] sm:$0xff]
    %v1787 = vld [vmem:[#allocation8 + $0x2298] sm:$0xff]
    %v1788 = vld [vmem:[#allocation8 + $0x22a0] sm:$0xff]
    %v1789 = vld [vmem:[#allocation8 + $0x22a8] sm:$0xff]
    %v1790 = vld [vmem:[#allocation8 + $0x22b0] sm:$0xff]
    %v1791 = vld [vmem:[#allocation8 + $0x22b8] sm:$0xff]
    %v1792 = vld [vmem:[#allocation8 + $0x22c0] sm:$0xff]
    %v1793 = vld [vmem:[#allocation8 + $0x22c8] sm:$0xff]
    %v1794 = vld [vmem:[#allocation8 + $0x22d0] sm:$0xff]
    %v1795 = vld [vmem:[#allocation8 + $0x22d8] sm:$0xff]
    %v1796 = vld [vmem:[#allocation8 + $0x22e0] sm:$0xff]
    %v1797 = vld [vmem:[#allocation8 + $0x22e8] sm:$0xff]
    %v1798 = vld [vmem:[#allocation8 + $0x22f0] sm:$0xff]
    %v1799 = vld [vmem:[#allocation8 + $0x22f8] sm:$0xff]
    %v1800 = vld [vmem:[#allocation8 + $0x2300] sm:$0xff]
    %v1801 = vld [vmem:[#allocation8 + $0x2308] sm:$0xff]
    %v1802 = vld [vmem:[#allocation8 + $0x2310] sm:$0xff]
    %v1803 = vld [vmem:[#allocation8 + $0x2318] sm:$0xff]
    %v1804 = vld [vmem:[#allocation8 + $0x2320] sm:$0xff]
    %v1805 = vld [vmem:[#allocation8 + $0x2328] sm:$0xff]
    %v1806 = vld [vmem:[#allocation8 + $0x2330] sm:$0xff]
    %v1807 = vld [vmem:[#allocation8 + $0x2338] sm:$0xff]
    %v1808 = vld [vmem:[#allocation8 + $0x2340] sm:$0xff]
    %v1809 = vld [vmem:[#allocation8 + $0x2348] sm:$0xff]
    %v1810 = vld [vmem:[#allocation8 + $0x2350] sm:$0xff]
    %v1811 = vld [vmem:[#allocation8 + $0x2358] sm:$0xff]
    %v1812 = vld [vmem:[#allocation8 + $0x2360] sm:$0xff]
    %v1813 = vld [vmem:[#allocation8 + $0x2368] sm:$0xff]
    %v1814 = vld [vmem:[#allocation8 + $0x2370] sm:$0xff]
    %v1815 = vld [vmem:[#allocation8 + $0x2378] sm:$0xff]
    %v1816 = vld [vmem:[#allocation8 + $0x2380] sm:$0xff]
    %v1817 = vld [vmem:[#allocation8 + $0x2388] sm:$0xff]
    %v1818 = vld [vmem:[#allocation8 + $0x2390] sm:$0xff]
    %v1819 = vld [vmem:[#allocation8 + $0x2398] sm:$0xff]
    %v1820 = vld [vmem:[#allocation8 + $0x23a0] sm:$0xff]
    %v1821 = vld [vmem:[#allocation8 + $0x23a8] sm:$0xff]
    %v1822 = vld [vmem:[#allocation8 + $0x23b0] sm:$0xff]
    %v1823 = vld [vmem:[#allocation8 + $0x23b8] sm:$0xff]
    %v1824 = vld [vmem:[#allocation8 + $0x23c0] sm:$0xff]
    %v1825 = vld [vmem:[#allocation8 + $0x23c8] sm:$0xff]
    %v1826 = vld [vmem:[#allocation8 + $0x23d0] sm:$0xff]
    %v1827 = vld [vmem:[#allocation8 + $0x23d8] sm:$0xff]
    %v1828 = vld [vmem:[#allocation8 + $0x23e0] sm:$0xff]
    %v1829 = vld [vmem:[#allocation8 + $0x23e8] sm:$0xff]
    %v1830 = vld [vmem:[#allocation8 + $0x23f0] sm:$0xff]
    %v1831 = vld [vmem:[#allocation8 + $0x23f8] sm:$0xff]
    %v1832 = vld [vmem:[#allocation10] sm:$0xff]
    %v1833 = vld [vmem:[#allocation10 + $0x8] sm:$0xf]
    %v1836 = vlaneseq
    %v1837 = vshrl.u32 %v1836, 7
    %v1838 = vsub.s32 0, %v1837
    %v1839 = vrot.slane %v1832, %v1838
    %v1840 = vlaneseq
    %v1841 = vshrl.u32 %v1840, 7
    %v1842 = vsub.s32 1, %v1841
    %v1843 = vrot.slane %v1832, %v1842
    %v1844 = vlaneseq
    %v1845 = vshrl.u32 %v1844, 7
    %v1846 = vsub.s32 2, %v1845
    %v1847 = vrot.slane %v1832, %v1846
    %v1848 = vlaneseq
    %v1849 = vshrl.u32 %v1848, 7
    %v1850 = vsub.s32 3, %v1849
    %v1851 = vrot.slane %v1832, %v1850
    %v1852 = vlaneseq
    %v1853 = vshrl.u32 %v1852, 7
    %v1854 = vsub.s32 4, %v1853
    %v1855 = vrot.slane %v1832, %v1854
    %v1856 = vlaneseq
    %v1857 = vshrl.u32 %v1856, 7
    %v1858 = vsub.s32 5, %v1857
    %v1859 = vrot.slane %v1832, %v1858
    %v1860 = vlaneseq
    %v1861 = vshrl.u32 %v1860, 7
    %v1862 = vsub.s32 6, %v1861
    %v1863 = vrot.slane %v1832, %v1862
    %v1864 = vlaneseq
    %v1865 = vshrl.u32 %v1864, 7
    %v1866 = vsub.s32 7, %v1865
    %v1867 = vrot.slane %v1832, %v1866
    %v1868 = vlaneseq
    %v1869 = vshrl.u32 %v1868, 7
    %v1870 = vsub.s32 0, %v1869
    %v1871 = vrot.slane %v1833, %v1870
    %v1872 = vlaneseq
    %v1873 = vshrl.u32 %v1872, 7
    %v1874 = vsub.s32 1, %v1873
    %v1875 = vrot.slane %v1833, %v1874
    %v1876 = vlaneseq
    %v1877 = vshrl.u32 %v1876, 7
    %v1878 = vsub.s32 2, %v1877
    %v1879 = vrot.slane %v1833, %v1878
    %v1880 = vlaneseq
    %v1881 = vshrl.u32 %v1880, 7
    %v1882 = vsub.s32 3, %v1881
    %v1883 = vrot.slane %v1833, %v1882
    %v3048 = vunpack.c.l.b16 %v680
    %v3049 = vunpack.c.h.b16 %v680
    %v3050 = vunpack.c.l.b16 %v681
    %v3051 = vunpack.c.h.b16 %v681
    %v3052 = vunpack.c.l.b16 %v682
    %v3053 = vunpack.c.h.b16 %v682
    %v3054 = vunpack.c.l.b16 %v683
    %v3055 = vunpack.c.h.b16 %v683
    %v3056 = vunpack.c.l.b16 %v684
    %v3057 = vunpack.c.h.b16 %v684
    %v3058 = vunpack.c.l.b16 %v685
    %v3059 = vunpack.c.h.b16 %v685
    %v3060 = vunpack.c.l.b16 %v686
    %v3061 = vunpack.c.h.b16 %v686
    %v3062 = vunpack.c.l.b16 %v687
    %v3063 = vunpack.c.h.b16 %v687
    %v3064 = vunpack.c.l.b16 %v688
    %v3065 = vunpack.c.h.b16 %v688
    %v3066 = vunpack.c.l.b16 %v689
    %v3067 = vunpack.c.h.b16 %v689
    %v3068 = vunpack.c.l.b16 %v690
    %v3069 = vunpack.c.h.b16 %v690
    %v3070 = vunpack.c.l.b16 %v691
    %v3071 = vunpack.c.h.b16 %v691
    %v3072 = vunpack.c.l.b16 %v692
    %v3073 = vunpack.c.h.b16 %v692
    %v3074 = vunpack.c.l.b16 %v693
    %v3075 = vunpack.c.h.b16 %v693
    %v3076 = vunpack.c.l.b16 %v694
    %v3077 = vunpack.c.h.b16 %v694
    %v3078 = vunpack.c.l.b16 %v695
    %v3079 = vunpack.c.h.b16 %v695
    %v3080 = vunpack.c.l.b16 %v696
    %v3081 = vunpack.c.h.b16 %v696
    %v3082 = vunpack.c.l.b16 %v697
    %v3083 = vunpack.c.h.b16 %v697
    %v3084 = vunpack.c.l.b16 %v698
    %v3085 = vunpack.c.h.b16 %v698
    %v3086 = vunpack.c.l.b16 %v699
    %v3087 = vunpack.c.h.b16 %v699
    %v3088 = vunpack.c.l.b16 %v700
    %v3089 = vunpack.c.h.b16 %v700
    %v3090 = vunpack.c.l.b16 %v701
    %v3091 = vunpack.c.h.b16 %v701
    %v3092 = vunpack.c.l.b16 %v702
    %v3093 = vunpack.c.h.b16 %v702
    %v3094 = vunpack.c.l.b16 %v703
    %v3095 = vunpack.c.h.b16 %v703
    %v3096 = vunpack.c.l.b16 %v704
    %v3097 = vunpack.c.h.b16 %v704
    %v3098 = vunpack.c.l.b16 %v705
    %v3099 = vunpack.c.h.b16 %v705
    %v3100 = vunpack.c.l.b16 %v706
    %v3101 = vunpack.c.h.b16 %v706
    %v3102 = vunpack.c.l.b16 %v707
    %v3103 = vunpack.c.h.b16 %v707
    %v3104 = vunpack.c.l.b16 %v708
    %v3105 = vunpack.c.h.b16 %v708
    %v3106 = vunpack.c.l.b16 %v709
    %v3107 = vunpack.c.h.b16 %v709
    %v3108 = vunpack.c.l.b16 %v710
    %v3109 = vunpack.c.h.b16 %v710
    %v3110 = vunpack.c.l.b16 %v711
    %v3111 = vunpack.c.h.b16 %v711
    %v3112 = vunpack.c.l.b16 %v712
    %v3113 = vunpack.c.h.b16 %v712
    %v3114 = vunpack.c.l.b16 %v713
    %v3115 = vunpack.c.h.b16 %v713
    %v3116 = vunpack.c.l.b16 %v714
    %v3117 = vunpack.c.h.b16 %v714
    %v3118 = vunpack.c.l.b16 %v715
    %v3119 = vunpack.c.h.b16 %v715
    %v3120 = vunpack.c.l.b16 %v716
    %v3121 = vunpack.c.h.b16 %v716
    %v3122 = vunpack.c.l.b16 %v717
    %v3123 = vunpack.c.h.b16 %v717
    %v3124 = vunpack.c.l.b16 %v718
    %v3125 = vunpack.c.h.b16 %v718
    %v3126 = vunpack.c.l.b16 %v719
    %v3127 = vunpack.c.h.b16 %v719
    %v3128 = vunpack.c.l.b16 %v720
    %v3129 = vunpack.c.h.b16 %v720
    %v3130 = vunpack.c.l.b16 %v721
    %v3131 = vunpack.c.h.b16 %v721
    %v3132 = vunpack.c.l.b16 %v722
    %v3133 = vunpack.c.h.b16 %v722
    %v3134 = vunpack.c.l.b16 %v723
    %v3135 = vunpack.c.h.b16 %v723
    %v3136 = vunpack.c.l.b16 %v724
    %v3137 = vunpack.c.h.b16 %v724
    %v3138 = vunpack.c.l.b16 %v725
    %v3139 = vunpack.c.h.b16 %v725
    %v3140 = vunpack.c.l.b16 %v726
    %v3141 = vunpack.c.h.b16 %v726
    %v3142 = vunpack.c.l.b16 %v727
    %v3143 = vunpack.c.h.b16 %v727
    %v3144 = vunpack.c.l.b16 %v728
    %v3145 = vunpack.c.h.b16 %v728
    %v3146 = vunpack.c.l.b16 %v729
    %v3147 = vunpack.c.h.b16 %v729
    %v3148 = vunpack.c.l.b16 %v730
    %v3149 = vunpack.c.h.b16 %v730
    %v3150 = vunpack.c.l.b16 %v731
    %v3151 = vunpack.c.h.b16 %v731
    %v3152 = vunpack.c.l.b16 %v732
    %v3153 = vunpack.c.h.b16 %v732
    %v3154 = vunpack.c.l.b16 %v733
    %v3155 = vunpack.c.h.b16 %v733
    %v3156 = vunpack.c.l.b16 %v734
    %v3157 = vunpack.c.h.b16 %v734
    %v3158 = vunpack.c.l.b16 %v735
    %v3159 = vunpack.c.h.b16 %v735
    %v3160 = vunpack.c.l.b16 %v736
    %v3161 = vunpack.c.h.b16 %v736
    %v3162 = vunpack.c.l.b16 %v737
    %v3163 = vunpack.c.h.b16 %v737
    %v3164 = vunpack.c.l.b16 %v738
    %v3165 = vunpack.c.h.b16 %v738
    %v3166 = vunpack.c.l.b16 %v739
    %v3167 = vunpack.c.h.b16 %v739
    %v3168 = vunpack.c.l.b16 %v740
    %v3169 = vunpack.c.h.b16 %v740
    %v3170 = vunpack.c.l.b16 %v741
    %v3171 = vunpack.c.h.b16 %v741
    %v3172 = vunpack.c.l.b16 %v742
    %v3173 = vunpack.c.h.b16 %v742
    %v3174 = vunpack.c.l.b16 %v743
    %v3175 = vunpack.c.h.b16 %v743
    %v3176 = vunpack.c.l.b16 %v744
    %v3177 = vunpack.c.h.b16 %v744
    %v3178 = vunpack.c.l.b16 %v745
    %v3179 = vunpack.c.h.b16 %v745
    %v3180 = vunpack.c.l.b16 %v746
    %v3181 = vunpack.c.h.b16 %v746
    %v3182 = vunpack.c.l.b16 %v747
    %v3183 = vunpack.c.h.b16 %v747
    %v3184 = vunpack.c.l.b16 %v748
    %v3185 = vunpack.c.h.b16 %v748
    %v3186 = vunpack.c.l.b16 %v749
    %v3187 = vunpack.c.h.b16 %v749
    %v3188 = vunpack.c.l.b16 %v750
    %v3189 = vunpack.c.h.b16 %v750
    %v3190 = vunpack.c.l.b16 %v751
    %v3191 = vunpack.c.h.b16 %v751
    %v3192 = vunpack.c.l.b16 %v752
    %v3193 = vunpack.c.h.b16 %v752
    %v3194 = vunpack.c.l.b16 %v753
    %v3195 = vunpack.c.h.b16 %v753
    %v3196 = vunpack.c.l.b16 %v754
    %v3197 = vunpack.c.h.b16 %v754
    %v3198 = vunpack.c.l.b16 %v755
    %v3199 = vunpack.c.h.b16 %v755
    %v3200 = vunpack.c.l.b16 %v756
    %v3201 = vunpack.c.h.b16 %v756
    %v3202 = vunpack.c.l.b16 %v757
    %v3203 = vunpack.c.h.b16 %v757
    %v3204 = vunpack.c.l.b16 %v758
    %v3205 = vunpack.c.h.b16 %v758
    %v3206 = vunpack.c.l.b16 %v759
    %v3207 = vunpack.c.h.b16 %v759
    %v3208 = vunpack.c.l.b16 %v760
    %v3209 = vunpack.c.h.b16 %v760
    %v3210 = vunpack.c.l.b16 %v761
    %v3211 = vunpack.c.h.b16 %v761
    %v3212 = vunpack.c.l.b16 %v762
    %v3213 = vunpack.c.h.b16 %v762
    %v3214 = vunpack.c.l.b16 %v763
    %v3215 = vunpack.c.h.b16 %v763
    %v3216 = vunpack.c.l.b16 %v764
    %v3217 = vunpack.c.h.b16 %v764
    %v3218 = vunpack.c.l.b16 %v765
    %v3219 = vunpack.c.h.b16 %v765
    %v3220 = vunpack.c.l.b16 %v766
    %v3221 = vunpack.c.h.b16 %v766
    %v3222 = vunpack.c.l.b16 %v767
    %v3223 = vunpack.c.h.b16 %v767
    %v3224 = vunpack.c.l.b16 %v768
    %v3225 = vunpack.c.h.b16 %v768
    %v3226 = vunpack.c.l.b16 %v769
    %v3227 = vunpack.c.h.b16 %v769
    %v3228 = vunpack.c.l.b16 %v770
    %v3229 = vunpack.c.h.b16 %v770
    %v3230 = vunpack.c.l.b16 %v771
    %v3231 = vunpack.c.h.b16 %v771
    %v3232 = vunpack.c.l.b16 %v772
    %v3233 = vunpack.c.h.b16 %v772
    %v3234 = vunpack.c.l.b16 %v773
    %v3235 = vunpack.c.h.b16 %v773
    %v3236 = vunpack.c.l.b16 %v774
    %v3237 = vunpack.c.h.b16 %v774
    %v3238 = vunpack.c.l.b16 %v775
    %v3239 = vunpack.c.h.b16 %v775
    %v3240 = vunpack.c.l.b16 %v776
    %v3241 = vunpack.c.h.b16 %v776
    %v3242 = vunpack.c.l.b16 %v777
    %v3243 = vunpack.c.h.b16 %v777
    %v3244 = vunpack.c.l.b16 %v778
    %v3245 = vunpack.c.h.b16 %v778
    %v3246 = vunpack.c.l.b16 %v779
    %v3247 = vunpack.c.h.b16 %v779
    %v3248 = vunpack.c.l.b16 %v780
    %v3249 = vunpack.c.h.b16 %v780
    %v3250 = vunpack.c.l.b16 %v781
    %v3251 = vunpack.c.h.b16 %v781
    %v3252 = vunpack.c.l.b16 %v782
    %v3253 = vunpack.c.h.b16 %v782
    %v3254 = vunpack.c.l.b16 %v783
    %v3255 = vunpack.c.h.b16 %v783
    %v3256 = vunpack.c.l.b16 %v784
    %v3257 = vunpack.c.h.b16 %v784
    %v3258 = vunpack.c.l.b16 %v785
    %v3259 = vunpack.c.h.b16 %v785
    %v3260 = vunpack.c.l.b16 %v786
    %v3261 = vunpack.c.h.b16 %v786
    %v3262 = vunpack.c.l.b16 %v787
    %v3263 = vunpack.c.h.b16 %v787
    %v3264 = vunpack.c.l.b16 %v788
    %v3265 = vunpack.c.h.b16 %v788
    %v3266 = vunpack.c.l.b16 %v789
    %v3267 = vunpack.c.h.b16 %v789
    %v3268 = vunpack.c.l.b16 %v790
    %v3269 = vunpack.c.h.b16 %v790
    %v3270 = vunpack.c.l.b16 %v791
    %v3271 = vunpack.c.h.b16 %v791
    %v3272 = vunpack.c.l.b16 %v792
    %v3273 = vunpack.c.h.b16 %v792
    %v3274 = vunpack.c.l.b16 %v793
    %v3275 = vunpack.c.h.b16 %v793
    %v3276 = vunpack.c.l.b16 %v794
    %v3277 = vunpack.c.h.b16 %v794
    %v3278 = vunpack.c.l.b16 %v795
    %v3279 = vunpack.c.h.b16 %v795
    %v3280 = vunpack.c.l.b16 %v796
    %v3281 = vunpack.c.h.b16 %v796
    %v3282 = vunpack.c.l.b16 %v797
    %v3283 = vunpack.c.h.b16 %v797
    %v3284 = vunpack.c.l.b16 %v798
    %v3285 = vunpack.c.h.b16 %v798
    %v3286 = vunpack.c.l.b16 %v799
    %v3287 = vunpack.c.h.b16 %v799
    %v3288 = vunpack.c.l.b16 %v800
    %v3289 = vunpack.c.h.b16 %v800
    %v3290 = vunpack.c.l.b16 %v801
    %v3291 = vunpack.c.h.b16 %v801
    %v3292 = vunpack.c.l.b16 %v802
    %v3293 = vunpack.c.h.b16 %v802
    %v3294 = vunpack.c.l.b16 %v803
    %v3295 = vunpack.c.h.b16 %v803
    %v3296 = vunpack.c.l.b16 %v804
    %v3297 = vunpack.c.h.b16 %v804
    %v3298 = vunpack.c.l.b16 %v805
    %v3299 = vunpack.c.h.b16 %v805
    %v3300 = vunpack.c.l.b16 %v806
    %v3301 = vunpack.c.h.b16 %v806
    %v3302 = vunpack.c.l.b16 %v807
    %v3303 = vunpack.c.h.b16 %v807
    %v3304 = vunpack.c.l.b16 %v808
    %v3305 = vunpack.c.h.b16 %v808
    %v3306 = vunpack.c.l.b16 %v809
    %v3307 = vunpack.c.h.b16 %v809
    %v3308 = vunpack.c.l.b16 %v810
    %v3309 = vunpack.c.h.b16 %v810
    %v3310 = vunpack.c.l.b16 %v811
    %v3311 = vunpack.c.h.b16 %v811
    %v3312 = vunpack.c.l.b16 %v812
    %v3313 = vunpack.c.h.b16 %v812
    %v3314 = vunpack.c.l.b16 %v813
    %v3315 = vunpack.c.h.b16 %v813
    %v3316 = vunpack.c.l.b16 %v814
    %v3317 = vunpack.c.h.b16 %v814
    %v3318 = vunpack.c.l.b16 %v815
    %v3319 = vunpack.c.h.b16 %v815
    %v3320 = vunpack.c.l.b16 %v816
    %v3321 = vunpack.c.h.b16 %v816
    %v3322 = vunpack.c.l.b16 %v817
    %v3323 = vunpack.c.h.b16 %v817
    %v3324 = vunpack.c.l.b16 %v818
    %v3325 = vunpack.c.h.b16 %v818
    %v3326 = vunpack.c.l.b16 %v819
    %v3327 = vunpack.c.h.b16 %v819
    %v3328 = vunpack.c.l.b16 %v820
    %v3329 = vunpack.c.h.b16 %v820
    %v3330 = vunpack.c.l.b16 %v821
    %v3331 = vunpack.c.h.b16 %v821
    %v3332 = vunpack.c.l.b16 %v822
    %v3333 = vunpack.c.h.b16 %v822
    %v3334 = vunpack.c.l.b16 %v823
    %v3335 = vunpack.c.h.b16 %v823
    %v3336 = vunpack.c.l.b16 %v824
    %v3337 = vunpack.c.h.b16 %v824
    %v3338 = vunpack.c.l.b16 %v825
    %v3339 = vunpack.c.h.b16 %v825
    %v3340 = vunpack.c.l.b16 %v826
    %v3341 = vunpack.c.h.b16 %v826
    %v3342 = vunpack.c.l.b16 %v827
    %v3343 = vunpack.c.h.b16 %v827
    %v3344 = vunpack.c.l.b16 %v828
    %v3345 = vunpack.c.h.b16 %v828
    %v3346 = vunpack.c.l.b16 %v829
    %v3347 = vunpack.c.h.b16 %v829
    %v3348 = vunpack.c.l.b16 %v830
    %v3349 = vunpack.c.h.b16 %v830
    %v3350 = vunpack.c.l.b16 %v831
    %v3351 = vunpack.c.h.b16 %v831
    %v3352 = vunpack.c.l.b16 %v832
    %v3353 = vunpack.c.h.b16 %v832
    %v3354 = vunpack.c.l.b16 %v833
    %v3355 = vunpack.c.h.b16 %v833
    %v3356 = vunpack.c.l.b16 %v834
    %v3357 = vunpack.c.h.b16 %v834
    %v3358 = vunpack.c.l.b16 %v835
    %v3359 = vunpack.c.h.b16 %v835
    %v3360 = vunpack.c.l.b16 %v836
    %v3361 = vunpack.c.h.b16 %v836
    %v3362 = vunpack.c.l.b16 %v837
    %v3363 = vunpack.c.h.b16 %v837
    %v3364 = vunpack.c.l.b16 %v838
    %v3365 = vunpack.c.h.b16 %v838
    %v3366 = vunpack.c.l.b16 %v839
    %v3367 = vunpack.c.h.b16 %v839
    %v3368 = vunpack.c.l.b16 %v840
    %v3369 = vunpack.c.h.b16 %v840
    %v3370 = vunpack.c.l.b16 %v841
    %v3371 = vunpack.c.h.b16 %v841
    %v3372 = vunpack.c.l.b16 %v842
    %v3373 = vunpack.c.h.b16 %v842
    %v3374 = vunpack.c.l.b16 %v843
    %v3375 = vunpack.c.h.b16 %v843
    %v3376 = vunpack.c.l.b16 %v844
    %v3377 = vunpack.c.h.b16 %v844
    %v3378 = vunpack.c.l.b16 %v845
    %v3379 = vunpack.c.h.b16 %v845
    %v3380 = vunpack.c.l.b16 %v846
    %v3381 = vunpack.c.h.b16 %v846
    %v3382 = vunpack.c.l.b16 %v847
    %v3383 = vunpack.c.h.b16 %v847
    %v3384 = vunpack.c.l.b16 %v848
    %v3385 = vunpack.c.h.b16 %v848
    %v3386 = vunpack.c.l.b16 %v849
    %v3387 = vunpack.c.h.b16 %v849
    %v3388 = vunpack.c.l.b16 %v850
    %v3389 = vunpack.c.h.b16 %v850
    %v3390 = vunpack.c.l.b16 %v851
    %v3391 = vunpack.c.h.b16 %v851
    %v3392 = vunpack.c.l.b16 %v852
    %v3393 = vunpack.c.h.b16 %v852
    %v3394 = vunpack.c.l.b16 %v853
    %v3395 = vunpack.c.h.b16 %v853
    %v3396 = vunpack.c.l.b16 %v854
    %v3397 = vunpack.c.h.b16 %v854
    %v3398 = vunpack.c.l.b16 %v855
    %v3399 = vunpack.c.h.b16 %v855
    %v3400 = vunpack.c.l.b16 %v856
    %v3401 = vunpack.c.h.b16 %v856
    %v3402 = vunpack.c.l.b16 %v857
    %v3403 = vunpack.c.h.b16 %v857
    %v3404 = vunpack.c.l.b16 %v858
    %v3405 = vunpack.c.h.b16 %v858
    %v3406 = vunpack.c.l.b16 %v859
    %v3407 = vunpack.c.h.b16 %v859
    %v3408 = vunpack.c.l.b16 %v860
    %v3409 = vunpack.c.h.b16 %v860
    %v3410 = vunpack.c.l.b16 %v861
    %v3411 = vunpack.c.h.b16 %v861
    %v3412 = vunpack.c.l.b16 %v862
    %v3413 = vunpack.c.h.b16 %v862
    %v3414 = vunpack.c.l.b16 %v863
    %v3415 = vunpack.c.h.b16 %v863
    %v3416 = vunpack.c.l.b16 %v864
    %v3417 = vunpack.c.h.b16 %v864
    %v3418 = vunpack.c.l.b16 %v865
    %v3419 = vunpack.c.h.b16 %v865
    %v3420 = vunpack.c.l.b16 %v866
    %v3421 = vunpack.c.h.b16 %v866
    %v3422 = vunpack.c.l.b16 %v867
    %v3423 = vunpack.c.h.b16 %v867
    %v3424 = vunpack.c.l.b16 %v868
    %v3425 = vunpack.c.h.b16 %v868
    %v3426 = vunpack.c.l.b16 %v869
    %v3427 = vunpack.c.h.b16 %v869
    %v3428 = vunpack.c.l.b16 %v870
    %v3429 = vunpack.c.h.b16 %v870
    %v3430 = vunpack.c.l.b16 %v871
    %v3431 = vunpack.c.h.b16 %v871
    %v3432 = vunpack.c.l.b16 %v872
    %v3433 = vunpack.c.h.b16 %v872
    %v3434 = vunpack.c.l.b16 %v873
    %v3435 = vunpack.c.h.b16 %v873
    %v3436 = vunpack.c.l.b16 %v874
    %v3437 = vunpack.c.h.b16 %v874
    %v3438 = vunpack.c.l.b16 %v875
    %v3439 = vunpack.c.h.b16 %v875
    %v3440 = vunpack.c.l.b16 %v876
    %v3441 = vunpack.c.h.b16 %v876
    %v3442 = vunpack.c.l.b16 %v877
    %v3443 = vunpack.c.h.b16 %v877
    %v3444 = vunpack.c.l.b16 %v878
    %v3445 = vunpack.c.h.b16 %v878
    %v3446 = vunpack.c.l.b16 %v879
    %v3447 = vunpack.c.h.b16 %v879
    %v3448 = vunpack.c.l.b16 %v880
    %v3449 = vunpack.c.h.b16 %v880
    %v3450 = vunpack.c.l.b16 %v881
    %v3451 = vunpack.c.h.b16 %v881
    %v3452 = vunpack.c.l.b16 %v882
    %v3453 = vunpack.c.h.b16 %v882
    %v3454 = vunpack.c.l.b16 %v883
    %v3455 = vunpack.c.h.b16 %v883
    %v3456 = vunpack.c.l.b16 %v884
    %v3457 = vunpack.c.h.b16 %v884
    %v3458 = vunpack.c.l.b16 %v885
    %v3459 = vunpack.c.h.b16 %v885
    %v3460 = vunpack.c.l.b16 %v886
    %v3461 = vunpack.c.h.b16 %v886
    %v3462 = vunpack.c.l.b16 %v887
    %v3463 = vunpack.c.h.b16 %v887
    %v3464 = vunpack.c.l.b16 %v888
    %v3465 = vunpack.c.h.b16 %v888
    %v3466 = vunpack.c.l.b16 %v889
    %v3467 = vunpack.c.h.b16 %v889
    %v3468 = vunpack.c.l.b16 %v890
    %v3469 = vunpack.c.h.b16 %v890
    %v3470 = vunpack.c.l.b16 %v891
    %v3471 = vunpack.c.h.b16 %v891
    %v3472 = vunpack.c.l.b16 %v892
    %v3473 = vunpack.c.h.b16 %v892
    %v3474 = vunpack.c.l.b16 %v893
    %v3475 = vunpack.c.h.b16 %v893
    %v3476 = vunpack.c.l.b16 %v894
    %v3477 = vunpack.c.h.b16 %v894
    %v3478 = vunpack.c.l.b16 %v895
    %v3479 = vunpack.c.h.b16 %v895
    %v3480 = vunpack.c.l.b16 %v896
    %v3481 = vunpack.c.h.b16 %v896
    %v3482 = vunpack.c.l.b16 %v897
    %v3483 = vunpack.c.h.b16 %v897
    %v3484 = vunpack.c.l.b16 %v898
    %v3485 = vunpack.c.h.b16 %v898
    %v3486 = vunpack.c.l.b16 %v899
    %v3487 = vunpack.c.h.b16 %v899
    %v3488 = vunpack.c.l.b16 %v900
    %v3489 = vunpack.c.h.b16 %v900
    %v3490 = vunpack.c.l.b16 %v901
    %v3491 = vunpack.c.h.b16 %v901
    %v3492 = vunpack.c.l.b16 %v902
    %v3493 = vunpack.c.h.b16 %v902
    %v3494 = vunpack.c.l.b16 %v903
    %v3495 = vunpack.c.h.b16 %v903
    %v3496 = vunpack.c.l.b16 %v904
    %v3497 = vunpack.c.h.b16 %v904
    %v3498 = vunpack.c.l.b16 %v905
    %v3499 = vunpack.c.h.b16 %v905
    %v3500 = vunpack.c.l.b16 %v906
    %v3501 = vunpack.c.h.b16 %v906
    %v3502 = vunpack.c.l.b16 %v907
    %v3503 = vunpack.c.h.b16 %v907
    %v3504 = vunpack.c.l.b16 %v908
    %v3505 = vunpack.c.h.b16 %v908
    %v3506 = vunpack.c.l.b16 %v909
    %v3507 = vunpack.c.h.b16 %v909
    %v3508 = vunpack.c.l.b16 %v910
    %v3509 = vunpack.c.h.b16 %v910
    %v3510 = vunpack.c.l.b16 %v911
    %v3511 = vunpack.c.h.b16 %v911
    %v3512 = vunpack.c.l.b16 %v912
    %v3513 = vunpack.c.h.b16 %v912
    %v3514 = vunpack.c.l.b16 %v913
    %v3515 = vunpack.c.h.b16 %v913
    %v3516 = vunpack.c.l.b16 %v914
    %v3517 = vunpack.c.h.b16 %v914
    %v3518 = vunpack.c.l.b16 %v915
    %v3519 = vunpack.c.h.b16 %v915
    %v3520 = vunpack.c.l.b16 %v916
    %v3521 = vunpack.c.h.b16 %v916
    %v3522 = vunpack.c.l.b16 %v917
    %v3523 = vunpack.c.h.b16 %v917
    %v3524 = vunpack.c.l.b16 %v918
    %v3525 = vunpack.c.h.b16 %v918
    %v3526 = vunpack.c.l.b16 %v919
    %v3527 = vunpack.c.h.b16 %v919
    %v3528 = vunpack.c.l.b16 %v920
    %v3529 = vunpack.c.h.b16 %v920
    %v3530 = vunpack.c.l.b16 %v921
    %v3531 = vunpack.c.h.b16 %v921
    %v3532 = vunpack.c.l.b16 %v922
    %v3533 = vunpack.c.h.b16 %v922
    %v3534 = vunpack.c.l.b16 %v923
    %v3535 = vunpack.c.h.b16 %v923
    %v3536 = vunpack.c.l.b16 %v924
    %v3537 = vunpack.c.h.b16 %v924
    %v3538 = vunpack.c.l.b16 %v925
    %v3539 = vunpack.c.h.b16 %v925
    %v3540 = vunpack.c.l.b16 %v926
    %v3541 = vunpack.c.h.b16 %v926
    %v3542 = vunpack.c.l.b16 %v927
    %v3543 = vunpack.c.h.b16 %v927
    %v3544 = vunpack.c.l.b16 %v928
    %v3545 = vunpack.c.h.b16 %v928
    %v3546 = vunpack.c.l.b16 %v929
    %v3547 = vunpack.c.h.b16 %v929
    %v3548 = vunpack.c.l.b16 %v930
    %v3549 = vunpack.c.h.b16 %v930
    %v3550 = vunpack.c.l.b16 %v931
    %v3551 = vunpack.c.h.b16 %v931
    %v3552 = vunpack.c.l.b16 %v932
    %v3553 = vunpack.c.h.b16 %v932
    %v3554 = vunpack.c.l.b16 %v933
    %v3555 = vunpack.c.h.b16 %v933
    %v3556 = vunpack.c.l.b16 %v934
    %v3557 = vunpack.c.h.b16 %v934
    %v3558 = vunpack.c.l.b16 %v935
    %v3559 = vunpack.c.h.b16 %v935
    %v3560 = vunpack.c.l.b16 %v936
    %v3561 = vunpack.c.h.b16 %v936
    %v3562 = vunpack.c.l.b16 %v937
    %v3563 = vunpack.c.h.b16 %v937
    %v3564 = vunpack.c.l.b16 %v938
    %v3565 = vunpack.c.h.b16 %v938
    %v3566 = vunpack.c.l.b16 %v939
    %v3567 = vunpack.c.h.b16 %v939
    %v3568 = vunpack.c.l.b16 %v940
    %v3569 = vunpack.c.h.b16 %v940
    %v3570 = vunpack.c.l.b16 %v941
    %v3571 = vunpack.c.h.b16 %v941
    %v3572 = vunpack.c.l.b16 %v942
    %v3573 = vunpack.c.h.b16 %v942
    %v3574 = vunpack.c.l.b16 %v943
    %v3575 = vunpack.c.h.b16 %v943
    %v3576 = vunpack.c.l.b16 %v944
    %v3577 = vunpack.c.h.b16 %v944
    %v3578 = vunpack.c.l.b16 %v945
    %v3579 = vunpack.c.h.b16 %v945
    %v3580 = vunpack.c.l.b16 %v946
    %v3581 = vunpack.c.h.b16 %v946
    %v3582 = vunpack.c.l.b16 %v947
    %v3583 = vunpack.c.h.b16 %v947
    %v3584 = vunpack.c.l.b16 %v948
    %v3585 = vunpack.c.h.b16 %v948
    %v3586 = vunpack.c.l.b16 %v949
    %v3587 = vunpack.c.h.b16 %v949
    %v3588 = vunpack.c.l.b16 %v950
    %v3589 = vunpack.c.h.b16 %v950
    %v3590 = vunpack.c.l.b16 %v951
    %v3591 = vunpack.c.h.b16 %v951
    %v3592 = vunpack.c.l.b16 %v952
    %v3593 = vunpack.c.h.b16 %v952
    %v3594 = vunpack.c.l.b16 %v953
    %v3595 = vunpack.c.h.b16 %v953
    %v3596 = vunpack.c.l.b16 %v954
    %v3597 = vunpack.c.h.b16 %v954
    %v3598 = vunpack.c.l.b16 %v955
    %v3599 = vunpack.c.h.b16 %v955
    %v3600 = vunpack.c.l.b16 %v956
    %v3601 = vunpack.c.h.b16 %v956
    %v3602 = vunpack.c.l.b16 %v957
    %v3603 = vunpack.c.h.b16 %v957
    %v3604 = vunpack.c.l.b16 %v958
    %v3605 = vunpack.c.h.b16 %v958
    %v3606 = vunpack.c.l.b16 %v959
    %v3607 = vunpack.c.h.b16 %v959
    %v3608 = vunpack.c.l.b16 %v960
    %v3609 = vunpack.c.h.b16 %v960
    %v3610 = vunpack.c.l.b16 %v961
    %v3611 = vunpack.c.h.b16 %v961
    %v3612 = vunpack.c.l.b16 %v962
    %v3613 = vunpack.c.h.b16 %v962
    %v3614 = vunpack.c.l.b16 %v963
    %v3615 = vunpack.c.h.b16 %v963
    %v3616 = vunpack.c.l.b16 %v964
    %v3617 = vunpack.c.h.b16 %v964
    %v3618 = vunpack.c.l.b16 %v965
    %v3619 = vunpack.c.h.b16 %v965
    %v3620 = vunpack.c.l.b16 %v966
    %v3621 = vunpack.c.h.b16 %v966
    %v3622 = vunpack.c.l.b16 %v967
    %v3623 = vunpack.c.h.b16 %v967
    %v3624 = vunpack.c.l.b16 %v968
    %v3625 = vunpack.c.h.b16 %v968
    %v3626 = vunpack.c.l.b16 %v969
    %v3627 = vunpack.c.h.b16 %v969
    %v3628 = vunpack.c.l.b16 %v970
    %v3629 = vunpack.c.h.b16 %v970
    %v3630 = vunpack.c.l.b16 %v971
    %v3631 = vunpack.c.h.b16 %v971
    %v3632 = vunpack.c.l.b16 %v972
    %v3633 = vunpack.c.h.b16 %v972
    %v3634 = vunpack.c.l.b16 %v973
    %v3635 = vunpack.c.h.b16 %v973
    %v3636 = vunpack.c.l.b16 %v974
    %v3637 = vunpack.c.h.b16 %v974
    %v3638 = vunpack.c.l.b16 %v975
    %v3639 = vunpack.c.h.b16 %v975
    %v3640 = vunpack.c.l.b16 %v976
    %v3641 = vunpack.c.h.b16 %v976
    %v3642 = vunpack.c.l.b16 %v977
    %v3643 = vunpack.c.h.b16 %v977
    %v3644 = vunpack.c.l.b16 %v978
    %v3645 = vunpack.c.h.b16 %v978
    %v3646 = vunpack.c.l.b16 %v979
    %v3647 = vunpack.c.h.b16 %v979
    %v3648 = vunpack.c.l.b16 %v980
    %v3649 = vunpack.c.h.b16 %v980
    %v3650 = vunpack.c.l.b16 %v981
    %v3651 = vunpack.c.h.b16 %v981
    %v3652 = vunpack.c.l.b16 %v982
    %v3653 = vunpack.c.h.b16 %v982
    %v3654 = vunpack.c.l.b16 %v983
    %v3655 = vunpack.c.h.b16 %v983
    %v3656 = vunpack.c.l.b16 %v984
    %v3657 = vunpack.c.h.b16 %v984
    %v3658 = vunpack.c.l.b16 %v985
    %v3659 = vunpack.c.h.b16 %v985
    %v3660 = vunpack.c.l.b16 %v986
    %v3661 = vunpack.c.h.b16 %v986
    %v3662 = vunpack.c.l.b16 %v987
    %v3663 = vunpack.c.h.b16 %v987
    %v3664 = vunpack.c.l.b16 %v988
    %v3665 = vunpack.c.h.b16 %v988
    %v3666 = vunpack.c.l.b16 %v989
    %v3667 = vunpack.c.h.b16 %v989
    %v3668 = vunpack.c.l.b16 %v990
    %v3669 = vunpack.c.h.b16 %v990
    %v3670 = vunpack.c.l.b16 %v991
    %v3671 = vunpack.c.h.b16 %v991
    %v3672 = vunpack.c.l.b16 %v992
    %v3673 = vunpack.c.h.b16 %v992
    %v3674 = vunpack.c.l.b16 %v993
    %v3675 = vunpack.c.h.b16 %v993
    %v3676 = vunpack.c.l.b16 %v994
    %v3677 = vunpack.c.h.b16 %v994
    %v3678 = vunpack.c.l.b16 %v995
    %v3679 = vunpack.c.h.b16 %v995
    %v3680 = vunpack.c.l.b16 %v996
    %v3681 = vunpack.c.h.b16 %v996
    %v3682 = vunpack.c.l.b16 %v997
    %v3683 = vunpack.c.h.b16 %v997
    %v3684 = vunpack.c.l.b16 %v998
    %v3685 = vunpack.c.h.b16 %v998
    %v3686 = vunpack.c.l.b16 %v999
    %v3687 = vunpack.c.h.b16 %v999
    %v3688 = vunpack.c.l.b16 %v1000
    %v3689 = vunpack.c.h.b16 %v1000
    %v3690 = vunpack.c.l.b16 %v1001
    %v3691 = vunpack.c.h.b16 %v1001
    %v3692 = vunpack.c.l.b16 %v1002
    %v3693 = vunpack.c.h.b16 %v1002
    %v3694 = vunpack.c.l.b16 %v1003
    %v3695 = vunpack.c.h.b16 %v1003
    %v3696 = vunpack.c.l.b16 %v1004
    %v3697 = vunpack.c.h.b16 %v1004
    %v3698 = vunpack.c.l.b16 %v1005
    %v3699 = vunpack.c.h.b16 %v1005
    %v3700 = vunpack.c.l.b16 %v1006
    %v3701 = vunpack.c.h.b16 %v1006
    %v3702 = vunpack.c.l.b16 %v1007
    %v3703 = vunpack.c.h.b16 %v1007
    %v3704 = vunpack.c.l.b16 %v1008
    %v3705 = vunpack.c.h.b16 %v1008
    %v3706 = vunpack.c.l.b16 %v1009
    %v3707 = vunpack.c.h.b16 %v1009
    %v3708 = vunpack.c.l.b16 %v1010
    %v3709 = vunpack.c.h.b16 %v1010
    %v3710 = vunpack.c.l.b16 %v1011
    %v3711 = vunpack.c.h.b16 %v1011
    %v3712 = vunpack.c.l.b16 %v1012
    %v3713 = vunpack.c.h.b16 %v1012
    %v3714 = vunpack.c.l.b16 %v1013
    %v3715 = vunpack.c.h.b16 %v1013
    %v3716 = vunpack.c.l.b16 %v1014
    %v3717 = vunpack.c.h.b16 %v1014
    %v3718 = vunpack.c.l.b16 %v1015
    %v3719 = vunpack.c.h.b16 %v1015
    %v3720 = vunpack.c.l.b16 %v1016
    %v3721 = vunpack.c.h.b16 %v1016
    %v3722 = vunpack.c.l.b16 %v1017
    %v3723 = vunpack.c.h.b16 %v1017
    %v3724 = vunpack.c.l.b16 %v1018
    %v3725 = vunpack.c.h.b16 %v1018
    %v3726 = vunpack.c.l.b16 %v1019
    %v3727 = vunpack.c.h.b16 %v1019
    %v3728 = vunpack.c.l.b16 %v1020
    %v3729 = vunpack.c.h.b16 %v1020
    %v3730 = vunpack.c.l.b16 %v1021
    %v3731 = vunpack.c.h.b16 %v1021
    %v3732 = vunpack.c.l.b16 %v1022
    %v3733 = vunpack.c.h.b16 %v1022
    %v3734 = vunpack.c.l.b16 %v1023
    %v3735 = vunpack.c.h.b16 %v1023
    %v3736 = vunpack.c.l.b16 %v1024
    %v3737 = vunpack.c.h.b16 %v1024
    %v3738 = vunpack.c.l.b16 %v1025
    %v3739 = vunpack.c.h.b16 %v1025
    %v3740 = vunpack.c.l.b16 %v1026
    %v3741 = vunpack.c.h.b16 %v1026
    %v3742 = vunpack.c.l.b16 %v1027
    %v3743 = vunpack.c.h.b16 %v1027
    %v3744 = vunpack.c.l.b16 %v1028
    %v3745 = vunpack.c.h.b16 %v1028
    %v3746 = vunpack.c.l.b16 %v1029
    %v3747 = vunpack.c.h.b16 %v1029
    %v3748 = vunpack.c.l.b16 %v1030
    %v3749 = vunpack.c.h.b16 %v1030
    %v3750 = vunpack.c.l.b16 %v1031
    %v3751 = vunpack.c.h.b16 %v1031
    %v3752 = vunpack.c.l.b16 %v1032
    %v3753 = vunpack.c.h.b16 %v1032
    %v3754 = vunpack.c.l.b16 %v1033
    %v3755 = vunpack.c.h.b16 %v1033
    %v3756 = vunpack.c.l.b16 %v1034
    %v3757 = vunpack.c.h.b16 %v1034
    %v3758 = vunpack.c.l.b16 %v1035
    %v3759 = vunpack.c.h.b16 %v1035
    %v3760 = vunpack.c.l.b16 %v1036
    %v3761 = vunpack.c.h.b16 %v1036
    %v3762 = vunpack.c.l.b16 %v1037
    %v3763 = vunpack.c.h.b16 %v1037
    %v3764 = vunpack.c.l.b16 %v1038
    %v3765 = vunpack.c.h.b16 %v1038
    %v3766 = vunpack.c.l.b16 %v1039
    %v3767 = vunpack.c.h.b16 %v1039
    %v3768 = vunpack.c.l.b16 %v1040
    %v3769 = vunpack.c.h.b16 %v1040
    %v3770 = vunpack.c.l.b16 %v1041
    %v3771 = vunpack.c.h.b16 %v1041
    %v3772 = vunpack.c.l.b16 %v1042
    %v3773 = vunpack.c.h.b16 %v1042
    %v3774 = vunpack.c.l.b16 %v1043
    %v3775 = vunpack.c.h.b16 %v1043
    %v3776 = vunpack.c.l.b16 %v1044
    %v3777 = vunpack.c.h.b16 %v1044
    %v3778 = vunpack.c.l.b16 %v1045
    %v3779 = vunpack.c.h.b16 %v1045
    %v3780 = vunpack.c.l.b16 %v1046
    %v3781 = vunpack.c.h.b16 %v1046
    %v3782 = vunpack.c.l.b16 %v1047
    %v3783 = vunpack.c.h.b16 %v1047
    %v3784 = vunpack.c.l.b16 %v1048
    %v3785 = vunpack.c.h.b16 %v1048
    %v3786 = vunpack.c.l.b16 %v1049
    %v3787 = vunpack.c.h.b16 %v1049
    %v3788 = vunpack.c.l.b16 %v1050
    %v3789 = vunpack.c.h.b16 %v1050
    %v3790 = vunpack.c.l.b16 %v1051
    %v3791 = vunpack.c.h.b16 %v1051
    %v3792 = vunpack.c.l.b16 %v1052
    %v3793 = vunpack.c.h.b16 %v1052
    %v3794 = vunpack.c.l.b16 %v1053
    %v3795 = vunpack.c.h.b16 %v1053
    %v3796 = vunpack.c.l.b16 %v1054
    %v3797 = vunpack.c.h.b16 %v1054
    %v3798 = vunpack.c.l.b16 %v1055
    %v3799 = vunpack.c.h.b16 %v1055
    %v3800 = vunpack.c.l.b16 %v1056
    %v3801 = vunpack.c.h.b16 %v1056
    %v3802 = vunpack.c.l.b16 %v1057
    %v3803 = vunpack.c.h.b16 %v1057
    %v3804 = vunpack.c.l.b16 %v1058
    %v3805 = vunpack.c.h.b16 %v1058
    %v3806 = vunpack.c.l.b16 %v1059
    %v3807 = vunpack.c.h.b16 %v1059
    %v3808 = vunpack.c.l.b16 %v1060
    %v3809 = vunpack.c.h.b16 %v1060
    %v3810 = vunpack.c.l.b16 %v1061
    %v3811 = vunpack.c.h.b16 %v1061
    %v3812 = vunpack.c.l.b16 %v1062
    %v3813 = vunpack.c.h.b16 %v1062
    %v3814 = vunpack.c.l.b16 %v1063
    %v3815 = vunpack.c.h.b16 %v1063
    %v3816 = vunpack.c.l.b16 %v1064
    %v3817 = vunpack.c.h.b16 %v1064
    %v3818 = vunpack.c.l.b16 %v1065
    %v3819 = vunpack.c.h.b16 %v1065
    %v3820 = vunpack.c.l.b16 %v1066
    %v3821 = vunpack.c.h.b16 %v1066
    %v3822 = vunpack.c.l.b16 %v1067
    %v3823 = vunpack.c.h.b16 %v1067
    %v3824 = vunpack.c.l.b16 %v1068
    %v3825 = vunpack.c.h.b16 %v1068
    %v3826 = vunpack.c.l.b16 %v1069
    %v3827 = vunpack.c.h.b16 %v1069
    %v3828 = vunpack.c.l.b16 %v1070
    %v3829 = vunpack.c.h.b16 %v1070
    %v3830 = vunpack.c.l.b16 %v1071
    %v3831 = vunpack.c.h.b16 %v1071
    %v3832 = vunpack.c.l.b16 %v1072
    %v3833 = vunpack.c.h.b16 %v1072
    %v3834 = vunpack.c.l.b16 %v1073
    %v3835 = vunpack.c.h.b16 %v1073
    %v3836 = vunpack.c.l.b16 %v1074
    %v3837 = vunpack.c.h.b16 %v1074
    %v3838 = vunpack.c.l.b16 %v1075
    %v3839 = vunpack.c.h.b16 %v1075
    %v3840 = vunpack.c.l.b16 %v1076
    %v3841 = vunpack.c.h.b16 %v1076
    %v3842 = vunpack.c.l.b16 %v1077
    %v3843 = vunpack.c.h.b16 %v1077
    %v3844 = vunpack.c.l.b16 %v1078
    %v3845 = vunpack.c.h.b16 %v1078
    %v3846 = vunpack.c.l.b16 %v1079
    %v3847 = vunpack.c.h.b16 %v1079
    %v3848 = vunpack.c.l.b16 %v1080
    %v3849 = vunpack.c.h.b16 %v1080
    %v3850 = vunpack.c.l.b16 %v1081
    %v3851 = vunpack.c.h.b16 %v1081
    %v3852 = vunpack.c.l.b16 %v1082
    %v3853 = vunpack.c.h.b16 %v1082
    %v3854 = vunpack.c.l.b16 %v1083
    %v3855 = vunpack.c.h.b16 %v1083
    %v3856 = vunpack.c.l.b16 %v1084
    %v3857 = vunpack.c.h.b16 %v1084
    %v3858 = vunpack.c.l.b16 %v1085
    %v3859 = vunpack.c.h.b16 %v1085
    %v3860 = vunpack.c.l.b16 %v1086
    %v3861 = vunpack.c.h.b16 %v1086
    %v3862 = vunpack.c.l.b16 %v1087
    %v3863 = vunpack.c.h.b16 %v1087
    %v3864 = vunpack.c.l.b16 %v1088
    %v3865 = vunpack.c.h.b16 %v1088
    %v3866 = vunpack.c.l.b16 %v1089
    %v3867 = vunpack.c.h.b16 %v1089
    %v3868 = vunpack.c.l.b16 %v1090
    %v3869 = vunpack.c.h.b16 %v1090
    %v3870 = vunpack.c.l.b16 %v1091
    %v3871 = vunpack.c.h.b16 %v1091
    %v3872 = vunpack.c.l.b16 %v1092
    %v3873 = vunpack.c.h.b16 %v1092
    %v3874 = vunpack.c.l.b16 %v1093
    %v3875 = vunpack.c.h.b16 %v1093
    %v3876 = vunpack.c.l.b16 %v1094
    %v3877 = vunpack.c.h.b16 %v1094
    %v3878 = vunpack.c.l.b16 %v1095
    %v3879 = vunpack.c.h.b16 %v1095
    %v3880 = vunpack.c.l.b16 %v1096
    %v3881 = vunpack.c.h.b16 %v1096
    %v3882 = vunpack.c.l.b16 %v1097
    %v3883 = vunpack.c.h.b16 %v1097
    %v3884 = vunpack.c.l.b16 %v1098
    %v3885 = vunpack.c.h.b16 %v1098
    %v3886 = vunpack.c.l.b16 %v1099
    %v3887 = vunpack.c.h.b16 %v1099
    %v3888 = vunpack.c.l.b16 %v1100
    %v3889 = vunpack.c.h.b16 %v1100
    %v3890 = vunpack.c.l.b16 %v1101
    %v3891 = vunpack.c.h.b16 %v1101
    %v3892 = vunpack.c.l.b16 %v1102
    %v3893 = vunpack.c.h.b16 %v1102
    %v3894 = vunpack.c.l.b16 %v1103
    %v3895 = vunpack.c.h.b16 %v1103
    %v3896 = vunpack.c.l.b16 %v1104
    %v3897 = vunpack.c.h.b16 %v1104
    %v3898 = vunpack.c.l.b16 %v1105
    %v3899 = vunpack.c.h.b16 %v1105
    %v3900 = vunpack.c.l.b16 %v1106
    %v3901 = vunpack.c.h.b16 %v1106
    %v3902 = vunpack.c.l.b16 %v1107
    %v3903 = vunpack.c.h.b16 %v1107
    %v3904 = vunpack.c.l.b16 %v1108
    %v3905 = vunpack.c.h.b16 %v1108
    %v3906 = vunpack.c.l.b16 %v1109
    %v3907 = vunpack.c.h.b16 %v1109
    %v3908 = vunpack.c.l.b16 %v1110
    %v3909 = vunpack.c.h.b16 %v1110
    %v3910 = vunpack.c.l.b16 %v1111
    %v3911 = vunpack.c.h.b16 %v1111
    %v3912 = vunpack.c.l.b16 %v1112
    %v3913 = vunpack.c.h.b16 %v1112
    %v3914 = vunpack.c.l.b16 %v1113
    %v3915 = vunpack.c.h.b16 %v1113
    %v3916 = vunpack.c.l.b16 %v1114
    %v3917 = vunpack.c.h.b16 %v1114
    %v3918 = vunpack.c.l.b16 %v1115
    %v3919 = vunpack.c.h.b16 %v1115
    %v3920 = vunpack.c.l.b16 %v1116
    %v3921 = vunpack.c.h.b16 %v1116
    %v3922 = vunpack.c.l.b16 %v1117
    %v3923 = vunpack.c.h.b16 %v1117
    %v3924 = vunpack.c.l.b16 %v1118
    %v3925 = vunpack.c.h.b16 %v1118
    %v3926 = vunpack.c.l.b16 %v1119
    %v3927 = vunpack.c.h.b16 %v1119
    %v3928 = vunpack.c.l.b16 %v1120
    %v3929 = vunpack.c.h.b16 %v1120
    %v3930 = vunpack.c.l.b16 %v1121
    %v3931 = vunpack.c.h.b16 %v1121
    %v3932 = vunpack.c.l.b16 %v1122
    %v3933 = vunpack.c.h.b16 %v1122
    %v3934 = vunpack.c.l.b16 %v1123
    %v3935 = vunpack.c.h.b16 %v1123
    %v3936 = vunpack.c.l.b16 %v1124
    %v3937 = vunpack.c.h.b16 %v1124
    %v3938 = vunpack.c.l.b16 %v1125
    %v3939 = vunpack.c.h.b16 %v1125
    %v3940 = vunpack.c.l.b16 %v1126
    %v3941 = vunpack.c.h.b16 %v1126
    %v3942 = vunpack.c.l.b16 %v1127
    %v3943 = vunpack.c.h.b16 %v1127
    %v3944 = vunpack.c.l.b16 %v1128
    %v3945 = vunpack.c.h.b16 %v1128
    %v3946 = vunpack.c.l.b16 %v1129
    %v3947 = vunpack.c.h.b16 %v1129
    %v3948 = vunpack.c.l.b16 %v1130
    %v3949 = vunpack.c.h.b16 %v1130
    %v3950 = vunpack.c.l.b16 %v1131
    %v3951 = vunpack.c.h.b16 %v1131
    %v3952 = vunpack.c.l.b16 %v1132
    %v3953 = vunpack.c.h.b16 %v1132
    %v3954 = vunpack.c.l.b16 %v1133
    %v3955 = vunpack.c.h.b16 %v1133
    %v3956 = vunpack.c.l.b16 %v1134
    %v3957 = vunpack.c.h.b16 %v1134
    %v3958 = vunpack.c.l.b16 %v1135
    %v3959 = vunpack.c.h.b16 %v1135
    %v3960 = vunpack.c.l.b16 %v1136
    %v3961 = vunpack.c.h.b16 %v1136
    %v3962 = vunpack.c.l.b16 %v1137
    %v3963 = vunpack.c.h.b16 %v1137
    %v3964 = vunpack.c.l.b16 %v1138
    %v3965 = vunpack.c.h.b16 %v1138
    %v3966 = vunpack.c.l.b16 %v1139
    %v3967 = vunpack.c.h.b16 %v1139
    %v3968 = vunpack.c.l.b16 %v1140
    %v3969 = vunpack.c.h.b16 %v1140
    %v3970 = vunpack.c.l.b16 %v1141
    %v3971 = vunpack.c.h.b16 %v1141
    %v3972 = vunpack.c.l.b16 %v1142
    %v3973 = vunpack.c.h.b16 %v1142
    %v3974 = vunpack.c.l.b16 %v1143
    %v3975 = vunpack.c.h.b16 %v1143
    %v3976 = vunpack.c.l.b16 %v1144
    %v3977 = vunpack.c.h.b16 %v1144
    %v3978 = vunpack.c.l.b16 %v1145
    %v3979 = vunpack.c.h.b16 %v1145
    %v3980 = vunpack.c.l.b16 %v1146
    %v3981 = vunpack.c.h.b16 %v1146
    %v3982 = vunpack.c.l.b16 %v1147
    %v3983 = vunpack.c.h.b16 %v1147
    %v3984 = vunpack.c.l.b16 %v1148
    %v3985 = vunpack.c.h.b16 %v1148
    %v3986 = vunpack.c.l.b16 %v1149
    %v3987 = vunpack.c.h.b16 %v1149
    %v3988 = vunpack.c.l.b16 %v1150
    %v3989 = vunpack.c.h.b16 %v1150
    %v3990 = vunpack.c.l.b16 %v1151
    %v3991 = vunpack.c.h.b16 %v1151
    %v3992 = vunpack.c.l.b16 %v1152
    %v3993 = vunpack.c.h.b16 %v1152
    %v3994 = vunpack.c.l.b16 %v1153
    %v3995 = vunpack.c.h.b16 %v1153
    %v3996 = vunpack.c.l.b16 %v1154
    %v3997 = vunpack.c.h.b16 %v1154
    %v3998 = vunpack.c.l.b16 %v1155
    %v3999 = vunpack.c.h.b16 %v1155
    %v4000 = vunpack.c.l.b16 %v1156
    %v4001 = vunpack.c.h.b16 %v1156
    %v4002 = vunpack.c.l.b16 %v1157
    %v4003 = vunpack.c.h.b16 %v1157
    %v4004 = vunpack.c.l.b16 %v1158
    %v4005 = vunpack.c.h.b16 %v1158
    %v4006 = vunpack.c.l.b16 %v1159
    %v4007 = vunpack.c.h.b16 %v1159
    %v4008 = vunpack.c.l.b16 %v1160
    %v4009 = vunpack.c.h.b16 %v1160
    %v4010 = vunpack.c.l.b16 %v1161
    %v4011 = vunpack.c.h.b16 %v1161
    %v4012 = vunpack.c.l.b16 %v1162
    %v4013 = vunpack.c.h.b16 %v1162
    %v4014 = vunpack.c.l.b16 %v1163
    %v4015 = vunpack.c.h.b16 %v1163
    %v4016 = vunpack.c.l.b16 %v1164
    %v4017 = vunpack.c.h.b16 %v1164
    %v4018 = vunpack.c.l.b16 %v1165
    %v4019 = vunpack.c.h.b16 %v1165
    %v4020 = vunpack.c.l.b16 %v1166
    %v4021 = vunpack.c.h.b16 %v1166
    %v4022 = vunpack.c.l.b16 %v1167
    %v4023 = vunpack.c.h.b16 %v1167
    %v4024 = vunpack.c.l.b16 %v1168
    %v4025 = vunpack.c.h.b16 %v1168
    %v4026 = vunpack.c.l.b16 %v1169
    %v4027 = vunpack.c.h.b16 %v1169
    %v4028 = vunpack.c.l.b16 %v1170
    %v4029 = vunpack.c.h.b16 %v1170
    %v4030 = vunpack.c.l.b16 %v1171
    %v4031 = vunpack.c.h.b16 %v1171
    %v4032 = vunpack.c.l.b16 %v1172
    %v4033 = vunpack.c.h.b16 %v1172
    %v4034 = vunpack.c.l.b16 %v1173
    %v4035 = vunpack.c.h.b16 %v1173
    %v4036 = vunpack.c.l.b16 %v1174
    %v4037 = vunpack.c.h.b16 %v1174
    %v4038 = vunpack.c.l.b16 %v1175
    %v4039 = vunpack.c.h.b16 %v1175
    %v4040 = vunpack.c.l.b16 %v1176
    %v4041 = vunpack.c.h.b16 %v1176
    %v4042 = vunpack.c.l.b16 %v1177
    %v4043 = vunpack.c.h.b16 %v1177
    %v4044 = vunpack.c.l.b16 %v1178
    %v4045 = vunpack.c.h.b16 %v1178
    %v4046 = vunpack.c.l.b16 %v1179
    %v4047 = vunpack.c.h.b16 %v1179
    %v4048 = vunpack.c.l.b16 %v1180
    %v4049 = vunpack.c.h.b16 %v1180
    %v4050 = vunpack.c.l.b16 %v1181
    %v4051 = vunpack.c.h.b16 %v1181
    %v4052 = vunpack.c.l.b16 %v1182
    %v4053 = vunpack.c.h.b16 %v1182
    %v4054 = vunpack.c.l.b16 %v1183
    %v4055 = vunpack.c.h.b16 %v1183
    %v4056 = vunpack.c.l.b16 %v1184
    %v4057 = vunpack.c.h.b16 %v1184
    %v4058 = vunpack.c.l.b16 %v1185
    %v4059 = vunpack.c.h.b16 %v1185
    %v4060 = vunpack.c.l.b16 %v1186
    %v4061 = vunpack.c.h.b16 %v1186
    %v4062 = vunpack.c.l.b16 %v1187
    %v4063 = vunpack.c.h.b16 %v1187
    %v4064 = vunpack.c.l.b16 %v1188
    %v4065 = vunpack.c.h.b16 %v1188
    %v4066 = vunpack.c.l.b16 %v1189
    %v4067 = vunpack.c.h.b16 %v1189
    %v4068 = vunpack.c.l.b16 %v1190
    %v4069 = vunpack.c.h.b16 %v1190
    %v4070 = vunpack.c.l.b16 %v1191
    %v4071 = vunpack.c.h.b16 %v1191
    %v4072 = vunpack.c.l.b16 %v1192
    %v4073 = vunpack.c.h.b16 %v1192
    %v4074 = vunpack.c.l.b16 %v1193
    %v4075 = vunpack.c.h.b16 %v1193
    %v4076 = vunpack.c.l.b16 %v1194
    %v4077 = vunpack.c.h.b16 %v1194
    %v4078 = vunpack.c.l.b16 %v1195
    %v4079 = vunpack.c.h.b16 %v1195
    %v4080 = vunpack.c.l.b16 %v1196
    %v4081 = vunpack.c.h.b16 %v1196
    %v4082 = vunpack.c.l.b16 %v1197
    %v4083 = vunpack.c.h.b16 %v1197
    %v4084 = vunpack.c.l.b16 %v1198
    %v4085 = vunpack.c.h.b16 %v1198
    %v4086 = vunpack.c.l.b16 %v1199
    %v4087 = vunpack.c.h.b16 %v1199
    %v4088 = vunpack.c.l.b16 %v1200
    %v4089 = vunpack.c.h.b16 %v1200
    %v4090 = vunpack.c.l.b16 %v1201
    %v4091 = vunpack.c.h.b16 %v1201
    %v4092 = vunpack.c.l.b16 %v1202
    %v4093 = vunpack.c.h.b16 %v1202
    %v4094 = vunpack.c.l.b16 %v1203
    %v4095 = vunpack.c.h.b16 %v1203
    %v4096 = vunpack.c.l.b16 %v1204
    %v4097 = vunpack.c.h.b16 %v1204
    %v4098 = vunpack.c.l.b16 %v1205
    %v4099 = vunpack.c.h.b16 %v1205
    %v4100 = vunpack.c.l.b16 %v1206
    %v4101 = vunpack.c.h.b16 %v1206
    %v4102 = vunpack.c.l.b16 %v1207
    %v4103 = vunpack.c.h.b16 %v1207
    %v4104 = vunpack.c.l.b16 %v1208
    %v4105 = vunpack.c.h.b16 %v1208
    %v4106 = vunpack.c.l.b16 %v1209
    %v4107 = vunpack.c.h.b16 %v1209
    %v4108 = vunpack.c.l.b16 %v1210
    %v4109 = vunpack.c.h.b16 %v1210
    %v4110 = vunpack.c.l.b16 %v1211
    %v4111 = vunpack.c.h.b16 %v1211
    %v4112 = vunpack.c.l.b16 %v1212
    %v4113 = vunpack.c.h.b16 %v1212
    %v4114 = vunpack.c.l.b16 %v1213
    %v4115 = vunpack.c.h.b16 %v1213
    %v4116 = vunpack.c.l.b16 %v1214
    %v4117 = vunpack.c.h.b16 %v1214
    %v4118 = vunpack.c.l.b16 %v1215
    %v4119 = vunpack.c.h.b16 %v1215
    %v4120 = vunpack.c.l.b16 %v1216
    %v4121 = vunpack.c.h.b16 %v1216
    %v4122 = vunpack.c.l.b16 %v1217
    %v4123 = vunpack.c.h.b16 %v1217
    %v4124 = vunpack.c.l.b16 %v1218
    %v4125 = vunpack.c.h.b16 %v1218
    %v4126 = vunpack.c.l.b16 %v1219
    %v4127 = vunpack.c.h.b16 %v1219
    %v4128 = vunpack.c.l.b16 %v1220
    %v4129 = vunpack.c.h.b16 %v1220
    %v4130 = vunpack.c.l.b16 %v1221
    %v4131 = vunpack.c.h.b16 %v1221
    %v4132 = vunpack.c.l.b16 %v1222
    %v4133 = vunpack.c.h.b16 %v1222
    %v4134 = vunpack.c.l.b16 %v1223
    %v4135 = vunpack.c.h.b16 %v1223
    %v4136 = vunpack.c.l.b16 %v1224
    %v4137 = vunpack.c.h.b16 %v1224
    %v4138 = vunpack.c.l.b16 %v1225
    %v4139 = vunpack.c.h.b16 %v1225
    %v4140 = vunpack.c.l.b16 %v1226
    %v4141 = vunpack.c.h.b16 %v1226
    %v4142 = vunpack.c.l.b16 %v1227
    %v4143 = vunpack.c.h.b16 %v1227
    %v4144 = vunpack.c.l.b16 %v1228
    %v4145 = vunpack.c.h.b16 %v1228
    %v4146 = vunpack.c.l.b16 %v1229
    %v4147 = vunpack.c.h.b16 %v1229
    %v4148 = vunpack.c.l.b16 %v1230
    %v4149 = vunpack.c.h.b16 %v1230
    %v4150 = vunpack.c.l.b16 %v1231
    %v4151 = vunpack.c.h.b16 %v1231
    %v4152 = vunpack.c.l.b16 %v1232
    %v4153 = vunpack.c.h.b16 %v1232
    %v4154 = vunpack.c.l.b16 %v1233
    %v4155 = vunpack.c.h.b16 %v1233
    %v4156 = vunpack.c.l.b16 %v1234
    %v4157 = vunpack.c.h.b16 %v1234
    %v4158 = vunpack.c.l.b16 %v1235
    %v4159 = vunpack.c.h.b16 %v1235
    %v4160 = vunpack.c.l.b16 %v1236
    %v4161 = vunpack.c.h.b16 %v1236
    %v4162 = vunpack.c.l.b16 %v1237
    %v4163 = vunpack.c.h.b16 %v1237
    %v4164 = vunpack.c.l.b16 %v1238
    %v4165 = vunpack.c.h.b16 %v1238
    %v4166 = vunpack.c.l.b16 %v1239
    %v4167 = vunpack.c.h.b16 %v1239
    %v4168 = vunpack.c.l.b16 %v1240
    %v4169 = vunpack.c.h.b16 %v1240
    %v4170 = vunpack.c.l.b16 %v1241
    %v4171 = vunpack.c.h.b16 %v1241
    %v4172 = vunpack.c.l.b16 %v1242
    %v4173 = vunpack.c.h.b16 %v1242
    %v4174 = vunpack.c.l.b16 %v1243
    %v4175 = vunpack.c.h.b16 %v1243
    %v4176 = vunpack.c.l.b16 %v1244
    %v4177 = vunpack.c.h.b16 %v1244
    %v4178 = vunpack.c.l.b16 %v1245
    %v4179 = vunpack.c.h.b16 %v1245
    %v4180 = vunpack.c.l.b16 %v1246
    %v4181 = vunpack.c.h.b16 %v1246
    %v4182 = vunpack.c.l.b16 %v1247
    %v4183 = vunpack.c.h.b16 %v1247
    %v4184 = vunpack.c.l.b16 %v1248
    %v4185 = vunpack.c.h.b16 %v1248
    %v4186 = vunpack.c.l.b16 %v1249
    %v4187 = vunpack.c.h.b16 %v1249
    %v4188 = vunpack.c.l.b16 %v1250
    %v4189 = vunpack.c.h.b16 %v1250
    %v4190 = vunpack.c.l.b16 %v1251
    %v4191 = vunpack.c.h.b16 %v1251
    %v4192 = vunpack.c.l.b16 %v1252
    %v4193 = vunpack.c.h.b16 %v1252
    %v4194 = vunpack.c.l.b16 %v1253
    %v4195 = vunpack.c.h.b16 %v1253
    %v4196 = vunpack.c.l.b16 %v1254
    %v4197 = vunpack.c.h.b16 %v1254
    %v4198 = vunpack.c.l.b16 %v1255
    %v4199 = vunpack.c.h.b16 %v1255
    %v4200 = vunpack.c.l.b16 %v1256
    %v4201 = vunpack.c.h.b16 %v1256
    %v4202 = vunpack.c.l.b16 %v1257
    %v4203 = vunpack.c.h.b16 %v1257
    %v4204 = vunpack.c.l.b16 %v1258
    %v4205 = vunpack.c.h.b16 %v1258
    %v4206 = vunpack.c.l.b16 %v1259
    %v4207 = vunpack.c.h.b16 %v1259
    %v4208 = vunpack.c.l.b16 %v1260
    %v4209 = vunpack.c.h.b16 %v1260
    %v4210 = vunpack.c.l.b16 %v1261
    %v4211 = vunpack.c.h.b16 %v1261
    %v4212 = vunpack.c.l.b16 %v1262
    %v4213 = vunpack.c.h.b16 %v1262
    %v4214 = vunpack.c.l.b16 %v1263
    %v4215 = vunpack.c.h.b16 %v1263
    %v4216 = vunpack.c.l.b16 %v1264
    %v4217 = vunpack.c.h.b16 %v1264
    %v4218 = vunpack.c.l.b16 %v1265
    %v4219 = vunpack.c.h.b16 %v1265
    %v4220 = vunpack.c.l.b16 %v1266
    %v4221 = vunpack.c.h.b16 %v1266
    %v4222 = vunpack.c.l.b16 %v1267
    %v4223 = vunpack.c.h.b16 %v1267
    %v4224 = vunpack.c.l.b16 %v1268
    %v4225 = vunpack.c.h.b16 %v1268
    %v4226 = vunpack.c.l.b16 %v1269
    %v4227 = vunpack.c.h.b16 %v1269
    %v4228 = vunpack.c.l.b16 %v1270
    %v4229 = vunpack.c.h.b16 %v1270
    %v4230 = vunpack.c.l.b16 %v1271
    %v4231 = vunpack.c.h.b16 %v1271
    %v4232 = vunpack.c.l.b16 %v1272
    %v4233 = vunpack.c.h.b16 %v1272
    %v4234 = vunpack.c.l.b16 %v1273
    %v4235 = vunpack.c.h.b16 %v1273
    %v4236 = vunpack.c.l.b16 %v1274
    %v4237 = vunpack.c.h.b16 %v1274
    %v4238 = vunpack.c.l.b16 %v1275
    %v4239 = vunpack.c.h.b16 %v1275
    %v4240 = vunpack.c.l.b16 %v1276
    %v4241 = vunpack.c.h.b16 %v1276
    %v4242 = vunpack.c.l.b16 %v1277
    %v4243 = vunpack.c.h.b16 %v1277
    %v4244 = vunpack.c.l.b16 %v1278
    %v4245 = vunpack.c.h.b16 %v1278
    %v4246 = vunpack.c.l.b16 %v1279
    %v4247 = vunpack.c.h.b16 %v1279
    %v4248 = vunpack.c.l.b16 %v1280
    %v4249 = vunpack.c.h.b16 %v1280
    %v4250 = vunpack.c.l.b16 %v1281
    %v4251 = vunpack.c.h.b16 %v1281
    %v4252 = vunpack.c.l.b16 %v1282
    %v4253 = vunpack.c.h.b16 %v1282
    %v4254 = vunpack.c.l.b16 %v1283
    %v4255 = vunpack.c.h.b16 %v1283
    %v4256 = vunpack.c.l.b16 %v1284
    %v4257 = vunpack.c.h.b16 %v1284
    %v4258 = vunpack.c.l.b16 %v1285
    %v4259 = vunpack.c.h.b16 %v1285
    %v4260 = vunpack.c.l.b16 %v1286
    %v4261 = vunpack.c.h.b16 %v1286
    %v4262 = vunpack.c.l.b16 %v1287
    %v4263 = vunpack.c.h.b16 %v1287
    %v4264 = vunpack.c.l.b16 %v1288
    %v4265 = vunpack.c.h.b16 %v1288
    %v4266 = vunpack.c.l.b16 %v1289
    %v4267 = vunpack.c.h.b16 %v1289
    %v4268 = vunpack.c.l.b16 %v1290
    %v4269 = vunpack.c.h.b16 %v1290
    %v4270 = vunpack.c.l.b16 %v1291
    %v4271 = vunpack.c.h.b16 %v1291
    %v4272 = vunpack.c.l.b16 %v1292
    %v4273 = vunpack.c.h.b16 %v1292
    %v4274 = vunpack.c.l.b16 %v1293
    %v4275 = vunpack.c.h.b16 %v1293
    %v4276 = vunpack.c.l.b16 %v1294
    %v4277 = vunpack.c.h.b16 %v1294
    %v4278 = vunpack.c.l.b16 %v1295
    %v4279 = vunpack.c.h.b16 %v1295
    %v4280 = vunpack.c.l.b16 %v1296
    %v4281 = vunpack.c.h.b16 %v1296
    %v4282 = vunpack.c.l.b16 %v1297
    %v4283 = vunpack.c.h.b16 %v1297
    %v4284 = vunpack.c.l.b16 %v1298
    %v4285 = vunpack.c.h.b16 %v1298
    %v4286 = vunpack.c.l.b16 %v1299
    %v4287 = vunpack.c.h.b16 %v1299
    %v4288 = vunpack.c.l.b16 %v1300
    %v4289 = vunpack.c.h.b16 %v1300
    %v4290 = vunpack.c.l.b16 %v1301
    %v4291 = vunpack.c.h.b16 %v1301
    %v4292 = vunpack.c.l.b16 %v1302
    %v4293 = vunpack.c.h.b16 %v1302
    %v4294 = vunpack.c.l.b16 %v1303
    %v4295 = vunpack.c.h.b16 %v1303
    %v4296 = vunpack.c.l.b16 %v1304
    %v4297 = vunpack.c.h.b16 %v1304
    %v4298 = vunpack.c.l.b16 %v1305
    %v4299 = vunpack.c.h.b16 %v1305
    %v4300 = vunpack.c.l.b16 %v1306
    %v4301 = vunpack.c.h.b16 %v1306
    %v4302 = vunpack.c.l.b16 %v1307
    %v4303 = vunpack.c.h.b16 %v1307
    %v4304 = vunpack.c.l.b16 %v1308
    %v4305 = vunpack.c.h.b16 %v1308
    %v4306 = vunpack.c.l.b16 %v1309
    %v4307 = vunpack.c.h.b16 %v1309
    %v4308 = vunpack.c.l.b16 %v1310
    %v4309 = vunpack.c.h.b16 %v1310
    %v4310 = vunpack.c.l.b16 %v1311
    %v4311 = vunpack.c.h.b16 %v1311
    %v4312 = vunpack.c.l.b16 %v1312
    %v4313 = vunpack.c.h.b16 %v1312
    %v4314 = vunpack.c.l.b16 %v1313
    %v4315 = vunpack.c.h.b16 %v1313
    %v4316 = vunpack.c.l.b16 %v1314
    %v4317 = vunpack.c.h.b16 %v1314
    %v4318 = vunpack.c.l.b16 %v1315
    %v4319 = vunpack.c.h.b16 %v1315
    %v4320 = vunpack.c.l.b16 %v1316
    %v4321 = vunpack.c.h.b16 %v1316
    %v4322 = vunpack.c.l.b16 %v1317
    %v4323 = vunpack.c.h.b16 %v1317
    %v4324 = vunpack.c.l.b16 %v1318
    %v4325 = vunpack.c.h.b16 %v1318
    %v4326 = vunpack.c.l.b16 %v1319
    %v4327 = vunpack.c.h.b16 %v1319
    %v4328 = vunpack.c.l.b16 %v1320
    %v4329 = vunpack.c.h.b16 %v1320
    %v4330 = vunpack.c.l.b16 %v1321
    %v4331 = vunpack.c.h.b16 %v1321
    %v4332 = vunpack.c.l.b16 %v1322
    %v4333 = vunpack.c.h.b16 %v1322
    %v4334 = vunpack.c.l.b16 %v1323
    %v4335 = vunpack.c.h.b16 %v1323
    %v4336 = vunpack.c.l.b16 %v1324
    %v4337 = vunpack.c.h.b16 %v1324
    %v4338 = vunpack.c.l.b16 %v1325
    %v4339 = vunpack.c.h.b16 %v1325
    %v4340 = vunpack.c.l.b16 %v1326
    %v4341 = vunpack.c.h.b16 %v1326
    %v4342 = vunpack.c.l.b16 %v1327
    %v4343 = vunpack.c.h.b16 %v1327
    %v4344 = vunpack.c.l.b16 %v1328
    %v4345 = vunpack.c.h.b16 %v1328
    %v4346 = vunpack.c.l.b16 %v1329
    %v4347 = vunpack.c.h.b16 %v1329
    %v4348 = vunpack.c.l.b16 %v1330
    %v4349 = vunpack.c.h.b16 %v1330
    %v4350 = vunpack.c.l.b16 %v1331
    %v4351 = vunpack.c.h.b16 %v1331
    %v4352 = vunpack.c.l.b16 %v1332
    %v4353 = vunpack.c.h.b16 %v1332
    %v4354 = vunpack.c.l.b16 %v1333
    %v4355 = vunpack.c.h.b16 %v1333
    %v4356 = vunpack.c.l.b16 %v1334
    %v4357 = vunpack.c.h.b16 %v1334
    %v4358 = vunpack.c.l.b16 %v1335
    %v4359 = vunpack.c.h.b16 %v1335
    %v4360 = vunpack.c.l.b16 %v1336
    %v4361 = vunpack.c.h.b16 %v1336
    %v4362 = vunpack.c.l.b16 %v1337
    %v4363 = vunpack.c.h.b16 %v1337
    %v4364 = vunpack.c.l.b16 %v1338
    %v4365 = vunpack.c.h.b16 %v1338
    %v4366 = vunpack.c.l.b16 %v1339
    %v4367 = vunpack.c.h.b16 %v1339
    %v4368 = vunpack.c.l.b16 %v1340
    %v4369 = vunpack.c.h.b16 %v1340
    %v4370 = vunpack.c.l.b16 %v1341
    %v4371 = vunpack.c.h.b16 %v1341
    %v4372 = vunpack.c.l.b16 %v1342
    %v4373 = vunpack.c.h.b16 %v1342
    %v4374 = vunpack.c.l.b16 %v1343
    %v4375 = vunpack.c.h.b16 %v1343
    %v4376 = vunpack.c.l.b16 %v1344
    %v4377 = vunpack.c.h.b16 %v1344
    %v4378 = vunpack.c.l.b16 %v1345
    %v4379 = vunpack.c.h.b16 %v1345
    %v4380 = vunpack.c.l.b16 %v1346
    %v4381 = vunpack.c.h.b16 %v1346
    %v4382 = vunpack.c.l.b16 %v1347
    %v4383 = vunpack.c.h.b16 %v1347
    %v4384 = vunpack.c.l.b16 %v1348
    %v4385 = vunpack.c.h.b16 %v1348
    %v4386 = vunpack.c.l.b16 %v1349
    %v4387 = vunpack.c.h.b16 %v1349
    %v4388 = vunpack.c.l.b16 %v1350
    %v4389 = vunpack.c.h.b16 %v1350
    %v4390 = vunpack.c.l.b16 %v1351
    %v4391 = vunpack.c.h.b16 %v1351
    %v4392 = vunpack.c.l.b16 %v1352
    %v4393 = vunpack.c.h.b16 %v1352
    %v4394 = vunpack.c.l.b16 %v1353
    %v4395 = vunpack.c.h.b16 %v1353
    %v4396 = vunpack.c.l.b16 %v1354
    %v4397 = vunpack.c.h.b16 %v1354
    %v4398 = vunpack.c.l.b16 %v1355
    %v4399 = vunpack.c.h.b16 %v1355
    %v4400 = vunpack.c.l.b16 %v1356
    %v4401 = vunpack.c.h.b16 %v1356
    %v4402 = vunpack.c.l.b16 %v1357
    %v4403 = vunpack.c.h.b16 %v1357
    %v4404 = vunpack.c.l.b16 %v1358
    %v4405 = vunpack.c.h.b16 %v1358
    %v4406 = vunpack.c.l.b16 %v1359
    %v4407 = vunpack.c.h.b16 %v1359
    %v4408 = vunpack.c.l.b16 %v1360
    %v4409 = vunpack.c.h.b16 %v1360
    %v4410 = vunpack.c.l.b16 %v1361
    %v4411 = vunpack.c.h.b16 %v1361
    %v4412 = vunpack.c.l.b16 %v1362
    %v4413 = vunpack.c.h.b16 %v1362
    %v4414 = vunpack.c.l.b16 %v1363
    %v4415 = vunpack.c.h.b16 %v1363
    %v4416 = vunpack.c.l.b16 %v1364
    %v4417 = vunpack.c.h.b16 %v1364
    %v4418 = vunpack.c.l.b16 %v1365
    %v4419 = vunpack.c.h.b16 %v1365
    %v4420 = vunpack.c.l.b16 %v1366
    %v4421 = vunpack.c.h.b16 %v1366
    %v4422 = vunpack.c.l.b16 %v1367
    %v4423 = vunpack.c.h.b16 %v1367
    %v4424 = vunpack.c.l.b16 %v1368
    %v4425 = vunpack.c.h.b16 %v1368
    %v4426 = vunpack.c.l.b16 %v1369
    %v4427 = vunpack.c.h.b16 %v1369
    %v4428 = vunpack.c.l.b16 %v1370
    %v4429 = vunpack.c.h.b16 %v1370
    %v4430 = vunpack.c.l.b16 %v1371
    %v4431 = vunpack.c.h.b16 %v1371
    %v4432 = vunpack.c.l.b16 %v1372
    %v4433 = vunpack.c.h.b16 %v1372
    %v4434 = vunpack.c.l.b16 %v1373
    %v4435 = vunpack.c.h.b16 %v1373
    %v4436 = vunpack.c.l.b16 %v1374
    %v4437 = vunpack.c.h.b16 %v1374
    %v4438 = vunpack.c.l.b16 %v1375
    %v4439 = vunpack.c.h.b16 %v1375
    %v4440 = vunpack.c.l.b16 %v1376
    %v4441 = vunpack.c.h.b16 %v1376
    %v4442 = vunpack.c.l.b16 %v1377
    %v4443 = vunpack.c.h.b16 %v1377
    %v4444 = vunpack.c.l.b16 %v1378
    %v4445 = vunpack.c.h.b16 %v1378
    %v4446 = vunpack.c.l.b16 %v1379
    %v4447 = vunpack.c.h.b16 %v1379
    %v4448 = vunpack.c.l.b16 %v1380
    %v4449 = vunpack.c.h.b16 %v1380
    %v4450 = vunpack.c.l.b16 %v1381
    %v4451 = vunpack.c.h.b16 %v1381
    %v4452 = vunpack.c.l.b16 %v1382
    %v4453 = vunpack.c.h.b16 %v1382
    %v4454 = vunpack.c.l.b16 %v1383
    %v4455 = vunpack.c.h.b16 %v1383
    %v4456 = vunpack.c.l.b16 %v1384
    %v4457 = vunpack.c.h.b16 %v1384
    %v4458 = vunpack.c.l.b16 %v1385
    %v4459 = vunpack.c.h.b16 %v1385
    %v4460 = vunpack.c.l.b16 %v1386
    %v4461 = vunpack.c.h.b16 %v1386
    %v4462 = vunpack.c.l.b16 %v1387
    %v4463 = vunpack.c.h.b16 %v1387
    %v4464 = vunpack.c.l.b16 %v1388
    %v4465 = vunpack.c.h.b16 %v1388
    %v4466 = vunpack.c.l.b16 %v1389
    %v4467 = vunpack.c.h.b16 %v1389
    %v4468 = vunpack.c.l.b16 %v1390
    %v4469 = vunpack.c.h.b16 %v1390
    %v4470 = vunpack.c.l.b16 %v1391
    %v4471 = vunpack.c.h.b16 %v1391
    %v4472 = vunpack.c.l.b16 %v1392
    %v4473 = vunpack.c.h.b16 %v1392
    %v4474 = vunpack.c.l.b16 %v1393
    %v4475 = vunpack.c.h.b16 %v1393
    %v4476 = vunpack.c.l.b16 %v1394
    %v4477 = vunpack.c.h.b16 %v1394
    %v4478 = vunpack.c.l.b16 %v1395
    %v4479 = vunpack.c.h.b16 %v1395
    %v4480 = vunpack.c.l.b16 %v1396
    %v4481 = vunpack.c.h.b16 %v1396
    %v4482 = vunpack.c.l.b16 %v1397
    %v4483 = vunpack.c.h.b16 %v1397
    %v4484 = vunpack.c.l.b16 %v1398
    %v4485 = vunpack.c.h.b16 %v1398
    %v4486 = vunpack.c.l.b16 %v1399
    %v4487 = vunpack.c.h.b16 %v1399
    %v4488 = vunpack.c.l.b16 %v1400
    %v4489 = vunpack.c.h.b16 %v1400
    %v4490 = vunpack.c.l.b16 %v1401
    %v4491 = vunpack.c.h.b16 %v1401
    %v4492 = vunpack.c.l.b16 %v1402
    %v4493 = vunpack.c.h.b16 %v1402
    %v4494 = vunpack.c.l.b16 %v1403
    %v4495 = vunpack.c.h.b16 %v1403
    %v4496 = vunpack.c.l.b16 %v1404
    %v4497 = vunpack.c.h.b16 %v1404
    %v4498 = vunpack.c.l.b16 %v1405
    %v4499 = vunpack.c.h.b16 %v1405
    %v4500 = vunpack.c.l.b16 %v1406
    %v4501 = vunpack.c.h.b16 %v1406
    %v4502 = vunpack.c.l.b16 %v1407
    %v4503 = vunpack.c.h.b16 %v1407
    %v4504 = vunpack.c.l.b16 %v1408
    %v4505 = vunpack.c.h.b16 %v1408
    %v4506 = vunpack.c.l.b16 %v1409
    %v4507 = vunpack.c.h.b16 %v1409
    %v4508 = vunpack.c.l.b16 %v1410
    %v4509 = vunpack.c.h.b16 %v1410
    %v4510 = vunpack.c.l.b16 %v1411
    %v4511 = vunpack.c.h.b16 %v1411
    %v4512 = vunpack.c.l.b16 %v1412
    %v4513 = vunpack.c.h.b16 %v1412
    %v4514 = vunpack.c.l.b16 %v1413
    %v4515 = vunpack.c.h.b16 %v1413
    %v4516 = vunpack.c.l.b16 %v1414
    %v4517 = vunpack.c.h.b16 %v1414
    %v4518 = vunpack.c.l.b16 %v1415
    %v4519 = vunpack.c.h.b16 %v1415
    %v4520 = vunpack.c.l.b16 %v1416
    %v4521 = vunpack.c.h.b16 %v1416
    %v4522 = vunpack.c.l.b16 %v1417
    %v4523 = vunpack.c.h.b16 %v1417
    %v4524 = vunpack.c.l.b16 %v1418
    %v4525 = vunpack.c.h.b16 %v1418
    %v4526 = vunpack.c.l.b16 %v1419
    %v4527 = vunpack.c.h.b16 %v1419
    %v4528 = vunpack.c.l.b16 %v1420
    %v4529 = vunpack.c.h.b16 %v1420
    %v4530 = vunpack.c.l.b16 %v1421
    %v4531 = vunpack.c.h.b16 %v1421
    %v4532 = vunpack.c.l.b16 %v1422
    %v4533 = vunpack.c.h.b16 %v1422
    %v4534 = vunpack.c.l.b16 %v1423
    %v4535 = vunpack.c.h.b16 %v1423
    %v4536 = vunpack.c.l.b16 %v1424
    %v4537 = vunpack.c.h.b16 %v1424
    %v4538 = vunpack.c.l.b16 %v1425
    %v4539 = vunpack.c.h.b16 %v1425
    %v4540 = vunpack.c.l.b16 %v1426
    %v4541 = vunpack.c.h.b16 %v1426
    %v4542 = vunpack.c.l.b16 %v1427
    %v4543 = vunpack.c.h.b16 %v1427
    %v4544 = vunpack.c.l.b16 %v1428
    %v4545 = vunpack.c.h.b16 %v1428
    %v4546 = vunpack.c.l.b16 %v1429
    %v4547 = vunpack.c.h.b16 %v1429
    %v4548 = vunpack.c.l.b16 %v1430
    %v4549 = vunpack.c.h.b16 %v1430
    %v4550 = vunpack.c.l.b16 %v1431
    %v4551 = vunpack.c.h.b16 %v1431
    %v4552 = vunpack.c.l.b16 %v1432
    %v4553 = vunpack.c.h.b16 %v1432
    %v4554 = vunpack.c.l.b16 %v1433
    %v4555 = vunpack.c.h.b16 %v1433
    %v4556 = vunpack.c.l.b16 %v1434
    %v4557 = vunpack.c.h.b16 %v1434
    %v4558 = vunpack.c.l.b16 %v1435
    %v4559 = vunpack.c.h.b16 %v1435
    %v4560 = vunpack.c.l.b16 %v1436
    %v4561 = vunpack.c.h.b16 %v1436
    %v4562 = vunpack.c.l.b16 %v1437
    %v4563 = vunpack.c.h.b16 %v1437
    %v4564 = vunpack.c.l.b16 %v1438
    %v4565 = vunpack.c.h.b16 %v1438
    %v4566 = vunpack.c.l.b16 %v1439
    %v4567 = vunpack.c.h.b16 %v1439
    %v4568 = vunpack.c.l.b16 %v1440
    %v4569 = vunpack.c.h.b16 %v1440
    %v4570 = vunpack.c.l.b16 %v1441
    %v4571 = vunpack.c.h.b16 %v1441
    %v4572 = vunpack.c.l.b16 %v1442
    %v4573 = vunpack.c.h.b16 %v1442
    %v4574 = vunpack.c.l.b16 %v1443
    %v4575 = vunpack.c.h.b16 %v1443
    %v4576 = vunpack.c.l.b16 %v1444
    %v4577 = vunpack.c.h.b16 %v1444
    %v4578 = vunpack.c.l.b16 %v1445
    %v4579 = vunpack.c.h.b16 %v1445
    %v4580 = vunpack.c.l.b16 %v1446
    %v4581 = vunpack.c.h.b16 %v1446
    %v4582 = vunpack.c.l.b16 %v1447
    %v4583 = vunpack.c.h.b16 %v1447
    %v4584 = vunpack.c.l.b16 %v1448
    %v4585 = vunpack.c.h.b16 %v1448
    %v4586 = vunpack.c.l.b16 %v1449
    %v4587 = vunpack.c.h.b16 %v1449
    %v4588 = vunpack.c.l.b16 %v1450
    %v4589 = vunpack.c.h.b16 %v1450
    %v4590 = vunpack.c.l.b16 %v1451
    %v4591 = vunpack.c.h.b16 %v1451
    %v4592 = vunpack.c.l.b16 %v1452
    %v4593 = vunpack.c.h.b16 %v1452
    %v4594 = vunpack.c.l.b16 %v1453
    %v4595 = vunpack.c.h.b16 %v1453
    %v4596 = vunpack.c.l.b16 %v1454
    %v4597 = vunpack.c.h.b16 %v1454
    %v4598 = vunpack.c.l.b16 %v1455
    %v4599 = vunpack.c.h.b16 %v1455
    %v4600 = vunpack.c.l.b16 %v1456
    %v4601 = vunpack.c.h.b16 %v1456
    %v4602 = vunpack.c.l.b16 %v1457
    %v4603 = vunpack.c.h.b16 %v1457
    %v4604 = vunpack.c.l.b16 %v1458
    %v4605 = vunpack.c.h.b16 %v1458
    %v4606 = vunpack.c.l.b16 %v1459
    %v4607 = vunpack.c.h.b16 %v1459
    %v4608 = vunpack.c.l.b16 %v1460
    %v4609 = vunpack.c.h.b16 %v1460
    %v4610 = vunpack.c.l.b16 %v1461
    %v4611 = vunpack.c.h.b16 %v1461
    %v4612 = vunpack.c.l.b16 %v1462
    %v4613 = vunpack.c.h.b16 %v1462
    %v4614 = vunpack.c.l.b16 %v1463
    %v4615 = vunpack.c.h.b16 %v1463
    %v4616 = vunpack.c.l.b16 %v1464
    %v4617 = vunpack.c.h.b16 %v1464
    %v4618 = vunpack.c.l.b16 %v1465
    %v4619 = vunpack.c.h.b16 %v1465
    %v4620 = vunpack.c.l.b16 %v1466
    %v4621 = vunpack.c.h.b16 %v1466
    %v4622 = vunpack.c.l.b16 %v1467
    %v4623 = vunpack.c.h.b16 %v1467
    %v4624 = vunpack.c.l.b16 %v1468
    %v4625 = vunpack.c.h.b16 %v1468
    %v4626 = vunpack.c.l.b16 %v1469
    %v4627 = vunpack.c.h.b16 %v1469
    %v4628 = vunpack.c.l.b16 %v1470
    %v4629 = vunpack.c.h.b16 %v1470
    %v4630 = vunpack.c.l.b16 %v1471
    %v4631 = vunpack.c.h.b16 %v1471
    %v4632 = vunpack.c.l.b16 %v1472
    %v4633 = vunpack.c.h.b16 %v1472
    %v4634 = vunpack.c.l.b16 %v1473
    %v4635 = vunpack.c.h.b16 %v1473
    %v4636 = vunpack.c.l.b16 %v1474
    %v4637 = vunpack.c.h.b16 %v1474
    %v4638 = vunpack.c.l.b16 %v1475
    %v4639 = vunpack.c.h.b16 %v1475
    %v4640 = vunpack.c.l.b16 %v1476
    %v4641 = vunpack.c.h.b16 %v1476
    %v4642 = vunpack.c.l.b16 %v1477
    %v4643 = vunpack.c.h.b16 %v1477
    %v4644 = vunpack.c.l.b16 %v1478
    %v4645 = vunpack.c.h.b16 %v1478
    %v4646 = vunpack.c.l.b16 %v1479
    %v4647 = vunpack.c.h.b16 %v1479
    %v4648 = vunpack.c.l.b16 %v1480
    %v4649 = vunpack.c.h.b16 %v1480
    %v4650 = vunpack.c.l.b16 %v1481
    %v4651 = vunpack.c.h.b16 %v1481
    %v4652 = vunpack.c.l.b16 %v1482
    %v4653 = vunpack.c.h.b16 %v1482
    %v4654 = vunpack.c.l.b16 %v1483
    %v4655 = vunpack.c.h.b16 %v1483
    %v4656 = vunpack.c.l.b16 %v1484
    %v4657 = vunpack.c.h.b16 %v1484
    %v4658 = vunpack.c.l.b16 %v1485
    %v4659 = vunpack.c.h.b16 %v1485
    %v4660 = vunpack.c.l.b16 %v1486
    %v4661 = vunpack.c.h.b16 %v1486
    %v4662 = vunpack.c.l.b16 %v1487
    %v4663 = vunpack.c.h.b16 %v1487
    %v4664 = vunpack.c.l.b16 %v1488
    %v4665 = vunpack.c.h.b16 %v1488
    %v4666 = vunpack.c.l.b16 %v1489
    %v4667 = vunpack.c.h.b16 %v1489
    %v4668 = vunpack.c.l.b16 %v1490
    %v4669 = vunpack.c.h.b16 %v1490
    %v4670 = vunpack.c.l.b16 %v1491
    %v4671 = vunpack.c.h.b16 %v1491
    %v4672 = vunpack.c.l.b16 %v1492
    %v4673 = vunpack.c.h.b16 %v1492
    %v4674 = vunpack.c.l.b16 %v1493
    %v4675 = vunpack.c.h.b16 %v1493
    %v4676 = vunpack.c.l.b16 %v1494
    %v4677 = vunpack.c.h.b16 %v1494
    %v4678 = vunpack.c.l.b16 %v1495
    %v4679 = vunpack.c.h.b16 %v1495
    %v4680 = vunpack.c.l.b16 %v1496
    %v4681 = vunpack.c.h.b16 %v1496
    %v4682 = vunpack.c.l.b16 %v1497
    %v4683 = vunpack.c.h.b16 %v1497
    %v4684 = vunpack.c.l.b16 %v1498
    %v4685 = vunpack.c.h.b16 %v1498
    %v4686 = vunpack.c.l.b16 %v1499
    %v4687 = vunpack.c.h.b16 %v1499
    %v4688 = vunpack.c.l.b16 %v1500
    %v4689 = vunpack.c.h.b16 %v1500
    %v4690 = vunpack.c.l.b16 %v1501
    %v4691 = vunpack.c.h.b16 %v1501
    %v4692 = vunpack.c.l.b16 %v1502
    %v4693 = vunpack.c.h.b16 %v1502
    %v4694 = vunpack.c.l.b16 %v1503
    %v4695 = vunpack.c.h.b16 %v1503
    %v4696 = vunpack.c.l.b16 %v1504
    %v4697 = vunpack.c.h.b16 %v1504
    %v4698 = vunpack.c.l.b16 %v1505
    %v4699 = vunpack.c.h.b16 %v1505
    %v4700 = vunpack.c.l.b16 %v1506
    %v4701 = vunpack.c.h.b16 %v1506
    %v4702 = vunpack.c.l.b16 %v1507
    %v4703 = vunpack.c.h.b16 %v1507
    %v4704 = vunpack.c.l.b16 %v1508
    %v4705 = vunpack.c.h.b16 %v1508
    %v4706 = vunpack.c.l.b16 %v1509
    %v4707 = vunpack.c.h.b16 %v1509
    %v4708 = vunpack.c.l.b16 %v1510
    %v4709 = vunpack.c.h.b16 %v1510
    %v4710 = vunpack.c.l.b16 %v1511
    %v4711 = vunpack.c.h.b16 %v1511
    %v4712 = vunpack.c.l.b16 %v1512
    %v4713 = vunpack.c.h.b16 %v1512
    %v4714 = vunpack.c.l.b16 %v1513
    %v4715 = vunpack.c.h.b16 %v1513
    %v4716 = vunpack.c.l.b16 %v1514
    %v4717 = vunpack.c.h.b16 %v1514
    %v4718 = vunpack.c.l.b16 %v1515
    %v4719 = vunpack.c.h.b16 %v1515
    %v4720 = vunpack.c.l.b16 %v1516
    %v4721 = vunpack.c.h.b16 %v1516
    %v4722 = vunpack.c.l.b16 %v1517
    %v4723 = vunpack.c.h.b16 %v1517
    %v4724 = vunpack.c.l.b16 %v1518
    %v4725 = vunpack.c.h.b16 %v1518
    %v4726 = vunpack.c.l.b16 %v1519
    %v4727 = vunpack.c.h.b16 %v1519
    %v4728 = vunpack.c.l.b16 %v1520
    %v4729 = vunpack.c.h.b16 %v1520
    %v4730 = vunpack.c.l.b16 %v1521
    %v4731 = vunpack.c.h.b16 %v1521
    %v4732 = vunpack.c.l.b16 %v1522
    %v4733 = vunpack.c.h.b16 %v1522
    %v4734 = vunpack.c.l.b16 %v1523
    %v4735 = vunpack.c.h.b16 %v1523
    %v4736 = vunpack.c.l.b16 %v1524
    %v4737 = vunpack.c.h.b16 %v1524
    %v4738 = vunpack.c.l.b16 %v1525
    %v4739 = vunpack.c.h.b16 %v1525
    %v4740 = vunpack.c.l.b16 %v1526
    %v4741 = vunpack.c.h.b16 %v1526
    %v4742 = vunpack.c.l.b16 %v1527
    %v4743 = vunpack.c.h.b16 %v1527
    %v4744 = vunpack.c.l.b16 %v1528
    %v4745 = vunpack.c.h.b16 %v1528
    %v4746 = vunpack.c.l.b16 %v1529
    %v4747 = vunpack.c.h.b16 %v1529
    %v4748 = vunpack.c.l.b16 %v1530
    %v4749 = vunpack.c.h.b16 %v1530
    %v4750 = vunpack.c.l.b16 %v1531
    %v4751 = vunpack.c.h.b16 %v1531
    %v4752 = vunpack.c.l.b16 %v1532
    %v4753 = vunpack.c.h.b16 %v1532
    %v4754 = vunpack.c.l.b16 %v1533
    %v4755 = vunpack.c.h.b16 %v1533
    %v4756 = vunpack.c.l.b16 %v1534
    %v4757 = vunpack.c.h.b16 %v1534
    %v4758 = vunpack.c.l.b16 %v1535
    %v4759 = vunpack.c.h.b16 %v1535
    %v4760 = vunpack.c.l.b16 %v1536
    %v4761 = vunpack.c.h.b16 %v1536
    %v4762 = vunpack.c.l.b16 %v1537
    %v4763 = vunpack.c.h.b16 %v1537
    %v4764 = vunpack.c.l.b16 %v1538
    %v4765 = vunpack.c.h.b16 %v1538
    %v4766 = vunpack.c.l.b16 %v1539
    %v4767 = vunpack.c.h.b16 %v1539
    %v4768 = vunpack.c.l.b16 %v1540
    %v4769 = vunpack.c.h.b16 %v1540
    %v4770 = vunpack.c.l.b16 %v1541
    %v4771 = vunpack.c.h.b16 %v1541
    %v4772 = vunpack.c.l.b16 %v1542
    %v4773 = vunpack.c.h.b16 %v1542
    %v4774 = vunpack.c.l.b16 %v1543
    %v4775 = vunpack.c.h.b16 %v1543
    %v4776 = vunpack.c.l.b16 %v1544
    %v4777 = vunpack.c.h.b16 %v1544
    %v4778 = vunpack.c.l.b16 %v1545
    %v4779 = vunpack.c.h.b16 %v1545
    %v4780 = vunpack.c.l.b16 %v1546
    %v4781 = vunpack.c.h.b16 %v1546
    %v4782 = vunpack.c.l.b16 %v1547
    %v4783 = vunpack.c.h.b16 %v1547
    %v4784 = vunpack.c.l.b16 %v1548
    %v4785 = vunpack.c.h.b16 %v1548
    %v4786 = vunpack.c.l.b16 %v1549
    %v4787 = vunpack.c.h.b16 %v1549
    %v4788 = vunpack.c.l.b16 %v1550
    %v4789 = vunpack.c.h.b16 %v1550
    %v4790 = vunpack.c.l.b16 %v1551
    %v4791 = vunpack.c.h.b16 %v1551
    %v4792 = vunpack.c.l.b16 %v1552
    %v4793 = vunpack.c.h.b16 %v1552
    %v4794 = vunpack.c.l.b16 %v1553
    %v4795 = vunpack.c.h.b16 %v1553
    %v4796 = vunpack.c.l.b16 %v1554
    %v4797 = vunpack.c.h.b16 %v1554
    %v4798 = vunpack.c.l.b16 %v1555
    %v4799 = vunpack.c.h.b16 %v1555
    %v4800 = vunpack.c.l.b16 %v1556
    %v4801 = vunpack.c.h.b16 %v1556
    %v4802 = vunpack.c.l.b16 %v1557
    %v4803 = vunpack.c.h.b16 %v1557
    %v4804 = vunpack.c.l.b16 %v1558
    %v4805 = vunpack.c.h.b16 %v1558
    %v4806 = vunpack.c.l.b16 %v1559
    %v4807 = vunpack.c.h.b16 %v1559
    %v4808 = vunpack.c.l.b16 %v1560
    %v4809 = vunpack.c.h.b16 %v1560
    %v4810 = vunpack.c.l.b16 %v1561
    %v4811 = vunpack.c.h.b16 %v1561
    %v4812 = vunpack.c.l.b16 %v1562
    %v4813 = vunpack.c.h.b16 %v1562
    %v4814 = vunpack.c.l.b16 %v1563
    %v4815 = vunpack.c.h.b16 %v1563
    %v4816 = vunpack.c.l.b16 %v1564
    %v4817 = vunpack.c.h.b16 %v1564
    %v4818 = vunpack.c.l.b16 %v1565
    %v4819 = vunpack.c.h.b16 %v1565
    %v4820 = vunpack.c.l.b16 %v1566
    %v4821 = vunpack.c.h.b16 %v1566
    %v4822 = vunpack.c.l.b16 %v1567
    %v4823 = vunpack.c.h.b16 %v1567
    %v4824 = vunpack.c.l.b16 %v1568
    %v4825 = vunpack.c.h.b16 %v1568
    %v4826 = vunpack.c.l.b16 %v1569
    %v4827 = vunpack.c.h.b16 %v1569
    %v4828 = vunpack.c.l.b16 %v1570
    %v4829 = vunpack.c.h.b16 %v1570
    %v4830 = vunpack.c.l.b16 %v1571
    %v4831 = vunpack.c.h.b16 %v1571
    %v4832 = vunpack.c.l.b16 %v1572
    %v4833 = vunpack.c.h.b16 %v1572
    %v4834 = vunpack.c.l.b16 %v1573
    %v4835 = vunpack.c.h.b16 %v1573
    %v4836 = vunpack.c.l.b16 %v1574
    %v4837 = vunpack.c.h.b16 %v1574
    %v4838 = vunpack.c.l.b16 %v1575
    %v4839 = vunpack.c.h.b16 %v1575
    %v4840 = vunpack.c.l.b16 %v1576
    %v4841 = vunpack.c.h.b16 %v1576
    %v4842 = vunpack.c.l.b16 %v1577
    %v4843 = vunpack.c.h.b16 %v1577
    %v4844 = vunpack.c.l.b16 %v1578
    %v4845 = vunpack.c.h.b16 %v1578
    %v4846 = vunpack.c.l.b16 %v1579
    %v4847 = vunpack.c.h.b16 %v1579
    %v4848 = vunpack.c.l.b16 %v1580
    %v4849 = vunpack.c.h.b16 %v1580
    %v4850 = vunpack.c.l.b16 %v1581
    %v4851 = vunpack.c.h.b16 %v1581
    %v4852 = vunpack.c.l.b16 %v1582
    %v4853 = vunpack.c.h.b16 %v1582
    %v4854 = vunpack.c.l.b16 %v1583
    %v4855 = vunpack.c.h.b16 %v1583
    %v4856 = vunpack.c.l.b16 %v1584
    %v4857 = vunpack.c.h.b16 %v1584
    %v4858 = vunpack.c.l.b16 %v1585
    %v4859 = vunpack.c.h.b16 %v1585
    %v4860 = vunpack.c.l.b16 %v1586
    %v4861 = vunpack.c.h.b16 %v1586
    %v4862 = vunpack.c.l.b16 %v1587
    %v4863 = vunpack.c.h.b16 %v1587
    %v4864 = vunpack.c.l.b16 %v1588
    %v4865 = vunpack.c.h.b16 %v1588
    %v4866 = vunpack.c.l.b16 %v1589
    %v4867 = vunpack.c.h.b16 %v1589
    %v4868 = vunpack.c.l.b16 %v1590
    %v4869 = vunpack.c.h.b16 %v1590
    %v4870 = vunpack.c.l.b16 %v1591
    %v4871 = vunpack.c.h.b16 %v1591
    %v4872 = vunpack.c.l.b16 %v1592
    %v4873 = vunpack.c.h.b16 %v1592
    %v4874 = vunpack.c.l.b16 %v1593
    %v4875 = vunpack.c.h.b16 %v1593
    %v4876 = vunpack.c.l.b16 %v1594
    %v4877 = vunpack.c.h.b16 %v1594
    %v4878 = vunpack.c.l.b16 %v1595
    %v4879 = vunpack.c.h.b16 %v1595
    %v4880 = vunpack.c.l.b16 %v1596
    %v4881 = vunpack.c.h.b16 %v1596
    %v4882 = vunpack.c.l.b16 %v1597
    %v4883 = vunpack.c.h.b16 %v1597
    %v4884 = vunpack.c.l.b16 %v1598
    %v4885 = vunpack.c.h.b16 %v1598
    %v4886 = vunpack.c.l.b16 %v1599
    %v4887 = vunpack.c.h.b16 %v1599
    %v4888 = vunpack.c.l.b16 %v1600
    %v4889 = vunpack.c.h.b16 %v1600
    %v4890 = vunpack.c.l.b16 %v1601
    %v4891 = vunpack.c.h.b16 %v1601
    %v4892 = vunpack.c.l.b16 %v1602
    %v4893 = vunpack.c.h.b16 %v1602
    %v4894 = vunpack.c.l.b16 %v1603
    %v4895 = vunpack.c.h.b16 %v1603
    %v4896 = vunpack.c.l.b16 %v1604
    %v4897 = vunpack.c.h.b16 %v1604
    %v4898 = vunpack.c.l.b16 %v1605
    %v4899 = vunpack.c.h.b16 %v1605
    %v4900 = vunpack.c.l.b16 %v1606
    %v4901 = vunpack.c.h.b16 %v1606
    %v4902 = vunpack.c.l.b16 %v1607
    %v4903 = vunpack.c.h.b16 %v1607
    %v4904 = vunpack.c.l.b16 %v1608
    %v4905 = vunpack.c.h.b16 %v1608
    %v4906 = vunpack.c.l.b16 %v1609
    %v4907 = vunpack.c.h.b16 %v1609
    %v4908 = vunpack.c.l.b16 %v1610
    %v4909 = vunpack.c.h.b16 %v1610
    %v4910 = vunpack.c.l.b16 %v1611
    %v4911 = vunpack.c.h.b16 %v1611
    %v4912 = vunpack.c.l.b16 %v1612
    %v4913 = vunpack.c.h.b16 %v1612
    %v4914 = vunpack.c.l.b16 %v1613
    %v4915 = vunpack.c.h.b16 %v1613
    %v4916 = vunpack.c.l.b16 %v1614
    %v4917 = vunpack.c.h.b16 %v1614
    %v4918 = vunpack.c.l.b16 %v1615
    %v4919 = vunpack.c.h.b16 %v1615
    %v4920 = vunpack.c.l.b16 %v1616
    %v4921 = vunpack.c.h.b16 %v1616
    %v4922 = vunpack.c.l.b16 %v1617
    %v4923 = vunpack.c.h.b16 %v1617
    %v4924 = vunpack.c.l.b16 %v1618
    %v4925 = vunpack.c.h.b16 %v1618
    %v4926 = vunpack.c.l.b16 %v1619
    %v4927 = vunpack.c.h.b16 %v1619
    %v4928 = vunpack.c.l.b16 %v1620
    %v4929 = vunpack.c.h.b16 %v1620
    %v4930 = vunpack.c.l.b16 %v1621
    %v4931 = vunpack.c.h.b16 %v1621
    %v4932 = vunpack.c.l.b16 %v1622
    %v4933 = vunpack.c.h.b16 %v1622
    %v4934 = vunpack.c.l.b16 %v1623
    %v4935 = vunpack.c.h.b16 %v1623
    %v4936 = vunpack.c.l.b16 %v1624
    %v4937 = vunpack.c.h.b16 %v1624
    %v4938 = vunpack.c.l.b16 %v1625
    %v4939 = vunpack.c.h.b16 %v1625
    %v4940 = vunpack.c.l.b16 %v1626
    %v4941 = vunpack.c.h.b16 %v1626
    %v4942 = vunpack.c.l.b16 %v1627
    %v4943 = vunpack.c.h.b16 %v1627
    %v4944 = vunpack.c.l.b16 %v1628
    %v4945 = vunpack.c.h.b16 %v1628
    %v4946 = vunpack.c.l.b16 %v1629
    %v4947 = vunpack.c.h.b16 %v1629
    %v4948 = vunpack.c.l.b16 %v1630
    %v4949 = vunpack.c.h.b16 %v1630
    %v4950 = vunpack.c.l.b16 %v1631
    %v4951 = vunpack.c.h.b16 %v1631
    %v4952 = vunpack.c.l.b16 %v1632
    %v4953 = vunpack.c.h.b16 %v1632
    %v4954 = vunpack.c.l.b16 %v1633
    %v4955 = vunpack.c.h.b16 %v1633
    %v4956 = vunpack.c.l.b16 %v1634
    %v4957 = vunpack.c.h.b16 %v1634
    %v4958 = vunpack.c.l.b16 %v1635
    %v4959 = vunpack.c.h.b16 %v1635
    %v4960 = vunpack.c.l.b16 %v1636
    %v4961 = vunpack.c.h.b16 %v1636
    %v4962 = vunpack.c.l.b16 %v1637
    %v4963 = vunpack.c.h.b16 %v1637
    %v4964 = vunpack.c.l.b16 %v1638
    %v4965 = vunpack.c.h.b16 %v1638
    %v4966 = vunpack.c.l.b16 %v1639
    %v4967 = vunpack.c.h.b16 %v1639
    %v4968 = vunpack.c.l.b16 %v1640
    %v4969 = vunpack.c.h.b16 %v1640
    %v4970 = vunpack.c.l.b16 %v1641
    %v4971 = vunpack.c.h.b16 %v1641
    %v4972 = vunpack.c.l.b16 %v1642
    %v4973 = vunpack.c.h.b16 %v1642
    %v4974 = vunpack.c.l.b16 %v1643
    %v4975 = vunpack.c.h.b16 %v1643
    %v4976 = vunpack.c.l.b16 %v1644
    %v4977 = vunpack.c.h.b16 %v1644
    %v4978 = vunpack.c.l.b16 %v1645
    %v4979 = vunpack.c.h.b16 %v1645
    %v4980 = vunpack.c.l.b16 %v1646
    %v4981 = vunpack.c.h.b16 %v1646
    %v4982 = vunpack.c.l.b16 %v1647
    %v4983 = vunpack.c.h.b16 %v1647
    %v4984 = vunpack.c.l.b16 %v1648
    %v4985 = vunpack.c.h.b16 %v1648
    %v4986 = vunpack.c.l.b16 %v1649
    %v4987 = vunpack.c.h.b16 %v1649
    %v4988 = vunpack.c.l.b16 %v1650
    %v4989 = vunpack.c.h.b16 %v1650
    %v4990 = vunpack.c.l.b16 %v1651
    %v4991 = vunpack.c.h.b16 %v1651
    %v4992 = vunpack.c.l.b16 %v1652
    %v4993 = vunpack.c.h.b16 %v1652
    %v4994 = vunpack.c.l.b16 %v1653
    %v4995 = vunpack.c.h.b16 %v1653
    %v4996 = vunpack.c.l.b16 %v1654
    %v4997 = vunpack.c.h.b16 %v1654
    %v4998 = vunpack.c.l.b16 %v1655
    %v4999 = vunpack.c.h.b16 %v1655
    %v5000 = vunpack.c.l.b16 %v1656
    %v5001 = vunpack.c.h.b16 %v1656
    %v5002 = vunpack.c.l.b16 %v1657
    %v5003 = vunpack.c.h.b16 %v1657
    %v5004 = vunpack.c.l.b16 %v1658
    %v5005 = vunpack.c.h.b16 %v1658
    %v5006 = vunpack.c.l.b16 %v1659
    %v5007 = vunpack.c.h.b16 %v1659
    %v5008 = vunpack.c.l.b16 %v1660
    %v5009 = vunpack.c.h.b16 %v1660
    %v5010 = vunpack.c.l.b16 %v1661
    %v5011 = vunpack.c.h.b16 %v1661
    %v5012 = vunpack.c.l.b16 %v1662
    %v5013 = vunpack.c.h.b16 %v1662
    %v5014 = vunpack.c.l.b16 %v1663
    %v5015 = vunpack.c.h.b16 %v1663
    %v5016 = vunpack.c.l.b16 %v1664
    %v5017 = vunpack.c.h.b16 %v1664
    %v5018 = vunpack.c.l.b16 %v1665
    %v5019 = vunpack.c.h.b16 %v1665
    %v5020 = vunpack.c.l.b16 %v1666
    %v5021 = vunpack.c.h.b16 %v1666
    %v5022 = vunpack.c.l.b16 %v1667
    %v5023 = vunpack.c.h.b16 %v1667
    %v5024 = vunpack.c.l.b16 %v1668
    %v5025 = vunpack.c.h.b16 %v1668
    %v5026 = vunpack.c.l.b16 %v1669
    %v5027 = vunpack.c.h.b16 %v1669
    %v5028 = vunpack.c.l.b16 %v1670
    %v5029 = vunpack.c.h.b16 %v1670
    %v5030 = vunpack.c.l.b16 %v1671
    %v5031 = vunpack.c.h.b16 %v1671
    %v5032 = vunpack.c.l.b16 %v1672
    %v5033 = vunpack.c.h.b16 %v1672
    %v5034 = vunpack.c.l.b16 %v1673
    %v5035 = vunpack.c.h.b16 %v1673
    %v5036 = vunpack.c.l.b16 %v1674
    %v5037 = vunpack.c.h.b16 %v1674
    %v5038 = vunpack.c.l.b16 %v1675
    %v5039 = vunpack.c.h.b16 %v1675
    %v5040 = vunpack.c.l.b16 %v1676
    %v5041 = vunpack.c.h.b16 %v1676
    %v5042 = vunpack.c.l.b16 %v1677
    %v5043 = vunpack.c.h.b16 %v1677
    %v5044 = vunpack.c.l.b16 %v1678
    %v5045 = vunpack.c.h.b16 %v1678
    %v5046 = vunpack.c.l.b16 %v1679
    %v5047 = vunpack.c.h.b16 %v1679
    %v5048 = vunpack.c.l.b16 %v1680
    %v5049 = vunpack.c.h.b16 %v1680
    %v5050 = vunpack.c.l.b16 %v1681
    %v5051 = vunpack.c.h.b16 %v1681
    %v5052 = vunpack.c.l.b16 %v1682
    %v5053 = vunpack.c.h.b16 %v1682
    %v5054 = vunpack.c.l.b16 %v1683
    %v5055 = vunpack.c.h.b16 %v1683
    %v5056 = vunpack.c.l.b16 %v1684
    %v5057 = vunpack.c.h.b16 %v1684
    %v5058 = vunpack.c.l.b16 %v1685
    %v5059 = vunpack.c.h.b16 %v1685
    %v5060 = vunpack.c.l.b16 %v1686
    %v5061 = vunpack.c.h.b16 %v1686
    %v5062 = vunpack.c.l.b16 %v1687
    %v5063 = vunpack.c.h.b16 %v1687
    %v5064 = vunpack.c.l.b16 %v1688
    %v5065 = vunpack.c.h.b16 %v1688
    %v5066 = vunpack.c.l.b16 %v1689
    %v5067 = vunpack.c.h.b16 %v1689
    %v5068 = vunpack.c.l.b16 %v1690
    %v5069 = vunpack.c.h.b16 %v1690
    %v5070 = vunpack.c.l.b16 %v1691
    %v5071 = vunpack.c.h.b16 %v1691
    %v5072 = vunpack.c.l.b16 %v1692
    %v5073 = vunpack.c.h.b16 %v1692
    %v5074 = vunpack.c.l.b16 %v1693
    %v5075 = vunpack.c.h.b16 %v1693
    %v5076 = vunpack.c.l.b16 %v1694
    %v5077 = vunpack.c.h.b16 %v1694
    %v5078 = vunpack.c.l.b16 %v1695
    %v5079 = vunpack.c.h.b16 %v1695
    %v5080 = vunpack.c.l.b16 %v1696
    %v5081 = vunpack.c.h.b16 %v1696
    %v5082 = vunpack.c.l.b16 %v1697
    %v5083 = vunpack.c.h.b16 %v1697
    %v5084 = vunpack.c.l.b16 %v1698
    %v5085 = vunpack.c.h.b16 %v1698
    %v5086 = vunpack.c.l.b16 %v1699
    %v5087 = vunpack.c.h.b16 %v1699
    %v5088 = vunpack.c.l.b16 %v1700
    %v5089 = vunpack.c.h.b16 %v1700
    %v5090 = vunpack.c.l.b16 %v1701
    %v5091 = vunpack.c.h.b16 %v1701
    %v5092 = vunpack.c.l.b16 %v1702
    %v5093 = vunpack.c.h.b16 %v1702
    %v5094 = vunpack.c.l.b16 %v1703
    %v5095 = vunpack.c.h.b16 %v1703
    %v5096 = vunpack.c.l.b16 %v1704
    %v5097 = vunpack.c.h.b16 %v1704
    %v5098 = vunpack.c.l.b16 %v1705
    %v5099 = vunpack.c.h.b16 %v1705
    %v5100 = vunpack.c.l.b16 %v1706
    %v5101 = vunpack.c.h.b16 %v1706
    %v5102 = vunpack.c.l.b16 %v1707
    %v5103 = vunpack.c.h.b16 %v1707
    %v5104 = vunpack.c.l.b16 %v1708
    %v5105 = vunpack.c.h.b16 %v1708
    %v5106 = vunpack.c.l.b16 %v1709
    %v5107 = vunpack.c.h.b16 %v1709
    %v5108 = vunpack.c.l.b16 %v1710
    %v5109 = vunpack.c.h.b16 %v1710
    %v5110 = vunpack.c.l.b16 %v1711
    %v5111 = vunpack.c.h.b16 %v1711
    %v5112 = vunpack.c.l.b16 %v1712
    %v5113 = vunpack.c.h.b16 %v1712
    %v5114 = vunpack.c.l.b16 %v1713
    %v5115 = vunpack.c.h.b16 %v1713
    %v5116 = vunpack.c.l.b16 %v1714
    %v5117 = vunpack.c.h.b16 %v1714
    %v5118 = vunpack.c.l.b16 %v1715
    %v5119 = vunpack.c.h.b16 %v1715
    %v5120 = vunpack.c.l.b16 %v1716
    %v5121 = vunpack.c.h.b16 %v1716
    %v5122 = vunpack.c.l.b16 %v1717
    %v5123 = vunpack.c.h.b16 %v1717
    %v5124 = vunpack.c.l.b16 %v1718
    %v5125 = vunpack.c.h.b16 %v1718
    %v5126 = vunpack.c.l.b16 %v1719
    %v5127 = vunpack.c.h.b16 %v1719
    %v5128 = vunpack.c.l.b16 %v1720
    %v5129 = vunpack.c.h.b16 %v1720
    %v5130 = vunpack.c.l.b16 %v1721
    %v5131 = vunpack.c.h.b16 %v1721
    %v5132 = vunpack.c.l.b16 %v1722
    %v5133 = vunpack.c.h.b16 %v1722
    %v5134 = vunpack.c.l.b16 %v1723
    %v5135 = vunpack.c.h.b16 %v1723
    %v5136 = vunpack.c.l.b16 %v1724
    %v5137 = vunpack.c.h.b16 %v1724
    %v5138 = vunpack.c.l.b16 %v1725
    %v5139 = vunpack.c.h.b16 %v1725
    %v5140 = vunpack.c.l.b16 %v1726
    %v5141 = vunpack.c.h.b16 %v1726
    %v5142 = vunpack.c.l.b16 %v1727
    %v5143 = vunpack.c.h.b16 %v1727
    %v5144 = vunpack.c.l.b16 %v1728
    %v5145 = vunpack.c.h.b16 %v1728
    %v5146 = vunpack.c.l.b16 %v1729
    %v5147 = vunpack.c.h.b16 %v1729
    %v5148 = vunpack.c.l.b16 %v1730
    %v5149 = vunpack.c.h.b16 %v1730
    %v5150 = vunpack.c.l.b16 %v1731
    %v5151 = vunpack.c.h.b16 %v1731
    %v5152 = vunpack.c.l.b16 %v1732
    %v5153 = vunpack.c.h.b16 %v1732
    %v5154 = vunpack.c.l.b16 %v1733
    %v5155 = vunpack.c.h.b16 %v1733
    %v5156 = vunpack.c.l.b16 %v1734
    %v5157 = vunpack.c.h.b16 %v1734
    %v5158 = vunpack.c.l.b16 %v1735
    %v5159 = vunpack.c.h.b16 %v1735
    %v5160 = vunpack.c.l.b16 %v1736
    %v5161 = vunpack.c.h.b16 %v1736
    %v5162 = vunpack.c.l.b16 %v1737
    %v5163 = vunpack.c.h.b16 %v1737
    %v5164 = vunpack.c.l.b16 %v1738
    %v5165 = vunpack.c.h.b16 %v1738
    %v5166 = vunpack.c.l.b16 %v1739
    %v5167 = vunpack.c.h.b16 %v1739
    %v5168 = vunpack.c.l.b16 %v1740
    %v5169 = vunpack.c.h.b16 %v1740
    %v5170 = vunpack.c.l.b16 %v1741
    %v5171 = vunpack.c.h.b16 %v1741
    %v5172 = vunpack.c.l.b16 %v1742
    %v5173 = vunpack.c.h.b16 %v1742
    %v5174 = vunpack.c.l.b16 %v1743
    %v5175 = vunpack.c.h.b16 %v1743
    %v5176 = vunpack.c.l.b16 %v1744
    %v5177 = vunpack.c.h.b16 %v1744
    %v5178 = vunpack.c.l.b16 %v1745
    %v5179 = vunpack.c.h.b16 %v1745
    %v5180 = vunpack.c.l.b16 %v1746
    %v5181 = vunpack.c.h.b16 %v1746
    %v5182 = vunpack.c.l.b16 %v1747
    %v5183 = vunpack.c.h.b16 %v1747
    %v5184 = vunpack.c.l.b16 %v1748
    %v5185 = vunpack.c.h.b16 %v1748
    %v5186 = vunpack.c.l.b16 %v1749
    %v5187 = vunpack.c.h.b16 %v1749
    %v5188 = vunpack.c.l.b16 %v1750
    %v5189 = vunpack.c.h.b16 %v1750
    %v5190 = vunpack.c.l.b16 %v1751
    %v5191 = vunpack.c.h.b16 %v1751
    %v5192 = vunpack.c.l.b16 %v1752
    %v5193 = vunpack.c.h.b16 %v1752
    %v5194 = vunpack.c.l.b16 %v1753
    %v5195 = vunpack.c.h.b16 %v1753
    %v5196 = vunpack.c.l.b16 %v1754
    %v5197 = vunpack.c.h.b16 %v1754
    %v5198 = vunpack.c.l.b16 %v1755
    %v5199 = vunpack.c.h.b16 %v1755
    %v5200 = vunpack.c.l.b16 %v1756
    %v5201 = vunpack.c.h.b16 %v1756
    %v5202 = vunpack.c.l.b16 %v1757
    %v5203 = vunpack.c.h.b16 %v1757
    %v5204 = vunpack.c.l.b16 %v1758
    %v5205 = vunpack.c.h.b16 %v1758
    %v5206 = vunpack.c.l.b16 %v1759
    %v5207 = vunpack.c.h.b16 %v1759
    %v5208 = vunpack.c.l.b16 %v1760
    %v5209 = vunpack.c.h.b16 %v1760
    %v5210 = vunpack.c.l.b16 %v1761
    %v5211 = vunpack.c.h.b16 %v1761
    %v5212 = vunpack.c.l.b16 %v1762
    %v5213 = vunpack.c.h.b16 %v1762
    %v5214 = vunpack.c.l.b16 %v1763
    %v5215 = vunpack.c.h.b16 %v1763
    %v5216 = vunpack.c.l.b16 %v1764
    %v5217 = vunpack.c.h.b16 %v1764
    %v5218 = vunpack.c.l.b16 %v1765
    %v5219 = vunpack.c.h.b16 %v1765
    %v5220 = vunpack.c.l.b16 %v1766
    %v5221 = vunpack.c.h.b16 %v1766
    %v5222 = vunpack.c.l.b16 %v1767
    %v5223 = vunpack.c.h.b16 %v1767
    %v5224 = vunpack.c.l.b16 %v1768
    %v5225 = vunpack.c.h.b16 %v1768
    %v5226 = vunpack.c.l.b16 %v1769
    %v5227 = vunpack.c.h.b16 %v1769
    %v5228 = vunpack.c.l.b16 %v1770
    %v5229 = vunpack.c.h.b16 %v1770
    %v5230 = vunpack.c.l.b16 %v1771
    %v5231 = vunpack.c.h.b16 %v1771
    %v5232 = vunpack.c.l.b16 %v1772
    %v5233 = vunpack.c.h.b16 %v1772
    %v5234 = vunpack.c.l.b16 %v1773
    %v5235 = vunpack.c.h.b16 %v1773
    %v5236 = vunpack.c.l.b16 %v1774
    %v5237 = vunpack.c.h.b16 %v1774
    %v5238 = vunpack.c.l.b16 %v1775
    %v5239 = vunpack.c.h.b16 %v1775
    %v5240 = vunpack.c.l.b16 %v1776
    %v5241 = vunpack.c.h.b16 %v1776
    %v5242 = vunpack.c.l.b16 %v1777
    %v5243 = vunpack.c.h.b16 %v1777
    %v5244 = vunpack.c.l.b16 %v1778
    %v5245 = vunpack.c.h.b16 %v1778
    %v5246 = vunpack.c.l.b16 %v1779
    %v5247 = vunpack.c.h.b16 %v1779
    %v5248 = vunpack.c.l.b16 %v1780
    %v5249 = vunpack.c.h.b16 %v1780
    %v5250 = vunpack.c.l.b16 %v1781
    %v5251 = vunpack.c.h.b16 %v1781
    %v5252 = vunpack.c.l.b16 %v1782
    %v5253 = vunpack.c.h.b16 %v1782
    %v5254 = vunpack.c.l.b16 %v1783
    %v5255 = vunpack.c.h.b16 %v1783
    %v5256 = vunpack.c.l.b16 %v1784
    %v5257 = vunpack.c.h.b16 %v1784
    %v5258 = vunpack.c.l.b16 %v1785
    %v5259 = vunpack.c.h.b16 %v1785
    %v5260 = vunpack.c.l.b16 %v1786
    %v5261 = vunpack.c.h.b16 %v1786
    %v5262 = vunpack.c.l.b16 %v1787
    %v5263 = vunpack.c.h.b16 %v1787
    %v5264 = vunpack.c.l.b16 %v1788
    %v5265 = vunpack.c.h.b16 %v1788
    %v5266 = vunpack.c.l.b16 %v1789
    %v5267 = vunpack.c.h.b16 %v1789
    %v5268 = vunpack.c.l.b16 %v1790
    %v5269 = vunpack.c.h.b16 %v1790
    %v5270 = vunpack.c.l.b16 %v1791
    %v5271 = vunpack.c.h.b16 %v1791
    %v5272 = vunpack.c.l.b16 %v1792
    %v5273 = vunpack.c.h.b16 %v1792
    %v5274 = vunpack.c.l.b16 %v1793
    %v5275 = vunpack.c.h.b16 %v1793
    %v5276 = vunpack.c.l.b16 %v1794
    %v5277 = vunpack.c.h.b16 %v1794
    %v5278 = vunpack.c.l.b16 %v1795
    %v5279 = vunpack.c.h.b16 %v1795
    %v5280 = vunpack.c.l.b16 %v1796
    %v5281 = vunpack.c.h.b16 %v1796
    %v5282 = vunpack.c.l.b16 %v1797
    %v5283 = vunpack.c.h.b16 %v1797
    %v5284 = vunpack.c.l.b16 %v1798
    %v5285 = vunpack.c.h.b16 %v1798
    %v5286 = vunpack.c.l.b16 %v1799
    %v5287 = vunpack.c.h.b16 %v1799
    %v5288 = vunpack.c.l.b16 %v1800
    %v5289 = vunpack.c.h.b16 %v1800
    %v5290 = vunpack.c.l.b16 %v1801
    %v5291 = vunpack.c.h.b16 %v1801
    %v5292 = vunpack.c.l.b16 %v1802
    %v5293 = vunpack.c.h.b16 %v1802
    %v5294 = vunpack.c.l.b16 %v1803
    %v5295 = vunpack.c.h.b16 %v1803
    %v5296 = vunpack.c.l.b16 %v1804
    %v5297 = vunpack.c.h.b16 %v1804
    %v5298 = vunpack.c.l.b16 %v1805
    %v5299 = vunpack.c.h.b16 %v1805
    %v5300 = vunpack.c.l.b16 %v1806
    %v5301 = vunpack.c.h.b16 %v1806
    %v5302 = vunpack.c.l.b16 %v1807
    %v5303 = vunpack.c.h.b16 %v1807
    %v5304 = vunpack.c.l.b16 %v1808
    %v5305 = vunpack.c.h.b16 %v1808
    %v5306 = vunpack.c.l.b16 %v1809
    %v5307 = vunpack.c.h.b16 %v1809
    %v5308 = vunpack.c.l.b16 %v1810
    %v5309 = vunpack.c.h.b16 %v1810
    %v5310 = vunpack.c.l.b16 %v1811
    %v5311 = vunpack.c.h.b16 %v1811
    %v5312 = vunpack.c.l.b16 %v1812
    %v5313 = vunpack.c.h.b16 %v1812
    %v5314 = vunpack.c.l.b16 %v1813
    %v5315 = vunpack.c.h.b16 %v1813
    %v5316 = vunpack.c.l.b16 %v1814
    %v5317 = vunpack.c.h.b16 %v1814
    %v5318 = vunpack.c.l.b16 %v1815
    %v5319 = vunpack.c.h.b16 %v1815
    %v5320 = vunpack.c.l.b16 %v1816
    %v5321 = vunpack.c.h.b16 %v1816
    %v5322 = vunpack.c.l.b16 %v1817
    %v5323 = vunpack.c.h.b16 %v1817
    %v5324 = vunpack.c.l.b16 %v1818
    %v5325 = vunpack.c.h.b16 %v1818
    %v5326 = vunpack.c.l.b16 %v1819
    %v5327 = vunpack.c.h.b16 %v1819
    %v5328 = vunpack.c.l.b16 %v1820
    %v5329 = vunpack.c.h.b16 %v1820
    %v5330 = vunpack.c.l.b16 %v1821
    %v5331 = vunpack.c.h.b16 %v1821
    %v5332 = vunpack.c.l.b16 %v1822
    %v5333 = vunpack.c.h.b16 %v1822
    %v5334 = vunpack.c.l.b16 %v1823
    %v5335 = vunpack.c.h.b16 %v1823
    %v5336 = vunpack.c.l.b16 %v1824
    %v5337 = vunpack.c.h.b16 %v1824
    %v5338 = vunpack.c.l.b16 %v1825
    %v5339 = vunpack.c.h.b16 %v1825
    %v5340 = vunpack.c.l.b16 %v1826
    %v5341 = vunpack.c.h.b16 %v1826
    %v5342 = vunpack.c.l.b16 %v1827
    %v5343 = vunpack.c.h.b16 %v1827
    %v5344 = vunpack.c.l.b16 %v1828
    %v5345 = vunpack.c.h.b16 %v1828
    %v5346 = vunpack.c.l.b16 %v1829
    %v5347 = vunpack.c.h.b16 %v1829
    %v5348 = vunpack.c.l.b16 %v1830
    %v5349 = vunpack.c.h.b16 %v1830
    %v5350 = vunpack.c.l.b16 %v1831
    %v5351 = vunpack.c.h.b16 %v1831
    %v5352 = vpack.c.b16 %v3060, %v3048
    %v5353 = vpack.c.b16 %v3061, %v3049
    %v5354 = vpack.c.b16 %v3062, %v3050
    %v5355 = vpack.c.b16 %v3063, %v3051
    %v5356 = vpack.c.b16 %v3064, %v3052
    %v5357 = vpack.c.b16 %v3065, %v3053
    %v5358 = vpack.c.b16 %v3066, %v3054
    %v5359 = vpack.c.b16 %v3067, %v3055
    %v5360 = vpack.c.b16 %v3068, %v3056
    %v5361 = vpack.c.b16 %v3069, %v3057
    %v5362 = vpack.c.b16 %v3070, %v3058
    %v5363 = vpack.c.b16 %v3071, %v3059
    %v5364 = vpack.c.b16 %v3084, %v3072
    %v5365 = vpack.c.b16 %v3085, %v3073
    %v5366 = vpack.c.b16 %v3086, %v3074
    %v5367 = vpack.c.b16 %v3087, %v3075
    %v5368 = vpack.c.b16 %v3088, %v3076
    %v5369 = vpack.c.b16 %v3089, %v3077
    %v5370 = vpack.c.b16 %v3090, %v3078
    %v5371 = vpack.c.b16 %v3091, %v3079
    %v5372 = vpack.c.b16 %v3092, %v3080
    %v5373 = vpack.c.b16 %v3093, %v3081
    %v5374 = vpack.c.b16 %v3094, %v3082
    %v5375 = vpack.c.b16 %v3095, %v3083
    %v5376 = vpack.c.b16 %v3108, %v3096
    %v5377 = vpack.c.b16 %v3109, %v3097
    %v5378 = vpack.c.b16 %v3110, %v3098
    %v5379 = vpack.c.b16 %v3111, %v3099
    %v5380 = vpack.c.b16 %v3112, %v3100
    %v5381 = vpack.c.b16 %v3113, %v3101
    %v5382 = vpack.c.b16 %v3114, %v3102
    %v5383 = vpack.c.b16 %v3115, %v3103
    %v5384 = vpack.c.b16 %v3116, %v3104
    %v5385 = vpack.c.b16 %v3117, %v3105
    %v5386 = vpack.c.b16 %v3118, %v3106
    %v5387 = vpack.c.b16 %v3119, %v3107
    %v5388 = vpack.c.b16 %v3132, %v3120
    %v5389 = vpack.c.b16 %v3133, %v3121
    %v5390 = vpack.c.b16 %v3134, %v3122
    %v5391 = vpack.c.b16 %v3135, %v3123
    %v5392 = vpack.c.b16 %v3136, %v3124
    %v5393 = vpack.c.b16 %v3137, %v3125
    %v5394 = vpack.c.b16 %v3138, %v3126
    %v5395 = vpack.c.b16 %v3139, %v3127
    %v5396 = vpack.c.b16 %v3140, %v3128
    %v5397 = vpack.c.b16 %v3141, %v3129
    %v5398 = vpack.c.b16 %v3142, %v3130
    %v5399 = vpack.c.b16 %v3143, %v3131
    %v5400 = vpack.c.b16 %v3156, %v3144
    %v5401 = vpack.c.b16 %v3157, %v3145
    %v5402 = vpack.c.b16 %v3158, %v3146
    %v5403 = vpack.c.b16 %v3159, %v3147
    %v5404 = vpack.c.b16 %v3160, %v3148
    %v5405 = vpack.c.b16 %v3161, %v3149
    %v5406 = vpack.c.b16 %v3162, %v3150
    %v5407 = vpack.c.b16 %v3163, %v3151
    %v5408 = vpack.c.b16 %v3164, %v3152
    %v5409 = vpack.c.b16 %v3165, %v3153
    %v5410 = vpack.c.b16 %v3166, %v3154
    %v5411 = vpack.c.b16 %v3167, %v3155
    %v5412 = vpack.c.b16 %v3180, %v3168
    %v5413 = vpack.c.b16 %v3181, %v3169
    %v5414 = vpack.c.b16 %v3182, %v3170
    %v5415 = vpack.c.b16 %v3183, %v3171
    %v5416 = vpack.c.b16 %v3184, %v3172
    %v5417 = vpack.c.b16 %v3185, %v3173
    %v5418 = vpack.c.b16 %v3186, %v3174
    %v5419 = vpack.c.b16 %v3187, %v3175
    %v5420 = vpack.c.b16 %v3188, %v3176
    %v5421 = vpack.c.b16 %v3189, %v3177
    %v5422 = vpack.c.b16 %v3190, %v3178
    %v5423 = vpack.c.b16 %v3191, %v3179
    %v5424 = vpack.c.b16 %v3204, %v3192
    %v5425 = vpack.c.b16 %v3205, %v3193
    %v5426 = vpack.c.b16 %v3206, %v3194
    %v5427 = vpack.c.b16 %v3207, %v3195
    %v5428 = vpack.c.b16 %v3208, %v3196
    %v5429 = vpack.c.b16 %v3209, %v3197
    %v5430 = vpack.c.b16 %v3210, %v3198
    %v5431 = vpack.c.b16 %v3211, %v3199
    %v5432 = vpack.c.b16 %v3212, %v3200
    %v5433 = vpack.c.b16 %v3213, %v3201
    %v5434 = vpack.c.b16 %v3214, %v3202
    %v5435 = vpack.c.b16 %v3215, %v3203
    %v5436 = vpack.c.b16 %v3228, %v3216
    %v5437 = vpack.c.b16 %v3229, %v3217
    %v5438 = vpack.c.b16 %v3230, %v3218
    %v5439 = vpack.c.b16 %v3231, %v3219
    %v5440 = vpack.c.b16 %v3232, %v3220
    %v5441 = vpack.c.b16 %v3233, %v3221
    %v5442 = vpack.c.b16 %v3234, %v3222
    %v5443 = vpack.c.b16 %v3235, %v3223
    %v5444 = vpack.c.b16 %v3236, %v3224
    %v5445 = vpack.c.b16 %v3237, %v3225
    %v5446 = vpack.c.b16 %v3238, %v3226
    %v5447 = vpack.c.b16 %v3239, %v3227
    %v5448 = vpack.c.b16 %v3252, %v3240
    %v5449 = vpack.c.b16 %v3253, %v3241
    %v5450 = vpack.c.b16 %v3254, %v3242
    %v5451 = vpack.c.b16 %v3255, %v3243
    %v5452 = vpack.c.b16 %v3256, %v3244
    %v5453 = vpack.c.b16 %v3257, %v3245
    %v5454 = vpack.c.b16 %v3258, %v3246
    %v5455 = vpack.c.b16 %v3259, %v3247
    %v5456 = vpack.c.b16 %v3260, %v3248
    %v5457 = vpack.c.b16 %v3261, %v3249
    %v5458 = vpack.c.b16 %v3262, %v3250
    %v5459 = vpack.c.b16 %v3263, %v3251
    %v5460 = vpack.c.b16 %v3276, %v3264
    %v5461 = vpack.c.b16 %v3277, %v3265
    %v5462 = vpack.c.b16 %v3278, %v3266
    %v5463 = vpack.c.b16 %v3279, %v3267
    %v5464 = vpack.c.b16 %v3280, %v3268
    %v5465 = vpack.c.b16 %v3281, %v3269
    %v5466 = vpack.c.b16 %v3282, %v3270
    %v5467 = vpack.c.b16 %v3283, %v3271
    %v5468 = vpack.c.b16 %v3284, %v3272
    %v5469 = vpack.c.b16 %v3285, %v3273
    %v5470 = vpack.c.b16 %v3286, %v3274
    %v5471 = vpack.c.b16 %v3287, %v3275
    %v5472 = vpack.c.b16 %v3300, %v3288
    %v5473 = vpack.c.b16 %v3301, %v3289
    %v5474 = vpack.c.b16 %v3302, %v3290
    %v5475 = vpack.c.b16 %v3303, %v3291
    %v5476 = vpack.c.b16 %v3304, %v3292
    %v5477 = vpack.c.b16 %v3305, %v3293
    %v5478 = vpack.c.b16 %v3306, %v3294
    %v5479 = vpack.c.b16 %v3307, %v3295
    %v5480 = vpack.c.b16 %v3308, %v3296
    %v5481 = vpack.c.b16 %v3309, %v3297
    %v5482 = vpack.c.b16 %v3310, %v3298
    %v5483 = vpack.c.b16 %v3311, %v3299
    %v5484 = vpack.c.b16 %v3324, %v3312
    %v5485 = vpack.c.b16 %v3325, %v3313
    %v5486 = vpack.c.b16 %v3326, %v3314
    %v5487 = vpack.c.b16 %v3327, %v3315
    %v5488 = vpack.c.b16 %v3328, %v3316
    %v5489 = vpack.c.b16 %v3329, %v3317
    %v5490 = vpack.c.b16 %v3330, %v3318
    %v5491 = vpack.c.b16 %v3331, %v3319
    %v5492 = vpack.c.b16 %v3332, %v3320
    %v5493 = vpack.c.b16 %v3333, %v3321
    %v5494 = vpack.c.b16 %v3334, %v3322
    %v5495 = vpack.c.b16 %v3335, %v3323
    %v5496 = vpack.c.b16 %v3348, %v3336
    %v5497 = vpack.c.b16 %v3349, %v3337
    %v5498 = vpack.c.b16 %v3350, %v3338
    %v5499 = vpack.c.b16 %v3351, %v3339
    %v5500 = vpack.c.b16 %v3352, %v3340
    %v5501 = vpack.c.b16 %v3353, %v3341
    %v5502 = vpack.c.b16 %v3354, %v3342
    %v5503 = vpack.c.b16 %v3355, %v3343
    %v5504 = vpack.c.b16 %v3356, %v3344
    %v5505 = vpack.c.b16 %v3357, %v3345
    %v5506 = vpack.c.b16 %v3358, %v3346
    %v5507 = vpack.c.b16 %v3359, %v3347
    %v5508 = vpack.c.b16 %v3372, %v3360
    %v5509 = vpack.c.b16 %v3373, %v3361
    %v5510 = vpack.c.b16 %v3374, %v3362
    %v5511 = vpack.c.b16 %v3375, %v3363
    %v5512 = vpack.c.b16 %v3376, %v3364
    %v5513 = vpack.c.b16 %v3377, %v3365
    %v5514 = vpack.c.b16 %v3378, %v3366
    %v5515 = vpack.c.b16 %v3379, %v3367
    %v5516 = vpack.c.b16 %v3380, %v3368
    %v5517 = vpack.c.b16 %v3381, %v3369
    %v5518 = vpack.c.b16 %v3382, %v3370
    %v5519 = vpack.c.b16 %v3383, %v3371
    %v5520 = vpack.c.b16 %v3396, %v3384
    %v5521 = vpack.c.b16 %v3397, %v3385
    %v5522 = vpack.c.b16 %v3398, %v3386
    %v5523 = vpack.c.b16 %v3399, %v3387
    %v5524 = vpack.c.b16 %v3400, %v3388
    %v5525 = vpack.c.b16 %v3401, %v3389
    %v5526 = vpack.c.b16 %v3402, %v3390
    %v5527 = vpack.c.b16 %v3403, %v3391
    %v5528 = vpack.c.b16 %v3404, %v3392
    %v5529 = vpack.c.b16 %v3405, %v3393
    %v5530 = vpack.c.b16 %v3406, %v3394
    %v5531 = vpack.c.b16 %v3407, %v3395
    %v5532 = vpack.c.b16 %v3420, %v3408
    %v5533 = vpack.c.b16 %v3421, %v3409
    %v5534 = vpack.c.b16 %v3422, %v3410
    %v5535 = vpack.c.b16 %v3423, %v3411
    %v5536 = vpack.c.b16 %v3424, %v3412
    %v5537 = vpack.c.b16 %v3425, %v3413
    %v5538 = vpack.c.b16 %v3426, %v3414
    %v5539 = vpack.c.b16 %v3427, %v3415
    %v5540 = vpack.c.b16 %v3428, %v3416
    %v5541 = vpack.c.b16 %v3429, %v3417
    %v5542 = vpack.c.b16 %v3430, %v3418
    %v5543 = vpack.c.b16 %v3431, %v3419
    %v5544 = vpack.c.b16 %v3444, %v3432
    %v5545 = vpack.c.b16 %v3445, %v3433
    %v5546 = vpack.c.b16 %v3446, %v3434
    %v5547 = vpack.c.b16 %v3447, %v3435
    %v5548 = vpack.c.b16 %v3448, %v3436
    %v5549 = vpack.c.b16 %v3449, %v3437
    %v5550 = vpack.c.b16 %v3450, %v3438
    %v5551 = vpack.c.b16 %v3451, %v3439
    %v5552 = vpack.c.b16 %v3452, %v3440
    %v5553 = vpack.c.b16 %v3453, %v3441
    %v5554 = vpack.c.b16 %v3454, %v3442
    %v5555 = vpack.c.b16 %v3455, %v3443
    %v5556 = vpack.c.b16 %v3468, %v3456
    %v5557 = vpack.c.b16 %v3469, %v3457
    %v5558 = vpack.c.b16 %v3470, %v3458
    %v5559 = vpack.c.b16 %v3471, %v3459
    %v5560 = vpack.c.b16 %v3472, %v3460
    %v5561 = vpack.c.b16 %v3473, %v3461
    %v5562 = vpack.c.b16 %v3474, %v3462
    %v5563 = vpack.c.b16 %v3475, %v3463
    %v5564 = vpack.c.b16 %v3476, %v3464
    %v5565 = vpack.c.b16 %v3477, %v3465
    %v5566 = vpack.c.b16 %v3478, %v3466
    %v5567 = vpack.c.b16 %v3479, %v3467
    %v5568 = vpack.c.b16 %v3492, %v3480
    %v5569 = vpack.c.b16 %v3493, %v3481
    %v5570 = vpack.c.b16 %v3494, %v3482
    %v5571 = vpack.c.b16 %v3495, %v3483
    %v5572 = vpack.c.b16 %v3496, %v3484
    %v5573 = vpack.c.b16 %v3497, %v3485
    %v5574 = vpack.c.b16 %v3498, %v3486
    %v5575 = vpack.c.b16 %v3499, %v3487
    %v5576 = vpack.c.b16 %v3500, %v3488
    %v5577 = vpack.c.b16 %v3501, %v3489
    %v5578 = vpack.c.b16 %v3502, %v3490
    %v5579 = vpack.c.b16 %v3503, %v3491
    %v5580 = vpack.c.b16 %v3516, %v3504
    %v5581 = vpack.c.b16 %v3517, %v3505
    %v5582 = vpack.c.b16 %v3518, %v3506
    %v5583 = vpack.c.b16 %v3519, %v3507
    %v5584 = vpack.c.b16 %v3520, %v3508
    %v5585 = vpack.c.b16 %v3521, %v3509
    %v5586 = vpack.c.b16 %v3522, %v3510
    %v5587 = vpack.c.b16 %v3523, %v3511
    %v5588 = vpack.c.b16 %v3524, %v3512
    %v5589 = vpack.c.b16 %v3525, %v3513
    %v5590 = vpack.c.b16 %v3526, %v3514
    %v5591 = vpack.c.b16 %v3527, %v3515
    %v5592 = vpack.c.b16 %v3540, %v3528
    %v5593 = vpack.c.b16 %v3541, %v3529
    %v5594 = vpack.c.b16 %v3542, %v3530
    %v5595 = vpack.c.b16 %v3543, %v3531
    %v5596 = vpack.c.b16 %v3544, %v3532
    %v5597 = vpack.c.b16 %v3545, %v3533
    %v5598 = vpack.c.b16 %v3546, %v3534
    %v5599 = vpack.c.b16 %v3547, %v3535
    %v5600 = vpack.c.b16 %v3548, %v3536
    %v5601 = vpack.c.b16 %v3549, %v3537
    %v5602 = vpack.c.b16 %v3550, %v3538
    %v5603 = vpack.c.b16 %v3551, %v3539
    %v5604 = vpack.c.b16 %v3564, %v3552
    %v5605 = vpack.c.b16 %v3565, %v3553
    %v5606 = vpack.c.b16 %v3566, %v3554
    %v5607 = vpack.c.b16 %v3567, %v3555
    %v5608 = vpack.c.b16 %v3568, %v3556
    %v5609 = vpack.c.b16 %v3569, %v3557
    %v5610 = vpack.c.b16 %v3570, %v3558
    %v5611 = vpack.c.b16 %v3571, %v3559
    %v5612 = vpack.c.b16 %v3572, %v3560
    %v5613 = vpack.c.b16 %v3573, %v3561
    %v5614 = vpack.c.b16 %v3574, %v3562
    %v5615 = vpack.c.b16 %v3575, %v3563
    %v5616 = vpack.c.b16 %v3588, %v3576
    %v5617 = vpack.c.b16 %v3589, %v3577
    %v5618 = vpack.c.b16 %v3590, %v3578
    %v5619 = vpack.c.b16 %v3591, %v3579
    %v5620 = vpack.c.b16 %v3592, %v3580
    %v5621 = vpack.c.b16 %v3593, %v3581
    %v5622 = vpack.c.b16 %v3594, %v3582
    %v5623 = vpack.c.b16 %v3595, %v3583
    %v5624 = vpack.c.b16 %v3596, %v3584
    %v5625 = vpack.c.b16 %v3597, %v3585
    %v5626 = vpack.c.b16 %v3598, %v3586
    %v5627 = vpack.c.b16 %v3599, %v3587
    %v5628 = vpack.c.b16 %v3612, %v3600
    %v5629 = vpack.c.b16 %v3613, %v3601
    %v5630 = vpack.c.b16 %v3614, %v3602
    %v5631 = vpack.c.b16 %v3615, %v3603
    %v5632 = vpack.c.b16 %v3616, %v3604
    %v5633 = vpack.c.b16 %v3617, %v3605
    %v5634 = vpack.c.b16 %v3618, %v3606
    %v5635 = vpack.c.b16 %v3619, %v3607
    %v5636 = vpack.c.b16 %v3620, %v3608
    %v5637 = vpack.c.b16 %v3621, %v3609
    %v5638 = vpack.c.b16 %v3622, %v3610
    %v5639 = vpack.c.b16 %v3623, %v3611
    %v5640 = vpack.c.b16 %v3636, %v3624
    %v5641 = vpack.c.b16 %v3637, %v3625
    %v5642 = vpack.c.b16 %v3638, %v3626
    %v5643 = vpack.c.b16 %v3639, %v3627
    %v5644 = vpack.c.b16 %v3640, %v3628
    %v5645 = vpack.c.b16 %v3641, %v3629
    %v5646 = vpack.c.b16 %v3642, %v3630
    %v5647 = vpack.c.b16 %v3643, %v3631
    %v5648 = vpack.c.b16 %v3644, %v3632
    %v5649 = vpack.c.b16 %v3645, %v3633
    %v5650 = vpack.c.b16 %v3646, %v3634
    %v5651 = vpack.c.b16 %v3647, %v3635
    %v5652 = vpack.c.b16 %v3660, %v3648
    %v5653 = vpack.c.b16 %v3661, %v3649
    %v5654 = vpack.c.b16 %v3662, %v3650
    %v5655 = vpack.c.b16 %v3663, %v3651
    %v5656 = vpack.c.b16 %v3664, %v3652
    %v5657 = vpack.c.b16 %v3665, %v3653
    %v5658 = vpack.c.b16 %v3666, %v3654
    %v5659 = vpack.c.b16 %v3667, %v3655
    %v5660 = vpack.c.b16 %v3668, %v3656
    %v5661 = vpack.c.b16 %v3669, %v3657
    %v5662 = vpack.c.b16 %v3670, %v3658
    %v5663 = vpack.c.b16 %v3671, %v3659
    %v5664 = vpack.c.b16 %v3684, %v3672
    %v5665 = vpack.c.b16 %v3685, %v3673
    %v5666 = vpack.c.b16 %v3686, %v3674
    %v5667 = vpack.c.b16 %v3687, %v3675
    %v5668 = vpack.c.b16 %v3688, %v3676
    %v5669 = vpack.c.b16 %v3689, %v3677
    %v5670 = vpack.c.b16 %v3690, %v3678
    %v5671 = vpack.c.b16 %v3691, %v3679
    %v5672 = vpack.c.b16 %v3692, %v3680
    %v5673 = vpack.c.b16 %v3693, %v3681
    %v5674 = vpack.c.b16 %v3694, %v3682
    %v5675 = vpack.c.b16 %v3695, %v3683
    %v5676 = vpack.c.b16 %v3708, %v3696
    %v5677 = vpack.c.b16 %v3709, %v3697
    %v5678 = vpack.c.b16 %v3710, %v3698
    %v5679 = vpack.c.b16 %v3711, %v3699
    %v5680 = vpack.c.b16 %v3712, %v3700
    %v5681 = vpack.c.b16 %v3713, %v3701
    %v5682 = vpack.c.b16 %v3714, %v3702
    %v5683 = vpack.c.b16 %v3715, %v3703
    %v5684 = vpack.c.b16 %v3716, %v3704
    %v5685 = vpack.c.b16 %v3717, %v3705
    %v5686 = vpack.c.b16 %v3718, %v3706
    %v5687 = vpack.c.b16 %v3719, %v3707
    %v5688 = vpack.c.b16 %v3732, %v3720
    %v5689 = vpack.c.b16 %v3733, %v3721
    %v5690 = vpack.c.b16 %v3734, %v3722
    %v5691 = vpack.c.b16 %v3735, %v3723
    %v5692 = vpack.c.b16 %v3736, %v3724
    %v5693 = vpack.c.b16 %v3737, %v3725
    %v5694 = vpack.c.b16 %v3738, %v3726
    %v5695 = vpack.c.b16 %v3739, %v3727
    %v5696 = vpack.c.b16 %v3740, %v3728
    %v5697 = vpack.c.b16 %v3741, %v3729
    %v5698 = vpack.c.b16 %v3742, %v3730
    %v5699 = vpack.c.b16 %v3743, %v3731
    %v5700 = vpack.c.b16 %v3756, %v3744
    %v5701 = vpack.c.b16 %v3757, %v3745
    %v5702 = vpack.c.b16 %v3758, %v3746
    %v5703 = vpack.c.b16 %v3759, %v3747
    %v5704 = vpack.c.b16 %v3760, %v3748
    %v5705 = vpack.c.b16 %v3761, %v3749
    %v5706 = vpack.c.b16 %v3762, %v3750
    %v5707 = vpack.c.b16 %v3763, %v3751
    %v5708 = vpack.c.b16 %v3764, %v3752
    %v5709 = vpack.c.b16 %v3765, %v3753
    %v5710 = vpack.c.b16 %v3766, %v3754
    %v5711 = vpack.c.b16 %v3767, %v3755
    %v5712 = vpack.c.b16 %v3780, %v3768
    %v5713 = vpack.c.b16 %v3781, %v3769
    %v5714 = vpack.c.b16 %v3782, %v3770
    %v5715 = vpack.c.b16 %v3783, %v3771
    %v5716 = vpack.c.b16 %v3784, %v3772
    %v5717 = vpack.c.b16 %v3785, %v3773
    %v5718 = vpack.c.b16 %v3786, %v3774
    %v5719 = vpack.c.b16 %v3787, %v3775
    %v5720 = vpack.c.b16 %v3788, %v3776
    %v5721 = vpack.c.b16 %v3789, %v3777
    %v5722 = vpack.c.b16 %v3790, %v3778
    %v5723 = vpack.c.b16 %v3791, %v3779
    %v5724 = vpack.c.b16 %v3804, %v3792
    %v5725 = vpack.c.b16 %v3805, %v3793
    %v5726 = vpack.c.b16 %v3806, %v3794
    %v5727 = vpack.c.b16 %v3807, %v3795
    %v5728 = vpack.c.b16 %v3808, %v3796
    %v5729 = vpack.c.b16 %v3809, %v3797
    %v5730 = vpack.c.b16 %v3810, %v3798
    %v5731 = vpack.c.b16 %v3811, %v3799
    %v5732 = vpack.c.b16 %v3812, %v3800
    %v5733 = vpack.c.b16 %v3813, %v3801
    %v5734 = vpack.c.b16 %v3814, %v3802
    %v5735 = vpack.c.b16 %v3815, %v3803
    %v5736 = vpack.c.b16 %v3828, %v3816
    %v5737 = vpack.c.b16 %v3829, %v3817
    %v5738 = vpack.c.b16 %v3830, %v3818
    %v5739 = vpack.c.b16 %v3831, %v3819
    %v5740 = vpack.c.b16 %v3832, %v3820
    %v5741 = vpack.c.b16 %v3833, %v3821
    %v5742 = vpack.c.b16 %v3834, %v3822
    %v5743 = vpack.c.b16 %v3835, %v3823
    %v5744 = vpack.c.b16 %v3836, %v3824
    %v5745 = vpack.c.b16 %v3837, %v3825
    %v5746 = vpack.c.b16 %v3838, %v3826
    %v5747 = vpack.c.b16 %v3839, %v3827
    %v5748 = vpack.c.b16 %v3852, %v3840
    %v5749 = vpack.c.b16 %v3853, %v3841
    %v5750 = vpack.c.b16 %v3854, %v3842
    %v5751 = vpack.c.b16 %v3855, %v3843
    %v5752 = vpack.c.b16 %v3856, %v3844
    %v5753 = vpack.c.b16 %v3857, %v3845
    %v5754 = vpack.c.b16 %v3858, %v3846
    %v5755 = vpack.c.b16 %v3859, %v3847
    %v5756 = vpack.c.b16 %v3860, %v3848
    %v5757 = vpack.c.b16 %v3861, %v3849
    %v5758 = vpack.c.b16 %v3862, %v3850
    %v5759 = vpack.c.b16 %v3863, %v3851
    %v5760 = vpack.c.b16 %v3876, %v3864
    %v5761 = vpack.c.b16 %v3877, %v3865
    %v5762 = vpack.c.b16 %v3878, %v3866
    %v5763 = vpack.c.b16 %v3879, %v3867
    %v5764 = vpack.c.b16 %v3880, %v3868
    %v5765 = vpack.c.b16 %v3881, %v3869
    %v5766 = vpack.c.b16 %v3882, %v3870
    %v5767 = vpack.c.b16 %v3883, %v3871
    %v5768 = vpack.c.b16 %v3884, %v3872
    %v5769 = vpack.c.b16 %v3885, %v3873
    %v5770 = vpack.c.b16 %v3886, %v3874
    %v5771 = vpack.c.b16 %v3887, %v3875
    %v5772 = vpack.c.b16 %v3900, %v3888
    %v5773 = vpack.c.b16 %v3901, %v3889
    %v5774 = vpack.c.b16 %v3902, %v3890
    %v5775 = vpack.c.b16 %v3903, %v3891
    %v5776 = vpack.c.b16 %v3904, %v3892
    %v5777 = vpack.c.b16 %v3905, %v3893
    %v5778 = vpack.c.b16 %v3906, %v3894
    %v5779 = vpack.c.b16 %v3907, %v3895
    %v5780 = vpack.c.b16 %v3908, %v3896
    %v5781 = vpack.c.b16 %v3909, %v3897
    %v5782 = vpack.c.b16 %v3910, %v3898
    %v5783 = vpack.c.b16 %v3911, %v3899
    %v5784 = vpack.c.b16 %v3924, %v3912
    %v5785 = vpack.c.b16 %v3925, %v3913
    %v5786 = vpack.c.b16 %v3926, %v3914
    %v5787 = vpack.c.b16 %v3927, %v3915
    %v5788 = vpack.c.b16 %v3928, %v3916
    %v5789 = vpack.c.b16 %v3929, %v3917
    %v5790 = vpack.c.b16 %v3930, %v3918
    %v5791 = vpack.c.b16 %v3931, %v3919
    %v5792 = vpack.c.b16 %v3932, %v3920
    %v5793 = vpack.c.b16 %v3933, %v3921
    %v5794 = vpack.c.b16 %v3934, %v3922
    %v5795 = vpack.c.b16 %v3935, %v3923
    %v5796 = vpack.c.b16 %v3948, %v3936
    %v5797 = vpack.c.b16 %v3949, %v3937
    %v5798 = vpack.c.b16 %v3950, %v3938
    %v5799 = vpack.c.b16 %v3951, %v3939
    %v5800 = vpack.c.b16 %v3952, %v3940
    %v5801 = vpack.c.b16 %v3953, %v3941
    %v5802 = vpack.c.b16 %v3954, %v3942
    %v5803 = vpack.c.b16 %v3955, %v3943
    %v5804 = vpack.c.b16 %v3956, %v3944
    %v5805 = vpack.c.b16 %v3957, %v3945
    %v5806 = vpack.c.b16 %v3958, %v3946
    %v5807 = vpack.c.b16 %v3959, %v3947
    %v5808 = vpack.c.b16 %v3972, %v3960
    %v5809 = vpack.c.b16 %v3973, %v3961
    %v5810 = vpack.c.b16 %v3974, %v3962
    %v5811 = vpack.c.b16 %v3975, %v3963
    %v5812 = vpack.c.b16 %v3976, %v3964
    %v5813 = vpack.c.b16 %v3977, %v3965
    %v5814 = vpack.c.b16 %v3978, %v3966
    %v5815 = vpack.c.b16 %v3979, %v3967
    %v5816 = vpack.c.b16 %v3980, %v3968
    %v5817 = vpack.c.b16 %v3981, %v3969
    %v5818 = vpack.c.b16 %v3982, %v3970
    %v5819 = vpack.c.b16 %v3983, %v3971
    %v5820 = vpack.c.b16 %v3996, %v3984
    %v5821 = vpack.c.b16 %v3997, %v3985
    %v5822 = vpack.c.b16 %v3998, %v3986
    %v5823 = vpack.c.b16 %v3999, %v3987
    %v5824 = vpack.c.b16 %v4000, %v3988
    %v5825 = vpack.c.b16 %v4001, %v3989
    %v5826 = vpack.c.b16 %v4002, %v3990
    %v5827 = vpack.c.b16 %v4003, %v3991
    %v5828 = vpack.c.b16 %v4004, %v3992
    %v5829 = vpack.c.b16 %v4005, %v3993
    %v5830 = vpack.c.b16 %v4006, %v3994
    %v5831 = vpack.c.b16 %v4007, %v3995
    %v5832 = vpack.c.b16 %v4020, %v4008
    %v5833 = vpack.c.b16 %v4021, %v4009
    %v5834 = vpack.c.b16 %v4022, %v4010
    %v5835 = vpack.c.b16 %v4023, %v4011
    %v5836 = vpack.c.b16 %v4024, %v4012
    %v5837 = vpack.c.b16 %v4025, %v4013
    %v5838 = vpack.c.b16 %v4026, %v4014
    %v5839 = vpack.c.b16 %v4027, %v4015
    %v5840 = vpack.c.b16 %v4028, %v4016
    %v5841 = vpack.c.b16 %v4029, %v4017
    %v5842 = vpack.c.b16 %v4030, %v4018
    %v5843 = vpack.c.b16 %v4031, %v4019
    %v5844 = vpack.c.b16 %v4044, %v4032
    %v5845 = vpack.c.b16 %v4045, %v4033
    %v5846 = vpack.c.b16 %v4046, %v4034
    %v5847 = vpack.c.b16 %v4047, %v4035
    %v5848 = vpack.c.b16 %v4048, %v4036
    %v5849 = vpack.c.b16 %v4049, %v4037
    %v5850 = vpack.c.b16 %v4050, %v4038
    %v5851 = vpack.c.b16 %v4051, %v4039
    %v5852 = vpack.c.b16 %v4052, %v4040
    %v5853 = vpack.c.b16 %v4053, %v4041
    %v5854 = vpack.c.b16 %v4054, %v4042
    %v5855 = vpack.c.b16 %v4055, %v4043
    %v5856 = vpack.c.b16 %v4068, %v4056
    %v5857 = vpack.c.b16 %v4069, %v4057
    %v5858 = vpack.c.b16 %v4070, %v4058
    %v5859 = vpack.c.b16 %v4071, %v4059
    %v5860 = vpack.c.b16 %v4072, %v4060
    %v5861 = vpack.c.b16 %v4073, %v4061
    %v5862 = vpack.c.b16 %v4074, %v4062
    %v5863 = vpack.c.b16 %v4075, %v4063
    %v5864 = vpack.c.b16 %v4076, %v4064
    %v5865 = vpack.c.b16 %v4077, %v4065
    %v5866 = vpack.c.b16 %v4078, %v4066
    %v5867 = vpack.c.b16 %v4079, %v4067
    %v5868 = vpack.c.b16 %v4092, %v4080
    %v5869 = vpack.c.b16 %v4093, %v4081
    %v5870 = vpack.c.b16 %v4094, %v4082
    %v5871 = vpack.c.b16 %v4095, %v4083
    %v5872 = vpack.c.b16 %v4096, %v4084
    %v5873 = vpack.c.b16 %v4097, %v4085
    %v5874 = vpack.c.b16 %v4098, %v4086
    %v5875 = vpack.c.b16 %v4099, %v4087
    %v5876 = vpack.c.b16 %v4100, %v4088
    %v5877 = vpack.c.b16 %v4101, %v4089
    %v5878 = vpack.c.b16 %v4102, %v4090
    %v5879 = vpack.c.b16 %v4103, %v4091
    %v5880 = vpack.c.b16 %v4116, %v4104
    %v5881 = vpack.c.b16 %v4117, %v4105
    %v5882 = vpack.c.b16 %v4118, %v4106
    %v5883 = vpack.c.b16 %v4119, %v4107
    %v5884 = vpack.c.b16 %v4120, %v4108
    %v5885 = vpack.c.b16 %v4121, %v4109
    %v5886 = vpack.c.b16 %v4122, %v4110
    %v5887 = vpack.c.b16 %v4123, %v4111
    %v5888 = vpack.c.b16 %v4124, %v4112
    %v5889 = vpack.c.b16 %v4125, %v4113
    %v5890 = vpack.c.b16 %v4126, %v4114
    %v5891 = vpack.c.b16 %v4127, %v4115
    %v5892 = vpack.c.b16 %v4140, %v4128
    %v5893 = vpack.c.b16 %v4141, %v4129
    %v5894 = vpack.c.b16 %v4142, %v4130
    %v5895 = vpack.c.b16 %v4143, %v4131
    %v5896 = vpack.c.b16 %v4144, %v4132
    %v5897 = vpack.c.b16 %v4145, %v4133
    %v5898 = vpack.c.b16 %v4146, %v4134
    %v5899 = vpack.c.b16 %v4147, %v4135
    %v5900 = vpack.c.b16 %v4148, %v4136
    %v5901 = vpack.c.b16 %v4149, %v4137
    %v5902 = vpack.c.b16 %v4150, %v4138
    %v5903 = vpack.c.b16 %v4151, %v4139
    %v5904 = vpack.c.b16 %v4164, %v4152
    %v5905 = vpack.c.b16 %v4165, %v4153
    %v5906 = vpack.c.b16 %v4166, %v4154
    %v5907 = vpack.c.b16 %v4167, %v4155
    %v5908 = vpack.c.b16 %v4168, %v4156
    %v5909 = vpack.c.b16 %v4169, %v4157
    %v5910 = vpack.c.b16 %v4170, %v4158
    %v5911 = vpack.c.b16 %v4171, %v4159
    %v5912 = vpack.c.b16 %v4172, %v4160
    %v5913 = vpack.c.b16 %v4173, %v4161
    %v5914 = vpack.c.b16 %v4174, %v4162
    %v5915 = vpack.c.b16 %v4175, %v4163
    %v5916 = vpack.c.b16 %v4188, %v4176
    %v5917 = vpack.c.b16 %v4189, %v4177
    %v5918 = vpack.c.b16 %v4190, %v4178
    %v5919 = vpack.c.b16 %v4191, %v4179
    %v5920 = vpack.c.b16 %v4192, %v4180
    %v5921 = vpack.c.b16 %v4193, %v4181
    %v5922 = vpack.c.b16 %v4194, %v4182
    %v5923 = vpack.c.b16 %v4195, %v4183
    %v5924 = vpack.c.b16 %v4196, %v4184
    %v5925 = vpack.c.b16 %v4197, %v4185
    %v5926 = vpack.c.b16 %v4198, %v4186
    %v5927 = vpack.c.b16 %v4199, %v4187
    %v5928 = vpack.c.b16 %v4212, %v4200
    %v5929 = vpack.c.b16 %v4213, %v4201
    %v5930 = vpack.c.b16 %v4214, %v4202
    %v5931 = vpack.c.b16 %v4215, %v4203
    %v5932 = vpack.c.b16 %v4216, %v4204
    %v5933 = vpack.c.b16 %v4217, %v4205
    %v5934 = vpack.c.b16 %v4218, %v4206
    %v5935 = vpack.c.b16 %v4219, %v4207
    %v5936 = vpack.c.b16 %v4220, %v4208
    %v5937 = vpack.c.b16 %v4221, %v4209
    %v5938 = vpack.c.b16 %v4222, %v4210
    %v5939 = vpack.c.b16 %v4223, %v4211
    %v5940 = vpack.c.b16 %v4236, %v4224
    %v5941 = vpack.c.b16 %v4237, %v4225
    %v5942 = vpack.c.b16 %v4238, %v4226
    %v5943 = vpack.c.b16 %v4239, %v4227
    %v5944 = vpack.c.b16 %v4240, %v4228
    %v5945 = vpack.c.b16 %v4241, %v4229
    %v5946 = vpack.c.b16 %v4242, %v4230
    %v5947 = vpack.c.b16 %v4243, %v4231
    %v5948 = vpack.c.b16 %v4244, %v4232
    %v5949 = vpack.c.b16 %v4245, %v4233
    %v5950 = vpack.c.b16 %v4246, %v4234
    %v5951 = vpack.c.b16 %v4247, %v4235
    %v5952 = vpack.c.b16 %v4260, %v4248
    %v5953 = vpack.c.b16 %v4261, %v4249
    %v5954 = vpack.c.b16 %v4262, %v4250
    %v5955 = vpack.c.b16 %v4263, %v4251
    %v5956 = vpack.c.b16 %v4264, %v4252
    %v5957 = vpack.c.b16 %v4265, %v4253
    %v5958 = vpack.c.b16 %v4266, %v4254
    %v5959 = vpack.c.b16 %v4267, %v4255
    %v5960 = vpack.c.b16 %v4268, %v4256
    %v5961 = vpack.c.b16 %v4269, %v4257
    %v5962 = vpack.c.b16 %v4270, %v4258
    %v5963 = vpack.c.b16 %v4271, %v4259
    %v5964 = vpack.c.b16 %v4284, %v4272
    %v5965 = vpack.c.b16 %v4285, %v4273
    %v5966 = vpack.c.b16 %v4286, %v4274
    %v5967 = vpack.c.b16 %v4287, %v4275
    %v5968 = vpack.c.b16 %v4288, %v4276
    %v5969 = vpack.c.b16 %v4289, %v4277
    %v5970 = vpack.c.b16 %v4290, %v4278
    %v5971 = vpack.c.b16 %v4291, %v4279
    %v5972 = vpack.c.b16 %v4292, %v4280
    %v5973 = vpack.c.b16 %v4293, %v4281
    %v5974 = vpack.c.b16 %v4294, %v4282
    %v5975 = vpack.c.b16 %v4295, %v4283
    %v5976 = vpack.c.b16 %v4308, %v4296
    %v5977 = vpack.c.b16 %v4309, %v4297
    %v5978 = vpack.c.b16 %v4310, %v4298
    %v5979 = vpack.c.b16 %v4311, %v4299
    %v5980 = vpack.c.b16 %v4312, %v4300
    %v5981 = vpack.c.b16 %v4313, %v4301
    %v5982 = vpack.c.b16 %v4314, %v4302
    %v5983 = vpack.c.b16 %v4315, %v4303
    %v5984 = vpack.c.b16 %v4316, %v4304
    %v5985 = vpack.c.b16 %v4317, %v4305
    %v5986 = vpack.c.b16 %v4318, %v4306
    %v5987 = vpack.c.b16 %v4319, %v4307
    %v5988 = vpack.c.b16 %v4332, %v4320
    %v5989 = vpack.c.b16 %v4333, %v4321
    %v5990 = vpack.c.b16 %v4334, %v4322
    %v5991 = vpack.c.b16 %v4335, %v4323
    %v5992 = vpack.c.b16 %v4336, %v4324
    %v5993 = vpack.c.b16 %v4337, %v4325
    %v5994 = vpack.c.b16 %v4338, %v4326
    %v5995 = vpack.c.b16 %v4339, %v4327
    %v5996 = vpack.c.b16 %v4340, %v4328
    %v5997 = vpack.c.b16 %v4341, %v4329
    %v5998 = vpack.c.b16 %v4342, %v4330
    %v5999 = vpack.c.b16 %v4343, %v4331
    %v6000 = vpack.c.b16 %v4356, %v4344
    %v6001 = vpack.c.b16 %v4357, %v4345
    %v6002 = vpack.c.b16 %v4358, %v4346
    %v6003 = vpack.c.b16 %v4359, %v4347
    %v6004 = vpack.c.b16 %v4360, %v4348
    %v6005 = vpack.c.b16 %v4361, %v4349
    %v6006 = vpack.c.b16 %v4362, %v4350
    %v6007 = vpack.c.b16 %v4363, %v4351
    %v6008 = vpack.c.b16 %v4364, %v4352
    %v6009 = vpack.c.b16 %v4365, %v4353
    %v6010 = vpack.c.b16 %v4366, %v4354
    %v6011 = vpack.c.b16 %v4367, %v4355
    %v6012 = vpack.c.b16 %v4380, %v4368
    %v6013 = vpack.c.b16 %v4381, %v4369
    %v6014 = vpack.c.b16 %v4382, %v4370
    %v6015 = vpack.c.b16 %v4383, %v4371
    %v6016 = vpack.c.b16 %v4384, %v4372
    %v6017 = vpack.c.b16 %v4385, %v4373
    %v6018 = vpack.c.b16 %v4386, %v4374
    %v6019 = vpack.c.b16 %v4387, %v4375
    %v6020 = vpack.c.b16 %v4388, %v4376
    %v6021 = vpack.c.b16 %v4389, %v4377
    %v6022 = vpack.c.b16 %v4390, %v4378
    %v6023 = vpack.c.b16 %v4391, %v4379
    %v6024 = vpack.c.b16 %v4404, %v4392
    %v6025 = vpack.c.b16 %v4405, %v4393
    %v6026 = vpack.c.b16 %v4406, %v4394
    %v6027 = vpack.c.b16 %v4407, %v4395
    %v6028 = vpack.c.b16 %v4408, %v4396
    %v6029 = vpack.c.b16 %v4409, %v4397
    %v6030 = vpack.c.b16 %v4410, %v4398
    %v6031 = vpack.c.b16 %v4411, %v4399
    %v6032 = vpack.c.b16 %v4412, %v4400
    %v6033 = vpack.c.b16 %v4413, %v4401
    %v6034 = vpack.c.b16 %v4414, %v4402
    %v6035 = vpack.c.b16 %v4415, %v4403
    %v6036 = vpack.c.b16 %v4428, %v4416
    %v6037 = vpack.c.b16 %v4429, %v4417
    %v6038 = vpack.c.b16 %v4430, %v4418
    %v6039 = vpack.c.b16 %v4431, %v4419
    %v6040 = vpack.c.b16 %v4432, %v4420
    %v6041 = vpack.c.b16 %v4433, %v4421
    %v6042 = vpack.c.b16 %v4434, %v4422
    %v6043 = vpack.c.b16 %v4435, %v4423
    %v6044 = vpack.c.b16 %v4436, %v4424
    %v6045 = vpack.c.b16 %v4437, %v4425
    %v6046 = vpack.c.b16 %v4438, %v4426
    %v6047 = vpack.c.b16 %v4439, %v4427
    %v6048 = vpack.c.b16 %v4452, %v4440
    %v6049 = vpack.c.b16 %v4453, %v4441
    %v6050 = vpack.c.b16 %v4454, %v4442
    %v6051 = vpack.c.b16 %v4455, %v4443
    %v6052 = vpack.c.b16 %v4456, %v4444
    %v6053 = vpack.c.b16 %v4457, %v4445
    %v6054 = vpack.c.b16 %v4458, %v4446
    %v6055 = vpack.c.b16 %v4459, %v4447
    %v6056 = vpack.c.b16 %v4460, %v4448
    %v6057 = vpack.c.b16 %v4461, %v4449
    %v6058 = vpack.c.b16 %v4462, %v4450
    %v6059 = vpack.c.b16 %v4463, %v4451
    %v6060 = vpack.c.b16 %v4476, %v4464
    %v6061 = vpack.c.b16 %v4477, %v4465
    %v6062 = vpack.c.b16 %v4478, %v4466
    %v6063 = vpack.c.b16 %v4479, %v4467
    %v6064 = vpack.c.b16 %v4480, %v4468
    %v6065 = vpack.c.b16 %v4481, %v4469
    %v6066 = vpack.c.b16 %v4482, %v4470
    %v6067 = vpack.c.b16 %v4483, %v4471
    %v6068 = vpack.c.b16 %v4484, %v4472
    %v6069 = vpack.c.b16 %v4485, %v4473
    %v6070 = vpack.c.b16 %v4486, %v4474
    %v6071 = vpack.c.b16 %v4487, %v4475
    %v6072 = vpack.c.b16 %v4500, %v4488
    %v6073 = vpack.c.b16 %v4501, %v4489
    %v6074 = vpack.c.b16 %v4502, %v4490
    %v6075 = vpack.c.b16 %v4503, %v4491
    %v6076 = vpack.c.b16 %v4504, %v4492
    %v6077 = vpack.c.b16 %v4505, %v4493
    %v6078 = vpack.c.b16 %v4506, %v4494
    %v6079 = vpack.c.b16 %v4507, %v4495
    %v6080 = vpack.c.b16 %v4508, %v4496
    %v6081 = vpack.c.b16 %v4509, %v4497
    %v6082 = vpack.c.b16 %v4510, %v4498
    %v6083 = vpack.c.b16 %v4511, %v4499
    %v6084 = vpack.c.b16 %v4524, %v4512
    %v6085 = vpack.c.b16 %v4525, %v4513
    %v6086 = vpack.c.b16 %v4526, %v4514
    %v6087 = vpack.c.b16 %v4527, %v4515
    %v6088 = vpack.c.b16 %v4528, %v4516
    %v6089 = vpack.c.b16 %v4529, %v4517
    %v6090 = vpack.c.b16 %v4530, %v4518
    %v6091 = vpack.c.b16 %v4531, %v4519
    %v6092 = vpack.c.b16 %v4532, %v4520
    %v6093 = vpack.c.b16 %v4533, %v4521
    %v6094 = vpack.c.b16 %v4534, %v4522
    %v6095 = vpack.c.b16 %v4535, %v4523
    %v6096 = vpack.c.b16 %v4548, %v4536
    %v6097 = vpack.c.b16 %v4549, %v4537
    %v6098 = vpack.c.b16 %v4550, %v4538
    %v6099 = vpack.c.b16 %v4551, %v4539
    %v6100 = vpack.c.b16 %v4552, %v4540
    %v6101 = vpack.c.b16 %v4553, %v4541
    %v6102 = vpack.c.b16 %v4554, %v4542
    %v6103 = vpack.c.b16 %v4555, %v4543
    %v6104 = vpack.c.b16 %v4556, %v4544
    %v6105 = vpack.c.b16 %v4557, %v4545
    %v6106 = vpack.c.b16 %v4558, %v4546
    %v6107 = vpack.c.b16 %v4559, %v4547
    %v6108 = vpack.c.b16 %v4572, %v4560
    %v6109 = vpack.c.b16 %v4573, %v4561
    %v6110 = vpack.c.b16 %v4574, %v4562
    %v6111 = vpack.c.b16 %v4575, %v4563
    %v6112 = vpack.c.b16 %v4576, %v4564
    %v6113 = vpack.c.b16 %v4577, %v4565
    %v6114 = vpack.c.b16 %v4578, %v4566
    %v6115 = vpack.c.b16 %v4579, %v4567
    %v6116 = vpack.c.b16 %v4580, %v4568
    %v6117 = vpack.c.b16 %v4581, %v4569
    %v6118 = vpack.c.b16 %v4582, %v4570
    %v6119 = vpack.c.b16 %v4583, %v4571
    %v6120 = vpack.c.b16 %v4596, %v4584
    %v6121 = vpack.c.b16 %v4597, %v4585
    %v6122 = vpack.c.b16 %v4598, %v4586
    %v6123 = vpack.c.b16 %v4599, %v4587
    %v6124 = vpack.c.b16 %v4600, %v4588
    %v6125 = vpack.c.b16 %v4601, %v4589
    %v6126 = vpack.c.b16 %v4602, %v4590
    %v6127 = vpack.c.b16 %v4603, %v4591
    %v6128 = vpack.c.b16 %v4604, %v4592
    %v6129 = vpack.c.b16 %v4605, %v4593
    %v6130 = vpack.c.b16 %v4606, %v4594
    %v6131 = vpack.c.b16 %v4607, %v4595
    %v6132 = vpack.c.b16 %v4620, %v4608
    %v6133 = vpack.c.b16 %v4621, %v4609
    %v6134 = vpack.c.b16 %v4622, %v4610
    %v6135 = vpack.c.b16 %v4623, %v4611
    %v6136 = vpack.c.b16 %v4624, %v4612
    %v6137 = vpack.c.b16 %v4625, %v4613
    %v6138 = vpack.c.b16 %v4626, %v4614
    %v6139 = vpack.c.b16 %v4627, %v4615
    %v6140 = vpack.c.b16 %v4628, %v4616
    %v6141 = vpack.c.b16 %v4629, %v4617
    %v6142 = vpack.c.b16 %v4630, %v4618
    %v6143 = vpack.c.b16 %v4631, %v4619
    %v6144 = vpack.c.b16 %v4644, %v4632
    %v6145 = vpack.c.b16 %v4645, %v4633
    %v6146 = vpack.c.b16 %v4646, %v4634
    %v6147 = vpack.c.b16 %v4647, %v4635
    %v6148 = vpack.c.b16 %v4648, %v4636
    %v6149 = vpack.c.b16 %v4649, %v4637
    %v6150 = vpack.c.b16 %v4650, %v4638
    %v6151 = vpack.c.b16 %v4651, %v4639
    %v6152 = vpack.c.b16 %v4652, %v4640
    %v6153 = vpack.c.b16 %v4653, %v4641
    %v6154 = vpack.c.b16 %v4654, %v4642
    %v6155 = vpack.c.b16 %v4655, %v4643
    %v6156 = vpack.c.b16 %v4668, %v4656
    %v6157 = vpack.c.b16 %v4669, %v4657
    %v6158 = vpack.c.b16 %v4670, %v4658
    %v6159 = vpack.c.b16 %v4671, %v4659
    %v6160 = vpack.c.b16 %v4672, %v4660
    %v6161 = vpack.c.b16 %v4673, %v4661
    %v6162 = vpack.c.b16 %v4674, %v4662
    %v6163 = vpack.c.b16 %v4675, %v4663
    %v6164 = vpack.c.b16 %v4676, %v4664
    %v6165 = vpack.c.b16 %v4677, %v4665
    %v6166 = vpack.c.b16 %v4678, %v4666
    %v6167 = vpack.c.b16 %v4679, %v4667
    %v6168 = vpack.c.b16 %v4692, %v4680
    %v6169 = vpack.c.b16 %v4693, %v4681
    %v6170 = vpack.c.b16 %v4694, %v4682
    %v6171 = vpack.c.b16 %v4695, %v4683
    %v6172 = vpack.c.b16 %v4696, %v4684
    %v6173 = vpack.c.b16 %v4697, %v4685
    %v6174 = vpack.c.b16 %v4698, %v4686
    %v6175 = vpack.c.b16 %v4699, %v4687
    %v6176 = vpack.c.b16 %v4700, %v4688
    %v6177 = vpack.c.b16 %v4701, %v4689
    %v6178 = vpack.c.b16 %v4702, %v4690
    %v6179 = vpack.c.b16 %v4703, %v4691
    %v6180 = vpack.c.b16 %v4716, %v4704
    %v6181 = vpack.c.b16 %v4717, %v4705
    %v6182 = vpack.c.b16 %v4718, %v4706
    %v6183 = vpack.c.b16 %v4719, %v4707
    %v6184 = vpack.c.b16 %v4720, %v4708
    %v6185 = vpack.c.b16 %v4721, %v4709
    %v6186 = vpack.c.b16 %v4722, %v4710
    %v6187 = vpack.c.b16 %v4723, %v4711
    %v6188 = vpack.c.b16 %v4724, %v4712
    %v6189 = vpack.c.b16 %v4725, %v4713
    %v6190 = vpack.c.b16 %v4726, %v4714
    %v6191 = vpack.c.b16 %v4727, %v4715
    %v6192 = vpack.c.b16 %v4740, %v4728
    %v6193 = vpack.c.b16 %v4741, %v4729
    %v6194 = vpack.c.b16 %v4742, %v4730
    %v6195 = vpack.c.b16 %v4743, %v4731
    %v6196 = vpack.c.b16 %v4744, %v4732
    %v6197 = vpack.c.b16 %v4745, %v4733
    %v6198 = vpack.c.b16 %v4746, %v4734
    %v6199 = vpack.c.b16 %v4747, %v4735
    %v6200 = vpack.c.b16 %v4748, %v4736
    %v6201 = vpack.c.b16 %v4749, %v4737
    %v6202 = vpack.c.b16 %v4750, %v4738
    %v6203 = vpack.c.b16 %v4751, %v4739
    %v6204 = vpack.c.b16 %v4764, %v4752
    %v6205 = vpack.c.b16 %v4765, %v4753
    %v6206 = vpack.c.b16 %v4766, %v4754
    %v6207 = vpack.c.b16 %v4767, %v4755
    %v6208 = vpack.c.b16 %v4768, %v4756
    %v6209 = vpack.c.b16 %v4769, %v4757
    %v6210 = vpack.c.b16 %v4770, %v4758
    %v6211 = vpack.c.b16 %v4771, %v4759
    %v6212 = vpack.c.b16 %v4772, %v4760
    %v6213 = vpack.c.b16 %v4773, %v4761
    %v6214 = vpack.c.b16 %v4774, %v4762
    %v6215 = vpack.c.b16 %v4775, %v4763
    %v6216 = vpack.c.b16 %v4788, %v4776
    %v6217 = vpack.c.b16 %v4789, %v4777
    %v6218 = vpack.c.b16 %v4790, %v4778
    %v6219 = vpack.c.b16 %v4791, %v4779
    %v6220 = vpack.c.b16 %v4792, %v4780
    %v6221 = vpack.c.b16 %v4793, %v4781
    %v6222 = vpack.c.b16 %v4794, %v4782
    %v6223 = vpack.c.b16 %v4795, %v4783
    %v6224 = vpack.c.b16 %v4796, %v4784
    %v6225 = vpack.c.b16 %v4797, %v4785
    %v6226 = vpack.c.b16 %v4798, %v4786
    %v6227 = vpack.c.b16 %v4799, %v4787
    %v6228 = vpack.c.b16 %v4812, %v4800
    %v6229 = vpack.c.b16 %v4813, %v4801
    %v6230 = vpack.c.b16 %v4814, %v4802
    %v6231 = vpack.c.b16 %v4815, %v4803
    %v6232 = vpack.c.b16 %v4816, %v4804
    %v6233 = vpack.c.b16 %v4817, %v4805
    %v6234 = vpack.c.b16 %v4818, %v4806
    %v6235 = vpack.c.b16 %v4819, %v4807
    %v6236 = vpack.c.b16 %v4820, %v4808
    %v6237 = vpack.c.b16 %v4821, %v4809
    %v6238 = vpack.c.b16 %v4822, %v4810
    %v6239 = vpack.c.b16 %v4823, %v4811
    %v6240 = vpack.c.b16 %v4836, %v4824
    %v6241 = vpack.c.b16 %v4837, %v4825
    %v6242 = vpack.c.b16 %v4838, %v4826
    %v6243 = vpack.c.b16 %v4839, %v4827
    %v6244 = vpack.c.b16 %v4840, %v4828
    %v6245 = vpack.c.b16 %v4841, %v4829
    %v6246 = vpack.c.b16 %v4842, %v4830
    %v6247 = vpack.c.b16 %v4843, %v4831
    %v6248 = vpack.c.b16 %v4844, %v4832
    %v6249 = vpack.c.b16 %v4845, %v4833
    %v6250 = vpack.c.b16 %v4846, %v4834
    %v6251 = vpack.c.b16 %v4847, %v4835
    %v6252 = vpack.c.b16 %v4860, %v4848
    %v6253 = vpack.c.b16 %v4861, %v4849
    %v6254 = vpack.c.b16 %v4862, %v4850
    %v6255 = vpack.c.b16 %v4863, %v4851
    %v6256 = vpack.c.b16 %v4864, %v4852
    %v6257 = vpack.c.b16 %v4865, %v4853
    %v6258 = vpack.c.b16 %v4866, %v4854
    %v6259 = vpack.c.b16 %v4867, %v4855
    %v6260 = vpack.c.b16 %v4868, %v4856
    %v6261 = vpack.c.b16 %v4869, %v4857
    %v6262 = vpack.c.b16 %v4870, %v4858
    %v6263 = vpack.c.b16 %v4871, %v4859
    %v6264 = vpack.c.b16 %v4884, %v4872
    %v6265 = vpack.c.b16 %v4885, %v4873
    %v6266 = vpack.c.b16 %v4886, %v4874
    %v6267 = vpack.c.b16 %v4887, %v4875
    %v6268 = vpack.c.b16 %v4888, %v4876
    %v6269 = vpack.c.b16 %v4889, %v4877
    %v6270 = vpack.c.b16 %v4890, %v4878
    %v6271 = vpack.c.b16 %v4891, %v4879
    %v6272 = vpack.c.b16 %v4892, %v4880
    %v6273 = vpack.c.b16 %v4893, %v4881
    %v6274 = vpack.c.b16 %v4894, %v4882
    %v6275 = vpack.c.b16 %v4895, %v4883
    %v6276 = vpack.c.b16 %v4908, %v4896
    %v6277 = vpack.c.b16 %v4909, %v4897
    %v6278 = vpack.c.b16 %v4910, %v4898
    %v6279 = vpack.c.b16 %v4911, %v4899
    %v6280 = vpack.c.b16 %v4912, %v4900
    %v6281 = vpack.c.b16 %v4913, %v4901
    %v6282 = vpack.c.b16 %v4914, %v4902
    %v6283 = vpack.c.b16 %v4915, %v4903
    %v6284 = vpack.c.b16 %v4916, %v4904
    %v6285 = vpack.c.b16 %v4917, %v4905
    %v6286 = vpack.c.b16 %v4918, %v4906
    %v6287 = vpack.c.b16 %v4919, %v4907
    %v6288 = vpack.c.b16 %v4932, %v4920
    %v6289 = vpack.c.b16 %v4933, %v4921
    %v6290 = vpack.c.b16 %v4934, %v4922
    %v6291 = vpack.c.b16 %v4935, %v4923
    %v6292 = vpack.c.b16 %v4936, %v4924
    %v6293 = vpack.c.b16 %v4937, %v4925
    %v6294 = vpack.c.b16 %v4938, %v4926
    %v6295 = vpack.c.b16 %v4939, %v4927
    %v6296 = vpack.c.b16 %v4940, %v4928
    %v6297 = vpack.c.b16 %v4941, %v4929
    %v6298 = vpack.c.b16 %v4942, %v4930
    %v6299 = vpack.c.b16 %v4943, %v4931
    %v6300 = vpack.c.b16 %v4956, %v4944
    %v6301 = vpack.c.b16 %v4957, %v4945
    %v6302 = vpack.c.b16 %v4958, %v4946
    %v6303 = vpack.c.b16 %v4959, %v4947
    %v6304 = vpack.c.b16 %v4960, %v4948
    %v6305 = vpack.c.b16 %v4961, %v4949
    %v6306 = vpack.c.b16 %v4962, %v4950
    %v6307 = vpack.c.b16 %v4963, %v4951
    %v6308 = vpack.c.b16 %v4964, %v4952
    %v6309 = vpack.c.b16 %v4965, %v4953
    %v6310 = vpack.c.b16 %v4966, %v4954
    %v6311 = vpack.c.b16 %v4967, %v4955
    %v6312 = vpack.c.b16 %v4980, %v4968
    %v6313 = vpack.c.b16 %v4981, %v4969
    %v6314 = vpack.c.b16 %v4982, %v4970
    %v6315 = vpack.c.b16 %v4983, %v4971
    %v6316 = vpack.c.b16 %v4984, %v4972
    %v6317 = vpack.c.b16 %v4985, %v4973
    %v6318 = vpack.c.b16 %v4986, %v4974
    %v6319 = vpack.c.b16 %v4987, %v4975
    %v6320 = vpack.c.b16 %v4988, %v4976
    %v6321 = vpack.c.b16 %v4989, %v4977
    %v6322 = vpack.c.b16 %v4990, %v4978
    %v6323 = vpack.c.b16 %v4991, %v4979
    %v6324 = vpack.c.b16 %v5004, %v4992
    %v6325 = vpack.c.b16 %v5005, %v4993
    %v6326 = vpack.c.b16 %v5006, %v4994
    %v6327 = vpack.c.b16 %v5007, %v4995
    %v6328 = vpack.c.b16 %v5008, %v4996
    %v6329 = vpack.c.b16 %v5009, %v4997
    %v6330 = vpack.c.b16 %v5010, %v4998
    %v6331 = vpack.c.b16 %v5011, %v4999
    %v6332 = vpack.c.b16 %v5012, %v5000
    %v6333 = vpack.c.b16 %v5013, %v5001
    %v6334 = vpack.c.b16 %v5014, %v5002
    %v6335 = vpack.c.b16 %v5015, %v5003
    %v6336 = vpack.c.b16 %v5028, %v5016
    %v6337 = vpack.c.b16 %v5029, %v5017
    %v6338 = vpack.c.b16 %v5030, %v5018
    %v6339 = vpack.c.b16 %v5031, %v5019
    %v6340 = vpack.c.b16 %v5032, %v5020
    %v6341 = vpack.c.b16 %v5033, %v5021
    %v6342 = vpack.c.b16 %v5034, %v5022
    %v6343 = vpack.c.b16 %v5035, %v5023
    %v6344 = vpack.c.b16 %v5036, %v5024
    %v6345 = vpack.c.b16 %v5037, %v5025
    %v6346 = vpack.c.b16 %v5038, %v5026
    %v6347 = vpack.c.b16 %v5039, %v5027
    %v6348 = vpack.c.b16 %v5052, %v5040
    %v6349 = vpack.c.b16 %v5053, %v5041
    %v6350 = vpack.c.b16 %v5054, %v5042
    %v6351 = vpack.c.b16 %v5055, %v5043
    %v6352 = vpack.c.b16 %v5056, %v5044
    %v6353 = vpack.c.b16 %v5057, %v5045
    %v6354 = vpack.c.b16 %v5058, %v5046
    %v6355 = vpack.c.b16 %v5059, %v5047
    %v6356 = vpack.c.b16 %v5060, %v5048
    %v6357 = vpack.c.b16 %v5061, %v5049
    %v6358 = vpack.c.b16 %v5062, %v5050
    %v6359 = vpack.c.b16 %v5063, %v5051
    %v6360 = vpack.c.b16 %v5076, %v5064
    %v6361 = vpack.c.b16 %v5077, %v5065
    %v6362 = vpack.c.b16 %v5078, %v5066
    %v6363 = vpack.c.b16 %v5079, %v5067
    %v6364 = vpack.c.b16 %v5080, %v5068
    %v6365 = vpack.c.b16 %v5081, %v5069
    %v6366 = vpack.c.b16 %v5082, %v5070
    %v6367 = vpack.c.b16 %v5083, %v5071
    %v6368 = vpack.c.b16 %v5084, %v5072
    %v6369 = vpack.c.b16 %v5085, %v5073
    %v6370 = vpack.c.b16 %v5086, %v5074
    %v6371 = vpack.c.b16 %v5087, %v5075
    %v6372 = vpack.c.b16 %v5100, %v5088
    %v6373 = vpack.c.b16 %v5101, %v5089
    %v6374 = vpack.c.b16 %v5102, %v5090
    %v6375 = vpack.c.b16 %v5103, %v5091
    %v6376 = vpack.c.b16 %v5104, %v5092
    %v6377 = vpack.c.b16 %v5105, %v5093
    %v6378 = vpack.c.b16 %v5106, %v5094
    %v6379 = vpack.c.b16 %v5107, %v5095
    %v6380 = vpack.c.b16 %v5108, %v5096
    %v6381 = vpack.c.b16 %v5109, %v5097
    %v6382 = vpack.c.b16 %v5110, %v5098
    %v6383 = vpack.c.b16 %v5111, %v5099
    %v6384 = vpack.c.b16 %v5124, %v5112
    %v6385 = vpack.c.b16 %v5125, %v5113
    %v6386 = vpack.c.b16 %v5126, %v5114
    %v6387 = vpack.c.b16 %v5127, %v5115
    %v6388 = vpack.c.b16 %v5128, %v5116
    %v6389 = vpack.c.b16 %v5129, %v5117
    %v6390 = vpack.c.b16 %v5130, %v5118
    %v6391 = vpack.c.b16 %v5131, %v5119
    %v6392 = vpack.c.b16 %v5132, %v5120
    %v6393 = vpack.c.b16 %v5133, %v5121
    %v6394 = vpack.c.b16 %v5134, %v5122
    %v6395 = vpack.c.b16 %v5135, %v5123
    %v6396 = vpack.c.b16 %v5148, %v5136
    %v6397 = vpack.c.b16 %v5149, %v5137
    %v6398 = vpack.c.b16 %v5150, %v5138
    %v6399 = vpack.c.b16 %v5151, %v5139
    %v6400 = vpack.c.b16 %v5152, %v5140
    %v6401 = vpack.c.b16 %v5153, %v5141
    %v6402 = vpack.c.b16 %v5154, %v5142
    %v6403 = vpack.c.b16 %v5155, %v5143
    %v6404 = vpack.c.b16 %v5156, %v5144
    %v6405 = vpack.c.b16 %v5157, %v5145
    %v6406 = vpack.c.b16 %v5158, %v5146
    %v6407 = vpack.c.b16 %v5159, %v5147
    %v6408 = vpack.c.b16 %v5172, %v5160
    %v6409 = vpack.c.b16 %v5173, %v5161
    %v6410 = vpack.c.b16 %v5174, %v5162
    %v6411 = vpack.c.b16 %v5175, %v5163
    %v6412 = vpack.c.b16 %v5176, %v5164
    %v6413 = vpack.c.b16 %v5177, %v5165
    %v6414 = vpack.c.b16 %v5178, %v5166
    %v6415 = vpack.c.b16 %v5179, %v5167
    %v6416 = vpack.c.b16 %v5180, %v5168
    %v6417 = vpack.c.b16 %v5181, %v5169
    %v6418 = vpack.c.b16 %v5182, %v5170
    %v6419 = vpack.c.b16 %v5183, %v5171
    %v6420 = vpack.c.b16 %v5196, %v5184
    %v6421 = vpack.c.b16 %v5197, %v5185
    %v6422 = vpack.c.b16 %v5198, %v5186
    %v6423 = vpack.c.b16 %v5199, %v5187
    %v6424 = vpack.c.b16 %v5200, %v5188
    %v6425 = vpack.c.b16 %v5201, %v5189
    %v6426 = vpack.c.b16 %v5202, %v5190
    %v6427 = vpack.c.b16 %v5203, %v5191
    %v6428 = vpack.c.b16 %v5204, %v5192
    %v6429 = vpack.c.b16 %v5205, %v5193
    %v6430 = vpack.c.b16 %v5206, %v5194
    %v6431 = vpack.c.b16 %v5207, %v5195
    %v6432 = vpack.c.b16 %v5220, %v5208
    %v6433 = vpack.c.b16 %v5221, %v5209
    %v6434 = vpack.c.b16 %v5222, %v5210
    %v6435 = vpack.c.b16 %v5223, %v5211
    %v6436 = vpack.c.b16 %v5224, %v5212
    %v6437 = vpack.c.b16 %v5225, %v5213
    %v6438 = vpack.c.b16 %v5226, %v5214
    %v6439 = vpack.c.b16 %v5227, %v5215
    %v6440 = vpack.c.b16 %v5228, %v5216
    %v6441 = vpack.c.b16 %v5229, %v5217
    %v6442 = vpack.c.b16 %v5230, %v5218
    %v6443 = vpack.c.b16 %v5231, %v5219
    %v6444 = vpack.c.b16 %v5244, %v5232
    %v6445 = vpack.c.b16 %v5245, %v5233
    %v6446 = vpack.c.b16 %v5246, %v5234
    %v6447 = vpack.c.b16 %v5247, %v5235
    %v6448 = vpack.c.b16 %v5248, %v5236
    %v6449 = vpack.c.b16 %v5249, %v5237
    %v6450 = vpack.c.b16 %v5250, %v5238
    %v6451 = vpack.c.b16 %v5251, %v5239
    %v6452 = vpack.c.b16 %v5252, %v5240
    %v6453 = vpack.c.b16 %v5253, %v5241
    %v6454 = vpack.c.b16 %v5254, %v5242
    %v6455 = vpack.c.b16 %v5255, %v5243
    %v6456 = vpack.c.b16 %v5268, %v5256
    %v6457 = vpack.c.b16 %v5269, %v5257
    %v6458 = vpack.c.b16 %v5270, %v5258
    %v6459 = vpack.c.b16 %v5271, %v5259
    %v6460 = vpack.c.b16 %v5272, %v5260
    %v6461 = vpack.c.b16 %v5273, %v5261
    %v6462 = vpack.c.b16 %v5274, %v5262
    %v6463 = vpack.c.b16 %v5275, %v5263
    %v6464 = vpack.c.b16 %v5276, %v5264
    %v6465 = vpack.c.b16 %v5277, %v5265
    %v6466 = vpack.c.b16 %v5278, %v5266
    %v6467 = vpack.c.b16 %v5279, %v5267
    %v6468 = vpack.c.b16 %v5292, %v5280
    %v6469 = vpack.c.b16 %v5293, %v5281
    %v6470 = vpack.c.b16 %v5294, %v5282
    %v6471 = vpack.c.b16 %v5295, %v5283
    %v6472 = vpack.c.b16 %v5296, %v5284
    %v6473 = vpack.c.b16 %v5297, %v5285
    %v6474 = vpack.c.b16 %v5298, %v5286
    %v6475 = vpack.c.b16 %v5299, %v5287
    %v6476 = vpack.c.b16 %v5300, %v5288
    %v6477 = vpack.c.b16 %v5301, %v5289
    %v6478 = vpack.c.b16 %v5302, %v5290
    %v6479 = vpack.c.b16 %v5303, %v5291
    %v6480 = vpack.c.b16 %v5316, %v5304
    %v6481 = vpack.c.b16 %v5317, %v5305
    %v6482 = vpack.c.b16 %v5318, %v5306
    %v6483 = vpack.c.b16 %v5319, %v5307
    %v6484 = vpack.c.b16 %v5320, %v5308
    %v6485 = vpack.c.b16 %v5321, %v5309
    %v6486 = vpack.c.b16 %v5322, %v5310
    %v6487 = vpack.c.b16 %v5323, %v5311
    %v6488 = vpack.c.b16 %v5324, %v5312
    %v6489 = vpack.c.b16 %v5325, %v5313
    %v6490 = vpack.c.b16 %v5326, %v5314
    %v6491 = vpack.c.b16 %v5327, %v5315
    %v6492 = vpack.c.b16 %v5340, %v5328
    %v6493 = vpack.c.b16 %v5341, %v5329
    %v6494 = vpack.c.b16 %v5342, %v5330
    %v6495 = vpack.c.b16 %v5343, %v5331
    %v6496 = vpack.c.b16 %v5344, %v5332
    %v6497 = vpack.c.b16 %v5345, %v5333
    %v6498 = vpack.c.b16 %v5346, %v5334
    %v6499 = vpack.c.b16 %v5347, %v5335
    %v6500 = vpack.c.b16 %v5348, %v5336
    %v6501 = vpack.c.b16 %v5349, %v5337
    %v6502 = vpack.c.b16 %v5350, %v5338
    %v6503 = vpack.c.b16 %v5351, %v5339
    %7656 = vmatprep.subr.bf16.mxu0 %v5353
    %7657 = vmatpush1.bf16.msra.mxu0 %v5352
    %7658 = vmatprep.subr.bf16.mxu0 %v5365
    %7659 = vmatpush1.bf16.msra.mxu0 %v5364
    %7660 = vmatprep.subr.bf16.mxu0 %v5377
    %7661 = vmatpush1.bf16.msra.mxu0 %v5376
    %7662 = vmatprep.subr.bf16.mxu0 %v5389
    %7663 = vmatpush1.bf16.msra.mxu0 %v5388
    %7664 = vmatprep.subr.bf16.mxu0 %v5401
    %7665 = vmatpush1.bf16.msra.mxu0 %v5400
    %7666 = vmatprep.subr.bf16.mxu0 %v5413
    %7667 = vmatpush1.bf16.msra.mxu0 %v5412
    %7668 = vmatprep.subr.bf16.mxu0 %v5425
    %7669 = vmatpush1.bf16.msra.mxu0 %v5424
    %7670 = vmatprep.subr.bf16.mxu0 %v5437
    %7671 = vmatpush1.bf16.msra.mxu0 %v5436
    %7672 = vmatprep.subr.bf16.mxu0 %v5449
    %7673 = vmatpush1.bf16.msra.mxu0 %v5448
    %7674 = vmatprep.subr.bf16.mxu0 %v5461
    %7675 = vmatpush1.bf16.msra.mxu0 %v5460
    %7676 = vmatprep.subr.bf16.mxu0 %v5473
    %7677 = vmatpush1.bf16.msra.mxu0 %v5472
    %7678 = vmatprep.subr.bf16.mxu0 %v5485
    %7679 = vmatpush1.bf16.msra.mxu0 %v5484
    %7680 = vmatprep.subr.bf16.mxu0 %v5497
    %7681 = vmatpush1.bf16.msra.mxu0 %v5496
    %7682 = vmatprep.subr.bf16.mxu0 %v5509
    %7683 = vmatpush1.bf16.msra.mxu0 %v5508
    %7684 = vmatprep.subr.bf16.mxu0 %v5521
    %7685 = vmatpush1.bf16.msra.mxu0 %v5520
    %7686 = vmatprep.subr.bf16.mxu0 %v5533
    %7687 = vmatpush1.bf16.msra.mxu0 %v5532
    %7688 = vmatprep.mubr.bf16.mxu0 %v669
    %7689 = vmatmul.mubr.bf16.gmra.mrb[0].mxu0 %v668
    %v7690 = vpop.f32.mrb[0].mxu0
    %v7691 = vadd.f32 %v1839, %v7690
    %v7692 = vpop.f32.mrb[0].mxu0
    %v7693 = vadd.f32 %v1843, %v7692
    %v7694 = vpop.f32.mrb[0].mxu0
    %v7695 = vpop.f32.mrb[0].mxu0
    %7696 = vdwg.mxu0
    %7697 = vmatprep.subr.bf16.mxu0 %v5545
    %7698 = vmatpush1.bf16.msra.mxu0 %v5544
    %7699 = vmatprep.subr.bf16.mxu0 %v5557
    %7700 = vmatpush1.bf16.msra.mxu0 %v5556
    %7701 = vmatprep.subr.bf16.mxu0 %v5569
    %7702 = vmatpush1.bf16.msra.mxu0 %v5568
    %7703 = vmatprep.subr.bf16.mxu0 %v5581
    %7704 = vmatpush1.bf16.msra.mxu0 %v5580
    %7705 = vmatprep.subr.bf16.mxu0 %v5593
    %7706 = vmatpush1.bf16.msra.mxu0 %v5592
    %7707 = vmatprep.subr.bf16.mxu0 %v5605
    %7708 = vmatpush1.bf16.msra.mxu0 %v5604
    %7709 = vmatprep.subr.bf16.mxu0 %v5617
    %7710 = vmatpush1.bf16.msra.mxu0 %v5616
    %7711 = vmatprep.subr.bf16.mxu0 %v5629
    %7712 = vmatpush1.bf16.msra.mxu0 %v5628
    %7713 = vmatprep.subr.bf16.mxu0 %v5641
    %7714 = vmatpush1.bf16.msra.mxu0 %v5640
    %7715 = vmatprep.subr.bf16.mxu0 %v5653
    %7716 = vmatpush1.bf16.msra.mxu0 %v5652
    %7717 = vmatprep.subr.bf16.mxu0 %v5665
    %7718 = vmatpush1.bf16.msra.mxu0 %v5664
    %7719 = vmatprep.subr.bf16.mxu0 %v5677
    %7720 = vmatpush1.bf16.msra.mxu0 %v5676
    %7721 = vmatprep.subr.bf16.mxu0 %v5689
    %7722 = vmatpush1.bf16.msra.mxu0 %v5688
    %7723 = vmatprep.subr.bf16.mxu0 %v5701
    %7724 = vmatpush1.bf16.msra.mxu0 %v5700
    %7725 = vmatprep.subr.bf16.mxu0 %v5713
    %7726 = vmatpush1.bf16.msra.mxu0 %v5712
    %7727 = vmatprep.subr.bf16.mxu0 %v5725
    %7728 = vmatpush1.bf16.msra.mxu0 %v5724
    %7729 = vmatprep.mubr.bf16.mxu0 %v671
    %7730 = vmatmul.mubr.bf16.gmra.mrb[0].mxu0 %v670
    %v7731 = vpop.f32.mrb[0].mxu0
    %v7732 = vadd.f32 %v7691, %v7731
    %v7733 = vpop.f32.mrb[0].mxu0
    %v7734 = vadd.f32 %v7693, %v7733
    %v7735 = vpop.f32.mrb[0].mxu0
    %v7736 = vpop.f32.mrb[0].mxu0
    %7737 = vdwg.mxu0
    %7738 = vmatprep.subr.bf16.mxu0 %v5737
    %7739 = vmatpush1.bf16.msra.mxu0 %v5736
    %7740 = vmatprep.subr.bf16.mxu0 %v5749
    %7741 = vmatpush1.bf16.msra.mxu0 %v5748
    %7742 = vmatprep.subr.bf16.mxu0 %v5761
    %7743 = vmatpush1.bf16.msra.mxu0 %v5760
    %7744 = vmatprep.subr.bf16.mxu0 %v5773
    %7745 = vmatpush1.bf16.msra.mxu0 %v5772
    %7746 = vmatprep.subr.bf16.mxu0 %v5785
    %7747 = vmatpush1.bf16.msra.mxu0 %v5784
    %7748 = vmatprep.subr.bf16.mxu0 %v5797
    %7749 = vmatpush1.bf16.msra.mxu0 %v5796
    %7750 = vmatprep.subr.bf16.mxu0 %v5809
    %7751 = vmatpush1.bf16.msra.mxu0 %v5808
    %7752 = vmatprep.subr.bf16.mxu0 %v5821
    %7753 = vmatpush1.bf16.msra.mxu0 %v5820
    %7754 = vmatprep.subr.bf16.mxu0 %v5833
    %7755 = vmatpush1.bf16.msra.mxu0 %v5832
    %7756 = vmatprep.subr.bf16.mxu0 %v5845
    %7757 = vmatpush1.bf16.msra.mxu0 %v5844
    %7758 = vmatprep.subr.bf16.mxu0 %v5857
    %7759 = vmatpush1.bf16.msra.mxu0 %v5856
    %7760 = vmatprep.subr.bf16.mxu0 %v5869
    %7761 = vmatpush1.bf16.msra.mxu0 %v5868
    %7762 = vmatprep.subr.bf16.mxu0 %v5881
    %7763 = vmatpush1.bf16.msra.mxu0 %v5880
    %7764 = vmatprep.subr.bf16.mxu0 %v5893
    %7765 = vmatpush1.bf16.msra.mxu0 %v5892
    %7766 = vmatprep.subr.bf16.mxu0 %v5905
    %7767 = vmatpush1.bf16.msra.mxu0 %v5904
    %7768 = vmatprep.subr.bf16.mxu0 %v5917
    %7769 = vmatpush1.bf16.msra.mxu0 %v5916
    %7770 = vmatprep.mubr.bf16.mxu0 %v673
    %7771 = vmatmul.mubr.bf16.gmra.mrb[0].mxu0 %v672
    %v7772 = vpop.f32.mrb[0].mxu0
    %v7773 = vadd.f32 %v7732, %v7772
    %v7774 = vpop.f32.mrb[0].mxu0
    %v7775 = vadd.f32 %v7734, %v7774
    %v7776 = vpop.f32.mrb[0].mxu0
    %v7777 = vpop.f32.mrb[0].mxu0
    %7778 = vdwg.mxu0
    %7779 = vmatprep.subr.bf16.mxu0 %v5929
    %7780 = vmatpush1.bf16.msra.mxu0 %v5928
    %7781 = vmatprep.subr.bf16.mxu0 %v5941
    %7782 = vmatpush1.bf16.msra.mxu0 %v5940
    %7783 = vmatprep.subr.bf16.mxu0 %v5953
    %7784 = vmatpush1.bf16.msra.mxu0 %v5952
    %7785 = vmatprep.subr.bf16.mxu0 %v5965
    %7786 = vmatpush1.bf16.msra.mxu0 %v5964
    %7787 = vmatprep.subr.bf16.mxu0 %v5977
    %7788 = vmatpush1.bf16.msra.mxu0 %v5976
    %7789 = vmatprep.subr.bf16.mxu0 %v5989
    %7790 = vmatpush1.bf16.msra.mxu0 %v5988
    %7791 = vmatprep.subr.bf16.mxu0 %v6001
    %7792 = vmatpush1.bf16.msra.mxu0 %v6000
    %7793 = vmatprep.subr.bf16.mxu0 %v6013
    %7794 = vmatpush1.bf16.msra.mxu0 %v6012
    %7795 = vmatprep.subr.bf16.mxu0 %v6025
    %7796 = vmatpush1.bf16.msra.mxu0 %v6024
    %7797 = vmatprep.subr.bf16.mxu0 %v6037
    %7798 = vmatpush1.bf16.msra.mxu0 %v6036
    %7799 = vmatprep.subr.bf16.mxu0 %v6049
    %7800 = vmatpush1.bf16.msra.mxu0 %v6048
    %7801 = vmatprep.subr.bf16.mxu0 %v6061
    %7802 = vmatpush1.bf16.msra.mxu0 %v6060
    %7803 = vmatprep.subr.bf16.mxu0 %v6073
    %7804 = vmatpush1.bf16.msra.mxu0 %v6072
    %7805 = vmatprep.subr.bf16.mxu0 %v6085
    %7806 = vmatpush1.bf16.msra.mxu0 %v6084
    %7807 = vmatprep.subr.bf16.mxu0 %v6097
    %7808 = vmatpush1.bf16.msra.mxu0 %v6096
    %7809 = vmatprep.subr.bf16.mxu0 %v6109
    %7810 = vmatpush1.bf16.msra.mxu0 %v6108
    %7811 = vmatprep.mubr.bf16.mxu0 %v675
    %7812 = vmatmul.mubr.bf16.gmra.mrb[0].mxu0 %v674
    %v7813 = vpop.f32.mrb[0].mxu0
    %v7814 = vadd.f32 %v7773, %v7813
    %v7815 = vpop.f32.mrb[0].mxu0
    %v7816 = vadd.f32 %v7775, %v7815
    %v7817 = vpop.f32.mrb[0].mxu0
    %v7818 = vpop.f32.mrb[0].mxu0
    %7819 = vdwg.mxu0
    %7820 = vmatprep.subr.bf16.mxu0 %v6121
    %7821 = vmatpush1.bf16.msra.mxu0 %v6120
    %7822 = vmatprep.subr.bf16.mxu0 %v6133
    %7823 = vmatpush1.bf16.msra.mxu0 %v6132
    %7824 = vmatprep.subr.bf16.mxu0 %v6145
    %7825 = vmatpush1.bf16.msra.mxu0 %v6144
    %7826 = vmatprep.subr.bf16.mxu0 %v6157
    %7827 = vmatpush1.bf16.msra.mxu0 %v6156
    %7828 = vmatprep.subr.bf16.mxu0 %v6169
    %7829 = vmatpush1.bf16.msra.mxu0 %v6168
    %7830 = vmatprep.subr.bf16.mxu0 %v6181
    %7831 = vmatpush1.bf16.msra.mxu0 %v6180
    %7832 = vmatprep.subr.bf16.mxu0 %v6193
    %7833 = vmatpush1.bf16.msra.mxu0 %v6192
    %7834 = vmatprep.subr.bf16.mxu0 %v6205
    %7835 = vmatpush1.bf16.msra.mxu0 %v6204
    %7836 = vmatprep.subr.bf16.mxu0 %v6217
    %7837 = vmatpush1.bf16.msra.mxu0 %v6216
    %7838 = vmatprep.subr.bf16.mxu0 %v6229
    %7839 = vmatpush1.bf16.msra.mxu0 %v6228
    %7840 = vmatprep.subr.bf16.mxu0 %v6241
    %7841 = vmatpush1.bf16.msra.mxu0 %v6240
    %7842 = vmatprep.subr.bf16.mxu0 %v6253
    %7843 = vmatpush1.bf16.msra.mxu0 %v6252
    %7844 = vmatprep.subr.bf16.mxu0 %v6265
    %7845 = vmatpush1.bf16.msra.mxu0 %v6264
    %7846 = vmatprep.subr.bf16.mxu0 %v6277
    %7847 = vmatpush1.bf16.msra.mxu0 %v6276
    %7848 = vmatprep.subr.bf16.mxu0 %v6289
    %7849 = vmatpush1.bf16.msra.mxu0 %v6288
    %7850 = vmatprep.subr.bf16.mxu0 %v6301
    %7851 = vmatpush1.bf16.msra.mxu0 %v6300
    %7852 = vmatprep.mubr.bf16.mxu0 %v677
    %7853 = vmatmul.mubr.bf16.gmra.mrb[0].mxu0 %v676
    %v7854 = vpop.f32.mrb[0].mxu0
    %v7855 = vadd.f32 %v7814, %v7854
    %v7856 = vpop.f32.mrb[0].mxu0
    %v7857 = vadd.f32 %v7816, %v7856
    %v7858 = vpop.f32.mrb[0].mxu0
    %v7859 = vpop.f32.mrb[0].mxu0
    %7860 = vdwg.mxu0
    %7861 = vmatprep.subr.bf16.mxu0 %v6313
    %7862 = vmatpush1.bf16.msra.mxu0 %v6312
    %7863 = vmatprep.subr.bf16.mxu0 %v6325
    %7864 = vmatpush1.bf16.msra.mxu0 %v6324
    %7865 = vmatprep.subr.bf16.mxu0 %v6337
    %7866 = vmatpush1.bf16.msra.mxu0 %v6336
    %7867 = vmatprep.subr.bf16.mxu0 %v6349
    %7868 = vmatpush1.bf16.msra.mxu0 %v6348
    %7869 = vmatprep.subr.bf16.mxu0 %v6361
    %7870 = vmatpush1.bf16.msra.mxu0 %v6360
    %7871 = vmatprep.subr.bf16.mxu0 %v6373
    %7872 = vmatpush1.bf16.msra.mxu0 %v6372
    %7873 = vmatprep.subr.bf16.mxu0 %v6385
    %7874 = vmatpush1.bf16.msra.mxu0 %v6384
    %7875 = vmatprep.subr.bf16.mxu0 %v6397
    %7876 = vmatpush1.bf16.msra.mxu0 %v6396
    %7877 = vmatprep.subr.bf16.mxu0 %v6409
    %7878 = vmatpush1.bf16.msra.mxu0 %v6408
    %7879 = vmatprep.subr.bf16.mxu0 %v6421
    %7880 = vmatpush1.bf16.msra.mxu0 %v6420
    %7881 = vmatprep.subr.bf16.mxu0 %v6433
    %7882 = vmatpush1.bf16.msra.mxu0 %v6432
    %7883 = vmatprep.subr.bf16.mxu0 %v6445
    %7884 = vmatpush1.bf16.msra.mxu0 %v6444
    %7885 = vmatprep.subr.bf16.mxu0 %v6457
    %7886 = vmatpush1.bf16.msra.mxu0 %v6456
    %7887 = vmatprep.subr.bf16.mxu0 %v6469
    %7888 = vmatpush1.bf16.msra.mxu0 %v6468
    %7889 = vmatprep.subr.bf16.mxu0 %v6481
    %7890 = vmatpush1.bf16.msra.mxu0 %v6480
    %7891 = vmatprep.subr.bf16.mxu0 %v6493
    %7892 = vmatpush1.bf16.msra.mxu0 %v6492
    %7893 = vmatprep.mubr.bf16.mxu0 %v679
    %7894 = vmatmul.mubr.bf16.gmra.mrb[0].mxu0 %v678
    %v7895 = vpop.f32.mrb[0].mxu0
    %v7896 = vadd.f32 %v7855, %v7895
    %v7897 = vpop.f32.mrb[0].mxu0
    %v7898 = vadd.f32 %v7857, %v7897
    %v7899 = vpop.f32.mrb[0].mxu0
    %v7900 = vpop.f32.mrb[0].mxu0
    %7901 = vdwg.mxu0
    %7902 = vmatprep.subr.bf16.mxu0 %v5355
    %7903 = vmatpush1.bf16.msra.mxu0 %v5354
    %7904 = vmatprep.subr.bf16.mxu0 %v5367
    %7905 = vmatpush1.bf16.msra.mxu0 %v5366
    %7906 = vmatprep.subr.bf16.mxu0 %v5379
    %7907 = vmatpush1.bf16.msra.mxu0 %v5378
    %7908 = vmatprep.subr.bf16.mxu0 %v5391
    %7909 = vmatpush1.bf16.msra.mxu0 %v5390
    %7910 = vmatprep.subr.bf16.mxu0 %v5403
    %7911 = vmatpush1.bf16.msra.mxu0 %v5402
    %7912 = vmatprep.subr.bf16.mxu0 %v5415
    %7913 = vmatpush1.bf16.msra.mxu0 %v5414
    %7914 = vmatprep.subr.bf16.mxu0 %v5427
    %7915 = vmatpush1.bf16.msra.mxu0 %v5426
    %7916 = vmatprep.subr.bf16.mxu0 %v5439
    %7917 = vmatpush1.bf16.msra.mxu0 %v5438
    %7918 = vmatprep.subr.bf16.mxu0 %v5451
    %7919 = vmatpush1.bf16.msra.mxu0 %v5450
    %7920 = vmatprep.subr.bf16.mxu0 %v5463
    %7921 = vmatpush1.bf16.msra.mxu0 %v5462
    %7922 = vmatprep.subr.bf16.mxu0 %v5475
    %7923 = vmatpush1.bf16.msra.mxu0 %v5474
    %7924 = vmatprep.subr.bf16.mxu0 %v5487
    %7925 = vmatpush1.bf16.msra.mxu0 %v5486
    %7926 = vmatprep.subr.bf16.mxu0 %v5499
    %7927 = vmatpush1.bf16.msra.mxu0 %v5498
    %7928 = vmatprep.subr.bf16.mxu0 %v5511
    %7929 = vmatpush1.bf16.msra.mxu0 %v5510
    %7930 = vmatprep.subr.bf16.mxu0 %v5523
    %7931 = vmatpush1.bf16.msra.mxu0 %v5522
    %7932 = vmatprep.subr.bf16.mxu0 %v5535
    %7933 = vmatpush1.bf16.msra.mxu0 %v5534
    %7934 = vmatprep.mubr.bf16.mxu0 %v669
    %7935 = vmatmul.mubr.bf16.gmra.mrb[0].mxu0 %v668
    %v7936 = vpop.f32.mrb[0].mxu0
    %v7937 = vadd.f32 %v1847, %v7936
    %v7938 = vpop.f32.mrb[0].mxu0
    %v7939 = vadd.f32 %v1851, %v7938
    %v7940 = vpop.f32.mrb[0].mxu0
    %v7941 = vpop.f32.mrb[0].mxu0
    %7942 = vdwg.mxu0
    %7943 = vmatprep.subr.bf16.mxu0 %v5547
    %7944 = vmatpush1.bf16.msra.mxu0 %v5546
    %7945 = vmatprep.subr.bf16.mxu0 %v5559
    %7946 = vmatpush1.bf16.msra.mxu0 %v5558
    %7947 = vmatprep.subr.bf16.mxu0 %v5571
    %7948 = vmatpush1.bf16.msra.mxu0 %v5570
    %7949 = vmatprep.subr.bf16.mxu0 %v5583
    %7950 = vmatpush1.bf16.msra.mxu0 %v5582
    %7951 = vmatprep.subr.bf16.mxu0 %v5595
    %7952 = vmatpush1.bf16.msra.mxu0 %v5594
    %7953 = vmatprep.subr.bf16.mxu0 %v5607
    %7954 = vmatpush1.bf16.msra.mxu0 %v5606
    %7955 = vmatprep.subr.bf16.mxu0 %v5619
    %7956 = vmatpush1.bf16.msra.mxu0 %v5618
    %7957 = vmatprep.subr.bf16.mxu0 %v5631
    %7958 = vmatpush1.bf16.msra.mxu0 %v5630
    %7959 = vmatprep.subr.bf16.mxu0 %v5643
    %7960 = vmatpush1.bf16.msra.mxu0 %v5642
    %7961 = vmatprep.subr.bf16.mxu0 %v5655
    %7962 = vmatpush1.bf16.msra.mxu0 %v5654
    %7963 = vmatprep.subr.bf16.mxu0 %v5667
    %7964 = vmatpush1.bf16.msra.mxu0 %v5666
    %7965 = vmatprep.subr.bf16.mxu0 %v5679
    %7966 = vmatpush1.bf16.msra.mxu0 %v5678
    %7967 = vmatprep.subr.bf16.mxu0 %v5691
    %7968 = vmatpush1.bf16.msra.mxu0 %v5690
    %7969 = vmatprep.subr.bf16.mxu0 %v5703
    %7970 = vmatpush1.bf16.msra.mxu0 %v5702
    %7971 = vmatprep.subr.bf16.mxu0 %v5715
    %7972 = vmatpush1.bf16.msra.mxu0 %v5714
    %7973 = vmatprep.subr.bf16.mxu0 %v5727
    %7974 = vmatpush1.bf16.msra.mxu0 %v5726
    %7975 = vmatprep.mubr.bf16.mxu0 %v671
    %7976 = vmatmul.mubr.bf16.gmra.mrb[0].mxu0 %v670
    %v7977 = vpop.f32.mrb[0].mxu0
    %v7978 = vadd.f32 %v7937, %v7977
    %v7979 = vpop.f32.mrb[0].mxu0
    %v7980 = vadd.f32 %v7939, %v7979
    %v7981 = vpop.f32.mrb[0].mxu0
    %v7982 = vpop.f32.mrb[0].mxu0
    %7983 = vdwg.mxu0
    %7984 = vmatprep.subr.bf16.mxu0 %v5739
    %7985 = vmatpush1.bf16.msra.mxu0 %v5738
    %7986 = vmatprep.subr.bf16.mxu0 %v5751
    %7987 = vmatpush1.bf16.msra.mxu0 %v5750
    %7988 = vmatprep.subr.bf16.mxu0 %v5763
    %7989 = vmatpush1.bf16.msra.mxu0 %v5762
    %7990 = vmatprep.subr.bf16.mxu0 %v5775
    %7991 = vmatpush1.bf16.msra.mxu0 %v5774
    %7992 = vmatprep.subr.bf16.mxu0 %v5787
    %7993 = vmatpush1.bf16.msra.mxu0 %v5786
    %7994 = vmatprep.subr.bf16.mxu0 %v5799
    %7995 = vmatpush1.bf16.msra.mxu0 %v5798
    %7996 = vmatprep.subr.bf16.mxu0 %v5811
    %7997 = vmatpush1.bf16.msra.mxu0 %v5810
    %7998 = vmatprep.subr.bf16.mxu0 %v5823
    %7999 = vmatpush1.bf16.msra.mxu0 %v5822
    %8000 = vmatprep.subr.bf16.mxu0 %v5835
    %8001 = vmatpush1.bf16.msra.mxu0 %v5834
    %8002 = vmatprep.subr.bf16.mxu0 %v5847
    %8003 = vmatpush1.bf16.msra.mxu0 %v5846
    %8004 = vmatprep.subr.bf16.mxu0 %v5859
    %8005 = vmatpush1.bf16.msra.mxu0 %v5858
    %8006 = vmatprep.subr.bf16.mxu0 %v5871
    %8007 = vmatpush1.bf16.msra.mxu0 %v5870
    %8008 = vmatprep.subr.bf16.mxu0 %v5883
    %8009 = vmatpush1.bf16.msra.mxu0 %v5882
    %8010 = vmatprep.subr.bf16.mxu0 %v5895
    %8011 = vmatpush1.bf16.msra.mxu0 %v5894
    %8012 = vmatprep.subr.bf16.mxu0 %v5907
    %8013 = vmatpush1.bf16.msra.mxu0 %v5906
    %8014 = vmatprep.subr.bf16.mxu0 %v5919
    %8015 = vmatpush1.bf16.msra.mxu0 %v5918
    %8016 = vmatprep.mubr.bf16.mxu0 %v673
    %8017 = vmatmul.mubr.bf16.gmra.mrb[0].mxu0 %v672
    %v8018 = vpop.f32.mrb[0].mxu0
    %v8019 = vadd.f32 %v7978, %v8018
    %v8020 = vpop.f32.mrb[0].mxu0
    %v8021 = vadd.f32 %v7980, %v8020
    %v8022 = vpop.f32.mrb[0].mxu0
    %v8023 = vpop.f32.mrb[0].mxu0
    %8024 = vdwg.mxu0
    %8025 = vmatprep.subr.bf16.mxu0 %v5931
    %8026 = vmatpush1.bf16.msra.mxu0 %v5930
    %8027 = vmatprep.subr.bf16.mxu0 %v5943
    %8028 = vmatpush1.bf16.msra.mxu0 %v5942
    %8029 = vmatprep.subr.bf16.mxu0 %v5955
    %8030 = vmatpush1.bf16.msra.mxu0 %v5954
    %8031 = vmatprep.subr.bf16.mxu0 %v5967
    %8032 = vmatpush1.bf16.msra.mxu0 %v5966
    %8033 = vmatprep.subr.bf16.mxu0 %v5979
    %8034 = vmatpush1.bf16.msra.mxu0 %v5978
    %8035 = vmatprep.subr.bf16.mxu0 %v5991
    %8036 = vmatpush1.bf16.msra.mxu0 %v5990
    %8037 = vmatprep.subr.bf16.mxu0 %v6003
    %8038 = vmatpush1.bf16.msra.mxu0 %v6002
    %8039 = vmatprep.subr.bf16.mxu0 %v6015
    %8040 = vmatpush1.bf16.msra.mxu0 %v6014
    %8041 = vmatprep.subr.bf16.mxu0 %v6027
    %8042 = vmatpush1.bf16.msra.mxu0 %v6026
    %8043 = vmatprep.subr.bf16.mxu0 %v6039
    %8044 = vmatpush1.bf16.msra.mxu0 %v6038
    %8045 = vmatprep.subr.bf16.mxu0 %v6051
    %8046 = vmatpush1.bf16.msra.mxu0 %v6050
    %8047 = vmatprep.subr.bf16.mxu0 %v6063
    %8048 = vmatpush1.bf16.msra.mxu0 %v6062
    %8049 = vmatprep.subr.bf16.mxu0 %v6075
    %8050 = vmatpush1.bf16.msra.mxu0 %v6074
    %8051 = vmatprep.subr.bf16.mxu0 %v6087
    %8052 = vmatpush1.bf16.msra.mxu0 %v6086
    %8053 = vmatprep.subr.bf16.mxu0 %v6099
    %8054 = vmatpush1.bf16.msra.mxu0 %v6098
    %8055 = vmatprep.subr.bf16.mxu0 %v6111
    %8056 = vmatpush1.bf16.msra.mxu0 %v6110
    %8057 = vmatprep.mubr.bf16.mxu0 %v675
    %8058 = vmatmul.mubr.bf16.gmra.mrb[0].mxu0 %v674
    %v8059 = vpop.f32.mrb[0].mxu0
    %v8060 = vadd.f32 %v8019, %v8059
    %v8061 = vpop.f32.mrb[0].mxu0
    %v8062 = vadd.f32 %v8021, %v8061
    %v8063 = vpop.f32.mrb[0].mxu0
    %v8064 = vpop.f32.mrb[0].mxu0
    %8065 = vdwg.mxu0
    %8066 = vmatprep.subr.bf16.mxu0 %v6123
    %8067 = vmatpush1.bf16.msra.mxu0 %v6122
    %8068 = vmatprep.subr.bf16.mxu0 %v6135
    %8069 = vmatpush1.bf16.msra.mxu0 %v6134
    %8070 = vmatprep.subr.bf16.mxu0 %v6147
    %8071 = vmatpush1.bf16.msra.mxu0 %v6146
    %8072 = vmatprep.subr.bf16.mxu0 %v6159
    %8073 = vmatpush1.bf16.msra.mxu0 %v6158
    %8074 = vmatprep.subr.bf16.mxu0 %v6171
    %8075 = vmatpush1.bf16.msra.mxu0 %v6170
    %8076 = vmatprep.subr.bf16.mxu0 %v6183
    %8077 = vmatpush1.bf16.msra.mxu0 %v6182
    %8078 = vmatprep.subr.bf16.mxu0 %v6195
    %8079 = vmatpush1.bf16.msra.mxu0 %v6194
    %8080 = vmatprep.subr.bf16.mxu0 %v6207
    %8081 = vmatpush1.bf16.msra.mxu0 %v6206
    %8082 = vmatprep.subr.bf16.mxu0 %v6219
    %8083 = vmatpush1.bf16.msra.mxu0 %v6218
    %8084 = vmatprep.subr.bf16.mxu0 %v6231
    %8085 = vmatpush1.bf16.msra.mxu0 %v6230
    %8086 = vmatprep.subr.bf16.mxu0 %v6243
    %8087 = vmatpush1.bf16.msra.mxu0 %v6242
    %8088 = vmatprep.subr.bf16.mxu0 %v6255
    %8089 = vmatpush1.bf16.msra.mxu0 %v6254
    %8090 = vmatprep.subr.bf16.mxu0 %v6267
    %8091 = vmatpush1.bf16.msra.mxu0 %v6266
    %8092 = vmatprep.subr.bf16.mxu0 %v6279
    %8093 = vmatpush1.bf16.msra.mxu0 %v6278
    %8094 = vmatprep.subr.bf16.mxu0 %v6291
    %8095 = vmatpush1.bf16.msra.mxu0 %v6290
    %8096 = vmatprep.subr.bf16.mxu0 %v6303
    %8097 = vmatpush1.bf16.msra.mxu0 %v6302
    %8098 = vmatprep.mubr.bf16.mxu0 %v677
    %8099 = vmatmul.mubr.bf16.gmra.mrb[0].mxu0 %v676
    %v8100 = vpop.f32.mrb[0].mxu0
    %v8101 = vadd.f32 %v8060, %v8100
    %v8102 = vpop.f32.mrb[0].mxu0
    %v8103 = vadd.f32 %v8062, %v8102
    %v8104 = vpop.f32.mrb[0].mxu0
    %v8105 = vpop.f32.mrb[0].mxu0
    %8106 = vdwg.mxu0
    %8107 = vmatprep.subr.bf16.mxu0 %v6315
    %8108 = vmatpush1.bf16.msra.mxu0 %v6314
    %8109 = vmatprep.subr.bf16.mxu0 %v6327
    %8110 = vmatpush1.bf16.msra.mxu0 %v6326
    %8111 = vmatprep.subr.bf16.mxu0 %v6339
    %8112 = vmatpush1.bf16.msra.mxu0 %v6338
    %8113 = vmatprep.subr.bf16.mxu0 %v6351
    %8114 = vmatpush1.bf16.msra.mxu0 %v6350
    %8115 = vmatprep.subr.bf16.mxu0 %v6363
    %8116 = vmatpush1.bf16.msra.mxu0 %v6362
    %8117 = vmatprep.subr.bf16.mxu0 %v6375
    %8118 = vmatpush1.bf16.msra.mxu0 %v6374
    %8119 = vmatprep.subr.bf16.mxu0 %v6387
    %8120 = vmatpush1.bf16.msra.mxu0 %v6386
    %8121 = vmatprep.subr.bf16.mxu0 %v6399
    %8122 = vmatpush1.bf16.msra.mxu0 %v6398
    %8123 = vmatprep.subr.bf16.mxu0 %v6411
    %8124 = vmatpush1.bf16.msra.mxu0 %v6410
    %8125 = vmatprep.subr.bf16.mxu0 %v6423
    %8126 = vmatpush1.bf16.msra.mxu0 %v6422
    %8127 = vmatprep.subr.bf16.mxu0 %v6435
    %8128 = vmatpush1.bf16.msra.mxu0 %v6434
    %8129 = vmatprep.subr.bf16.mxu0 %v6447
    %8130 = vmatpush1.bf16.msra.mxu0 %v6446
    %8131 = vmatprep.subr.bf16.mxu0 %v6459
    %8132 = vmatpush1.bf16.msra.mxu0 %v6458
    %8133 = vmatprep.subr.bf16.mxu0 %v6471
    %8134 = vmatpush1.bf16.msra.mxu0 %v6470
    %8135 = vmatprep.subr.bf16.mxu0 %v6483
    %8136 = vmatpush1.bf16.msra.mxu0 %v6482
    %8137 = vmatprep.subr.bf16.mxu0 %v6495
    %8138 = vmatpush1.bf16.msra.mxu0 %v6494
    %8139 = vmatprep.mubr.bf16.mxu0 %v679
    %8140 = vmatmul.mubr.bf16.gmra.mrb[0].mxu0 %v678
    %v8141 = vpop.f32.mrb[0].mxu0
    %v8142 = vadd.f32 %v8101, %v8141
    %v8143 = vpop.f32.mrb[0].mxu0
    %v8144 = vadd.f32 %v8103, %v8143
    %v8145 = vpop.f32.mrb[0].mxu0
    %v8146 = vpop.f32.mrb[0].mxu0
    %8147 = vdwg.mxu0
    %8148 = vmatprep.subr.bf16.mxu0 %v5357
    %8149 = vmatpush1.bf16.msra.mxu0 %v5356
    %8150 = vmatprep.subr.bf16.mxu0 %v5369
    %8151 = vmatpush1.bf16.msra.mxu0 %v5368
    %8152 = vmatprep.subr.bf16.mxu0 %v5381
    %8153 = vmatpush1.bf16.msra.mxu0 %v5380
    %8154 = vmatprep.subr.bf16.mxu0 %v5393
    %8155 = vmatpush1.bf16.msra.mxu0 %v5392
    %8156 = vmatprep.subr.bf16.mxu0 %v5405
    %8157 = vmatpush1.bf16.msra.mxu0 %v5404
    %8158 = vmatprep.subr.bf16.mxu0 %v5417
    %8159 = vmatpush1.bf16.msra.mxu0 %v5416
    %8160 = vmatprep.subr.bf16.mxu0 %v5429
    %8161 = vmatpush1.bf16.msra.mxu0 %v5428
    %8162 = vmatprep.subr.bf16.mxu0 %v5441
    %8163 = vmatpush1.bf16.msra.mxu0 %v5440
    %8164 = vmatprep.subr.bf16.mxu0 %v5453
    %8165 = vmatpush1.bf16.msra.mxu0 %v5452
    %8166 = vmatprep.subr.bf16.mxu0 %v5465
    %8167 = vmatpush1.bf16.msra.mxu0 %v5464
    %8168 = vmatprep.subr.bf16.mxu0 %v5477
    %8169 = vmatpush1.bf16.msra.mxu0 %v5476
    %8170 = vmatprep.subr.bf16.mxu0 %v5489
    %8171 = vmatpush1.bf16.msra.mxu0 %v5488
    %8172 = vmatprep.subr.bf16.mxu0 %v5501
    %8173 = vmatpush1.bf16.msra.mxu0 %v5500
    %8174 = vmatprep.subr.bf16.mxu0 %v5513
    %8175 = vmatpush1.bf16.msra.mxu0 %v5512
    %8176 = vmatprep.subr.bf16.mxu0 %v5525
    %8177 = vmatpush1.bf16.msra.mxu0 %v5524
    %8178 = vmatprep.subr.bf16.mxu0 %v5537
    %8179 = vmatpush1.bf16.msra.mxu0 %v5536
    %8180 = vmatprep.mubr.bf16.mxu0 %v669
    %8181 = vmatmul.mubr.bf16.gmra.mrb[0].mxu0 %v668
    %v8182 = vpop.f32.mrb[0].mxu0
    %v8183 = vadd.f32 %v1855, %v8182
    %v8184 = vpop.f32.mrb[0].mxu0
    %v8185 = vadd.f32 %v1859, %v8184
    %v8186 = vpop.f32.mrb[0].mxu0
    %v8187 = vpop.f32.mrb[0].mxu0
    %8188 = vdwg.mxu0
    %8189 = vmatprep.subr.bf16.mxu0 %v5549
    %8190 = vmatpush1.bf16.msra.mxu0 %v5548
    %8191 = vmatprep.subr.bf16.mxu0 %v5561
    %8192 = vmatpush1.bf16.msra.mxu0 %v5560
    %8193 = vmatprep.subr.bf16.mxu0 %v5573
    %8194 = vmatpush1.bf16.msra.mxu0 %v5572
    %8195 = vmatprep.subr.bf16.mxu0 %v5585
    %8196 = vmatpush1.bf16.msra.mxu0 %v5584
    %8197 = vmatprep.subr.bf16.mxu0 %v5597
    %8198 = vmatpush1.bf16.msra.mxu0 %v5596
    %8199 = vmatprep.subr.bf16.mxu0 %v5609
    %8200 = vmatpush1.bf16.msra.mxu0 %v5608
    %8201 = vmatprep.subr.bf16.mxu0 %v5621
    %8202 = vmatpush1.bf16.msra.mxu0 %v5620
    %8203 = vmatprep.subr.bf16.mxu0 %v5633
    %8204 = vmatpush1.bf16.msra.mxu0 %v5632
    %8205 = vmatprep.subr.bf16.mxu0 %v5645
    %8206 = vmatpush1.bf16.msra.mxu0 %v5644
    %8207 = vmatprep.subr.bf16.mxu0 %v5657
    %8208 = vmatpush1.bf16.msra.mxu0 %v5656
    %8209 = vmatprep.subr.bf16.mxu0 %v5669
    %8210 = vmatpush1.bf16.msra.mxu0 %v5668
    %8211 = vmatprep.subr.bf16.mxu0 %v5681
    %8212 = vmatpush1.bf16.msra.mxu0 %v5680
    %8213 = vmatprep.subr.bf16.mxu0 %v5693
    %8214 = vmatpush1.bf16.msra.mxu0 %v5692
    %8215 = vmatprep.subr.bf16.mxu0 %v5705
    %8216 = vmatpush1.bf16.msra.mxu0 %v5704
    %8217 = vmatprep.subr.bf16.mxu0 %v5717
    %8218 = vmatpush1.bf16.msra.mxu0 %v5716
    %8219 = vmatprep.subr.bf16.mxu0 %v5729
    %8220 = vmatpush1.bf16.msra.mxu0 %v5728
    %8221 = vmatprep.mubr.bf16.mxu0 %v671
    %8222 = vmatmul.mubr.bf16.gmra.mrb[0].mxu0 %v670
    %v8223 = vpop.f32.mrb[0].mxu0
    %v8224 = vadd.f32 %v8183, %v8223
    %v8225 = vpop.f32.mrb[0].mxu0
    %v8226 = vadd.f32 %v8185, %v8225
    %v8227 = vpop.f32.mrb[0].mxu0
    %v8228 = vpop.f32.mrb[0].mxu0
    %8229 = vdwg.mxu0
    %8230 = vmatprep.subr.bf16.mxu0 %v5741
    %8231 = vmatpush1.bf16.msra.mxu0 %v5740
    %8232 = vmatprep.subr.bf16.mxu0 %v5753
    %8233 = vmatpush1.bf16.msra.mxu0 %v5752
    %8234 = vmatprep.subr.bf16.mxu0 %v5765
    %8235 = vmatpush1.bf16.msra.mxu0 %v5764
    %8236 = vmatprep.subr.bf16.mxu0 %v5777
    %8237 = vmatpush1.bf16.msra.mxu0 %v5776
    %8238 = vmatprep.subr.bf16.mxu0 %v5789
    %8239 = vmatpush1.bf16.msra.mxu0 %v5788
    %8240 = vmatprep.subr.bf16.mxu0 %v5801
    %8241 = vmatpush1.bf16.msra.mxu0 %v5800
    %8242 = vmatprep.subr.bf16.mxu0 %v5813
    %8243 = vmatpush1.bf16.msra.mxu0 %v5812
    %8244 = vmatprep.subr.bf16.mxu0 %v5825
    %8245 = vmatpush1.bf16.msra.mxu0 %v5824
    %8246 = vmatprep.subr.bf16.mxu0 %v5837
    %8247 = vmatpush1.bf16.msra.mxu0 %v5836
    %8248 = vmatprep.subr.bf16.mxu0 %v5849
    %8249 = vmatpush1.bf16.msra.mxu0 %v5848
    %8250 = vmatprep.subr.bf16.mxu0 %v5861
    %8251 = vmatpush1.bf16.msra.mxu0 %v5860
    %8252 = vmatprep.subr.bf16.mxu0 %v5873
    %8253 = vmatpush1.bf16.msra.mxu0 %v5872
    %8254 = vmatprep.subr.bf16.mxu0 %v5885
    %8255 = vmatpush1.bf16.msra.mxu0 %v5884
    %8256 = vmatprep.subr.bf16.mxu0 %v5897
    %8257 = vmatpush1.bf16.msra.mxu0 %v5896
    %8258 = vmatprep.subr.bf16.mxu0 %v5909
    %8259 = vmatpush1.bf16.msra.mxu0 %v5908
    %8260 = vmatprep.subr.bf16.mxu0 %v5921
    %8261 = vmatpush1.bf16.msra.mxu0 %v5920
    %8262 = vmatprep.mubr.bf16.mxu0 %v673
    %8263 = vmatmul.mubr.bf16.gmra.mrb[0].mxu0 %v672
    %v8264 = vpop.f32.mrb[0].mxu0
    %v8265 = vadd.f32 %v8224, %v8264
    %v8266 = vpop.f32.mrb[0].mxu0
    %v8267 = vadd.f32 %v8226, %v8266
    %v8268 = vpop.f32.mrb[0].mxu0
    %v8269 = vpop.f32.mrb[0].mxu0
    %8270 = vdwg.mxu0
    %8271 = vmatprep.subr.bf16.mxu0 %v5933
    %8272 = vmatpush1.bf16.msra.mxu0 %v5932
    %8273 = vmatprep.subr.bf16.mxu0 %v5945
    %8274 = vmatpush1.bf16.msra.mxu0 %v5944
    %8275 = vmatprep.subr.bf16.mxu0 %v5957
    %8276 = vmatpush1.bf16.msra.mxu0 %v5956
    %8277 = vmatprep.subr.bf16.mxu0 %v5969
    %8278 = vmatpush1.bf16.msra.mxu0 %v5968
    %8279 = vmatprep.subr.bf16.mxu0 %v5981
    %8280 = vmatpush1.bf16.msra.mxu0 %v5980
    %8281 = vmatprep.subr.bf16.mxu0 %v5993
    %8282 = vmatpush1.bf16.msra.mxu0 %v5992
    %8283 = vmatprep.subr.bf16.mxu0 %v6005
    %8284 = vmatpush1.bf16.msra.mxu0 %v6004
    %8285 = vmatprep.subr.bf16.mxu0 %v6017
    %8286 = vmatpush1.bf16.msra.mxu0 %v6016
    %8287 = vmatprep.subr.bf16.mxu0 %v6029
    %8288 = vmatpush1.bf16.msra.mxu0 %v6028
    %8289 = vmatprep.subr.bf16.mxu0 %v6041
    %8290 = vmatpush1.bf16.msra.mxu0 %v6040
    %8291 = vmatprep.subr.bf16.mxu0 %v6053
    %8292 = vmatpush1.bf16.msra.mxu0 %v6052
    %8293 = vmatprep.subr.bf16.mxu0 %v6065
    %8294 = vmatpush1.bf16.msra.mxu0 %v6064
    %8295 = vmatprep.subr.bf16.mxu0 %v6077
    %8296 = vmatpush1.bf16.msra.mxu0 %v6076
    %8297 = vmatprep.subr.bf16.mxu0 %v6089
    %8298 = vmatpush1.bf16.msra.mxu0 %v6088
    %8299 = vmatprep.subr.bf16.mxu0 %v6101
    %8300 = vmatpush1.bf16.msra.mxu0 %v6100
    %8301 = vmatprep.subr.bf16.mxu0 %v6113
    %8302 = vmatpush1.bf16.msra.mxu0 %v6112
    %8303 = vmatprep.mubr.bf16.mxu0 %v675
    %8304 = vmatmul.mubr.bf16.gmra.mrb[0].mxu0 %v674
    %v8305 = vpop.f32.mrb[0].mxu0
    %v8306 = vadd.f32 %v8265, %v8305
    %v8307 = vpop.f32.mrb[0].mxu0
    %v8308 = vadd.f32 %v8267, %v8307
    %v8309 = vpop.f32.mrb[0].mxu0
    %v8310 = vpop.f32.mrb[0].mxu0
    %8311 = vdwg.mxu0
    %8312 = vmatprep.subr.bf16.mxu0 %v6125
    %8313 = vmatpush1.bf16.msra.mxu0 %v6124
    %8314 = vmatprep.subr.bf16.mxu0 %v6137
    %8315 = vmatpush1.bf16.msra.mxu0 %v6136
    %8316 = vmatprep.subr.bf16.mxu0 %v6149
    %8317 = vmatpush1.bf16.msra.mxu0 %v6148
    %8318 = vmatprep.subr.bf16.mxu0 %v6161
    %8319 = vmatpush1.bf16.msra.mxu0 %v6160
    %8320 = vmatprep.subr.bf16.mxu0 %v6173
    %8321 = vmatpush1.bf16.msra.mxu0 %v6172
    %8322 = vmatprep.subr.bf16.mxu0 %v6185
    %8323 = vmatpush1.bf16.msra.mxu0 %v6184
    %8324 = vmatprep.subr.bf16.mxu0 %v6197
    %8325 = vmatpush1.bf16.msra.mxu0 %v6196
    %8326 = vmatprep.subr.bf16.mxu0 %v6209
    %8327 = vmatpush1.bf16.msra.mxu0 %v6208
    %8328 = vmatprep.subr.bf16.mxu0 %v6221
    %8329 = vmatpush1.bf16.msra.mxu0 %v6220
    %8330 = vmatprep.subr.bf16.mxu0 %v6233
    %8331 = vmatpush1.bf16.msra.mxu0 %v6232
    %8332 = vmatprep.subr.bf16.mxu0 %v6245
    %8333 = vmatpush1.bf16.msra.mxu0 %v6244
    %8334 = vmatprep.subr.bf16.mxu0 %v6257
    %8335 = vmatpush1.bf16.msra.mxu0 %v6256
    %8336 = vmatprep.subr.bf16.mxu0 %v6269
    %8337 = vmatpush1.bf16.msra.mxu0 %v6268
    %8338 = vmatprep.subr.bf16.mxu0 %v6281
    %8339 = vmatpush1.bf16.msra.mxu0 %v6280
    %8340 = vmatprep.subr.bf16.mxu0 %v6293
    %8341 = vmatpush1.bf16.msra.mxu0 %v6292
    %8342 = vmatprep.subr.bf16.mxu0 %v6305
    %8343 = vmatpush1.bf16.msra.mxu0 %v6304
    %8344 = vmatprep.mubr.bf16.mxu0 %v677
    %8345 = vmatmul.mubr.bf16.gmra.mrb[0].mxu0 %v676
    %v8346 = vpop.f32.mrb[0].mxu0
    %v8347 = vadd.f32 %v8306, %v8346
    %v8348 = vpop.f32.mrb[0].mxu0
    %v8349 = vadd.f32 %v8308, %v8348
    %v8350 = vpop.f32.mrb[0].mxu0
    %v8351 = vpop.f32.mrb[0].mxu0
    %8352 = vdwg.mxu0
    %8353 = vmatprep.subr.bf16.mxu0 %v6317
    %8354 = vmatpush1.bf16.msra.mxu0 %v6316
    %8355 = vmatprep.subr.bf16.mxu0 %v6329
    %8356 = vmatpush1.bf16.msra.mxu0 %v6328
    %8357 = vmatprep.subr.bf16.mxu0 %v6341
    %8358 = vmatpush1.bf16.msra.mxu0 %v6340
    %8359 = vmatprep.subr.bf16.mxu0 %v6353
    %8360 = vmatpush1.bf16.msra.mxu0 %v6352
    %8361 = vmatprep.subr.bf16.mxu0 %v6365
    %8362 = vmatpush1.bf16.msra.mxu0 %v6364
    %8363 = vmatprep.subr.bf16.mxu0 %v6377
    %8364 = vmatpush1.bf16.msra.mxu0 %v6376
    %8365 = vmatprep.subr.bf16.mxu0 %v6389
    %8366 = vmatpush1.bf16.msra.mxu0 %v6388
    %8367 = vmatprep.subr.bf16.mxu0 %v6401
    %8368 = vmatpush1.bf16.msra.mxu0 %v6400
    %8369 = vmatprep.subr.bf16.mxu0 %v6413
    %8370 = vmatpush1.bf16.msra.mxu0 %v6412
    %8371 = vmatprep.subr.bf16.mxu0 %v6425
    %8372 = vmatpush1.bf16.msra.mxu0 %v6424
    %8373 = vmatprep.subr.bf16.mxu0 %v6437
    %8374 = vmatpush1.bf16.msra.mxu0 %v6436
    %8375 = vmatprep.subr.bf16.mxu0 %v6449
    %8376 = vmatpush1.bf16.msra.mxu0 %v6448
    %8377 = vmatprep.subr.bf16.mxu0 %v6461
    %8378 = vmatpush1.bf16.msra.mxu0 %v6460
    %8379 = vmatprep.subr.bf16.mxu0 %v6473
    %8380 = vmatpush1.bf16.msra.mxu0 %v6472
    %8381 = vmatprep.subr.bf16.mxu0 %v6485
    %8382 = vmatpush1.bf16.msra.mxu0 %v6484
    %8383 = vmatprep.subr.bf16.mxu0 %v6497
    %8384 = vmatpush1.bf16.msra.mxu0 %v6496
    %8385 = vmatprep.mubr.bf16.mxu0 %v679
    %8386 = vmatmul.mubr.bf16.gmra.mrb[0].mxu0 %v678
    %v8387 = vpop.f32.mrb[0].mxu0
    %v8388 = vadd.f32 %v8347, %v8387
    %v8389 = vpop.f32.mrb[0].mxu0
    %v8390 = vadd.f32 %v8349, %v8389
    %v8391 = vpop.f32.mrb[0].mxu0
    %v8392 = vpop.f32.mrb[0].mxu0
    %8393 = vdwg.mxu0
    %8394 = vmatprep.subr.bf16.mxu0 %v5359
    %8395 = vmatpush1.bf16.msra.mxu0 %v5358
    %8396 = vmatprep.subr.bf16.mxu0 %v5371
    %8397 = vmatpush1.bf16.msra.mxu0 %v5370
    %8398 = vmatprep.subr.bf16.mxu0 %v5383
    %8399 = vmatpush1.bf16.msra.mxu0 %v5382
    %8400 = vmatprep.subr.bf16.mxu0 %v5395
    %8401 = vmatpush1.bf16.msra.mxu0 %v5394
    %8402 = vmatprep.subr.bf16.mxu0 %v5407
    %8403 = vmatpush1.bf16.msra.mxu0 %v5406
    %8404 = vmatprep.subr.bf16.mxu0 %v5419
    %8405 = vmatpush1.bf16.msra.mxu0 %v5418
    %8406 = vmatprep.subr.bf16.mxu0 %v5431
    %8407 = vmatpush1.bf16.msra.mxu0 %v5430
    %8408 = vmatprep.subr.bf16.mxu0 %v5443
    %8409 = vmatpush1.bf16.msra.mxu0 %v5442
    %8410 = vmatprep.subr.bf16.mxu0 %v5455
    %8411 = vmatpush1.bf16.msra.mxu0 %v5454
    %8412 = vmatprep.subr.bf16.mxu0 %v5467
    %8413 = vmatpush1.bf16.msra.mxu0 %v5466
    %8414 = vmatprep.subr.bf16.mxu0 %v5479
    %8415 = vmatpush1.bf16.msra.mxu0 %v5478
    %8416 = vmatprep.subr.bf16.mxu0 %v5491
    %8417 = vmatpush1.bf16.msra.mxu0 %v5490
    %8418 = vmatprep.subr.bf16.mxu0 %v5503
    %8419 = vmatpush1.bf16.msra.mxu0 %v5502
    %8420 = vmatprep.subr.bf16.mxu0 %v5515
    %8421 = vmatpush1.bf16.msra.mxu0 %v5514
    %8422 = vmatprep.subr.bf16.mxu0 %v5527
    %8423 = vmatpush1.bf16.msra.mxu0 %v5526
    %8424 = vmatprep.subr.bf16.mxu0 %v5539
    %8425 = vmatpush1.bf16.msra.mxu0 %v5538
    %8426 = vmatprep.mubr.bf16.mxu0 %v669
    %8427 = vmatmul.mubr.bf16.gmra.mrb[0].mxu0 %v668
    %v8428 = vpop.f32.mrb[0].mxu0
    %v8429 = vadd.f32 %v1863, %v8428
    %v8430 = vpop.f32.mrb[0].mxu0
    %v8431 = vadd.f32 %v1867, %v8430
    %v8432 = vpop.f32.mrb[0].mxu0
    %v8433 = vpop.f32.mrb[0].mxu0
    %8434 = vdwg.mxu0
    %8435 = vmatprep.subr.bf16.mxu0 %v5551
    %8436 = vmatpush1.bf16.msra.mxu0 %v5550
    %8437 = vmatprep.subr.bf16.mxu0 %v5563
    %8438 = vmatpush1.bf16.msra.mxu0 %v5562
    %8439 = vmatprep.subr.bf16.mxu0 %v5575
    %8440 = vmatpush1.bf16.msra.mxu0 %v5574
    %8441 = vmatprep.subr.bf16.mxu0 %v5587
    %8442 = vmatpush1.bf16.msra.mxu0 %v5586
    %8443 = vmatprep.subr.bf16.mxu0 %v5599
    %8444 = vmatpush1.bf16.msra.mxu0 %v5598
    %8445 = vmatprep.subr.bf16.mxu0 %v5611
    %8446 = vmatpush1.bf16.msra.mxu0 %v5610
    %8447 = vmatprep.subr.bf16.mxu0 %v5623
    %8448 = vmatpush1.bf16.msra.mxu0 %v5622
    %8449 = vmatprep.subr.bf16.mxu0 %v5635
    %8450 = vmatpush1.bf16.msra.mxu0 %v5634
    %8451 = vmatprep.subr.bf16.mxu0 %v5647
    %8452 = vmatpush1.bf16.msra.mxu0 %v5646
    %8453 = vmatprep.subr.bf16.mxu0 %v5659
    %8454 = vmatpush1.bf16.msra.mxu0 %v5658
    %8455 = vmatprep.subr.bf16.mxu0 %v5671
    %8456 = vmatpush1.bf16.msra.mxu0 %v5670
    %8457 = vmatprep.subr.bf16.mxu0 %v5683
    %8458 = vmatpush1.bf16.msra.mxu0 %v5682
    %8459 = vmatprep.subr.bf16.mxu0 %v5695
    %8460 = vmatpush1.bf16.msra.mxu0 %v5694
    %8461 = vmatprep.subr.bf16.mxu0 %v5707
    %8462 = vmatpush1.bf16.msra.mxu0 %v5706
    %8463 = vmatprep.subr.bf16.mxu0 %v5719
    %8464 = vmatpush1.bf16.msra.mxu0 %v5718
    %8465 = vmatprep.subr.bf16.mxu0 %v5731
    %8466 = vmatpush1.bf16.msra.mxu0 %v5730
    %8467 = vmatprep.mubr.bf16.mxu0 %v671
    %8468 = vmatmul.mubr.bf16.gmra.mrb[0].mxu0 %v670
    %v8469 = vpop.f32.mrb[0].mxu0
    %v8470 = vadd.f32 %v8429, %v8469
    %v8471 = vpop.f32.mrb[0].mxu0
    %v8472 = vadd.f32 %v8431, %v8471
    %v8473 = vpop.f32.mrb[0].mxu0
    %v8474 = vpop.f32.mrb[0].mxu0
    %8475 = vdwg.mxu0
    %8476 = vmatprep.subr.bf16.mxu0 %v5743
    %8477 = vmatpush1.bf16.msra.mxu0 %v5742
    %8478 = vmatprep.subr.bf16.mxu0 %v5755
    %8479 = vmatpush1.bf16.msra.mxu0 %v5754
    %8480 = vmatprep.subr.bf16.mxu0 %v5767
    %8481 = vmatpush1.bf16.msra.mxu0 %v5766
    %8482 = vmatprep.subr.bf16.mxu0 %v5779
    %8483 = vmatpush1.bf16.msra.mxu0 %v5778
    %8484 = vmatprep.subr.bf16.mxu0 %v5791
    %8485 = vmatpush1.bf16.msra.mxu0 %v5790
    %8486 = vmatprep.subr.bf16.mxu0 %v5803
    %8487 = vmatpush1.bf16.msra.mxu0 %v5802
    %8488 = vmatprep.subr.bf16.mxu0 %v5815
    %8489 = vmatpush1.bf16.msra.mxu0 %v5814
    %8490 = vmatprep.subr.bf16.mxu0 %v5827
    %8491 = vmatpush1.bf16.msra.mxu0 %v5826
    %8492 = vmatprep.subr.bf16.mxu0 %v5839
    %8493 = vmatpush1.bf16.msra.mxu0 %v5838
    %8494 = vmatprep.subr.bf16.mxu0 %v5851
    %8495 = vmatpush1.bf16.msra.mxu0 %v5850
    %8496 = vmatprep.subr.bf16.mxu0 %v5863
    %8497 = vmatpush1.bf16.msra.mxu0 %v5862
    %8498 = vmatprep.subr.bf16.mxu0 %v5875
    %8499 = vmatpush1.bf16.msra.mxu0 %v5874
    %8500 = vmatprep.subr.bf16.mxu0 %v5887
    %8501 = vmatpush1.bf16.msra.mxu0 %v5886
    %8502 = vmatprep.subr.bf16.mxu0 %v5899
    %8503 = vmatpush1.bf16.msra.mxu0 %v5898
    %8504 = vmatprep.subr.bf16.mxu0 %v5911
    %8505 = vmatpush1.bf16.msra.mxu0 %v5910
    %8506 = vmatprep.subr.bf16.mxu0 %v5923
    %8507 = vmatpush1.bf16.msra.mxu0 %v5922
    %8508 = vmatprep.mubr.bf16.mxu0 %v673
    %8509 = vmatmul.mubr.bf16.gmra.mrb[0].mxu0 %v672
    %v8510 = vpop.f32.mrb[0].mxu0
    %v8511 = vadd.f32 %v8470, %v8510
    %v8512 = vpop.f32.mrb[0].mxu0
    %v8513 = vadd.f32 %v8472, %v8512
    %v8514 = vpop.f32.mrb[0].mxu0
    %v8515 = vpop.f32.mrb[0].mxu0
    %8516 = vdwg.mxu0
    %8517 = vmatprep.subr.bf16.mxu0 %v5935
    %8518 = vmatpush1.bf16.msra.mxu0 %v5934
    %8519 = vmatprep.subr.bf16.mxu0 %v5947
    %8520 = vmatpush1.bf16.msra.mxu0 %v5946
    %8521 = vmatprep.subr.bf16.mxu0 %v5959
    %8522 = vmatpush1.bf16.msra.mxu0 %v5958
    %8523 = vmatprep.subr.bf16.mxu0 %v5971
    %8524 = vmatpush1.bf16.msra.mxu0 %v5970
    %8525 = vmatprep.subr.bf16.mxu0 %v5983
    %8526 = vmatpush1.bf16.msra.mxu0 %v5982
    %8527 = vmatprep.subr.bf16.mxu0 %v5995
    %8528 = vmatpush1.bf16.msra.mxu0 %v5994
    %8529 = vmatprep.subr.bf16.mxu0 %v6007
    %8530 = vmatpush1.bf16.msra.mxu0 %v6006
    %8531 = vmatprep.subr.bf16.mxu0 %v6019
    %8532 = vmatpush1.bf16.msra.mxu0 %v6018
    %8533 = vmatprep.subr.bf16.mxu0 %v6031
    %8534 = vmatpush1.bf16.msra.mxu0 %v6030
    %8535 = vmatprep.subr.bf16.mxu0 %v6043
    %8536 = vmatpush1.bf16.msra.mxu0 %v6042
    %8537 = vmatprep.subr.bf16.mxu0 %v6055
    %8538 = vmatpush1.bf16.msra.mxu0 %v6054
    %8539 = vmatprep.subr.bf16.mxu0 %v6067
    %8540 = vmatpush1.bf16.msra.mxu0 %v6066
    %8541 = vmatprep.subr.bf16.mxu0 %v6079
    %8542 = vmatpush1.bf16.msra.mxu0 %v6078
    %8543 = vmatprep.subr.bf16.mxu0 %v6091
    %8544 = vmatpush1.bf16.msra.mxu0 %v6090
    %8545 = vmatprep.subr.bf16.mxu0 %v6103
    %8546 = vmatpush1.bf16.msra.mxu0 %v6102
    %8547 = vmatprep.subr.bf16.mxu0 %v6115
    %8548 = vmatpush1.bf16.msra.mxu0 %v6114
    %8549 = vmatprep.mubr.bf16.mxu0 %v675
    %8550 = vmatmul.mubr.bf16.gmra.mrb[0].mxu0 %v674
    %v8551 = vpop.f32.mrb[0].mxu0
    %v8552 = vadd.f32 %v8511, %v8551
    %v8553 = vpop.f32.mrb[0].mxu0
    %v8554 = vadd.f32 %v8513, %v8553
    %v8555 = vpop.f32.mrb[0].mxu0
    %v8556 = vpop.f32.mrb[0].mxu0
    %8557 = vdwg.mxu0
    %8558 = vmatprep.subr.bf16.mxu0 %v6127
    %8559 = vmatpush1.bf16.msra.mxu0 %v6126
    %8560 = vmatprep.subr.bf16.mxu0 %v6139
    %8561 = vmatpush1.bf16.msra.mxu0 %v6138
    %8562 = vmatprep.subr.bf16.mxu0 %v6151
    %8563 = vmatpush1.bf16.msra.mxu0 %v6150
    %8564 = vmatprep.subr.bf16.mxu0 %v6163
    %8565 = vmatpush1.bf16.msra.mxu0 %v6162
    %8566 = vmatprep.subr.bf16.mxu0 %v6175
    %8567 = vmatpush1.bf16.msra.mxu0 %v6174
    %8568 = vmatprep.subr.bf16.mxu0 %v6187
    %8569 = vmatpush1.bf16.msra.mxu0 %v6186
    %8570 = vmatprep.subr.bf16.mxu0 %v6199
    %8571 = vmatpush1.bf16.msra.mxu0 %v6198
    %8572 = vmatprep.subr.bf16.mxu0 %v6211
    %8573 = vmatpush1.bf16.msra.mxu0 %v6210
    %8574 = vmatprep.subr.bf16.mxu0 %v6223
    %8575 = vmatpush1.bf16.msra.mxu0 %v6222
    %8576 = vmatprep.subr.bf16.mxu0 %v6235
    %8577 = vmatpush1.bf16.msra.mxu0 %v6234
    %8578 = vmatprep.subr.bf16.mxu0 %v6247
    %8579 = vmatpush1.bf16.msra.mxu0 %v6246
    %8580 = vmatprep.subr.bf16.mxu0 %v6259
    %8581 = vmatpush1.bf16.msra.mxu0 %v6258
    %8582 = vmatprep.subr.bf16.mxu0 %v6271
    %8583 = vmatpush1.bf16.msra.mxu0 %v6270
    %8584 = vmatprep.subr.bf16.mxu0 %v6283
    %8585 = vmatpush1.bf16.msra.mxu0 %v6282
    %8586 = vmatprep.subr.bf16.mxu0 %v6295
    %8587 = vmatpush1.bf16.msra.mxu0 %v6294
    %8588 = vmatprep.subr.bf16.mxu0 %v6307
    %8589 = vmatpush1.bf16.msra.mxu0 %v6306
    %8590 = vmatprep.mubr.bf16.mxu0 %v677
    %8591 = vmatmul.mubr.bf16.gmra.mrb[0].mxu0 %v676
    %v8592 = vpop.f32.mrb[0].mxu0
    %v8593 = vadd.f32 %v8552, %v8592
    %v8594 = vpop.f32.mrb[0].mxu0
    %v8595 = vadd.f32 %v8554, %v8594
    %v8596 = vpop.f32.mrb[0].mxu0
    %v8597 = vpop.f32.mrb[0].mxu0
    %8598 = vdwg.mxu0
    %8599 = vmatprep.subr.bf16.mxu0 %v6319
    %8600 = vmatpush1.bf16.msra.mxu0 %v6318
    %8601 = vmatprep.subr.bf16.mxu0 %v6331
    %8602 = vmatpush1.bf16.msra.mxu0 %v6330
    %8603 = vmatprep.subr.bf16.mxu0 %v6343
    %8604 = vmatpush1.bf16.msra.mxu0 %v6342
    %8605 = vmatprep.subr.bf16.mxu0 %v6355
    %8606 = vmatpush1.bf16.msra.mxu0 %v6354
    %8607 = vmatprep.subr.bf16.mxu0 %v6367
    %8608 = vmatpush1.bf16.msra.mxu0 %v6366
    %8609 = vmatprep.subr.bf16.mxu0 %v6379
    %8610 = vmatpush1.bf16.msra.mxu0 %v6378
    %8611 = vmatprep.subr.bf16.mxu0 %v6391
    %8612 = vmatpush1.bf16.msra.mxu0 %v6390
    %8613 = vmatprep.subr.bf16.mxu0 %v6403
    %8614 = vmatpush1.bf16.msra.mxu0 %v6402
    %8615 = vmatprep.subr.bf16.mxu0 %v6415
    %8616 = vmatpush1.bf16.msra.mxu0 %v6414
    %8617 = vmatprep.subr.bf16.mxu0 %v6427
    %8618 = vmatpush1.bf16.msra.mxu0 %v6426
    %8619 = vmatprep.subr.bf16.mxu0 %v6439
    %8620 = vmatpush1.bf16.msra.mxu0 %v6438
    %8621 = vmatprep.subr.bf16.mxu0 %v6451
    %8622 = vmatpush1.bf16.msra.mxu0 %v6450
    %8623 = vmatprep.subr.bf16.mxu0 %v6463
    %8624 = vmatpush1.bf16.msra.mxu0 %v6462
    %8625 = vmatprep.subr.bf16.mxu0 %v6475
    %8626 = vmatpush1.bf16.msra.mxu0 %v6474
    %8627 = vmatprep.subr.bf16.mxu0 %v6487
    %8628 = vmatpush1.bf16.msra.mxu0 %v6486
    %8629 = vmatprep.subr.bf16.mxu0 %v6499
    %8630 = vmatpush1.bf16.msra.mxu0 %v6498
    %8631 = vmatprep.mubr.bf16.mxu0 %v679
    %8632 = vmatmul.mubr.bf16.gmra.mrb[0].mxu0 %v678
    %v8633 = vpop.f32.mrb[0].mxu0
    %v8634 = vadd.f32 %v8593, %v8633
    %v8635 = vpop.f32.mrb[0].mxu0
    %v8636 = vadd.f32 %v8595, %v8635
    %v8637 = vpop.f32.mrb[0].mxu0
    %v8638 = vpop.f32.mrb[0].mxu0
    %8639 = vdwg.mxu0
    %8640 = vmatprep.subr.bf16.mxu0 %v5361
    %8641 = vmatpush1.bf16.msra.mxu0 %v5360
    %8642 = vmatprep.subr.bf16.mxu0 %v5373
    %8643 = vmatpush1.bf16.msra.mxu0 %v5372
    %8644 = vmatprep.subr.bf16.mxu0 %v5385
    %8645 = vmatpush1.bf16.msra.mxu0 %v5384
    %8646 = vmatprep.subr.bf16.mxu0 %v5397
    %8647 = vmatpush1.bf16.msra.mxu0 %v5396
    %8648 = vmatprep.subr.bf16.mxu0 %v5409
    %8649 = vmatpush1.bf16.msra.mxu0 %v5408
    %8650 = vmatprep.subr.bf16.mxu0 %v5421
    %8651 = vmatpush1.bf16.msra.mxu0 %v5420
    %8652 = vmatprep.subr.bf16.mxu0 %v5433
    %8653 = vmatpush1.bf16.msra.mxu0 %v5432
    %8654 = vmatprep.subr.bf16.mxu0 %v5445
    %8655 = vmatpush1.bf16.msra.mxu0 %v5444
    %8656 = vmatprep.subr.bf16.mxu0 %v5457
    %8657 = vmatpush1.bf16.msra.mxu0 %v5456
    %8658 = vmatprep.subr.bf16.mxu0 %v5469
    %8659 = vmatpush1.bf16.msra.mxu0 %v5468
    %8660 = vmatprep.subr.bf16.mxu0 %v5481
    %8661 = vmatpush1.bf16.msra.mxu0 %v5480
    %8662 = vmatprep.subr.bf16.mxu0 %v5493
    %8663 = vmatpush1.bf16.msra.mxu0 %v5492
    %8664 = vmatprep.subr.bf16.mxu0 %v5505
    %8665 = vmatpush1.bf16.msra.mxu0 %v5504
    %8666 = vmatprep.subr.bf16.mxu0 %v5517
    %8667 = vmatpush1.bf16.msra.mxu0 %v5516
    %8668 = vmatprep.subr.bf16.mxu0 %v5529
    %8669 = vmatpush1.bf16.msra.mxu0 %v5528
    %8670 = vmatprep.subr.bf16.mxu0 %v5541
    %8671 = vmatpush1.bf16.msra.mxu0 %v5540
    %8672 = vmatprep.mubr.bf16.mxu0 %v669
    %8673 = vmatmul.mubr.bf16.gmra.mrb[0].mxu0 %v668
    %v8674 = vpop.f32.mrb[0].mxu0
    %v8675 = vadd.f32 %v1871, %v8674
    %v8676 = vpop.f32.mrb[0].mxu0
    %v8677 = vadd.f32 %v1875, %v8676
    %v8678 = vpop.f32.mrb[0].mxu0
    %v8679 = vpop.f32.mrb[0].mxu0
    %8680 = vdwg.mxu0
    %8681 = vmatprep.subr.bf16.mxu0 %v5553
    %8682 = vmatpush1.bf16.msra.mxu0 %v5552
    %8683 = vmatprep.subr.bf16.mxu0 %v5565
    %8684 = vmatpush1.bf16.msra.mxu0 %v5564
    %8685 = vmatprep.subr.bf16.mxu0 %v5577
    %8686 = vmatpush1.bf16.msra.mxu0 %v5576
    %8687 = vmatprep.subr.bf16.mxu0 %v5589
    %8688 = vmatpush1.bf16.msra.mxu0 %v5588
    %8689 = vmatprep.subr.bf16.mxu0 %v5601
    %8690 = vmatpush1.bf16.msra.mxu0 %v5600
    %8691 = vmatprep.subr.bf16.mxu0 %v5613
    %8692 = vmatpush1.bf16.msra.mxu0 %v5612
    %8693 = vmatprep.subr.bf16.mxu0 %v5625
    %8694 = vmatpush1.bf16.msra.mxu0 %v5624
    %8695 = vmatprep.subr.bf16.mxu0 %v5637
    %8696 = vmatpush1.bf16.msra.mxu0 %v5636
    %8697 = vmatprep.subr.bf16.mxu0 %v5649
    %8698 = vmatpush1.bf16.msra.mxu0 %v5648
    %8699 = vmatprep.subr.bf16.mxu0 %v5661
    %8700 = vmatpush1.bf16.msra.mxu0 %v5660
    %8701 = vmatprep.subr.bf16.mxu0 %v5673
    %8702 = vmatpush1.bf16.msra.mxu0 %v5672
    %8703 = vmatprep.subr.bf16.mxu0 %v5685
    %8704 = vmatpush1.bf16.msra.mxu0 %v5684
    %8705 = vmatprep.subr.bf16.mxu0 %v5697
    %8706 = vmatpush1.bf16.msra.mxu0 %v5696
    %8707 = vmatprep.subr.bf16.mxu0 %v5709
    %8708 = vmatpush1.bf16.msra.mxu0 %v5708
    %8709 = vmatprep.subr.bf16.mxu0 %v5721
    %8710 = vmatpush1.bf16.msra.mxu0 %v5720
    %8711 = vmatprep.subr.bf16.mxu0 %v5733
    %8712 = vmatpush1.bf16.msra.mxu0 %v5732
    %8713 = vmatprep.mubr.bf16.mxu0 %v671
    %8714 = vmatmul.mubr.bf16.gmra.mrb[0].mxu0 %v670
    %v8715 = vpop.f32.mrb[0].mxu0
    %v8716 = vadd.f32 %v8675, %v8715
    %v8717 = vpop.f32.mrb[0].mxu0
    %v8718 = vadd.f32 %v8677, %v8717
    %v8719 = vpop.f32.mrb[0].mxu0
    %v8720 = vpop.f32.mrb[0].mxu0
    %8721 = vdwg.mxu0
    %8722 = vmatprep.subr.bf16.mxu0 %v5745
    %8723 = vmatpush1.bf16.msra.mxu0 %v5744
    %8724 = vmatprep.subr.bf16.mxu0 %v5757
    %8725 = vmatpush1.bf16.msra.mxu0 %v5756
    %8726 = vmatprep.subr.bf16.mxu0 %v5769
    %8727 = vmatpush1.bf16.msra.mxu0 %v5768
    %8728 = vmatprep.subr.bf16.mxu0 %v5781
    %8729 = vmatpush1.bf16.msra.mxu0 %v5780
    %8730 = vmatprep.subr.bf16.mxu0 %v5793
    %8731 = vmatpush1.bf16.msra.mxu0 %v5792
    %8732 = vmatprep.subr.bf16.mxu0 %v5805
    %8733 = vmatpush1.bf16.msra.mxu0 %v5804
    %8734 = vmatprep.subr.bf16.mxu0 %v5817
    %8735 = vmatpush1.bf16.msra.mxu0 %v5816
    %8736 = vmatprep.subr.bf16.mxu0 %v5829
    %8737 = vmatpush1.bf16.msra.mxu0 %v5828
    %8738 = vmatprep.subr.bf16.mxu0 %v5841
    %8739 = vmatpush1.bf16.msra.mxu0 %v5840
    %8740 = vmatprep.subr.bf16.mxu0 %v5853
    %8741 = vmatpush1.bf16.msra.mxu0 %v5852
    %8742 = vmatprep.subr.bf16.mxu0 %v5865
    %8743 = vmatpush1.bf16.msra.mxu0 %v5864
    %8744 = vmatprep.subr.bf16.mxu0 %v5877
    %8745 = vmatpush1.bf16.msra.mxu0 %v5876
    %8746 = vmatprep.subr.bf16.mxu0 %v5889
    %8747 = vmatpush1.bf16.msra.mxu0 %v5888
    %8748 = vmatprep.subr.bf16.mxu0 %v5901
    %8749 = vmatpush1.bf16.msra.mxu0 %v5900
    %8750 = vmatprep.subr.bf16.mxu0 %v5913
    %8751 = vmatpush1.bf16.msra.mxu0 %v5912
    %8752 = vmatprep.subr.bf16.mxu0 %v5925
    %8753 = vmatpush1.bf16.msra.mxu0 %v5924
    %8754 = vmatprep.mubr.bf16.mxu0 %v673
    %8755 = vmatmul.mubr.bf16.gmra.mrb[0].mxu0 %v672
    %v8756 = vpop.f32.mrb[0].mxu0
    %v8757 = vadd.f32 %v8716, %v8756
    %v8758 = vpop.f32.mrb[0].mxu0
    %v8759 = vadd.f32 %v8718, %v8758
    %v8760 = vpop.f32.mrb[0].mxu0
    %v8761 = vpop.f32.mrb[0].mxu0
    %8762 = vdwg.mxu0
    %8763 = vmatprep.subr.bf16.mxu0 %v5937
    %8764 = vmatpush1.bf16.msra.mxu0 %v5936
    %8765 = vmatprep.subr.bf16.mxu0 %v5949
    %8766 = vmatpush1.bf16.msra.mxu0 %v5948
    %8767 = vmatprep.subr.bf16.mxu0 %v5961
    %8768 = vmatpush1.bf16.msra.mxu0 %v5960
    %8769 = vmatprep.subr.bf16.mxu0 %v5973
    %8770 = vmatpush1.bf16.msra.mxu0 %v5972
    %8771 = vmatprep.subr.bf16.mxu0 %v5985
    %8772 = vmatpush1.bf16.msra.mxu0 %v5984
    %8773 = vmatprep.subr.bf16.mxu0 %v5997
    %8774 = vmatpush1.bf16.msra.mxu0 %v5996
    %8775 = vmatprep.subr.bf16.mxu0 %v6009
    %8776 = vmatpush1.bf16.msra.mxu0 %v6008
    %8777 = vmatprep.subr.bf16.mxu0 %v6021
    %8778 = vmatpush1.bf16.msra.mxu0 %v6020
    %8779 = vmatprep.subr.bf16.mxu0 %v6033
    %8780 = vmatpush1.bf16.msra.mxu0 %v6032
    %8781 = vmatprep.subr.bf16.mxu0 %v6045
    %8782 = vmatpush1.bf16.msra.mxu0 %v6044
    %8783 = vmatprep.subr.bf16.mxu0 %v6057
    %8784 = vmatpush1.bf16.msra.mxu0 %v6056
    %8785 = vmatprep.subr.bf16.mxu0 %v6069
    %8786 = vmatpush1.bf16.msra.mxu0 %v6068
    %8787 = vmatprep.subr.bf16.mxu0 %v6081
    %8788 = vmatpush1.bf16.msra.mxu0 %v6080
    %8789 = vmatprep.subr.bf16.mxu0 %v6093
    %8790 = vmatpush1.bf16.msra.mxu0 %v6092
    %8791 = vmatprep.subr.bf16.mxu0 %v6105
    %8792 = vmatpush1.bf16.msra.mxu0 %v6104
    %8793 = vmatprep.subr.bf16.mxu0 %v6117
    %8794 = vmatpush1.bf16.msra.mxu0 %v6116
    %8795 = vmatprep.mubr.bf16.mxu0 %v675
    %8796 = vmatmul.mubr.bf16.gmra.mrb[0].mxu0 %v674
    %v8797 = vpop.f32.mrb[0].mxu0
    %v8798 = vadd.f32 %v8757, %v8797
    %v8799 = vpop.f32.mrb[0].mxu0
    %v8800 = vadd.f32 %v8759, %v8799
    %v8801 = vpop.f32.mrb[0].mxu0
    %v8802 = vpop.f32.mrb[0].mxu0
    %8803 = vdwg.mxu0
    %8804 = vmatprep.subr.bf16.mxu0 %v6129
    %8805 = vmatpush1.bf16.msra.mxu0 %v6128
    %8806 = vmatprep.subr.bf16.mxu0 %v6141
    %8807 = vmatpush1.bf16.msra.mxu0 %v6140
    %8808 = vmatprep.subr.bf16.mxu0 %v6153
    %8809 = vmatpush1.bf16.msra.mxu0 %v6152
    %8810 = vmatprep.subr.bf16.mxu0 %v6165
    %8811 = vmatpush1.bf16.msra.mxu0 %v6164
    %8812 = vmatprep.subr.bf16.mxu0 %v6177
    %8813 = vmatpush1.bf16.msra.mxu0 %v6176
    %8814 = vmatprep.subr.bf16.mxu0 %v6189
    %8815 = vmatpush1.bf16.msra.mxu0 %v6188
    %8816 = vmatprep.subr.bf16.mxu0 %v6201
    %8817 = vmatpush1.bf16.msra.mxu0 %v6200
    %8818 = vmatprep.subr.bf16.mxu0 %v6213
    %8819 = vmatpush1.bf16.msra.mxu0 %v6212
    %8820 = vmatprep.subr.bf16.mxu0 %v6225
    %8821 = vmatpush1.bf16.msra.mxu0 %v6224
    %8822 = vmatprep.subr.bf16.mxu0 %v6237
    %8823 = vmatpush1.bf16.msra.mxu0 %v6236
    %8824 = vmatprep.subr.bf16.mxu0 %v6249
    %8825 = vmatpush1.bf16.msra.mxu0 %v6248
    %8826 = vmatprep.subr.bf16.mxu0 %v6261
    %8827 = vmatpush1.bf16.msra.mxu0 %v6260
    %8828 = vmatprep.subr.bf16.mxu0 %v6273
    %8829 = vmatpush1.bf16.msra.mxu0 %v6272
    %8830 = vmatprep.subr.bf16.mxu0 %v6285
    %8831 = vmatpush1.bf16.msra.mxu0 %v6284
    %8832 = vmatprep.subr.bf16.mxu0 %v6297
    %8833 = vmatpush1.bf16.msra.mxu0 %v6296
    %8834 = vmatprep.subr.bf16.mxu0 %v6309
    %8835 = vmatpush1.bf16.msra.mxu0 %v6308
    %8836 = vmatprep.mubr.bf16.mxu0 %v677
    %8837 = vmatmul.mubr.bf16.gmra.mrb[0].mxu0 %v676
    %v8838 = vpop.f32.mrb[0].mxu0
    %v8839 = vadd.f32 %v8798, %v8838
    %v8840 = vpop.f32.mrb[0].mxu0
    %v8841 = vadd.f32 %v8800, %v8840
    %v8842 = vpop.f32.mrb[0].mxu0
    %v8843 = vpop.f32.mrb[0].mxu0
    %8844 = vdwg.mxu0
    %8845 = vmatprep.subr.bf16.mxu0 %v6321
    %8846 = vmatpush1.bf16.msra.mxu0 %v6320
    %8847 = vmatprep.subr.bf16.mxu0 %v6333
    %8848 = vmatpush1.bf16.msra.mxu0 %v6332
    %8849 = vmatprep.subr.bf16.mxu0 %v6345
    %8850 = vmatpush1.bf16.msra.mxu0 %v6344
    %8851 = vmatprep.subr.bf16.mxu0 %v6357
    %8852 = vmatpush1.bf16.msra.mxu0 %v6356
    %8853 = vmatprep.subr.bf16.mxu0 %v6369
    %8854 = vmatpush1.bf16.msra.mxu0 %v6368
    %8855 = vmatprep.subr.bf16.mxu0 %v6381
    %8856 = vmatpush1.bf16.msra.mxu0 %v6380
    %8857 = vmatprep.subr.bf16.mxu0 %v6393
    %8858 = vmatpush1.bf16.msra.mxu0 %v6392
    %8859 = vmatprep.subr.bf16.mxu0 %v6405
    %8860 = vmatpush1.bf16.msra.mxu0 %v6404
    %8861 = vmatprep.subr.bf16.mxu0 %v6417
    %8862 = vmatpush1.bf16.msra.mxu0 %v6416
    %8863 = vmatprep.subr.bf16.mxu0 %v6429
    %8864 = vmatpush1.bf16.msra.mxu0 %v6428
    %8865 = vmatprep.subr.bf16.mxu0 %v6441
    %8866 = vmatpush1.bf16.msra.mxu0 %v6440
    %8867 = vmatprep.subr.bf16.mxu0 %v6453
    %8868 = vmatpush1.bf16.msra.mxu0 %v6452
    %8869 = vmatprep.subr.bf16.mxu0 %v6465
    %8870 = vmatpush1.bf16.msra.mxu0 %v6464
    %8871 = vmatprep.subr.bf16.mxu0 %v6477
    %8872 = vmatpush1.bf16.msra.mxu0 %v6476
    %8873 = vmatprep.subr.bf16.mxu0 %v6489
    %8874 = vmatpush1.bf16.msra.mxu0 %v6488
    %8875 = vmatprep.subr.bf16.mxu0 %v6501
    %8876 = vmatpush1.bf16.msra.mxu0 %v6500
    %8877 = vmatprep.mubr.bf16.mxu0 %v679
    %8878 = vmatmul.mubr.bf16.gmra.mrb[0].mxu0 %v678
    %v8879 = vpop.f32.mrb[0].mxu0
    %v8880 = vadd.f32 %v8839, %v8879
    %v8881 = vpop.f32.mrb[0].mxu0
    %v8882 = vadd.f32 %v8841, %v8881
    %v8883 = vpop.f32.mrb[0].mxu0
    %v8884 = vpop.f32.mrb[0].mxu0
    %8885 = vdwg.mxu0
    %8886 = vmatprep.subr.bf16.mxu0 %v5363
    %8887 = vmatpush1.bf16.msra.mxu0 %v5362
    %8888 = vmatprep.subr.bf16.mxu0 %v5375
    %8889 = vmatpush1.bf16.msra.mxu0 %v5374
    %8890 = vmatprep.subr.bf16.mxu0 %v5387
    %8891 = vmatpush1.bf16.msra.mxu0 %v5386
    %8892 = vmatprep.subr.bf16.mxu0 %v5399
    %8893 = vmatpush1.bf16.msra.mxu0 %v5398
    %8894 = vmatprep.subr.bf16.mxu0 %v5411
    %8895 = vmatpush1.bf16.msra.mxu0 %v5410
    %8896 = vmatprep.subr.bf16.mxu0 %v5423
    %8897 = vmatpush1.bf16.msra.mxu0 %v5422
    %8898 = vmatprep.subr.bf16.mxu0 %v5435
    %8899 = vmatpush1.bf16.msra.mxu0 %v5434
    %8900 = vmatprep.subr.bf16.mxu0 %v5447
    %8901 = vmatpush1.bf16.msra.mxu0 %v5446
    %8902 = vmatprep.subr.bf16.mxu0 %v5459
    %8903 = vmatpush1.bf16.msra.mxu0 %v5458
    %8904 = vmatprep.subr.bf16.mxu0 %v5471
    %8905 = vmatpush1.bf16.msra.mxu0 %v5470
    %8906 = vmatprep.subr.bf16.mxu0 %v5483
    %8907 = vmatpush1.bf16.msra.mxu0 %v5482
    %8908 = vmatprep.subr.bf16.mxu0 %v5495
    %8909 = vmatpush1.bf16.msra.mxu0 %v5494
    %8910 = vmatprep.subr.bf16.mxu0 %v5507
    %8911 = vmatpush1.bf16.msra.mxu0 %v5506
    %8912 = vmatprep.subr.bf16.mxu0 %v5519
    %8913 = vmatpush1.bf16.msra.mxu0 %v5518
    %8914 = vmatprep.subr.bf16.mxu0 %v5531
    %8915 = vmatpush1.bf16.msra.mxu0 %v5530
    %8916 = vmatprep.subr.bf16.mxu0 %v5543
    %8917 = vmatpush1.bf16.msra.mxu0 %v5542
    %8918 = vmatprep.mubr.bf16.mxu0 %v669
    %8919 = vmatmul.mubr.bf16.gmra.mrb[0].mxu0 %v668
    %v8920 = vpop.f32.mrb[0].mxu0
    %v8921 = vadd.f32 %v1879, %v8920
    %v8922 = vpop.f32.mrb[0].mxu0
    %v8923 = vadd.f32 %v1883, %v8922
    %v8924 = vpop.f32.mrb[0].mxu0
    %v8925 = vpop.f32.mrb[0].mxu0
    %8926 = vdwg.mxu0
    %8927 = vmatprep.subr.bf16.mxu0 %v5555
    %8928 = vmatpush1.bf16.msra.mxu0 %v5554
    %8929 = vmatprep.subr.bf16.mxu0 %v5567
    %8930 = vmatpush1.bf16.msra.mxu0 %v5566
    %8931 = vmatprep.subr.bf16.mxu0 %v5579
    %8932 = vmatpush1.bf16.msra.mxu0 %v5578
    %8933 = vmatprep.subr.bf16.mxu0 %v5591
    %8934 = vmatpush1.bf16.msra.mxu0 %v5590
    %8935 = vmatprep.subr.bf16.mxu0 %v5603
    %8936 = vmatpush1.bf16.msra.mxu0 %v5602
    %8937 = vmatprep.subr.bf16.mxu0 %v5615
    %8938 = vmatpush1.bf16.msra.mxu0 %v5614
    %8939 = vmatprep.subr.bf16.mxu0 %v5627
    %8940 = vmatpush1.bf16.msra.mxu0 %v5626
    %8941 = vmatprep.subr.bf16.mxu0 %v5639
    %8942 = vmatpush1.bf16.msra.mxu0 %v5638
    %8943 = vmatprep.subr.bf16.mxu0 %v5651
    %8944 = vmatpush1.bf16.msra.mxu0 %v5650
    %8945 = vmatprep.subr.bf16.mxu0 %v5663
    %8946 = vmatpush1.bf16.msra.mxu0 %v5662
    %8947 = vmatprep.subr.bf16.mxu0 %v5675
    %8948 = vmatpush1.bf16.msra.mxu0 %v5674
    %8949 = vmatprep.subr.bf16.mxu0 %v5687
    %8950 = vmatpush1.bf16.msra.mxu0 %v5686
    %8951 = vmatprep.subr.bf16.mxu0 %v5699
    %8952 = vmatpush1.bf16.msra.mxu0 %v5698
    %8953 = vmatprep.subr.bf16.mxu0 %v5711
    %8954 = vmatpush1.bf16.msra.mxu0 %v5710
    %8955 = vmatprep.subr.bf16.mxu0 %v5723
    %8956 = vmatpush1.bf16.msra.mxu0 %v5722
    %8957 = vmatprep.subr.bf16.mxu0 %v5735
    %8958 = vmatpush1.bf16.msra.mxu0 %v5734
    %8959 = vmatprep.mubr.bf16.mxu0 %v671
    %8960 = vmatmul.mubr.bf16.gmra.mrb[0].mxu0 %v670
    %v8961 = vpop.f32.mrb[0].mxu0
    %v8962 = vadd.f32 %v8921, %v8961
    %v8963 = vpop.f32.mrb[0].mxu0
    %v8964 = vadd.f32 %v8923, %v8963
    %v8965 = vpop.f32.mrb[0].mxu0
    %v8966 = vpop.f32.mrb[0].mxu0
    %8967 = vdwg.mxu0
    %8968 = vmatprep.subr.bf16.mxu0 %v5747
    %8969 = vmatpush1.bf16.msra.mxu0 %v5746
    %8970 = vmatprep.subr.bf16.mxu0 %v5759
    %8971 = vmatpush1.bf16.msra.mxu0 %v5758
    %8972 = vmatprep.subr.bf16.mxu0 %v5771
    %8973 = vmatpush1.bf16.msra.mxu0 %v5770
    %8974 = vmatprep.subr.bf16.mxu0 %v5783
    %8975 = vmatpush1.bf16.msra.mxu0 %v5782
    %8976 = vmatprep.subr.bf16.mxu0 %v5795
    %8977 = vmatpush1.bf16.msra.mxu0 %v5794
    %8978 = vmatprep.subr.bf16.mxu0 %v5807
    %8979 = vmatpush1.bf16.msra.mxu0 %v5806
    %8980 = vmatprep.subr.bf16.mxu0 %v5819
    %8981 = vmatpush1.bf16.msra.mxu0 %v5818
    %8982 = vmatprep.subr.bf16.mxu0 %v5831
    %8983 = vmatpush1.bf16.msra.mxu0 %v5830
    %8984 = vmatprep.subr.bf16.mxu0 %v5843
    %8985 = vmatpush1.bf16.msra.mxu0 %v5842
    %8986 = vmatprep.subr.bf16.mxu0 %v5855
    %8987 = vmatpush1.bf16.msra.mxu0 %v5854
    %8988 = vmatprep.subr.bf16.mxu0 %v5867
    %8989 = vmatpush1.bf16.msra.mxu0 %v5866
    %8990 = vmatprep.subr.bf16.mxu0 %v5879
    %8991 = vmatpush1.bf16.msra.mxu0 %v5878
    %8992 = vmatprep.subr.bf16.mxu0 %v5891
    %8993 = vmatpush1.bf16.msra.mxu0 %v5890
    %8994 = vmatprep.subr.bf16.mxu0 %v5903
    %8995 = vmatpush1.bf16.msra.mxu0 %v5902
    %8996 = vmatprep.subr.bf16.mxu0 %v5915
    %8997 = vmatpush1.bf16.msra.mxu0 %v5914
    %8998 = vmatprep.subr.bf16.mxu0 %v5927
    %8999 = vmatpush1.bf16.msra.mxu0 %v5926
    %9000 = vmatprep.mubr.bf16.mxu0 %v673
    %9001 = vmatmul.mubr.bf16.gmra.mrb[0].mxu0 %v672
    %v9002 = vpop.f32.mrb[0].mxu0
    %v9003 = vadd.f32 %v8962, %v9002
    %v9004 = vpop.f32.mrb[0].mxu0
    %v9005 = vadd.f32 %v8964, %v9004
    %v9006 = vpop.f32.mrb[0].mxu0
    %v9007 = vpop.f32.mrb[0].mxu0
    %9008 = vdwg.mxu0
    %9009 = vmatprep.subr.bf16.mxu0 %v5939
    %9010 = vmatpush1.bf16.msra.mxu0 %v5938
    %9011 = vmatprep.subr.bf16.mxu0 %v5951
    %9012 = vmatpush1.bf16.msra.mxu0 %v5950
    %9013 = vmatprep.subr.bf16.mxu0 %v5963
    %9014 = vmatpush1.bf16.msra.mxu0 %v5962
    %9015 = vmatprep.subr.bf16.mxu0 %v5975
    %9016 = vmatpush1.bf16.msra.mxu0 %v5974
    %9017 = vmatprep.subr.bf16.mxu0 %v5987
    %9018 = vmatpush1.bf16.msra.mxu0 %v5986
    %9019 = vmatprep.subr.bf16.mxu0 %v5999
    %9020 = vmatpush1.bf16.msra.mxu0 %v5998
    %9021 = vmatprep.subr.bf16.mxu0 %v6011
    %9022 = vmatpush1.bf16.msra.mxu0 %v6010
    %9023 = vmatprep.subr.bf16.mxu0 %v6023
    %9024 = vmatpush1.bf16.msra.mxu0 %v6022
    %9025 = vmatprep.subr.bf16.mxu0 %v6035
    %9026 = vmatpush1.bf16.msra.mxu0 %v6034
    %9027 = vmatprep.subr.bf16.mxu0 %v6047
    %9028 = vmatpush1.bf16.msra.mxu0 %v6046
    %9029 = vmatprep.subr.bf16.mxu0 %v6059
    %9030 = vmatpush1.bf16.msra.mxu0 %v6058
    %9031 = vmatprep.subr.bf16.mxu0 %v6071
    %9032 = vmatpush1.bf16.msra.mxu0 %v6070
    %9033 = vmatprep.subr.bf16.mxu0 %v6083
    %9034 = vmatpush1.bf16.msra.mxu0 %v6082
    %9035 = vmatprep.subr.bf16.mxu0 %v6095
    %9036 = vmatpush1.bf16.msra.mxu0 %v6094
    %9037 = vmatprep.subr.bf16.mxu0 %v6107
    %9038 = vmatpush1.bf16.msra.mxu0 %v6106
    %9039 = vmatprep.subr.bf16.mxu0 %v6119
    %9040 = vmatpush1.bf16.msra.mxu0 %v6118
    %9041 = vmatprep.mubr.bf16.mxu0 %v675
    %9042 = vmatmul.mubr.bf16.gmra.mrb[0].mxu0 %v674
    %v9043 = vpop.f32.mrb[0].mxu0
    %v9044 = vadd.f32 %v9003, %v9043
    %v9045 = vpop.f32.mrb[0].mxu0
    %v9046 = vadd.f32 %v9005, %v9045
    %v9047 = vpop.f32.mrb[0].mxu0
    %v9048 = vpop.f32.mrb[0].mxu0
    %9049 = vdwg.mxu0
    %9050 = vmatprep.subr.bf16.mxu0 %v6131
    %9051 = vmatpush1.bf16.msra.mxu0 %v6130
    %9052 = vmatprep.subr.bf16.mxu0 %v6143
    %9053 = vmatpush1.bf16.msra.mxu0 %v6142
    %9054 = vmatprep.subr.bf16.mxu0 %v6155
    %9055 = vmatpush1.bf16.msra.mxu0 %v6154
    %9056 = vmatprep.subr.bf16.mxu0 %v6167
    %9057 = vmatpush1.bf16.msra.mxu0 %v6166
    %9058 = vmatprep.subr.bf16.mxu0 %v6179
    %9059 = vmatpush1.bf16.msra.mxu0 %v6178
    %9060 = vmatprep.subr.bf16.mxu0 %v6191
    %9061 = vmatpush1.bf16.msra.mxu0 %v6190
    %9062 = vmatprep.subr.bf16.mxu0 %v6203
    %9063 = vmatpush1.bf16.msra.mxu0 %v6202
    %9064 = vmatprep.subr.bf16.mxu0 %v6215
    %9065 = vmatpush1.bf16.msra.mxu0 %v6214
    %9066 = vmatprep.subr.bf16.mxu0 %v6227
    %9067 = vmatpush1.bf16.msra.mxu0 %v6226
    %9068 = vmatprep.subr.bf16.mxu0 %v6239
    %9069 = vmatpush1.bf16.msra.mxu0 %v6238
    %9070 = vmatprep.subr.bf16.mxu0 %v6251
    %9071 = vmatpush1.bf16.msra.mxu0 %v6250
    %9072 = vmatprep.subr.bf16.mxu0 %v6263
    %9073 = vmatpush1.bf16.msra.mxu0 %v6262
    %9074 = vmatprep.subr.bf16.mxu0 %v6275
    %9075 = vmatpush1.bf16.msra.mxu0 %v6274
    %9076 = vmatprep.subr.bf16.mxu0 %v6287
    %9077 = vmatpush1.bf16.msra.mxu0 %v6286
    %9078 = vmatprep.subr.bf16.mxu0 %v6299
    %9079 = vmatpush1.bf16.msra.mxu0 %v6298
    %9080 = vmatprep.subr.bf16.mxu0 %v6311
    %9081 = vmatpush1.bf16.msra.mxu0 %v6310
    %9082 = vmatprep.mubr.bf16.mxu0 %v677
    %9083 = vmatmul.mubr.bf16.gmra.mrb[0].mxu0 %v676
    %v9084 = vpop.f32.mrb[0].mxu0
    %v9085 = vadd.f32 %v9044, %v9084
    %v9086 = vpop.f32.mrb[0].mxu0
    %v9087 = vadd.f32 %v9046, %v9086
    %v9088 = vpop.f32.mrb[0].mxu0
    %v9089 = vpop.f32.mrb[0].mxu0
    %9090 = vdwg.mxu0
    %9091 = vmatprep.subr.bf16.mxu0 %v6323
    %9092 = vmatpush1.bf16.msra.mxu0 %v6322
    %9093 = vmatprep.subr.bf16.mxu0 %v6335
    %9094 = vmatpush1.bf16.msra.mxu0 %v6334
    %9095 = vmatprep.subr.bf16.mxu0 %v6347
    %9096 = vmatpush1.bf16.msra.mxu0 %v6346
    %9097 = vmatprep.subr.bf16.mxu0 %v6359
    %9098 = vmatpush1.bf16.msra.mxu0 %v6358
    %9099 = vmatprep.subr.bf16.mxu0 %v6371
    %9100 = vmatpush1.bf16.msra.mxu0 %v6370
    %9101 = vmatprep.subr.bf16.mxu0 %v6383
    %9102 = vmatpush1.bf16.msra.mxu0 %v6382
    %9103 = vmatprep.subr.bf16.mxu0 %v6395
    %9104 = vmatpush1.bf16.msra.mxu0 %v6394
    %9105 = vmatprep.subr.bf16.mxu0 %v6407
    %9106 = vmatpush1.bf16.msra.mxu0 %v6406
    %9107 = vmatprep.subr.bf16.mxu0 %v6419
    %9108 = vmatpush1.bf16.msra.mxu0 %v6418
    %9109 = vmatprep.subr.bf16.mxu0 %v6431
    %9110 = vmatpush1.bf16.msra.mxu0 %v6430
    %9111 = vmatprep.subr.bf16.mxu0 %v6443
    %9112 = vmatpush1.bf16.msra.mxu0 %v6442
    %9113 = vmatprep.subr.bf16.mxu0 %v6455
    %9114 = vmatpush1.bf16.msra.mxu0 %v6454
    %9115 = vmatprep.subr.bf16.mxu0 %v6467
    %9116 = vmatpush1.bf16.msra.mxu0 %v6466
    %9117 = vmatprep.subr.bf16.mxu0 %v6479
    %9118 = vmatpush1.bf16.msra.mxu0 %v6478
    %9119 = vmatprep.subr.bf16.mxu0 %v6491
    %9120 = vmatpush1.bf16.msra.mxu0 %v6490
    %9121 = vmatprep.subr.bf16.mxu0 %v6503
    %9122 = vmatpush1.bf16.msra.mxu0 %v6502
    %9123 = vmatprep.mubr.bf16.mxu0 %v679
    %9124 = vmatmul.mubr.bf16.gmra.mrb[0].mxu0 %v678
    %v9125 = vpop.f32.mrb[0].mxu0
    %v9126 = vadd.f32 %v9085, %v9125
    %v9127 = vpop.f32.mrb[0].mxu0
    %v9128 = vadd.f32 %v9087, %v9127
    %v9129 = vpop.f32.mrb[0].mxu0
    %v9130 = vpop.f32.mrb[0].mxu0
    %9131 = vdwg.mxu0
    %v9132 = vmax.f32 %v7896, 0.0
    %v9133 = vmax.f32 %v7898, 0.0
    %v9134 = vmax.f32 %v8142, 0.0
    %v9135 = vmax.f32 %v8144, 0.0
    %v9136 = vmax.f32 %v8388, 0.0
    %v9137 = vmax.f32 %v8390, 0.0
    %v9138 = vmax.f32 %v8634, 0.0
    %v9139 = vmax.f32 %v8636, 0.0
    %v9140 = vmax.f32 %v8880, 0.0
    %v9141 = vmax.f32 %v8882, 0.0
    %v9142 = vmax.f32 %v9126, 0.0
    %v9143 = vmax.f32 %v9128, 0.0
    %v9144 = vpack.c.bf16 %v9132, %v9132
    %v9145 = vpack.c.bf16 %v9133, %v9133
    %v9146 = vpack.c.bf16 %v9134, %v9134
    %v9147 = vpack.c.bf16 %v9135, %v9135
    %v9148 = vpack.c.bf16 %v9136, %v9136
    %v9149 = vpack.c.bf16 %v9137, %v9137
    %v9150 = vpack.c.bf16 %v9138, %v9138
    %v9151 = vpack.c.bf16 %v9139, %v9139
    %v9152 = vpack.c.bf16 %v9140, %v9140
    %v9153 = vpack.c.bf16 %v9141, %v9141
    %v9154 = vpack.c.bf16 %v9142, %v9142
    %v9155 = vpack.c.bf16 %v9143, %v9143
    %v9156 = vld [vmem:[%s5] sm:$0xf]
    %v9157 = vld [vmem:[%s5 + $0x4] sm:$0xf]
    %v9158 = vld [vmem:[%s5 + $0x8] sm:$0xf]
    %v9159 = vld [vmem:[%s5 + $0xc] sm:$0xf]
    %v9160 = vld [vmem:[%s5 + $0x10] sm:$0xf]
    %v9161 = vld [vmem:[%s5 + $0x14] sm:$0xf]
    %v9162 = vld [vmem:[%s5 + $0x18] sm:$0xf]
    %v9163 = vld [vmem:[%s5 + $0x1c] sm:$0xf]
    %v9164 = vld [vmem:[%s5 + $0x20] sm:$0xf]
    %v9165 = vld [vmem:[%s5 + $0x24] sm:$0xf]
    %v9166 = vld [vmem:[%s5 + $0x28] sm:$0xf]
    %v9167 = vld [vmem:[%s5 + $0x2c] sm:$0xf]
    %v9168 = vld [vmem:[%s5 + $0x30] sm:$0xf]
    %v9169 = vld [vmem:[%s5 + $0x34] sm:$0xf]
    %v9170 = vld [vmem:[%s5 + $0x38] sm:$0xf]
    %v9171 = vld [vmem:[%s5 + $0x3c] sm:$0xf]
    %v9172 = vld [vmem:[%s5 + $0x40] sm:$0xf]
    %v9173 = vld [vmem:[%s5 + $0x44] sm:$0xf]
    %v9174 = vld [vmem:[%s5 + $0x48] sm:$0xf]
    %v9175 = vld [vmem:[%s5 + $0x4c] sm:$0xf]
    %v9176 = vld [vmem:[%s5 + $0x50] sm:$0xf]
    %v9177 = vld [vmem:[%s5 + $0x54] sm:$0xf]
    %v9178 = vld [vmem:[%s5 + $0x58] sm:$0xf]
    %v9179 = vld [vmem:[%s5 + $0x5c] sm:$0xf]
    %v9180 = vld [vmem:[%s5 + $0x60] sm:$0xf]
    %v9181 = vld [vmem:[%s5 + $0x64] sm:$0xf]
    %v9182 = vld [vmem:[%s5 + $0x68] sm:$0xf]
    %v9183 = vld [vmem:[%s5 + $0x6c] sm:$0xf]
    %v9184 = vld [vmem:[%s5 + $0x70] sm:$0xf]
    %v9185 = vld [vmem:[%s5 + $0x74] sm:$0xf]
    %v9186 = vld [vmem:[%s5 + $0x78] sm:$0xf]
    %v9187 = vld [vmem:[%s5 + $0x7c] sm:$0xf]
    %v9188 = vld [vmem:[%s5 + $0x80] sm:$0xf]
    %v9189 = vld [vmem:[%s5 + $0x84] sm:$0xf]
    %v9190 = vld [vmem:[%s5 + $0x88] sm:$0xf]
    %v9191 = vld [vmem:[%s5 + $0x8c] sm:$0xf]
    %v9192 = vld [vmem:[%s5 + $0x90] sm:$0xf]
    %v9193 = vld [vmem:[%s5 + $0x94] sm:$0xf]
    %v9194 = vld [vmem:[%s5 + $0x98] sm:$0xf]
    %v9195 = vld [vmem:[%s5 + $0x9c] sm:$0xf]
    %v9196 = vld [vmem:[%s5 + $0xa0] sm:$0xf]
    %v9197 = vld [vmem:[%s5 + $0xa4] sm:$0xf]
    %v9198 = vld [vmem:[%s5 + $0xa8] sm:$0xf]
    %v9199 = vld [vmem:[%s5 + $0xac] sm:$0xf]
    %v9200 = vld [vmem:[%s5 + $0xb0] sm:$0xf]
    %v9201 = vld [vmem:[%s5 + $0xb4] sm:$0xf]
    %v9202 = vld [vmem:[%s5 + $0xb8] sm:$0xf]
    %v9203 = vld [vmem:[%s5 + $0xbc] sm:$0xf]
    %v9204 = vld [vmem:[%s5 + $0xc0] sm:$0xf]
    %v9205 = vld [vmem:[%s5 + $0xc4] sm:$0xf]
    %v9206 = vld [vmem:[%s5 + $0xc8] sm:$0xf]
    %v9207 = vld [vmem:[%s5 + $0xcc] sm:$0xf]
    %v9208 = vld [vmem:[%s5 + $0xd0] sm:$0xf]
    %v9209 = vld [vmem:[%s5 + $0xd4] sm:$0xf]
    %v9210 = vld [vmem:[%s5 + $0xd8] sm:$0xf]
    %v9211 = vld [vmem:[%s5 + $0xdc] sm:$0xf]
    %v9212 = vld [vmem:[%s5 + $0xe0] sm:$0xf]
    %v9213 = vld [vmem:[%s5 + $0xe4] sm:$0xf]
    %v9214 = vld [vmem:[%s5 + $0xe8] sm:$0xf]
    %v9215 = vld [vmem:[%s5 + $0xec] sm:$0xf]
    %v9216 = vld [vmem:[%s5 + $0xf0] sm:$0xf]
    %v9217 = vld [vmem:[%s5 + $0xf4] sm:$0xf]
    %v9218 = vld [vmem:[%s5 + $0xf8] sm:$0xf]
    %v9219 = vld [vmem:[%s5 + $0xfc] sm:$0xf]
    %v9220 = vld [vmem:[%s5 + $0x100] sm:$0xf]
    %v9221 = vld [vmem:[%s5 + $0x104] sm:$0xf]
    %v9222 = vld [vmem:[%s5 + $0x108] sm:$0xf]
    %v9223 = vld [vmem:[%s5 + $0x10c] sm:$0xf]
    %v9224 = vld [vmem:[%s5 + $0x110] sm:$0xf]
    %v9225 = vld [vmem:[%s5 + $0x114] sm:$0xf]
    %v9226 = vld [vmem:[%s5 + $0x118] sm:$0xf]
    %v9227 = vld [vmem:[%s5 + $0x11c] sm:$0xf]
    %v9228 = vld [vmem:[%s5 + $0x120] sm:$0xf]
    %v9229 = vld [vmem:[%s5 + $0x124] sm:$0xf]
    %v9230 = vld [vmem:[%s5 + $0x128] sm:$0xf]
    %v9231 = vld [vmem:[%s5 + $0x12c] sm:$0xf]
    %v9232 = vld [vmem:[%s5 + $0x130] sm:$0xf]
    %v9233 = vld [vmem:[%s5 + $0x134] sm:$0xf]
    %v9234 = vld [vmem:[%s5 + $0x138] sm:$0xf]
    %v9235 = vld [vmem:[%s5 + $0x13c] sm:$0xf]
    %v9236 = vld [vmem:[%s5 + $0x140] sm:$0xf]
    %v9237 = vld [vmem:[%s5 + $0x144] sm:$0xf]
    %v9238 = vld [vmem:[%s5 + $0x148] sm:$0xf]
    %v9239 = vld [vmem:[%s5 + $0x14c] sm:$0xf]
    %v9240 = vld [vmem:[%s5 + $0x150] sm:$0xf]
    %v9241 = vld [vmem:[%s5 + $0x154] sm:$0xf]
    %v9242 = vld [vmem:[%s5 + $0x158] sm:$0xf]
    %v9243 = vld [vmem:[%s5 + $0x15c] sm:$0xf]
    %v9244 = vld [vmem:[%s5 + $0x160] sm:$0xf]
    %v9245 = vld [vmem:[%s5 + $0x164] sm:$0xf]
    %v9246 = vld [vmem:[%s5 + $0x168] sm:$0xf]
    %v9247 = vld [vmem:[%s5 + $0x16c] sm:$0xf]
    %v9248 = vld [vmem:[%s5 + $0x170] sm:$0xf]
    %v9249 = vld [vmem:[%s5 + $0x174] sm:$0xf]
    %v9250 = vld [vmem:[%s5 + $0x178] sm:$0xf]
    %v9251 = vld [vmem:[%s5 + $0x17c] sm:$0xf]
    %v9252 = vld [vmem:[%s5 + $0x180] sm:$0xf]
    %v9253 = vld [vmem:[%s5 + $0x184] sm:$0xf]
    %v9254 = vld [vmem:[%s5 + $0x188] sm:$0xf]
    %v9255 = vld [vmem:[%s5 + $0x18c] sm:$0xf]
    %v9256 = vld [vmem:[%s5 + $0x190] sm:$0xf]
    %v9257 = vld [vmem:[%s5 + $0x194] sm:$0xf]
    %v9258 = vld [vmem:[%s5 + $0x198] sm:$0xf]
    %v9259 = vld [vmem:[%s5 + $0x19c] sm:$0xf]
    %v9260 = vld [vmem:[%s5 + $0x1a0] sm:$0xf]
    %v9261 = vld [vmem:[%s5 + $0x1a4] sm:$0xf]
    %v9262 = vld [vmem:[%s5 + $0x1a8] sm:$0xf]
    %v9263 = vld [vmem:[%s5 + $0x1ac] sm:$0xf]
    %v9264 = vld [vmem:[%s5 + $0x1b0] sm:$0xf]
    %v9265 = vld [vmem:[%s5 + $0x1b4] sm:$0xf]
    %v9266 = vld [vmem:[%s5 + $0x1b8] sm:$0xf]
    %v9267 = vld [vmem:[%s5 + $0x1bc] sm:$0xf]
    %v9268 = vld [vmem:[%s5 + $0x1c0] sm:$0xf]
    %v9269 = vld [vmem:[%s5 + $0x1c4] sm:$0xf]
    %v9270 = vld [vmem:[%s5 + $0x1c8] sm:$0xf]
    %v9271 = vld [vmem:[%s5 + $0x1cc] sm:$0xf]
    %v9272 = vld [vmem:[%s5 + $0x1d0] sm:$0xf]
    %v9273 = vld [vmem:[%s5 + $0x1d4] sm:$0xf]
    %v9274 = vld [vmem:[%s5 + $0x1d8] sm:$0xf]
    %v9275 = vld [vmem:[%s5 + $0x1dc] sm:$0xf]
    %v9276 = vld [vmem:[%s5 + $0x1e0] sm:$0xf]
    %v9277 = vld [vmem:[%s5 + $0x1e4] sm:$0xf]
    %v9278 = vld [vmem:[%s5 + $0x1e8] sm:$0xf]
    %v9279 = vld [vmem:[%s5 + $0x1ec] sm:$0xf]
    %v9280 = vld [vmem:[%s5 + $0x1f0] sm:$0xf]
    %v9281 = vld [vmem:[%s5 + $0x1f4] sm:$0xf]
    %v9282 = vld [vmem:[%s5 + $0x1f8] sm:$0xf]
    %v9283 = vld [vmem:[%s5 + $0x1fc] sm:$0xf]
    %v9284 = vld [vmem:[%s5 + $0x200] sm:$0xf]
    %v9285 = vld [vmem:[%s5 + $0x204] sm:$0xf]
    %v9286 = vld [vmem:[%s5 + $0x208] sm:$0xf]
    %v9287 = vld [vmem:[%s5 + $0x20c] sm:$0xf]
    %v9288 = vld [vmem:[%s5 + $0x210] sm:$0xf]
    %v9289 = vld [vmem:[%s5 + $0x214] sm:$0xf]
    %v9290 = vld [vmem:[%s5 + $0x218] sm:$0xf]
    %v9291 = vld [vmem:[%s5 + $0x21c] sm:$0xf]
    %v9292 = vld [vmem:[%s5 + $0x220] sm:$0xf]
    %v9293 = vld [vmem:[%s5 + $0x224] sm:$0xf]
    %v9294 = vld [vmem:[%s5 + $0x228] sm:$0xf]
    %v9295 = vld [vmem:[%s5 + $0x22c] sm:$0xf]
    %v9296 = vld [vmem:[%s5 + $0x230] sm:$0xf]
    %v9297 = vld [vmem:[%s5 + $0x234] sm:$0xf]
    %v9298 = vld [vmem:[%s5 + $0x238] sm:$0xf]
    %v9299 = vld [vmem:[%s5 + $0x23c] sm:$0xf]
    %v9300 = vld [vmem:[%s5 + $0x240] sm:$0xf]
    %v9301 = vld [vmem:[%s5 + $0x244] sm:$0xf]
    %v9302 = vld [vmem:[%s5 + $0x248] sm:$0xf]
    %v9303 = vld [vmem:[%s5 + $0x24c] sm:$0xf]
    %v9304 = vld [vmem:[%s5 + $0x250] sm:$0xf]
    %v9305 = vld [vmem:[%s5 + $0x254] sm:$0xf]
    %v9306 = vld [vmem:[%s5 + $0x258] sm:$0xf]
    %v9307 = vld [vmem:[%s5 + $0x25c] sm:$0xf]
    %v9308 = vld [vmem:[%s5 + $0x260] sm:$0xf]
    %v9309 = vld [vmem:[%s5 + $0x264] sm:$0xf]
    %v9310 = vld [vmem:[%s5 + $0x268] sm:$0xf]
    %v9311 = vld [vmem:[%s5 + $0x26c] sm:$0xf]
    %v9312 = vld [vmem:[%s5 + $0x270] sm:$0xf]
    %v9313 = vld [vmem:[%s5 + $0x274] sm:$0xf]
    %v9314 = vld [vmem:[%s5 + $0x278] sm:$0xf]
    %v9315 = vld [vmem:[%s5 + $0x27c] sm:$0xf]
    %v9316 = vld [vmem:[%s5 + $0x280] sm:$0xf]
    %v9317 = vld [vmem:[%s5 + $0x284] sm:$0xf]
    %v9318 = vld [vmem:[%s5 + $0x288] sm:$0xf]
    %v9319 = vld [vmem:[%s5 + $0x28c] sm:$0xf]
    %v9320 = vld [vmem:[%s5 + $0x290] sm:$0xf]
    %v9321 = vld [vmem:[%s5 + $0x294] sm:$0xf]
    %v9322 = vld [vmem:[%s5 + $0x298] sm:$0xf]
    %v9323 = vld [vmem:[%s5 + $0x29c] sm:$0xf]
    %v9324 = vld [vmem:[%s5 + $0x2a0] sm:$0xf]
    %v9325 = vld [vmem:[%s5 + $0x2a4] sm:$0xf]
    %v9326 = vld [vmem:[%s5 + $0x2a8] sm:$0xf]
    %v9327 = vld [vmem:[%s5 + $0x2ac] sm:$0xf]
    %v9328 = vld [vmem:[%s5 + $0x2b0] sm:$0xf]
    %v9329 = vld [vmem:[%s5 + $0x2b4] sm:$0xf]
    %v9330 = vld [vmem:[%s5 + $0x2b8] sm:$0xf]
    %v9331 = vld [vmem:[%s5 + $0x2bc] sm:$0xf]
    %v9332 = vld [vmem:[%s5 + $0x2c0] sm:$0xf]
    %v9333 = vld [vmem:[%s5 + $0x2c4] sm:$0xf]
    %v9334 = vld [vmem:[%s5 + $0x2c8] sm:$0xf]
    %v9335 = vld [vmem:[%s5 + $0x2cc] sm:$0xf]
    %v9336 = vld [vmem:[%s5 + $0x2d0] sm:$0xf]
    %v9337 = vld [vmem:[%s5 + $0x2d4] sm:$0xf]
    %v9338 = vld [vmem:[%s5 + $0x2d8] sm:$0xf]
    %v9339 = vld [vmem:[%s5 + $0x2dc] sm:$0xf]
    %v9340 = vld [vmem:[%s5 + $0x2e0] sm:$0xf]
    %v9341 = vld [vmem:[%s5 + $0x2e4] sm:$0xf]
    %v9342 = vld [vmem:[%s5 + $0x2e8] sm:$0xf]
    %v9343 = vld [vmem:[%s5 + $0x2ec] sm:$0xf]
    %v9344 = vld [vmem:[%s5 + $0x2f0] sm:$0xf]
    %v9345 = vld [vmem:[%s5 + $0x2f4] sm:$0xf]
    %v9346 = vld [vmem:[%s5 + $0x2f8] sm:$0xf]
    %v9347 = vld [vmem:[%s5 + $0x2fc] sm:$0xf]
    %v9348 = vld [vmem:[#allocation11] sm:$0x1]
    %v9350 = vlaneseq
    %v9351 = vshrl.u32 %v9350, 7
    %v9352 = vsub.s32 0, %v9351
    %v9353 = vrot.slane %v9348, %v9352
    %v9547 = vunpack.c.l.b16 %v9156
    %v9548 = vunpack.c.l.b16 %v9157
    %v9549 = vunpack.c.l.b16 %v9158
    %v9550 = vunpack.c.l.b16 %v9159
    %v9551 = vunpack.c.l.b16 %v9160
    %v9552 = vunpack.c.l.b16 %v9161
    %v9553 = vunpack.c.l.b16 %v9162
    %v9554 = vunpack.c.l.b16 %v9163
    %v9555 = vunpack.c.l.b16 %v9164
    %v9556 = vunpack.c.l.b16 %v9165
    %v9557 = vunpack.c.l.b16 %v9166
    %v9558 = vunpack.c.l.b16 %v9167
    %v9559 = vunpack.c.l.b16 %v9168
    %v9560 = vunpack.c.l.b16 %v9169
    %v9561 = vunpack.c.l.b16 %v9170
    %v9562 = vunpack.c.l.b16 %v9171
    %v9563 = vunpack.c.l.b16 %v9172
    %v9564 = vunpack.c.l.b16 %v9173
    %v9565 = vunpack.c.l.b16 %v9174
    %v9566 = vunpack.c.l.b16 %v9175
    %v9567 = vunpack.c.l.b16 %v9176
    %v9568 = vunpack.c.l.b16 %v9177
    %v9569 = vunpack.c.l.b16 %v9178
    %v9570 = vunpack.c.l.b16 %v9179
    %v9571 = vunpack.c.l.b16 %v9180
    %v9572 = vunpack.c.l.b16 %v9181
    %v9573 = vunpack.c.l.b16 %v9182
    %v9574 = vunpack.c.l.b16 %v9183
    %v9575 = vunpack.c.l.b16 %v9184
    %v9576 = vunpack.c.l.b16 %v9185
    %v9577 = vunpack.c.l.b16 %v9186
    %v9578 = vunpack.c.l.b16 %v9187
    %v9579 = vunpack.c.l.b16 %v9188
    %v9580 = vunpack.c.l.b16 %v9189
    %v9581 = vunpack.c.l.b16 %v9190
    %v9582 = vunpack.c.l.b16 %v9191
    %v9583 = vunpack.c.l.b16 %v9192
    %v9584 = vunpack.c.l.b16 %v9193
    %v9585 = vunpack.c.l.b16 %v9194
    %v9586 = vunpack.c.l.b16 %v9195
    %v9587 = vunpack.c.l.b16 %v9196
    %v9588 = vunpack.c.l.b16 %v9197
    %v9589 = vunpack.c.l.b16 %v9198
    %v9590 = vunpack.c.l.b16 %v9199
    %v9591 = vunpack.c.l.b16 %v9200
    %v9592 = vunpack.c.l.b16 %v9201
    %v9593 = vunpack.c.l.b16 %v9202
    %v9594 = vunpack.c.l.b16 %v9203
    %v9595 = vunpack.c.l.b16 %v9204
    %v9596 = vunpack.c.l.b16 %v9205
    %v9597 = vunpack.c.l.b16 %v9206
    %v9598 = vunpack.c.l.b16 %v9207
    %v9599 = vunpack.c.l.b16 %v9208
    %v9600 = vunpack.c.l.b16 %v9209
    %v9601 = vunpack.c.l.b16 %v9210
    %v9602 = vunpack.c.l.b16 %v9211
    %v9603 = vunpack.c.l.b16 %v9212
    %v9604 = vunpack.c.l.b16 %v9213
    %v9605 = vunpack.c.l.b16 %v9214
    %v9606 = vunpack.c.l.b16 %v9215
    %v9607 = vunpack.c.l.b16 %v9216
    %v9608 = vunpack.c.l.b16 %v9217
    %v9609 = vunpack.c.l.b16 %v9218
    %v9610 = vunpack.c.l.b16 %v9219
    %v9611 = vunpack.c.l.b16 %v9220
    %v9612 = vunpack.c.l.b16 %v9221
    %v9613 = vunpack.c.l.b16 %v9222
    %v9614 = vunpack.c.l.b16 %v9223
    %v9615 = vunpack.c.l.b16 %v9224
    %v9616 = vunpack.c.l.b16 %v9225
    %v9617 = vunpack.c.l.b16 %v9226
    %v9618 = vunpack.c.l.b16 %v9227
    %v9619 = vunpack.c.l.b16 %v9228
    %v9620 = vunpack.c.l.b16 %v9229
    %v9621 = vunpack.c.l.b16 %v9230
    %v9622 = vunpack.c.l.b16 %v9231
    %v9623 = vunpack.c.l.b16 %v9232
    %v9624 = vunpack.c.l.b16 %v9233
    %v9625 = vunpack.c.l.b16 %v9234
    %v9626 = vunpack.c.l.b16 %v9235
    %v9627 = vunpack.c.l.b16 %v9236
    %v9628 = vunpack.c.l.b16 %v9237
    %v9629 = vunpack.c.l.b16 %v9238
    %v9630 = vunpack.c.l.b16 %v9239
    %v9631 = vunpack.c.l.b16 %v9240
    %v9632 = vunpack.c.l.b16 %v9241
    %v9633 = vunpack.c.l.b16 %v9242
    %v9634 = vunpack.c.l.b16 %v9243
    %v9635 = vunpack.c.l.b16 %v9244
    %v9636 = vunpack.c.l.b16 %v9245
    %v9637 = vunpack.c.l.b16 %v9246
    %v9638 = vunpack.c.l.b16 %v9247
    %v9639 = vunpack.c.l.b16 %v9248
    %v9640 = vunpack.c.l.b16 %v9249
    %v9641 = vunpack.c.l.b16 %v9250
    %v9642 = vunpack.c.l.b16 %v9251
    %v9643 = vunpack.c.l.b16 %v9252
    %v9644 = vunpack.c.l.b16 %v9253
    %v9645 = vunpack.c.l.b16 %v9254
    %v9646 = vunpack.c.l.b16 %v9255
    %v9647 = vunpack.c.l.b16 %v9256
    %v9648 = vunpack.c.l.b16 %v9257
    %v9649 = vunpack.c.l.b16 %v9258
    %v9650 = vunpack.c.l.b16 %v9259
    %v9651 = vunpack.c.l.b16 %v9260
    %v9652 = vunpack.c.l.b16 %v9261
    %v9653 = vunpack.c.l.b16 %v9262
    %v9654 = vunpack.c.l.b16 %v9263
    %v9655 = vunpack.c.l.b16 %v9264
    %v9656 = vunpack.c.l.b16 %v9265
    %v9657 = vunpack.c.l.b16 %v9266
    %v9658 = vunpack.c.l.b16 %v9267
    %v9659 = vunpack.c.l.b16 %v9268
    %v9660 = vunpack.c.l.b16 %v9269
    %v9661 = vunpack.c.l.b16 %v9270
    %v9662 = vunpack.c.l.b16 %v9271
    %v9663 = vunpack.c.l.b16 %v9272
    %v9664 = vunpack.c.l.b16 %v9273
    %v9665 = vunpack.c.l.b16 %v9274
    %v9666 = vunpack.c.l.b16 %v9275
    %v9667 = vunpack.c.l.b16 %v9276
    %v9668 = vunpack.c.l.b16 %v9277
    %v9669 = vunpack.c.l.b16 %v9278
    %v9670 = vunpack.c.l.b16 %v9279
    %v9671 = vunpack.c.l.b16 %v9280
    %v9672 = vunpack.c.l.b16 %v9281
    %v9673 = vunpack.c.l.b16 %v9282
    %v9674 = vunpack.c.l.b16 %v9283
    %v9675 = vunpack.c.l.b16 %v9284
    %v9676 = vunpack.c.l.b16 %v9285
    %v9677 = vunpack.c.l.b16 %v9286
    %v9678 = vunpack.c.l.b16 %v9287
    %v9679 = vunpack.c.l.b16 %v9288
    %v9680 = vunpack.c.l.b16 %v9289
    %v9681 = vunpack.c.l.b16 %v9290
    %v9682 = vunpack.c.l.b16 %v9291
    %v9683 = vunpack.c.l.b16 %v9292
    %v9684 = vunpack.c.l.b16 %v9293
    %v9685 = vunpack.c.l.b16 %v9294
    %v9686 = vunpack.c.l.b16 %v9295
    %v9687 = vunpack.c.l.b16 %v9296
    %v9688 = vunpack.c.l.b16 %v9297
    %v9689 = vunpack.c.l.b16 %v9298
    %v9690 = vunpack.c.l.b16 %v9299
    %v9691 = vunpack.c.l.b16 %v9300
    %v9692 = vunpack.c.l.b16 %v9301
    %v9693 = vunpack.c.l.b16 %v9302
    %v9694 = vunpack.c.l.b16 %v9303
    %v9695 = vunpack.c.l.b16 %v9304
    %v9696 = vunpack.c.l.b16 %v9305
    %v9697 = vunpack.c.l.b16 %v9306
    %v9698 = vunpack.c.l.b16 %v9307
    %v9699 = vunpack.c.l.b16 %v9308
    %v9700 = vunpack.c.l.b16 %v9309
    %v9701 = vunpack.c.l.b16 %v9310
    %v9702 = vunpack.c.l.b16 %v9311
    %v9703 = vunpack.c.l.b16 %v9312
    %v9704 = vunpack.c.l.b16 %v9313
    %v9705 = vunpack.c.l.b16 %v9314
    %v9706 = vunpack.c.l.b16 %v9315
    %v9707 = vunpack.c.l.b16 %v9316
    %v9708 = vunpack.c.l.b16 %v9317
    %v9709 = vunpack.c.l.b16 %v9318
    %v9710 = vunpack.c.l.b16 %v9319
    %v9711 = vunpack.c.l.b16 %v9320
    %v9712 = vunpack.c.l.b16 %v9321
    %v9713 = vunpack.c.l.b16 %v9322
    %v9714 = vunpack.c.l.b16 %v9323
    %v9715 = vunpack.c.l.b16 %v9324
    %v9716 = vunpack.c.l.b16 %v9325
    %v9717 = vunpack.c.l.b16 %v9326
    %v9718 = vunpack.c.l.b16 %v9327
    %v9719 = vunpack.c.l.b16 %v9328
    %v9720 = vunpack.c.l.b16 %v9329
    %v9721 = vunpack.c.l.b16 %v9330
    %v9722 = vunpack.c.l.b16 %v9331
    %v9723 = vunpack.c.l.b16 %v9332
    %v9724 = vunpack.c.l.b16 %v9333
    %v9725 = vunpack.c.l.b16 %v9334
    %v9726 = vunpack.c.l.b16 %v9335
    %v9727 = vunpack.c.l.b16 %v9336
    %v9728 = vunpack.c.l.b16 %v9337
    %v9729 = vunpack.c.l.b16 %v9338
    %v9730 = vunpack.c.l.b16 %v9339
    %v9731 = vunpack.c.l.b16 %v9340
    %v9732 = vunpack.c.l.b16 %v9341
    %v9733 = vunpack.c.l.b16 %v9342
    %v9734 = vunpack.c.l.b16 %v9343
    %v9735 = vunpack.c.l.b16 %v9344
    %v9736 = vunpack.c.l.b16 %v9345
    %v9737 = vunpack.c.l.b16 %v9346
    %v9738 = vunpack.c.l.b16 %v9347
    %v9739 = vpack.c.b16 %v9548, %v9547
    %v9740 = vpack.c.b16 %v9550, %v9549
    %v9741 = vpack.c.b16 %v9552, %v9551
    %v9742 = vpack.c.b16 %v9554, %v9553
    %v9743 = vpack.c.b16 %v9556, %v9555
    %v9744 = vpack.c.b16 %v9558, %v9557
    %v9745 = vpack.c.b16 %v9560, %v9559
    %v9746 = vpack.c.b16 %v9562, %v9561
    %v9747 = vpack.c.b16 %v9564, %v9563
    %v9748 = vpack.c.b16 %v9566, %v9565
    %v9749 = vpack.c.b16 %v9568, %v9567
    %v9750 = vpack.c.b16 %v9570, %v9569
    %v9751 = vpack.c.b16 %v9572, %v9571
    %v9752 = vpack.c.b16 %v9574, %v9573
    %v9753 = vpack.c.b16 %v9576, %v9575
    %v9754 = vpack.c.b16 %v9578, %v9577
    %v9755 = vpack.c.b16 %v9580, %v9579
    %v9756 = vpack.c.b16 %v9582, %v9581
    %v9757 = vpack.c.b16 %v9584, %v9583
    %v9758 = vpack.c.b16 %v9586, %v9585
    %v9759 = vpack.c.b16 %v9588, %v9587
    %v9760 = vpack.c.b16 %v9590, %v9589
    %v9761 = vpack.c.b16 %v9592, %v9591
    %v9762 = vpack.c.b16 %v9594, %v9593
    %v9763 = vpack.c.b16 %v9596, %v9595
    %v9764 = vpack.c.b16 %v9598, %v9597
    %v9765 = vpack.c.b16 %v9600, %v9599
    %v9766 = vpack.c.b16 %v9602, %v9601
    %v9767 = vpack.c.b16 %v9604, %v9603
    %v9768 = vpack.c.b16 %v9606, %v9605
    %v9769 = vpack.c.b16 %v9608, %v9607
    %v9770 = vpack.c.b16 %v9610, %v9609
    %v9771 = vpack.c.b16 %v9612, %v9611
    %v9772 = vpack.c.b16 %v9614, %v9613
    %v9773 = vpack.c.b16 %v9616, %v9615
    %v9774 = vpack.c.b16 %v9618, %v9617
    %v9775 = vpack.c.b16 %v9620, %v9619
    %v9776 = vpack.c.b16 %v9622, %v9621
    %v9777 = vpack.c.b16 %v9624, %v9623
    %v9778 = vpack.c.b16 %v9626, %v9625
    %v9779 = vpack.c.b16 %v9628, %v9627
    %v9780 = vpack.c.b16 %v9630, %v9629
    %v9781 = vpack.c.b16 %v9632, %v9631
    %v9782 = vpack.c.b16 %v9634, %v9633
    %v9783 = vpack.c.b16 %v9636, %v9635
    %v9784 = vpack.c.b16 %v9638, %v9637
    %v9785 = vpack.c.b16 %v9640, %v9639
    %v9786 = vpack.c.b16 %v9642, %v9641
    %v9787 = vpack.c.b16 %v9644, %v9643
    %v9788 = vpack.c.b16 %v9646, %v9645
    %v9789 = vpack.c.b16 %v9648, %v9647
    %v9790 = vpack.c.b16 %v9650, %v9649
    %v9791 = vpack.c.b16 %v9652, %v9651
    %v9792 = vpack.c.b16 %v9654, %v9653
    %v9793 = vpack.c.b16 %v9656, %v9655
    %v9794 = vpack.c.b16 %v9658, %v9657
    %v9795 = vpack.c.b16 %v9660, %v9659
    %v9796 = vpack.c.b16 %v9662, %v9661
    %v9797 = vpack.c.b16 %v9664, %v9663
    %v9798 = vpack.c.b16 %v9666, %v9665
    %v9799 = vpack.c.b16 %v9668, %v9667
    %v9800 = vpack.c.b16 %v9670, %v9669
    %v9801 = vpack.c.b16 %v9672, %v9671
    %v9802 = vpack.c.b16 %v9674, %v9673
    %v9803 = vpack.c.b16 %v9676, %v9675
    %v9804 = vpack.c.b16 %v9678, %v9677
    %v9805 = vpack.c.b16 %v9680, %v9679
    %v9806 = vpack.c.b16 %v9682, %v9681
    %v9807 = vpack.c.b16 %v9684, %v9683
    %v9808 = vpack.c.b16 %v9686, %v9685
    %v9809 = vpack.c.b16 %v9688, %v9687
    %v9810 = vpack.c.b16 %v9690, %v9689
    %v9811 = vpack.c.b16 %v9692, %v9691
    %v9812 = vpack.c.b16 %v9694, %v9693
    %v9813 = vpack.c.b16 %v9696, %v9695
    %v9814 = vpack.c.b16 %v9698, %v9697
    %v9815 = vpack.c.b16 %v9700, %v9699
    %v9816 = vpack.c.b16 %v9702, %v9701
    %v9817 = vpack.c.b16 %v9704, %v9703
    %v9818 = vpack.c.b16 %v9706, %v9705
    %v9819 = vpack.c.b16 %v9708, %v9707
    %v9820 = vpack.c.b16 %v9710, %v9709
    %v9821 = vpack.c.b16 %v9712, %v9711
    %v9822 = vpack.c.b16 %v9714, %v9713
    %v9823 = vpack.c.b16 %v9716, %v9715
    %v9824 = vpack.c.b16 %v9718, %v9717
    %v9825 = vpack.c.b16 %v9720, %v9719
    %v9826 = vpack.c.b16 %v9722, %v9721
    %v9827 = vpack.c.b16 %v9724, %v9723
    %v9828 = vpack.c.b16 %v9726, %v9725
    %v9829 = vpack.c.b16 %v9728, %v9727
    %v9830 = vpack.c.b16 %v9730, %v9729
    %v9831 = vpack.c.b16 %v9732, %v9731
    %v9832 = vpack.c.b16 %v9734, %v9733
    %v9833 = vpack.c.b16 %v9736, %v9735
    %v9834 = vpack.c.b16 %v9738, %v9737
    %9931 = vmatprep.subr.bf16.mxu0 0
    %9932 = vmatpush1.bf16.msra.mxu0 %v9739
    %9933 = vmatprep.subr.bf16.mxu0 0
    %9934 = vmatpush1.bf16.msra.mxu0 %v9740
    %9935 = vmatprep.subr.bf16.mxu0 0
    %9936 = vmatpush1.bf16.msra.mxu0 %v9741
    %9937 = vmatprep.subr.bf16.mxu0 0
    %9938 = vmatpush1.bf16.msra.mxu0 %v9742
    %9939 = vmatprep.subr.bf16.mxu0 0
    %9940 = vmatpush1.bf16.msra.mxu0 %v9743
    %9941 = vmatprep.subr.bf16.mxu0 0
    %9942 = vmatpush1.bf16.msra.mxu0 %v9744
    %9943 = vmatprep.subr.bf16.mxu0 0
    %9944 = vmatpush1.bf16.msra.mxu0 %v9745
    %9945 = vmatprep.subr.bf16.mxu0 0
    %9946 = vmatpush1.bf16.msra.mxu0 %v9746
    %9947 = vmatprep.subr.bf16.mxu0 0
    %9948 = vmatpush1.bf16.msra.mxu0 %v9747
    %9949 = vmatprep.subr.bf16.mxu0 0
    %9950 = vmatpush1.bf16.msra.mxu0 %v9748
    %9951 = vmatprep.subr.bf16.mxu0 0
    %9952 = vmatpush1.bf16.msra.mxu0 %v9749
    %9953 = vmatprep.subr.bf16.mxu0 0
    %9954 = vmatpush1.bf16.msra.mxu0 %v9750
    %9955 = vmatprep.subr.bf16.mxu0 0
    %9956 = vmatpush1.bf16.msra.mxu0 %v9751
    %9957 = vmatprep.subr.bf16.mxu0 0
    %9958 = vmatpush1.bf16.msra.mxu0 %v9752
    %9959 = vmatprep.subr.bf16.mxu0 0
    %9960 = vmatpush1.bf16.msra.mxu0 %v9753
    %9961 = vmatprep.subr.bf16.mxu0 0
    %9962 = vmatpush1.bf16.msra.mxu0 %v9754
    %9963 = vmatprep.mubr.bf16.mxu0 %v9145
    %9964 = vmatmul.mubr.bf16.gmra.mrb[0].mxu0 %v9144
    %v9965 = vpop.f32.mrb[0].mxu0
    %v9966 = vadd.f32 %v9353, %v9965
    %v9967 = vpop.f32.mrb[0].mxu0
    %v9968 = vpop.f32.mrb[0].mxu0
    %v9969 = vpop.f32.mrb[0].mxu0
    %9970 = vdwg.mxu0
    %9971 = vmatprep.subr.bf16.mxu0 0
    %9972 = vmatpush1.bf16.msra.mxu0 %v9755
    %9973 = vmatprep.subr.bf16.mxu0 0
    %9974 = vmatpush1.bf16.msra.mxu0 %v9756
    %9975 = vmatprep.subr.bf16.mxu0 0
    %9976 = vmatpush1.bf16.msra.mxu0 %v9757
    %9977 = vmatprep.subr.bf16.mxu0 0
    %9978 = vmatpush1.bf16.msra.mxu0 %v9758
    %9979 = vmatprep.subr.bf16.mxu0 0
    %9980 = vmatpush1.bf16.msra.mxu0 %v9759
    %9981 = vmatprep.subr.bf16.mxu0 0
    %9982 = vmatpush1.bf16.msra.mxu0 %v9760
    %9983 = vmatprep.subr.bf16.mxu0 0
    %9984 = vmatpush1.bf16.msra.mxu0 %v9761
    %9985 = vmatprep.subr.bf16.mxu0 0
    %9986 = vmatpush1.bf16.msra.mxu0 %v9762
    %9987 = vmatprep.subr.bf16.mxu0 0
    %9988 = vmatpush1.bf16.msra.mxu0 %v9763
    %9989 = vmatprep.subr.bf16.mxu0 0
    %9990 = vmatpush1.bf16.msra.mxu0 %v9764
    %9991 = vmatprep.subr.bf16.mxu0 0
    %9992 = vmatpush1.bf16.msra.mxu0 %v9765
    %9993 = vmatprep.subr.bf16.mxu0 0
    %9994 = vmatpush1.bf16.msra.mxu0 %v9766
    %9995 = vmatprep.subr.bf16.mxu0 0
    %9996 = vmatpush1.bf16.msra.mxu0 %v9767
    %9997 = vmatprep.subr.bf16.mxu0 0
    %9998 = vmatpush1.bf16.msra.mxu0 %v9768
    %9999 = vmatprep.subr.bf16.mxu0 0
    %10000 = vmatpush1.bf16.msra.mxu0 %v9769
    %10001 = vmatprep.subr.bf16.mxu0 0
    %10002 = vmatpush1.bf16.msra.mxu0 %v9770
    %10003 = vmatprep.mubr.bf16.mxu0 %v9147
    %10004 = vmatmul.mubr.bf16.gmra.mrb[0].mxu0 %v9146
    %v10005 = vpop.f32.mrb[0].mxu0
    %v10006 = vadd.f32 %v9966, %v10005
    %v10007 = vpop.f32.mrb[0].mxu0
    %v10008 = vpop.f32.mrb[0].mxu0
    %v10009 = vpop.f32.mrb[0].mxu0
    %10010 = vdwg.mxu0
    %10011 = vmatprep.subr.bf16.mxu0 0
    %10012 = vmatpush1.bf16.msra.mxu0 %v9771
    %10013 = vmatprep.subr.bf16.mxu0 0
    %10014 = vmatpush1.bf16.msra.mxu0 %v9772
    %10015 = vmatprep.subr.bf16.mxu0 0
    %10016 = vmatpush1.bf16.msra.mxu0 %v9773
    %10017 = vmatprep.subr.bf16.mxu0 0
    %10018 = vmatpush1.bf16.msra.mxu0 %v9774
    %10019 = vmatprep.subr.bf16.mxu0 0
    %10020 = vmatpush1.bf16.msra.mxu0 %v9775
    %10021 = vmatprep.subr.bf16.mxu0 0
    %10022 = vmatpush1.bf16.msra.mxu0 %v9776
    %10023 = vmatprep.subr.bf16.mxu0 0
    %10024 = vmatpush1.bf16.msra.mxu0 %v9777
    %10025 = vmatprep.subr.bf16.mxu0 0
    %10026 = vmatpush1.bf16.msra.mxu0 %v9778
    %10027 = vmatprep.subr.bf16.mxu0 0
    %10028 = vmatpush1.bf16.msra.mxu0 %v9779
    %10029 = vmatprep.subr.bf16.mxu0 0
    %10030 = vmatpush1.bf16.msra.mxu0 %v9780
    %10031 = vmatprep.subr.bf16.mxu0 0
    %10032 = vmatpush1.bf16.msra.mxu0 %v9781
    %10033 = vmatprep.subr.bf16.mxu0 0
    %10034 = vmatpush1.bf16.msra.mxu0 %v9782
    %10035 = vmatprep.subr.bf16.mxu0 0
    %10036 = vmatpush1.bf16.msra.mxu0 %v9783
    %10037 = vmatprep.subr.bf16.mxu0 0
    %10038 = vmatpush1.bf16.msra.mxu0 %v9784
    %10039 = vmatprep.subr.bf16.mxu0 0
    %10040 = vmatpush1.bf16.msra.mxu0 %v9785
    %10041 = vmatprep.subr.bf16.mxu0 0
    %10042 = vmatpush1.bf16.msra.mxu0 %v9786
    %10043 = vmatprep.mubr.bf16.mxu0 %v9149
    %10044 = vmatmul.mubr.bf16.gmra.mrb[0].mxu0 %v9148
    %v10045 = vpop.f32.mrb[0].mxu0
    %v10046 = vadd.f32 %v10006, %v10045
    %v10047 = vpop.f32.mrb[0].mxu0
    %v10048 = vpop.f32.mrb[0].mxu0
    %v10049 = vpop.f32.mrb[0].mxu0
    %10050 = vdwg.mxu0
    %10051 = vmatprep.subr.bf16.mxu0 0
    %10052 = vmatpush1.bf16.msra.mxu0 %v9787
    %10053 = vmatprep.subr.bf16.mxu0 0
    %10054 = vmatpush1.bf16.msra.mxu0 %v9788
    %10055 = vmatprep.subr.bf16.mxu0 0
    %10056 = vmatpush1.bf16.msra.mxu0 %v9789
    %10057 = vmatprep.subr.bf16.mxu0 0
    %10058 = vmatpush1.bf16.msra.mxu0 %v9790
    %10059 = vmatprep.subr.bf16.mxu0 0
    %10060 = vmatpush1.bf16.msra.mxu0 %v9791
    %10061 = vmatprep.subr.bf16.mxu0 0
    %10062 = vmatpush1.bf16.msra.mxu0 %v9792
    %10063 = vmatprep.subr.bf16.mxu0 0
    %10064 = vmatpush1.bf16.msra.mxu0 %v9793
    %10065 = vmatprep.subr.bf16.mxu0 0
    %10066 = vmatpush1.bf16.msra.mxu0 %v9794
    %10067 = vmatprep.subr.bf16.mxu0 0
    %10068 = vmatpush1.bf16.msra.mxu0 %v9795
    %10069 = vmatprep.subr.bf16.mxu0 0
    %10070 = vmatpush1.bf16.msra.mxu0 %v9796
    %10071 = vmatprep.subr.bf16.mxu0 0
    %10072 = vmatpush1.bf16.msra.mxu0 %v9797
    %10073 = vmatprep.subr.bf16.mxu0 0
    %10074 = vmatpush1.bf16.msra.mxu0 %v9798
    %10075 = vmatprep.subr.bf16.mxu0 0
    %10076 = vmatpush1.bf16.msra.mxu0 %v9799
    %10077 = vmatprep.subr.bf16.mxu0 0
    %10078 = vmatpush1.bf16.msra.mxu0 %v9800
    %10079 = vmatprep.subr.bf16.mxu0 0
    %10080 = vmatpush1.bf16.msra.mxu0 %v9801
    %10081 = vmatprep.subr.bf16.mxu0 0
    %10082 = vmatpush1.bf16.msra.mxu0 %v9802
    %10083 = vmatprep.mubr.bf16.mxu0 %v9151
    %10084 = vmatmul.mubr.bf16.gmra.mrb[0].mxu0 %v9150
    %v10085 = vpop.f32.mrb[0].mxu0
    %v10086 = vadd.f32 %v10046, %v10085
    %v10087 = vpop.f32.mrb[0].mxu0
    %v10088 = vpop.f32.mrb[0].mxu0
    %v10089 = vpop.f32.mrb[0].mxu0
    %10090 = vdwg.mxu0
    %10091 = vmatprep.subr.bf16.mxu0 0
    %10092 = vmatpush1.bf16.msra.mxu0 %v9803
    %10093 = vmatprep.subr.bf16.mxu0 0
    %10094 = vmatpush1.bf16.msra.mxu0 %v9804
    %10095 = vmatprep.subr.bf16.mxu0 0
    %10096 = vmatpush1.bf16.msra.mxu0 %v9805
    %10097 = vmatprep.subr.bf16.mxu0 0
    %10098 = vmatpush1.bf16.msra.mxu0 %v9806
    %10099 = vmatprep.subr.bf16.mxu0 0
    %10100 = vmatpush1.bf16.msra.mxu0 %v9807
    %10101 = vmatprep.subr.bf16.mxu0 0
    %10102 = vmatpush1.bf16.msra.mxu0 %v9808
    %10103 = vmatprep.subr.bf16.mxu0 0
    %10104 = vmatpush1.bf16.msra.mxu0 %v9809
    %10105 = vmatprep.subr.bf16.mxu0 0
    %10106 = vmatpush1.bf16.msra.mxu0 %v9810
    %10107 = vmatprep.subr.bf16.mxu0 0
    %10108 = vmatpush1.bf16.msra.mxu0 %v9811
    %10109 = vmatprep.subr.bf16.mxu0 0
    %10110 = vmatpush1.bf16.msra.mxu0 %v9812
    %10111 = vmatprep.subr.bf16.mxu0 0
    %10112 = vmatpush1.bf16.msra.mxu0 %v9813
    %10113 = vmatprep.subr.bf16.mxu0 0
    %10114 = vmatpush1.bf16.msra.mxu0 %v9814
    %10115 = vmatprep.subr.bf16.mxu0 0
    %10116 = vmatpush1.bf16.msra.mxu0 %v9815
    %10117 = vmatprep.subr.bf16.mxu0 0
    %10118 = vmatpush1.bf16.msra.mxu0 %v9816
    %10119 = vmatprep.subr.bf16.mxu0 0
    %10120 = vmatpush1.bf16.msra.mxu0 %v9817
    %10121 = vmatprep.subr.bf16.mxu0 0
    %10122 = vmatpush1.bf16.msra.mxu0 %v9818
    %10123 = vmatprep.mubr.bf16.mxu0 %v9153
    %10124 = vmatmul.mubr.bf16.gmra.mrb[0].mxu0 %v9152
    %v10125 = vpop.f32.mrb[0].mxu0
    %v10126 = vadd.f32 %v10086, %v10125
    %v10127 = vpop.f32.mrb[0].mxu0
    %v10128 = vpop.f32.mrb[0].mxu0
    %v10129 = vpop.f32.mrb[0].mxu0
    %10130 = vdwg.mxu0
    %10131 = vmatprep.subr.bf16.mxu0 0
    %10132 = vmatpush1.bf16.msra.mxu0 %v9819
    %10133 = vmatprep.subr.bf16.mxu0 0
    %10134 = vmatpush1.bf16.msra.mxu0 %v9820
    %10135 = vmatprep.subr.bf16.mxu0 0
    %10136 = vmatpush1.bf16.msra.mxu0 %v9821
    %10137 = vmatprep.subr.bf16.mxu0 0
    %10138 = vmatpush1.bf16.msra.mxu0 %v9822
    %10139 = vmatprep.subr.bf16.mxu0 0
    %10140 = vmatpush1.bf16.msra.mxu0 %v9823
    %10141 = vmatprep.subr.bf16.mxu0 0
    %10142 = vmatpush1.bf16.msra.mxu0 %v9824
    %10143 = vmatprep.subr.bf16.mxu0 0
    %10144 = vmatpush1.bf16.msra.mxu0 %v9825
    %10145 = vmatprep.subr.bf16.mxu0 0
    %10146 = vmatpush1.bf16.msra.mxu0 %v9826
    %10147 = vmatprep.subr.bf16.mxu0 0
    %10148 = vmatpush1.bf16.msra.mxu0 %v9827
    %10149 = vmatprep.subr.bf16.mxu0 0
    %10150 = vmatpush1.bf16.msra.mxu0 %v9828
    %10151 = vmatprep.subr.bf16.mxu0 0
    %10152 = vmatpush1.bf16.msra.mxu0 %v9829
    %10153 = vmatprep.subr.bf16.mxu0 0
    %10154 = vmatpush1.bf16.msra.mxu0 %v9830
    %10155 = vmatprep.subr.bf16.mxu0 0
    %10156 = vmatpush1.bf16.msra.mxu0 %v9831
    %10157 = vmatprep.subr.bf16.mxu0 0
    %10158 = vmatpush1.bf16.msra.mxu0 %v9832
    %10159 = vmatprep.subr.bf16.mxu0 0
    %10160 = vmatpush1.bf16.msra.mxu0 %v9833
    %10161 = vmatprep.subr.bf16.mxu0 0
    %10162 = vmatpush1.bf16.msra.mxu0 %v9834
    %10163 = vmatprep.mubr.bf16.mxu0 %v9155
    %10164 = vmatmul.mubr.bf16.gmra.mrb[0].mxu0 %v9154
    %v10165 = vpop.f32.mrb[0].mxu0
    %v10166 = vadd.f32 %v10126, %v10165
    %v10167 = vpop.f32.mrb[0].mxu0
    %v10168 = vpop.f32.mrb[0].mxu0
    %v10169 = vpop.f32.mrb[0].mxu0
    %10170 = vdwg.mxu0
    %vm10171 = vcmask 58368
    %10172 = vst.msk [vmem:[#allocation23] sm:$0x3] %vm10171, %v10166
    %10174 = vrot.lane.b32.xlu0 %v10166, 120
    %v10175 = vpop.permute.xlu0 %10174
    %10177 = vst.msk [vmem:[#allocation25] sm:$0x3] %vm10171, %v10175
    %v10178 = vld [vmem:[#allocation13] sm:$0x3]
    %v10179 = vmul.f32 %v10166, 0.5
    %v10180 = vmul.f32 %v10179, 1.442695
    %v10181 = vpow.pop %v10180
    %10183 = vrot.lane.b32.xlu0 %v10181, 120
    %v10184 = vpop.permute.xlu0 %10183
    %v10186 = vmul.f32 %v10178, %v10184
    %v10187 = vadd.f32 %v10166, %v10186
    %v10188 = vpack.c.bf16 %v10187, %v10187
    %v10189 = vld [vmem:[#allocation14] sm:$0xf]
    %v10190 = vld [vmem:[#allocation16] sm:$0x1]
    %v10192 = vlaneseq
    %v10193 = vshrl.u32 %v10192, 7
    %v10194 = vsub.s32 0, %v10193
    %v10195 = vrot.slane %v10190, %v10194
    %vm10197 = vcmask 64512
    %v10199 = vsel %vm10197, %v10188, 0
    %vm10201 = vcmask 1043456
    %v10203 = vsel %vm10201, %v10189, 0
    %10205 = vmatprep.subr.bf16.mxu0 0
    %10206 = vmatpush1.bf16.msra.mxu0 %v10203
    %10207 = vmatprep.subr.bf16.mxu0 0
    %10208 = vmatpush1.bf16.msra.mxu0 0
    %10209 = vmatprep.subr.bf16.mxu0 0
    %10210 = vmatpush1.bf16.msra.mxu0 0
    %10211 = vmatprep.subr.bf16.mxu0 0
    %10212 = vmatpush1.bf16.msra.mxu0 0
    %10213 = vmatprep.subr.bf16.mxu0 0
    %10214 = vmatpush1.bf16.msra.mxu0 0
    %10215 = vmatprep.subr.bf16.mxu0 0
    %10216 = vmatpush1.bf16.msra.mxu0 0
    %10217 = vmatprep.subr.bf16.mxu0 0
    %10218 = vmatpush1.bf16.msra.mxu0 0
    %10219 = vmatprep.subr.bf16.mxu0 0
    %10220 = vmatpush1.bf16.msra.mxu0 0
    %10221 = vmatprep.subr.bf16.mxu0 0
    %10222 = vmatpush1.bf16.msra.mxu0 0
    %10223 = vmatprep.subr.bf16.mxu0 0
    %10224 = vmatpush1.bf16.msra.mxu0 0
    %10225 = vmatprep.subr.bf16.mxu0 0
    %10226 = vmatpush1.bf16.msra.mxu0 0
    %10227 = vmatprep.subr.bf16.mxu0 0
    %10228 = vmatpush1.bf16.msra.mxu0 0
    %10229 = vmatprep.subr.bf16.mxu0 0
    %10230 = vmatpush1.bf16.msra.mxu0 0
    %10231 = vmatprep.subr.bf16.mxu0 0
    %10232 = vmatpush1.bf16.msra.mxu0 0
    %10233 = vmatprep.subr.bf16.mxu0 0
    %10234 = vmatpush1.bf16.msra.mxu0 0
    %10235 = vmatprep.subr.bf16.mxu0 0
    %10236 = vmatpush1.bf16.msra.mxu0 0
    %10237 = vmatprep.mubr.bf16.mxu0 0
    %10238 = vmatmul.mubr.bf16.gmra.mrb[0].mxu0 %v10199
    %v10239 = vpop.f32.mrb[0].mxu0
    %v10240 = vadd.f32 %v10195, %v10239
    %v10241 = vpop.f32.mrb[0].mxu0
    %v10242 = vpop.f32.mrb[0].mxu0
    %v10243 = vpop.f32.mrb[0].mxu0
    %10244 = vdwg.mxu0
    %v10245 = vmax.f32 %v10240, 0.0
    %v10246 = vpack.c.bf16 %v10245, %v10245
    %v10247 = vld [vmem:[%s10] sm:$0xf]
    %v10248 = vld [vmem:[%s10 + $0x4] sm:$0xf]
    %v10249 = vld [vmem:[%s10 + $0x8] sm:$0xf]
    %v10250 = vld [vmem:[%s10 + $0xc] sm:$0xf]
    %v10251 = vld [vmem:[%s10 + $0x10] sm:$0xf]
    %v10252 = vld [vmem:[%s10 + $0x14] sm:$0xf]
    %v10253 = vld [vmem:[%s10 + $0x18] sm:$0xf]
    %v10254 = vld [vmem:[%s10 + $0x1c] sm:$0xf]
    %v10255 = vld [vmem:[%s10 + $0x20] sm:$0xf]
    %v10256 = vld [vmem:[%s10 + $0x24] sm:$0xf]
    %v10257 = vld [vmem:[%s10 + $0x28] sm:$0xf]
    %v10258 = vld [vmem:[%s10 + $0x2c] sm:$0xf]
    %v10259 = vld [vmem:[%s10 + $0x30] sm:$0x3]
    %v10260 = vld [vmem:[#allocation17] sm:$0x1]
    %v10262 = vlaneseq
    %v10263 = vshrl.u32 %v10262, 7
    %v10264 = vsub.s32 0, %v10263
    %v10265 = vrot.slane %v10260, %v10264
    %v10280 = vunpack.c.l.b16 %v10247
    %v10281 = vunpack.c.l.b16 %v10248
    %v10282 = vunpack.c.l.b16 %v10249
    %v10283 = vunpack.c.l.b16 %v10250
    %v10284 = vunpack.c.l.b16 %v10251
    %v10285 = vunpack.c.l.b16 %v10252
    %v10286 = vunpack.c.l.b16 %v10253
    %v10287 = vunpack.c.l.b16 %v10254
    %v10288 = vunpack.c.l.b16 %v10255
    %v10289 = vunpack.c.l.b16 %v10256
    %v10290 = vunpack.c.l.b16 %v10257
    %v10291 = vunpack.c.l.b16 %v10258
    %v10292 = vunpack.c.l.b16 %v10259
    %v10293 = vpack.c.b16 %v10281, %v10280
    %v10294 = vpack.c.b16 %v10283, %v10282
    %v10295 = vpack.c.b16 %v10285, %v10284
    %v10296 = vpack.c.b16 %v10287, %v10286
    %v10297 = vpack.c.b16 %v10289, %v10288
    %v10298 = vpack.c.b16 %v10291, %v10290
    %v10299 = vpack.c.b16 %v10292, %v10292
    %vm10306 = vcmask 818176
    %v10308 = vsel %vm10306, %v10246, 0
    %vm10310 = vcmask 1041408
    %v10312 = vsel %vm10310, %v10299, 0
    %10314 = vmatprep.subr.bf16.mxu0 0
    %10315 = vmatpush1.bf16.msra.mxu0 %v10293
    %10316 = vmatprep.subr.bf16.mxu0 0
    %10317 = vmatpush1.bf16.msra.mxu0 %v10294
    %10318 = vmatprep.subr.bf16.mxu0 0
    %10319 = vmatpush1.bf16.msra.mxu0 %v10295
    %10320 = vmatprep.subr.bf16.mxu0 0
    %10321 = vmatpush1.bf16.msra.mxu0 %v10296
    %10322 = vmatprep.subr.bf16.mxu0 0
    %10323 = vmatpush1.bf16.msra.mxu0 %v10297
    %10324 = vmatprep.subr.bf16.mxu0 0
    %10325 = vmatpush1.bf16.msra.mxu0 %v10298
    %10326 = vmatprep.subr.bf16.mxu0 0
    %10327 = vmatpush1.bf16.msra.mxu0 %v10312
    %10328 = vmatprep.subr.bf16.mxu0 0
    %10329 = vmatpush1.bf16.msra.mxu0 0
    %10330 = vmatprep.subr.bf16.mxu0 0
    %10331 = vmatpush1.bf16.msra.mxu0 0
    %10332 = vmatprep.subr.bf16.mxu0 0
    %10333 = vmatpush1.bf16.msra.mxu0 0
    %10334 = vmatprep.subr.bf16.mxu0 0
    %10335 = vmatpush1.bf16.msra.mxu0 0
    %10336 = vmatprep.subr.bf16.mxu0 0
    %10337 = vmatpush1.bf16.msra.mxu0 0
    %10338 = vmatprep.subr.bf16.mxu0 0
    %10339 = vmatpush1.bf16.msra.mxu0 0
    %10340 = vmatprep.subr.bf16.mxu0 0
    %10341 = vmatpush1.bf16.msra.mxu0 0
    %10342 = vmatprep.subr.bf16.mxu0 0
    %10343 = vmatpush1.bf16.msra.mxu0 0
    %10344 = vmatprep.subr.bf16.mxu0 0
    %10345 = vmatpush1.bf16.msra.mxu0 0
    %10346 = vmatprep.mubr.bf16.mxu0 0
    %10347 = vmatmul.mubr.bf16.gmra.mrb[0].mxu0 %v10308
    %v10348 = vpop.f32.mrb[0].mxu0
    %v10349 = vadd.f32 %v10265, %v10348
    %v10350 = vpop.f32.mrb[0].mxu0
    %v10351 = vpop.f32.mrb[0].mxu0
    %v10352 = vpop.f32.mrb[0].mxu0
    %10353 = vdwg.mxu0
    %v10354 = vxor.u32 %v10349, 2147483648
    %v10355 = vmul.f32 %v10354, 1.442695
    %v10356 = vpow.pop %v10355
    %v10357 = vadd.f32 %v10356, 1.0
    %v10358 = vrcp.pop %v10357
    %v10359 = vmul.f32 1.0, %v10358
    %v10360 = vpack.c.bf16 %v10359, %v10359
    %v10361 = vld [vmem:[#allocation19] sm:$0xf]
    %v10362 = vld [vmem:[#allocation20] sm:$0x1]
    %v10364 = vlaneseq
    %v10365 = vshrl.u32 %v10364, 7
    %v10366 = vsub.s32 0, %v10365
    %v10367 = vrot.slane %v10362, %v10366
    %v10370 = vsel %vm10197, %v10360, 0
    %v10373 = vsel %vm10201, %v10361, 0
    %10375 = vmatprep.subr.bf16.mxu0 0
    %10376 = vmatpush1.bf16.msra.mxu0 %v10373
    %10377 = vmatprep.subr.bf16.mxu0 0
    %10378 = vmatpush1.bf16.msra.mxu0 0
    %10379 = vmatprep.subr.bf16.mxu0 0
    %10380 = vmatpush1.bf16.msra.mxu0 0
    %10381 = vmatprep.subr.bf16.mxu0 0
    %10382 = vmatpush1.bf16.msra.mxu0 0
    %10383 = vmatprep.subr.bf16.mxu0 0
    %10384 = vmatpush1.bf16.msra.mxu0 0
    %10385 = vmatprep.subr.bf16.mxu0 0
    %10386 = vmatpush1.bf16.msra.mxu0 0
    %10387 = vmatprep.subr.bf16.mxu0 0
    %10388 = vmatpush1.bf16.msra.mxu0 0
    %10389 = vmatprep.subr.bf16.mxu0 0
    %10390 = vmatpush1.bf16.msra.mxu0 0
    %10391 = vmatprep.subr.bf16.mxu0 0
    %10392 = vmatpush1.bf16.msra.mxu0 0
    %10393 = vmatprep.subr.bf16.mxu0 0
    %10394 = vmatpush1.bf16.msra.mxu0 0
    %10395 = vmatprep.subr.bf16.mxu0 0
    %10396 = vmatpush1.bf16.msra.mxu0 0
    %10397 = vmatprep.subr.bf16.mxu0 0
    %10398 = vmatpush1.bf16.msra.mxu0 0
    %10399 = vmatprep.subr.bf16.mxu0 0
    %10400 = vmatpush1.bf16.msra.mxu0 0
    %10401 = vmatprep.subr.bf16.mxu0 0
    %10402 = vmatpush1.bf16.msra.mxu0 0
    %10403 = vmatprep.subr.bf16.mxu0 0
    %10404 = vmatpush1.bf16.msra.mxu0 0
    %10405 = vmatprep.subr.bf16.mxu0 0
    %10406 = vmatpush1.bf16.msra.mxu0 0
    %10407 = vmatprep.mubr.bf16.mxu0 0
    %10408 = vmatmul.mubr.bf16.gmra.mrb[0].mxu0 %v10370
    %v10409 = vpop.f32.mrb[0].mxu0
    %v10410 = vadd.f32 %v10367, %v10409
    %v10411 = vpop.f32.mrb[0].mxu0
    %v10412 = vpop.f32.mrb[0].mxu0
    %v10413 = vpop.f32.mrb[0].mxu0
    %10414 = vdwg.mxu0
    %10416 = vrot.lane.b32.xlu0 %v10410, 120
    %v10417 = vpop.permute.xlu0 %10416
    %v10419 = vmax.f32 %v10410, %v10417
    %10420 = vrot.lane.b32.xlu0 %v10410, 112
    %v10421 = vpop.permute.xlu0 %10420
    %v10423 = vmax.f32 %v10419, %v10421
    %10424 = vrot.lane.b32.xlu0 %v10410, 104
    %v10425 = vpop.permute.xlu0 %10424
    %v10427 = vmax.f32 %v10423, %v10425
    %v10428 = vsub.f32 %v10410, %v10427
    %v10429 = vmul.f32 %v10428, 1.442695
    %v10430 = vpow.pop %v10429
    %v10431 = vadd.f32 %v10430, 0.0
    %10433 = vrot.lane.b32.xlu0 %v10427, 8
    %v10434 = vpop.permute.xlu0 %10433
    %v10436 = vsub.f32 %v10410, %v10434
    %v10437 = vmul.f32 %v10436, 1.442695
    %v10438 = vpow.pop %v10437
    %10440 = vrot.lane.b32.xlu0 %v10438, 120
    %v10441 = vpop.permute.xlu0 %10440
    %v10443 = vadd.f32 %v10431, %v10441
    %10444 = vrot.lane.b32.xlu0 %v10427, 16
    %v10445 = vpop.permute.xlu0 %10444
    %v10447 = vsub.f32 %v10410, %v10445
    %v10448 = vmul.f32 %v10447, 1.442695
    %v10449 = vpow.pop %v10448
    %10451 = vrot.lane.b32.xlu0 %v10449, 112
    %v10452 = vpop.permute.xlu0 %10451
    %v10454 = vadd.f32 %v10443, %v10452
    %10455 = vrot.lane.b32.xlu0 %v10427, 24
    %v10456 = vpop.permute.xlu0 %10455
    %v10458 = vsub.f32 %v10410, %v10456
    %v10459 = vmul.f32 %v10458, 1.442695
    %v10460 = vpow.pop %v10459
    %10462 = vrot.lane.b32.xlu0 %v10460, 104
    %v10463 = vpop.permute.xlu0 %10462
    %v10465 = vadd.f32 %v10454, %v10463
    %v10466 = vlog2.pop %v10465
    %v10467 = vmul.f32 %v10466, 0.6931472
    %v10468 = vadd.f32 %v10427, %v10467
    %10470 = vrot.lane.b32.xlu0 %v10468, 8
    %v10471 = vpop.permute.xlu0 %10470
    %10473 = vrot.lane.b32.xlu0 %v10468, 16
    %v10474 = vpop.permute.xlu0 %10473
    %10476 = vrot.lane.b32.xlu0 %v10468, 24
    %v10477 = vpop.permute.xlu0 %10476
    %v10479 = vsel %vm10197, %v10468, %v10471
    %vm10480 = vcmask 130048
    %v10481 = vsel %vm10480, %v10479, %v10474
    %vm10482 = vcmask 195584
    %v10483 = vsel %vm10482, %v10481, %v10477
    %v10484 = vsub.f32 %v10410, %v10483
    %vm10485 = vcmask 254976
    %10486 = vst.msk [vmem:[#allocation22] sm:$0x3] %vm10485, %v10484
    // Predicated region
    $region106: #{tpu_custom_call.1} parent=1 // pred_check
      _
    $region107: #{tpu_custom_call.1} parent=1 // pred_check_branch
      %10488 = sbr.rel (0) target = $region109
    $region108: #{tpu_custom_call.1} parent=1 // pred_region
      %s10490 = ssub.s32 32, 32
      %10491 = vsyncadd [#allocation4], %s10490
      %s10493 = sshll.u32 [#allocation22], 4
      %s10494 = int_to_ptr.vmem [resolvable:$true] %s10493
      %10496 = dma.vmem_to_hbm [thread:$0]  %s10494, 32, %s14, [#allocation4]
    $region109: #{tpu_custom_call.1} parent=1 // pred_fallthru
      _
    // Predicated region
    $region110: #{tpu_custom_call.1} parent=1 // pred_check
      _
    $region111: #{tpu_custom_call.1} parent=1 // pred_check_branch
      %10498 = sbr.rel (0) target = $region113
    $region112: #{tpu_custom_call.1} parent=1 // pred_region
      %s10500 = ssub.s32 32, 32
      %10501 = vsyncadd [#allocation24], %s10500
      %s10503 = sshll.u32 [#allocation23], 4
      %s10504 = int_to_ptr.vmem [resolvable:$true] %s10503
      %10506 = dma.vmem_to_hbm [thread:$0]  %s10504, 32, %s15, [#allocation24]
    $region113: #{tpu_custom_call.1} parent=1 // pred_fallthru
      _
    // Predicated region
    $region114: #{tpu_custom_call.1} parent=1 // pred_check
      _
    $region115: #{tpu_custom_call.1} parent=1 // pred_check_branch
      %10508 = sbr.rel (0) target = $region117
    $region116: #{tpu_custom_call.1} parent=1 // pred_region
      %s10510 = ssub.s32 32, 32
      %10511 = vsyncadd [#allocation24], %s10510
      %s10513 = sshll.u32 [#allocation25], 4
      %s10514 = int_to_ptr.vmem [resolvable:$true] %s10513
      %10516 = dma.vmem_to_hbm [thread:$0]  %s10514, 32, %s16, [#allocation24]
    $region117: #{tpu_custom_call.1} parent=1 // pred_fallthru
      _
    // Predicated region
    $region118: #{tpu_custom_call.1} parent=1 // pred_check
      _
    $region119: #{tpu_custom_call.1} parent=1 // pred_check_branch
      %10518 = sbr.rel (0) target = $region121
    $region120: #{tpu_custom_call.1} parent=1 // pred_region
      %10519 = dma.done [#allocation4], 32
    $region121: #{tpu_custom_call.1} parent=1 // pred_fallthru
      _
    // Predicated region
    $region122: #{tpu_custom_call.1} parent=1 // pred_check
      _
    $region123: #{tpu_custom_call.1} parent=1 // pred_check_branch
      %10521 = sbr.rel (0) target = $region125
    $region124: #{tpu_custom_call.1} parent=1 // pred_region
      %10522 = dma.done [#allocation24], 32
    $region125: #{tpu_custom_call.1} parent=1 // pred_fallthru
      _
    // Predicated region
    $region126: #{tpu_custom_call.1} parent=1 // pred_check
      _
    $region127: #{tpu_custom_call.1} parent=1 // pred_check_branch
      %10524 = sbr.rel (0) target = $region129
    $region128: #{tpu_custom_call.1} parent=1 // pred_region
      %10525 = dma.done [#allocation24], 32
    $region129: #{tpu_custom_call.1} parent=1 // pred_fallthru
      _
    %10526 = vsyncpa [#allocation3], 1
    %10527 = vsyncpa [#allocation6], 1
    %10528 = vsyncpa [#allocation9], 1
    %10529 = vsyncpa [#allocation12], 1
    %10530 = vsyncpa [#allocation15], 1
    %10531 = vsyncpa [#allocation18], 1
    %10532 = vsyncpa [#allocation21], 1
    %10533 = vsyncpa [#allocation4], 1
    %10534 = vsyncpa [#allocation24], 1

</llo_original>
